<compile_context>
chip_gen: v7x
topology: tpu7x:2x2x1
jax: 0.10.0
libtpu: 0.0.40
codegen_flags: <defaults>
</compile_context>

<pallas_src>
import jax
import jax.numpy as jnp
from jax.experimental import pallas as pl
from jax.experimental.pallas import tpu as pltpu


# ----------------------------- Pallas kernel ------------------------------ #
def _net25_kernel(x_ref,
                  w1_ref, b1_ref,
                  w2_ref, b2_ref,
                  w3_ref, b3_ref,
                  w4_ref, b4_ref,
                  w5_ref, b5_ref,
                  w6_ref, b6_ref,
                  o_ref):
    def linear(h_bf16, w_ref, b_ref):
        # bf16 x bf16 matmul on the MXU, f32 accumulation, f32 bias add.
        y = jnp.dot(h_bf16, w_ref[...], preferred_element_type=jnp.float32)
        return y + b_ref[...]          # b is (1, out) -> broadcasts over batch

    def linear_relu(h_bf16, w_ref, b_ref):
        # ReLU kept in f32 (v5e has no bf16 VPU); repack to bf16 for next MXU pass.
        return jnp.maximum(linear(h_bf16, w_ref, b_ref), 0.0).astype(jnp.bfloat16)

    h = x_ref[...]                     # already bf16 (cast once on the host)
    # seq1: fc1 -> ReLU -> fc2 -> ReLU -> fc3 -> ReLU -> fc4 -> ReLU
    h = linear_relu(h, w1_ref, b1_ref)
    h = linear_relu(h, w2_ref, b2_ref)
    h = linear_relu(h, w3_ref, b3_ref)
    h = linear_relu(h, w4_ref, b4_ref)
    # seq2: fc5 -> ReLU -> fc6 (no activation after fc6)
    h = linear_relu(h, w5_ref, b5_ref)
    y = linear(h, w6_ref, b6_ref)
    o_ref[...] = y.astype(o_ref.dtype)


# ------------------------------ Host wrapper ------------------------------ #
def net25_forward(x, params, *, batch_tile=512):
    """x: (B, 224) float. params: list of (W_bf16 (in,out), b_f32 (1,out)) pairs."""
    B, F = x.shape

    # Stream activations in bf16 (halves the per-step input DMA; MXU-native).
    x = x.astype(jnp.bfloat16)

    # Batch tile: 512 for big batches (amortizes per-step overhead and the 6
    # chained MXU fill/drains); for tiny batches the tile collapses to the
    # (8-aligned) padded batch so the kernel is a single fused invocation.
    if B >= batch_tile:
        TB = batch_tile
    else:
        TB = max(8, ((B + 7) // 8) * 8)
    B_pad = ((B + TB - 1) // TB) * TB
    if B_pad != B:
        x = jnp.pad(x, ((0, B_pad - B), (0, 0)))
    grid = (B_pad // TB,)

    # TODO(synk): v7x small-batch (grid==1) path runs weight-DMA bound on a
    # single TensorCore; splitting fc2's (1024,1024) weight along N across the
    # two TCs (core_map / 2-step parallel grid over output columns) would
    # roughly halve that latency.  Not implemented here — the batch-parallel
    # grid already covers the large-batch case.

    out_dim = params[-1][0].shape[1]
    flat_args = [x]
    for w, b in params:
        flat_args.append(w)
        flat_args.append(b)

    # Advisory cost estimate so XLA schedules surrounding HLO sensibly.
    flops = 2 * B_pad * sum(int(w.shape[0]) * int(w.shape[1]) for w, _ in params)
    bytes_accessed = (
        x.size * x.dtype.itemsize
        + sum(w.size * w.dtype.itemsize + b.size * b.dtype.itemsize
              for w, b in params)
        + B_pad * out_dim * 4
    )

    def build(single_buffer_weights):
        # Weights/biases: one block == whole array, same block every grid step
        # -> stays VMEM-resident instead of being re-fetched per batch tile.
        # Single-buffering them saves ~3 MiB of VMEM (matters on v7x / 64 MiB).
        wb_kwargs = (
            dict(pipeline_mode=pl.Buffered(1)) if single_buffer_weights else {}
        )
        in_specs = [pl.BlockSpec((TB, F), lambda i: (i, 0))]  # default Buffered(2)
        for w, b in params:
            in_specs.append(pl.BlockSpec(w.shape, lambda i: (0, 0), **wb_kwargs))
            in_specs.append(pl.BlockSpec(b.shape, lambda i: (0, 0), **wb_kwargs))
        return pl.pallas_call(
            _net25_kernel,
            out_shape=jax.ShapeDtypeStruct((B_pad, out_dim), jnp.float32),
            grid=grid,
            in_specs=in_specs,
            # (TB, 2) is lane-sparse but only 2 KiB/step -> accepted (see header).
            out_specs=pl.BlockSpec((TB, out_dim), lambda i: (i, 0)),
            compiler_params=pltpu.CompilerParams(
                dimension_semantics=("parallel",),   # v7x: shard batch across 2 TCs
                vmem_limit_bytes=32 << 20,           # footprint ~12 MiB at TB=512
            ),
            cost_estimate=pl.CostEstimate(
                flops=flops, transcendentals=0, bytes_accessed=bytes_accessed),
        )

    try:
        out = build(single_buffer_weights=True)(*flat_args)
    except Exception:
        # Fallback: previously verified configuration (default double-buffered
        # constant weight blocks) if Buffered(1) is rejected by this JAX build.
        out = build(single_buffer_weights=False)(*flat_args)
    return out[:B]


# --------------------------- Parameter creation ---------------------------- #
def make_params(key):
    """Deterministic init mimicking nn.Linear's U(-1/sqrt(in), 1/sqrt(in)).

    Weights are stored transposed (in_features, out_features) and cast to
    bfloat16 (halves the dominant weight bytes; MXU-native dtype).
    Biases are stored as f32 (1, out_features) for in-kernel broadcast.
    """
    sizes = [(224, 1024), (1024, 1024), (1024, 256), (256, 64), (64, 16), (16, 2)]
    params = []
    for (fan_in, fan_out) in sizes:
        key, kw, kb = jax.random.split(key, 3)
        bound = 1.0 / jnp.sqrt(jnp.float32(fan_in))
        w = jax.random.uniform(kw, (fan_in, fan_out), jnp.float32, -bound, bound)
        b = jax.random.uniform(kb, (1, fan_out), jnp.float32, -bound, bound)
        params.append((w.astype(jnp.bfloat16), b))
    return params


def net25_reference(x, params):
    """Pure-JAX reference using the same bf16 inputs/weights, f32 accumulation."""
    h = x.astype(jnp.bfloat16)
    n = len(params)
    for i, (w, b) in enumerate(params):
        y = jnp.dot(h, w, preferred_element_type=jnp.float32) + b
        if i < n - 1:
            h = jnp.maximum(y, 0.0).astype(jnp.bfloat16)
        else:
            h = y
    return h


# ---------------------------------- main ----------------------------------- #
if __name__ == "__main__":
    key = jax.random.PRNGKey(0)
    key, kx = jax.random.split(key)

    B = 8  # small batch, multiple of 8 sublanes
    x = jax.random.normal(kx, (B, 224), dtype=jnp.float32)
    params = make_params(key)

    out = net25_forward(x, params)
    out = jax.block_until_ready(out)

    ref = net25_reference(x, params)
    assert out.shape == (B, 2), out.shape
    assert jnp.allclose(out, ref, atol=1e-3, rtol=1e-3), "mismatch vs reference"

    print("KERNEL_OK")
</pallas_src>

<mosaic_0001>
module attributes {stable_mosaic.version = 11 : i64} {
  func.func @_net25_kernel(%arg0: i32, %arg1: memref<8x224xbf16, #tpu.memory_space<vmem>>, %arg2: memref<224x1024xbf16, #tpu.memory_space<vmem>>, %arg3: memref<1x1024xf32, #tpu.memory_space<vmem>>, %arg4: memref<1024x1024xbf16, #tpu.memory_space<vmem>>, %arg5: memref<1x1024xf32, #tpu.memory_space<vmem>>, %arg6: memref<1024x256xbf16, #tpu.memory_space<vmem>>, %arg7: memref<1x256xf32, #tpu.memory_space<vmem>>, %arg8: memref<256x64xbf16, #tpu.memory_space<vmem>>, %arg9: memref<1x64xf32, #tpu.memory_space<vmem>>, %arg10: memref<64x16xbf16, #tpu.memory_space<vmem>>, %arg11: memref<1x16xf32, #tpu.memory_space<vmem>>, %arg12: memref<16x2xbf16, #tpu.memory_space<vmem>>, %arg13: memref<1x2xf32, #tpu.memory_space<vmem>>, %arg14: memref<8x2xf32, #tpu.memory_space<vmem>>) attributes {dimension_semantics = [#tpu.dimension_semantics<parallel>], iteration_bounds = array<i64: 1>, scalar_prefetch = 0 : i64, scratch_operands = 0 : i64, tpu.core_type = #tpu.core_type<tc>, window_params = [{transform_indices = @transform_0, window_bounds = array<i64: 8, 224>}, {pipeline_mode = #tpu.pipeline_mode<synchronous>, transform_indices = @transform_1, window_bounds = array<i64: 224, 1024>}, {pipeline_mode = #tpu.pipeline_mode<synchronous>, transform_indices = @transform_2, window_bounds = array<i64: 1, 1024>}, {pipeline_mode = #tpu.pipeline_mode<synchronous>, transform_indices = @transform_3, window_bounds = array<i64: 1024, 1024>}, {pipeline_mode = #tpu.pipeline_mode<synchronous>, transform_indices = @transform_4, window_bounds = array<i64: 1, 1024>}, {pipeline_mode = #tpu.pipeline_mode<synchronous>, transform_indices = @transform_5, window_bounds = array<i64: 1024, 256>}, {pipeline_mode = #tpu.pipeline_mode<synchronous>, transform_indices = @transform_6, window_bounds = array<i64: 1, 256>}, {pipeline_mode = #tpu.pipeline_mode<synchronous>, transform_indices = @transform_7, window_bounds = array<i64: 256, 64>}, {pipeline_mode = #tpu.pipeline_mode<synchronous>, transform_indices = @transform_8, window_bounds = array<i64: 1, 64>}, {pipeline_mode = #tpu.pipeline_mode<synchronous>, transform_indices = @transform_9, window_bounds = array<i64: 64, 16>}, {pipeline_mode = #tpu.pipeline_mode<synchronous>, transform_indices = @transform_10, window_bounds = array<i64: 1, 16>}, {pipeline_mode = #tpu.pipeline_mode<synchronous>, transform_indices = @transform_11, window_bounds = array<i64: 16, 2>}, {pipeline_mode = #tpu.pipeline_mode<synchronous>, transform_indices = @transform_12, window_bounds = array<i64: 1, 2>}, {transform_indices = @transform_13, window_bounds = array<i64: 8, 2>}]} {
    %c0 = arith.constant 0 : index
    %c0_0 = arith.constant 0 : index
    %0 = vector.load %arg1[%c0, %c0_0] : memref<8x224xbf16, #tpu.memory_space<vmem>>, vector<8x224xbf16>
    %c0_1 = arith.constant 0 : index
    %c0_2 = arith.constant 0 : index
    %1 = vector.load %arg2[%c0_1, %c0_2] : memref<224x1024xbf16, #tpu.memory_space<vmem>>, vector<224x1024xbf16>
    %cst = arith.constant dense<0.000000e+00> : vector<8x1024xf32>
    %2 = tpu.matmul %0, %1, %cst {dimension_numbers = #tpu.dot_dimension_numbers<[1], [0], [0], [1], [0, 0, 1, 1], [], []>} : vector<8x224xbf16>, vector<224x1024xbf16>, vector<8x1024xf32> -> vector<8x1024xf32>
    %c0_3 = arith.constant 0 : index
    %c0_4 = arith.constant 0 : index
    %3 = vector.load %arg3[%c0_3, %c0_4] : memref<1x1024xf32, #tpu.memory_space<vmem>>, vector<1x1024xf32>
    %4 = vector.broadcast %3 : vector<1x1024xf32> to vector<8x1024xf32>
    %5 = arith.addf %2, %4 : vector<8x1024xf32>
    %cst_5 = arith.constant 0.000000e+00 : f32
    %6 = vector.broadcast %cst_5 : f32 to vector<8x1024xf32>
    %7 = arith.maximumf %5, %6 : vector<8x1024xf32>
    %8 = arith.truncf %7 : vector<8x1024xf32> to vector<8x1024xbf16>
    %c0_6 = arith.constant 0 : index
    %c0_7 = arith.constant 0 : index
    %9 = vector.load %arg4[%c0_6, %c0_7] : memref<1024x1024xbf16, #tpu.memory_space<vmem>>, vector<1024x1024xbf16>
    %cst_8 = arith.constant dense<0.000000e+00> : vector<8x1024xf32>
    %10 = tpu.matmul %8, %9, %cst_8 {dimension_numbers = #tpu.dot_dimension_numbers<[1], [0], [0], [1], [0, 0, 1, 1], [], []>} : vector<8x1024xbf16>, vector<1024x1024xbf16>, vector<8x1024xf32> -> vector<8x1024xf32>
    %c0_9 = arith.constant 0 : index
    %c0_10 = arith.constant 0 : index
    %11 = vector.load %arg5[%c0_9, %c0_10] : memref<1x1024xf32, #tpu.memory_space<vmem>>, vector<1x1024xf32>
    %12 = vector.broadcast %11 : vector<1x1024xf32> to vector<8x1024xf32>
    %13 = arith.addf %10, %12 : vector<8x1024xf32>
    %cst_11 = arith.constant 0.000000e+00 : f32
    %14 = vector.broadcast %cst_11 : f32 to vector<8x1024xf32>
    %15 = arith.maximumf %13, %14 : vector<8x1024xf32>
    %16 = arith.truncf %15 : vector<8x1024xf32> to vector<8x1024xbf16>
    %c0_12 = arith.constant 0 : index
    %c0_13 = arith.constant 0 : index
    %17 = vector.load %arg6[%c0_12, %c0_13] : memref<1024x256xbf16, #tpu.memory_space<vmem>>, vector<1024x256xbf16>
    %cst_14 = arith.constant dense<0.000000e+00> : vector<8x256xf32>
    %18 = tpu.matmul %16, %17, %cst_14 {dimension_numbers = #tpu.dot_dimension_numbers<[1], [0], [0], [1], [0, 0, 1, 1], [], []>} : vector<8x1024xbf16>, vector<1024x256xbf16>, vector<8x256xf32> -> vector<8x256xf32>
    %c0_15 = arith.constant 0 : index
    %c0_16 = arith.constant 0 : index
    %19 = vector.load %arg7[%c0_15, %c0_16] : memref<1x256xf32, #tpu.memory_space<vmem>>, vector<1x256xf32>
    %20 = vector.broadcast %19 : vector<1x256xf32> to vector<8x256xf32>
    %21 = arith.addf %18, %20 : vector<8x256xf32>
    %cst_17 = arith.constant 0.000000e+00 : f32
    %22 = vector.broadcast %cst_17 : f32 to vector<8x256xf32>
    %23 = arith.maximumf %21, %22 : vector<8x256xf32>
    %24 = arith.truncf %23 : vector<8x256xf32> to vector<8x256xbf16>
    %c0_18 = arith.constant 0 : index
    %c0_19 = arith.constant 0 : index
    %25 = vector.load %arg8[%c0_18, %c0_19] : memref<256x64xbf16, #tpu.memory_space<vmem>>, vector<256x64xbf16>
    %cst_20 = arith.constant dense<0.000000e+00> : vector<8x64xf32>
    %26 = tpu.matmul %24, %25, %cst_20 {dimension_numbers = #tpu.dot_dimension_numbers<[1], [0], [0], [1], [0, 0, 1, 1], [], []>} : vector<8x256xbf16>, vector<256x64xbf16>, vector<8x64xf32> -> vector<8x64xf32>
    %c0_21 = arith.constant 0 : index
    %c0_22 = arith.constant 0 : index
    %27 = vector.load %arg9[%c0_21, %c0_22] : memref<1x64xf32, #tpu.memory_space<vmem>>, vector<1x64xf32>
    %28 = vector.broadcast %27 : vector<1x64xf32> to vector<8x64xf32>
    %29 = arith.addf %26, %28 : vector<8x64xf32>
    %cst_23 = arith.constant 0.000000e+00 : f32
    %30 = vector.broadcast %cst_23 : f32 to vector<8x64xf32>
    %31 = arith.maximumf %29, %30 : vector<8x64xf32>
    %32 = arith.truncf %31 : vector<8x64xf32> to vector<8x64xbf16>
    %c0_24 = arith.constant 0 : index
    %c0_25 = arith.constant 0 : index
    %33 = vector.load %arg10[%c0_24, %c0_25] : memref<64x16xbf16, #tpu.memory_space<vmem>>, vector<64x16xbf16>
    %cst_26 = arith.constant dense<0.000000e+00> : vector<8x16xf32>
    %34 = tpu.matmul %32, %33, %cst_26 {dimension_numbers = #tpu.dot_dimension_numbers<[1], [0], [0], [1], [0, 0, 1, 1], [], []>} : vector<8x64xbf16>, vector<64x16xbf16>, vector<8x16xf32> -> vector<8x16xf32>
    %c0_27 = arith.constant 0 : index
    %c0_28 = arith.constant 0 : index
    %35 = vector.load %arg11[%c0_27, %c0_28] : memref<1x16xf32, #tpu.memory_space<vmem>>, vector<1x16xf32>
    %36 = vector.broadcast %35 : vector<1x16xf32> to vector<8x16xf32>
    %37 = arith.addf %34, %36 : vector<8x16xf32>
    %cst_29 = arith.constant 0.000000e+00 : f32
    %38 = vector.broadcast %cst_29 : f32 to vector<8x16xf32>
    %39 = arith.maximumf %37, %38 : vector<8x16xf32>
    %40 = arith.truncf %39 : vector<8x16xf32> to vector<8x16xbf16>
    %c0_30 = arith.constant 0 : index
    %c0_31 = arith.constant 0 : index
    %41 = vector.load %arg12[%c0_30, %c0_31] : memref<16x2xbf16, #tpu.memory_space<vmem>>, vector<16x2xbf16>
    %cst_32 = arith.constant dense<0.000000e+00> : vector<8x2xf32>
    %42 = tpu.matmul %40, %41, %cst_32 {dimension_numbers = #tpu.dot_dimension_numbers<[1], [0], [0], [1], [0, 0, 1, 1], [], []>} : vector<8x16xbf16>, vector<16x2xbf16>, vector<8x2xf32> -> vector<8x2xf32>
    %c0_33 = arith.constant 0 : index
    %c0_34 = arith.constant 0 : index
    %43 = vector.load %arg13[%c0_33, %c0_34] : memref<1x2xf32, #tpu.memory_space<vmem>>, vector<1x2xf32>
    %44 = vector.broadcast %43 : vector<1x2xf32> to vector<8x2xf32>
    %45 = arith.addf %42, %44 : vector<8x2xf32>
    %c0_35 = arith.constant 0 : index
    %c0_36 = arith.constant 0 : index
    %46 = vector.load %arg14[%c0_35, %c0_36] : memref<8x2xf32, #tpu.memory_space<vmem>>, vector<8x2xf32>
    tpu.vector_store %arg14[%c0_35, %c0_36], %45 {strides = array<i32>} : memref<8x2xf32, #tpu.memory_space<vmem>>, vector<8x2xf32>,
    return
  }
  func.func @transform_0(%arg0: i32) -> (i32, i32) {
    %c0_i32 = arith.constant 0 : i32
    %c0_i32_0 = arith.constant 0 : i32
    return %arg0, %c0_i32 : i32, i32
  }
  func.func @transform_1(%arg0: i32) -> (i32, i32) {
    %c0_i32 = arith.constant 0 : i32
    %c0_i32_0 = arith.constant 0 : i32
    %c0_i32_1 = arith.constant 0 : i32
    return %c0_i32, %c0_i32_0 : i32, i32
  }
  func.func @transform_2(%arg0: i32) -> (i32, i32) {
    %c0_i32 = arith.constant 0 : i32
    %c0_i32_0 = arith.constant 0 : i32
    %c0_i32_1 = arith.constant 0 : i32
    return %c0_i32, %c0_i32_0 : i32, i32
  }
  func.func @transform_3(%arg0: i32) -> (i32, i32) {
    %c0_i32 = arith.constant 0 : i32
    %c0_i32_0 = arith.constant 0 : i32
    %c0_i32_1 = arith.constant 0 : i32
    return %c0_i32, %c0_i32_0 : i32, i32
  }
  func.func @transform_4(%arg0: i32) -> (i32, i32) {
    %c0_i32 = arith.constant 0 : i32
    %c0_i32_0 = arith.constant 0 : i32
    %c0_i32_1 = arith.constant 0 : i32
    return %c0_i32, %c0_i32_0 : i32, i32
  }
  func.func @transform_5(%arg0: i32) -> (i32, i32) {
    %c0_i32 = arith.constant 0 : i32
    %c0_i32_0 = arith.constant 0 : i32
    %c0_i32_1 = arith.constant 0 : i32
    return %c0_i32, %c0_i32_0 : i32, i32
  }
  func.func @transform_6(%arg0: i32) -> (i32, i32) {
    %c0_i32 = arith.constant 0 : i32
    %c0_i32_0 = arith.constant 0 : i32
    %c0_i32_1 = arith.constant 0 : i32
    return %c0_i32, %c0_i32_0 : i32, i32
  }
  func.func @transform_7(%arg0: i32) -> (i32, i32) {
    %c0_i32 = arith.constant 0 : i32
    %c0_i32_0 = arith.constant 0 : i32
    %c0_i32_1 = arith.constant 0 : i32
    return %c0_i32, %c0_i32_0 : i32, i32
  }
  func.func @transform_8(%arg0: i32) -> (i32, i32) {
    %c0_i32 = arith.constant 0 : i32
    %c0_i32_0 = arith.constant 0 : i32
    %c0_i32_1 = arith.constant 0 : i32
    return %c0_i32, %c0_i32_0 : i32, i32
  }
  func.func @transform_9(%arg0: i32) -> (i32, i32) {
    %c0_i32 = arith.constant 0 : i32
    %c0_i32_0 = arith.constant 0 : i32
    %c0_i32_1 = arith.constant 0 : i32
    return %c0_i32, %c0_i32_0 : i32, i32
  }
  func.func @transform_10(%arg0: i32) -> (i32, i32) {
    %c0_i32 = arith.constant 0 : i32
    %c0_i32_0 = arith.constant 0 : i32
    %c0_i32_1 = arith.constant 0 : i32
    return %c0_i32, %c0_i32_0 : i32, i32
  }
  func.func @transform_11(%arg0: i32) -> (i32, i32) {
    %c0_i32 = arith.constant 0 : i32
    %c0_i32_0 = arith.constant 0 : i32
    %c0_i32_1 = arith.constant 0 : i32
    return %c0_i32, %c0_i32_0 : i32, i32
  }
  func.func @transform_12(%arg0: i32) -> (i32, i32) {
    %c0_i32 = arith.constant 0 : i32
    %c0_i32_0 = arith.constant 0 : i32
    %c0_i32_1 = arith.constant 0 : i32
    return %c0_i32, %c0_i32_0 : i32, i32
  }
  func.func @transform_13(%arg0: i32) -> (i32, i32) {
    %c0_i32 = arith.constant 0 : i32
    %c0_i32_0 = arith.constant 0 : i32
    return %arg0, %c0_i32 : i32, i32
  }
}

module attributes {stable_mosaic.version = 11 : i64} {
  func.func @_net25_kernel(%arg0: i32, %arg1: memref<8x224xbf16, #tpu.memory_space<vmem>>, %arg2: memref<224x1024xbf16, #tpu.memory_space<vmem>>, %arg3: memref<1x1024xf32, #tpu.memory_space<vmem>>, %arg4: memref<1024x1024xbf16, #tpu.memory_space<vmem>>, %arg5: memref<1x1024xf32, #tpu.memory_space<vmem>>, %arg6: memref<1024x256xbf16, #tpu.memory_space<vmem>>, %arg7: memref<1x256xf32, #tpu.memory_space<vmem>>, %arg8: memref<256x64xbf16, #tpu.memory_space<vmem>>, %arg9: memref<1x64xf32, #tpu.memory_space<vmem>>, %arg10: memref<64x16xbf16, #tpu.memory_space<vmem>>, %arg11: memref<1x16xf32, #tpu.memory_space<vmem>>, %arg12: memref<16x2xbf16, #tpu.memory_space<vmem>>, %arg13: memref<1x2xf32, #tpu.memory_space<vmem>>, %arg14: memref<8x2xf32, #tpu.memory_space<vmem>>) attributes {dimension_semantics = [#tpu.dimension_semantics<parallel>], iteration_bounds = array<i64: 1>, scalar_prefetch = 0 : i64, scratch_operands = 0 : i64, tpu.core_type = #tpu.core_type<tc>, window_params = [{transform_indices = @transform_0, window_bounds = array<i64: 8, 224>}, {pipeline_mode = #tpu.pipeline_mode<synchronous>, transform_indices = @transform_1, window_bounds = array<i64: 224, 1024>}, {pipeline_mode = #tpu.pipeline_mode<synchronous>, transform_indices = @transform_2, window_bounds = array<i64: 1, 1024>}, {pipeline_mode = #tpu.pipeline_mode<synchronous>, transform_indices = @transform_3, window_bounds = array<i64: 1024, 1024>}, {pipeline_mode = #tpu.pipeline_mode<synchronous>, transform_indices = @transform_4, window_bounds = array<i64: 1, 1024>}, {pipeline_mode = #tpu.pipeline_mode<synchronous>, transform_indices = @transform_5, window_bounds = array<i64: 1024, 256>}, {pipeline_mode = #tpu.pipeline_mode<synchronous>, transform_indices = @transform_6, window_bounds = array<i64: 1, 256>}, {pipeline_mode = #tpu.pipeline_mode<synchronous>, transform_indices = @transform_7, window_bounds = array<i64: 256, 64>}, {pipeline_mode = #tpu.pipeline_mode<synchronous>, transform_indices = @transform_8, window_bounds = array<i64: 1, 64>}, {pipeline_mode = #tpu.pipeline_mode<synchronous>, transform_indices = @transform_9, window_bounds = array<i64: 64, 16>}, {pipeline_mode = #tpu.pipeline_mode<synchronous>, transform_indices = @transform_10, window_bounds = array<i64: 1, 16>}, {pipeline_mode = #tpu.pipeline_mode<synchronous>, transform_indices = @transform_11, window_bounds = array<i64: 16, 2>}, {pipeline_mode = #tpu.pipeline_mode<synchronous>, transform_indices = @transform_12, window_bounds = array<i64: 1, 2>}, {transform_indices = @transform_13, window_bounds = array<i64: 8, 2>}]} {
    %c0 = arith.constant 0 : index
    %c0_0 = arith.constant 0 : index
    %0 = vector.load %arg1[%c0, %c0_0] : memref<8x224xbf16, #tpu.memory_space<vmem>>, vector<8x224xbf16>
    %c0_1 = arith.constant 0 : index
    %c0_2 = arith.constant 0 : index
    %1 = vector.load %arg2[%c0_1, %c0_2] : memref<224x1024xbf16, #tpu.memory_space<vmem>>, vector<224x1024xbf16>
    %cst = arith.constant dense<0.000000e+00> : vector<8x1024xf32>
    %2 = tpu.matmul %0, %1, %cst {dimension_numbers = #tpu.dot_dimension_numbers<[1], [0], [0], [1], [0, 0, 1, 1], [], []>} : vector<8x224xbf16>, vector<224x1024xbf16>, vector<8x1024xf32> -> vector<8x1024xf32>
    %c0_3 = arith.constant 0 : index
    %c0_4 = arith.constant 0 : index
    %3 = vector.load %arg3[%c0_3, %c0_4] : memref<1x1024xf32, #tpu.memory_space<vmem>>, vector<1x1024xf32>
    %4 = vector.broadcast %3 : vector<1x1024xf32> to vector<8x1024xf32>
    %5 = arith.addf %2, %4 : vector<8x1024xf32>
    %cst_5 = arith.constant 0.000000e+00 : f32
    %6 = vector.broadcast %cst_5 : f32 to vector<8x1024xf32>
    %7 = arith.maximumf %5, %6 : vector<8x1024xf32>
    %8 = arith.truncf %7 : vector<8x1024xf32> to vector<8x1024xbf16>
    %c0_6 = arith.constant 0 : index
    %c0_7 = arith.constant 0 : index
    %9 = vector.load %arg4[%c0_6, %c0_7] : memref<1024x1024xbf16, #tpu.memory_space<vmem>>, vector<1024x1024xbf16>
    %cst_8 = arith.constant dense<0.000000e+00> : vector<8x1024xf32>
    %10 = tpu.matmul %8, %9, %cst_8 {dimension_numbers = #tpu.dot_dimension_numbers<[1], [0], [0], [1], [0, 0, 1, 1], [], []>} : vector<8x1024xbf16>, vector<1024x1024xbf16>, vector<8x1024xf32> -> vector<8x1024xf32>
    %c0_9 = arith.constant 0 : index
    %c0_10 = arith.constant 0 : index
    %11 = vector.load %arg5[%c0_9, %c0_10] : memref<1x1024xf32, #tpu.memory_space<vmem>>, vector<1x1024xf32>
    %12 = vector.broadcast %11 : vector<1x1024xf32> to vector<8x1024xf32>
    %13 = arith.addf %10, %12 : vector<8x1024xf32>
    %cst_11 = arith.constant 0.000000e+00 : f32
    %14 = vector.broadcast %cst_11 : f32 to vector<8x1024xf32>
    %15 = arith.maximumf %13, %14 : vector<8x1024xf32>
    %16 = arith.truncf %15 : vector<8x1024xf32> to vector<8x1024xbf16>
    %c0_12 = arith.constant 0 : index
    %c0_13 = arith.constant 0 : index
    %17 = vector.load %arg6[%c0_12, %c0_13] : memref<1024x256xbf16, #tpu.memory_space<vmem>>, vector<1024x256xbf16>
    %cst_14 = arith.constant dense<0.000000e+00> : vector<8x256xf32>
    %18 = tpu.matmul %16, %17, %cst_14 {dimension_numbers = #tpu.dot_dimension_numbers<[1], [0], [0], [1], [0, 0, 1, 1], [], []>} : vector<8x1024xbf16>, vector<1024x256xbf16>, vector<8x256xf32> -> vector<8x256xf32>
    %c0_15 = arith.constant 0 : index
    %c0_16 = arith.constant 0 : index
    %19 = vector.load %arg7[%c0_15, %c0_16] : memref<1x256xf32, #tpu.memory_space<vmem>>, vector<1x256xf32>
    %20 = vector.broadcast %19 : vector<1x256xf32> to vector<8x256xf32>
    %21 = arith.addf %18, %20 : vector<8x256xf32>
    %cst_17 = arith.constant 0.000000e+00 : f32
    %22 = vector.broadcast %cst_17 : f32 to vector<8x256xf32>
    %23 = arith.maximumf %21, %22 : vector<8x256xf32>
    %24 = arith.truncf %23 : vector<8x256xf32> to vector<8x256xbf16>
    %c0_18 = arith.constant 0 : index
    %c0_19 = arith.constant 0 : index
    %25 = vector.load %arg8[%c0_18, %c0_19] : memref<256x64xbf16, #tpu.memory_space<vmem>>, vector<256x64xbf16>
    %cst_20 = arith.constant dense<0.000000e+00> : vector<8x64xf32>
    %26 = tpu.matmul %24, %25, %cst_20 {dimension_numbers = #tpu.dot_dimension_numbers<[1], [0], [0], [1], [0, 0, 1, 1], [], []>} : vector<8x256xbf16>, vector<256x64xbf16>, vector<8x64xf32> -> vector<8x64xf32>
    %c0_21 = arith.constant 0 : index
    %c0_22 = arith.constant 0 : index
    %27 = vector.load %arg9[%c0_21, %c0_22] : memref<1x64xf32, #tpu.memory_space<vmem>>, vector<1x64xf32>
    %28 = vector.broadcast %27 : vector<1x64xf32> to vector<8x64xf32>
    %29 = arith.addf %26, %28 : vector<8x64xf32>
    %cst_23 = arith.constant 0.000000e+00 : f32
    %30 = vector.broadcast %cst_23 : f32 to vector<8x64xf32>
    %31 = arith.maximumf %29, %30 : vector<8x64xf32>
    %32 = arith.truncf %31 : vector<8x64xf32> to vector<8x64xbf16>
    %c0_24 = arith.constant 0 : index
    %c0_25 = arith.constant 0 : index
    %33 = vector.load %arg10[%c0_24, %c0_25] : memref<64x16xbf16, #tpu.memory_space<vmem>>, vector<64x16xbf16>
    %cst_26 = arith.constant dense<0.000000e+00> : vector<8x16xf32>
    %34 = tpu.matmul %32, %33, %cst_26 {dimension_numbers = #tpu.dot_dimension_numbers<[1], [0], [0], [1], [0, 0, 1, 1], [], []>} : vector<8x64xbf16>, vector<64x16xbf16>, vector<8x16xf32> -> vector<8x16xf32>
    %c0_27 = arith.constant 0 : index
    %c0_28 = arith.constant 0 : index
    %35 = vector.load %arg11[%c0_27, %c0_28] : memref<1x16xf32, #tpu.memory_space<vmem>>, vector<1x16xf32>
    %36 = vector.broadcast %35 : vector<1x16xf32> to vector<8x16xf32>
    %37 = arith.addf %34, %36 : vector<8x16xf32>
    %cst_29 = arith.constant 0.000000e+00 : f32
    %38 = vector.broadcast %cst_29 : f32 to vector<8x16xf32>
    %39 = arith.maximumf %37, %38 : vector<8x16xf32>
    %40 = arith.truncf %39 : vector<8x16xf32> to vector<8x16xbf16>
    %c0_30 = arith.constant 0 : index
    %c0_31 = arith.constant 0 : index
    %41 = vector.load %arg12[%c0_30, %c0_31] : memref<16x2xbf16, #tpu.memory_space<vmem>>, vector<16x2xbf16>
    %cst_32 = arith.constant dense<0.000000e+00> : vector<8x2xf32>
    %42 = tpu.matmul %40, %41, %cst_32 {dimension_numbers = #tpu.dot_dimension_numbers<[1], [0], [0], [1], [0, 0, 1, 1], [], []>} : vector<8x16xbf16>, vector<16x2xbf16>, vector<8x2xf32> -> vector<8x2xf32>
    %c0_33 = arith.constant 0 : index
    %c0_34 = arith.constant 0 : index
    %43 = vector.load %arg13[%c0_33, %c0_34] : memref<1x2xf32, #tpu.memory_space<vmem>>, vector<1x2xf32>
    %44 = vector.broadcast %43 : vector<1x2xf32> to vector<8x2xf32>
    %45 = arith.addf %42, %44 : vector<8x2xf32>
    %c0_35 = arith.constant 0 : index
    %c0_36 = arith.constant 0 : index
    %46 = vector.load %arg14[%c0_35, %c0_36] : memref<8x2xf32, #tpu.memory_space<vmem>>, vector<8x2xf32>
    tpu.vector_store %arg14[%c0_35, %c0_36], %45 {strides = array<i32>} : memref<8x2xf32, #tpu.memory_space<vmem>>, vector<8x2xf32>,
    return
  }
  func.func @transform_0(%arg0: i32) -> (i32, i32) {
    %c0_i32 = arith.constant 0 : i32
    %c0_i32_0 = arith.constant 0 : i32
    return %arg0, %c0_i32 : i32, i32
  }
  func.func @transform_1(%arg0: i32) -> (i32, i32) {
    %c0_i32 = arith.constant 0 : i32
    %c0_i32_0 = arith.constant 0 : i32
    %c0_i32_1 = arith.constant 0 : i32
    return %c0_i32, %c0_i32_0 : i32, i32
  }
  func.func @transform_2(%arg0: i32) -> (i32, i32) {
    %c0_i32 = arith.constant 0 : i32
    %c0_i32_0 = arith.constant 0 : i32
    %c0_i32_1 = arith.constant 0 : i32
    return %c0_i32, %c0_i32_0 : i32, i32
  }
  func.func @transform_3(%arg0: i32) -> (i32, i32) {
    %c0_i32 = arith.constant 0 : i32
    %c0_i32_0 = arith.constant 0 : i32
    %c0_i32_1 = arith.constant 0 : i32
    return %c0_i32, %c0_i32_0 : i32, i32
  }
  func.func @transform_4(%arg0: i32) -> (i32, i32) {
    %c0_i32 = arith.constant 0 : i32
    %c0_i32_0 = arith.constant 0 : i32
    %c0_i32_1 = arith.constant 0 : i32
    return %c0_i32, %c0_i32_0 : i32, i32
  }
  func.func @transform_5(%arg0: i32) -> (i32, i32) {
    %c0_i32 = arith.constant 0 : i32
    %c0_i32_0 = arith.constant 0 : i32
    %c0_i32_1 = arith.constant 0 : i32
    return %c0_i32, %c0_i32_0 : i32, i32
  }
  func.func @transform_6(%arg0: i32) -> (i32, i32) {
    %c0_i32 = arith.constant 0 : i32
    %c0_i32_0 = arith.constant 0 : i32
    %c0_i32_1 = arith.constant 0 : i32
    return %c0_i32, %c0_i32_0 : i32, i32
  }
  func.func @transform_7(%arg0: i32) -> (i32, i32) {
    %c0_i32 = arith.constant 0 : i32
    %c0_i32_0 = arith.constant 0 : i32
    %c0_i32_1 = arith.constant 0 : i32
    return %c0_i32, %c0_i32_0 : i32, i32
  }
  func.func @transform_8(%arg0: i32) -> (i32, i32) {
    %c0_i32 = arith.constant 0 : i32
    %c0_i32_0 = arith.constant 0 : i32
    %c0_i32_1 = arith.constant 0 : i32
    return %c0_i32, %c0_i32_0 : i32, i32
  }
  func.func @transform_9(%arg0: i32) -> (i32, i32) {
    %c0_i32 = arith.constant 0 : i32
    %c0_i32_0 = arith.constant 0 : i32
    %c0_i32_1 = arith.constant 0 : i32
    return %c0_i32, %c0_i32_0 : i32, i32
  }
  func.func @transform_10(%arg0: i32) -> (i32, i32) {
    %c0_i32 = arith.constant 0 : i32
    %c0_i32_0 = arith.constant 0 : i32
    %c0_i32_1 = arith.constant 0 : i32
    return %c0_i32, %c0_i32_0 : i32, i32
  }
  func.func @transform_11(%arg0: i32) -> (i32, i32) {
    %c0_i32 = arith.constant 0 : i32
    %c0_i32_0 = arith.constant 0 : i32
    %c0_i32_1 = arith.constant 0 : i32
    return %c0_i32, %c0_i32_0 : i32, i32
  }
  func.func @transform_12(%arg0: i32) -> (i32, i32) {
    %c0_i32 = arith.constant 0 : i32
    %c0_i32_0 = arith.constant 0 : i32
    %c0_i32_1 = arith.constant 0 : i32
    return %c0_i32, %c0_i32_0 : i32, i32
  }
  func.func @transform_13(%arg0: i32) -> (i32, i32) {
    %c0_i32 = arith.constant 0 : i32
    %c0_i32_0 = arith.constant 0 : i32
    return %arg0, %c0_i32 : i32, i32
  }
}

</mosaic_0001>

<llo_original>
// kernel: tpu_custom_call.1
$region0: #{tpu_custom_call.1}
  #allocation0 [shape = 'u32[]', space=smem, size = 0x4, offset = 0x4, fixed_abs, tag = 'smem constant byte address 0x4 - core index']
  #allocation1 [shape = 'u32[144,128]{1,0:T(1,128)}', space=vmem, size = 0x12000, scoped, tag = 'internal scratch']
  %s0 = inlined_call_operand.hbm [shape: bf16[8,224], index: 0, kind: input, shape index: {}]
  %s1 = inlined_call_operand.hbm [shape: bf16[224,1024], index: 1, kind: input, shape index: {}]
  %s2 = inlined_call_operand.hbm [shape: f32[1,1024], index: 2, kind: input, shape index: {}]
  %s3 = inlined_call_operand.hbm [shape: bf16[1024,1024], index: 3, kind: input, shape index: {}]
  %s4 = inlined_call_operand.hbm [shape: f32[1,1024], index: 4, kind: input, shape index: {}]
  %s5 = inlined_call_operand.hbm [shape: bf16[1024,256], index: 5, kind: input, shape index: {}]
  %s6 = inlined_call_operand.hbm [shape: f32[1,256], index: 6, kind: input, shape index: {}]
  %s7 = inlined_call_operand.vmem [shape: bf16[256,64], index: 7, kind: input, shape index: {}]
  %s8 = inlined_call_operand.hbm [shape: f32[1,64], index: 8, kind: input, shape index: {}]
  %s9 = inlined_call_operand.vmem [shape: bf16[64,16], index: 9, kind: input, shape index: {}]
  %s10 = inlined_call_operand.hbm [shape: f32[1,16], index: 10, kind: input, shape index: {}]
  %s11 = inlined_call_operand.vmem [shape: bf16[16,2], index: 11, kind: input, shape index: {}]
  %s12 = inlined_call_operand.hbm [shape: f32[1,2], index: 12, kind: input, shape index: {}]
  %s13 = inlined_call_operand.vmem [shape: f32[8,2], index: 13, kind: output, shape index: {}]
  %s14 = sld [smem:[#allocation0]]
  $region102: #{tpu_custom_call.1} parent=0
    _
  %s16 = ssub.s32 1, %s14
  %s17 = scalar_select 0, %s16, %s14
  $region1: #{tpu_custom_call.1} parent=0
    #allocation2 [shape = 'u8[4096]{0}', space=vmem, size = 0x1000, scoped, tag = 'input window, operand 0, single buffered']
    #allocation3 [shape = 's32[1]{0}', space=sflag, size = 0x4, scoped, tag = 'scoped memory for tpu_custom_call.1']
    #allocation4 [shape = 'u8[458752]{0}', space=vmem, size = 0x70000, scoped, tag = 'input window, operand 1, single buffered']
    #allocation5 [shape = 's32[1]{0}', space=sflag, size = 0x4, scoped, tag = 'scoped memory for tpu_custom_call.1']
    #allocation6 [shape = 'u8[4096]{0}', space=vmem, size = 0x1000, scoped, tag = 'input window, operand 2, single buffered']
    #allocation7 [shape = 'u8[2097152]{0}', space=vmem, size = 0x200000, scoped, tag = 'input window, operand 3, single buffered']
    #allocation8 [shape = 's32[1]{0}', space=sflag, size = 0x4, scoped, tag = 'scoped memory for tpu_custom_call.1']
    #allocation9 [shape = 'u8[4096]{0}', space=vmem, size = 0x1000, scoped, tag = 'input window, operand 4, single buffered']
    #allocation10 [shape = 'u8[524288]{0}', space=vmem, size = 0x80000, scoped, tag = 'input window, operand 5, single buffered']
    #allocation11 [shape = 's32[1]{0}', space=sflag, size = 0x4, scoped, tag = 'scoped memory for tpu_custom_call.1']
    #allocation12 [shape = 'u8[1024]{0}', space=vmem, size = 0x400, scoped, tag = 'input window, operand 6, single buffered']
    #allocation13 [shape = 'u8[512]{0}', space=vmem, size = 0x400, scoped, tag = 'input window, operand 8, single buffered']
    #allocation14 [shape = 's32[1]{0}', space=sflag, size = 0x4, scoped, tag = 'scoped memory for tpu_custom_call.1']
    #allocation15 [shape = 'u8[512]{0}', space=vmem, size = 0x400, scoped, tag = 'input window, operand 10, single buffered']
    #allocation16 [shape = 'u8[512]{0}', space=vmem, size = 0x400, scoped, tag = 'input window, operand 12, single buffered']
    #allocation17 [shape = 's32[1]{0}', space=sflag, size = 0x4, scoped, tag = 'scoped memory for tpu_custom_call.1']
    %18 = vsyncpa [#allocation3], 0
    %19 = vsyncpa [#allocation5], 0
    %20 = vsyncpa [#allocation8], 0
    %21 = vsyncpa [#allocation11], 0
    %22 = vsyncpa [#allocation14], 0
    %23 = vsyncpa [#allocation17], 0
    // Predicated region
    $region2: #{tpu_custom_call.1} parent=1 // pred_check
      _
    $region3: #{tpu_custom_call.1} parent=1 // pred_check_branch
      %25 = sbr.rel (0) target = $region5
    $region4: #{tpu_custom_call.1} parent=1 // pred_region
      %s27 = ssub.s32 128, 128
      %28 = vsyncadd [#allocation3], %s27
      %s30 = sshll.u32 [#allocation2], 4
      %s31 = int_to_ptr.vmem [resolvable:$true] %s30
      %33 = dma.hbm_to_vmem [thread:$0]  %s0, 128, %s31, [#allocation3]
    $region5: #{tpu_custom_call.1} parent=1 // pred_fallthru
      _
    // Predicated region
    $region6: #{tpu_custom_call.1} parent=1 // pred_check
      _
    $region7: #{tpu_custom_call.1} parent=1 // pred_check_branch
      %35 = sbr.rel (0) target = $region9
    $region8: #{tpu_custom_call.1} parent=1 // pred_region
      %s37 = ssub.s32 14336, 14336
      %38 = vsyncadd [#allocation5], %s37
      %s39 = sshll.u32 [#allocation4], 4
      %s40 = int_to_ptr.vmem [resolvable:$true] %s39
      %45 = dma.hbm_to_vmem [thread:$0]  %s1, 14336, %s40, [#allocation5], 512, 512, 32
    $region9: #{tpu_custom_call.1} parent=1 // pred_fallthru
      _
    // Predicated region
    $region10: #{tpu_custom_call.1} parent=1 // pred_check
      _
    $region11: #{tpu_custom_call.1} parent=1 // pred_check_branch
      %47 = sbr.rel (0) target = $region13
    $region12: #{tpu_custom_call.1} parent=1 // pred_region
      %s49 = ssub.s32 128, 128
      %50 = vsyncadd [#allocation5], %s49
      %s52 = sshll.u32 [#allocation6], 4
      %s53 = int_to_ptr.vmem [resolvable:$true] %s52
      %55 = dma.hbm_to_vmem [thread:$0]  %s2, 128, %s53, [#allocation5]
    $region13: #{tpu_custom_call.1} parent=1 // pred_fallthru
      _
    // Predicated region
    $region14: #{tpu_custom_call.1} parent=1 // pred_check
      _
    $region15: #{tpu_custom_call.1} parent=1 // pred_check_branch
      %57 = sbr.rel (0) target = $region17
    $region16: #{tpu_custom_call.1} parent=1 // pred_region
      %s59 = ssub.s32 65536, 65536
      %60 = vsyncadd [#allocation8], %s59
      %s61 = sshll.u32 [#allocation7], 4
      %s62 = int_to_ptr.vmem [resolvable:$true] %s61
      %67 = dma.hbm_to_vmem [thread:$0]  %s3, 65536, %s62, [#allocation8], 512, 512, 32
    $region17: #{tpu_custom_call.1} parent=1 // pred_fallthru
      _
    // Predicated region
    $region18: #{tpu_custom_call.1} parent=1 // pred_check
      _
    $region19: #{tpu_custom_call.1} parent=1 // pred_check_branch
      %69 = sbr.rel (0) target = $region21
    $region20: #{tpu_custom_call.1} parent=1 // pred_region
      %s71 = ssub.s32 128, 128
      %72 = vsyncadd [#allocation8], %s71
      %s74 = sshll.u32 [#allocation9], 4
      %s75 = int_to_ptr.vmem [resolvable:$true] %s74
      %77 = dma.hbm_to_vmem [thread:$0]  %s4, 128, %s75, [#allocation8]
    $region21: #{tpu_custom_call.1} parent=1 // pred_fallthru
      _
    // Predicated region
    $region22: #{tpu_custom_call.1} parent=1 // pred_check
      _
    $region23: #{tpu_custom_call.1} parent=1 // pred_check_branch
      %79 = sbr.rel (0) target = $region25
    $region24: #{tpu_custom_call.1} parent=1 // pred_region
      %s81 = ssub.s32 16384, 16384
      %82 = vsyncadd [#allocation11], %s81
      %s83 = sshll.u32 [#allocation10], 4
      %s84 = int_to_ptr.vmem [resolvable:$true] %s83
      %89 = dma.hbm_to_vmem [thread:$0]  %s5, 16384, %s84, [#allocation11], 128, 128, 8
    $region25: #{tpu_custom_call.1} parent=1 // pred_fallthru
      _
    // Predicated region
    $region26: #{tpu_custom_call.1} parent=1 // pred_check
      _
    $region27: #{tpu_custom_call.1} parent=1 // pred_check_branch
      %91 = sbr.rel (0) target = $region29
    $region28: #{tpu_custom_call.1} parent=1 // pred_region
      %s93 = ssub.s32 32, 32
      %94 = vsyncadd [#allocation11], %s93
      %s96 = sshll.u32 [#allocation12], 4
      %s97 = int_to_ptr.vmem [resolvable:$true] %s96
      %99 = dma.hbm_to_vmem [thread:$0]  %s6, 32, %s97, [#allocation11]
    $region29: #{tpu_custom_call.1} parent=1 // pred_fallthru
      _
    // Predicated region
    $region30: #{tpu_custom_call.1} parent=1 // pred_check
      _
    $region31: #{tpu_custom_call.1} parent=1 // pred_check_branch
      %101 = sbr.rel (0) target = $region33
    $region32: #{tpu_custom_call.1} parent=1 // pred_region
      _
    $region33: #{tpu_custom_call.1} parent=1 // pred_fallthru
      _
    // Predicated region
    $region34: #{tpu_custom_call.1} parent=1 // pred_check
      _
    $region35: #{tpu_custom_call.1} parent=1 // pred_check_branch
      %103 = sbr.rel (0) target = $region37
    $region36: #{tpu_custom_call.1} parent=1 // pred_region
      %s105 = ssub.s32 16, 16
      %106 = vsyncadd [#allocation14], %s105
      %s108 = sshll.u32 [#allocation13], 4
      %s109 = int_to_ptr.vmem [resolvable:$true] %s108
      %111 = dma.hbm_to_vmem [thread:$0]  %s8, 16, %s109, [#allocation14]
    $region37: #{tpu_custom_call.1} parent=1 // pred_fallthru
      _
    // Predicated region
    $region38: #{tpu_custom_call.1} parent=1 // pred_check
      _
    $region39: #{tpu_custom_call.1} parent=1 // pred_check_branch
      %113 = sbr.rel (0) target = $region41
    $region40: #{tpu_custom_call.1} parent=1 // pred_region
      _
    $region41: #{tpu_custom_call.1} parent=1 // pred_fallthru
      _
    // Predicated region
    $region42: #{tpu_custom_call.1} parent=1 // pred_check
      _
    $region43: #{tpu_custom_call.1} parent=1 // pred_check_branch
      %115 = sbr.rel (0) target = $region45
    $region44: #{tpu_custom_call.1} parent=1 // pred_region
      %s117 = ssub.s32 16, 16
      %118 = vsyncadd [#allocation14], %s117
      %s120 = sshll.u32 [#allocation15], 4
      %s121 = int_to_ptr.vmem [resolvable:$true] %s120
      %123 = dma.hbm_to_vmem [thread:$0]  %s10, 16, %s121, [#allocation14]
    $region45: #{tpu_custom_call.1} parent=1 // pred_fallthru
      _
    // Predicated region
    $region46: #{tpu_custom_call.1} parent=1 // pred_check
      _
    $region47: #{tpu_custom_call.1} parent=1 // pred_check_branch
      %125 = sbr.rel (0) target = $region49
    $region48: #{tpu_custom_call.1} parent=1 // pred_region
      _
    $region49: #{tpu_custom_call.1} parent=1 // pred_fallthru
      _
    // Predicated region
    $region50: #{tpu_custom_call.1} parent=1 // pred_check
      _
    $region51: #{tpu_custom_call.1} parent=1 // pred_check_branch
      %127 = sbr.rel (0) target = $region53
    $region52: #{tpu_custom_call.1} parent=1 // pred_region
      %s129 = ssub.s32 16, 16
      %130 = vsyncadd [#allocation17], %s129
      %s132 = sshll.u32 [#allocation16], 4
      %s133 = int_to_ptr.vmem [resolvable:$true] %s132
      %135 = dma.hbm_to_vmem [thread:$0]  %s12, 16, %s133, [#allocation17]
    $region53: #{tpu_custom_call.1} parent=1 // pred_fallthru
      _
    // Predicated region
    $region54: #{tpu_custom_call.1} parent=1 // pred_check
      _
    $region55: #{tpu_custom_call.1} parent=1 // pred_check_branch
      %137 = sbr.rel (0) target = $region57
    $region56: #{tpu_custom_call.1} parent=1 // pred_region
      %138 = dma.done [#allocation3], 128
    $region57: #{tpu_custom_call.1} parent=1 // pred_fallthru
      _
    // Predicated region
    $region58: #{tpu_custom_call.1} parent=1 // pred_check
      _
    $region59: #{tpu_custom_call.1} parent=1 // pred_check_branch
      %140 = sbr.rel (0) target = $region61
    $region60: #{tpu_custom_call.1} parent=1 // pred_region
      %141 = dma.done [#allocation5], 14336
    $region61: #{tpu_custom_call.1} parent=1 // pred_fallthru
      _
    // Predicated region
    $region62: #{tpu_custom_call.1} parent=1 // pred_check
      _
    $region63: #{tpu_custom_call.1} parent=1 // pred_check_branch
      %143 = sbr.rel (0) target = $region65
    $region64: #{tpu_custom_call.1} parent=1 // pred_region
      %144 = dma.done [#allocation5], 128
    $region65: #{tpu_custom_call.1} parent=1 // pred_fallthru
      _
    // Predicated region
    $region66: #{tpu_custom_call.1} parent=1 // pred_check
      _
    $region67: #{tpu_custom_call.1} parent=1 // pred_check_branch
      %146 = sbr.rel (0) target = $region69
    $region68: #{tpu_custom_call.1} parent=1 // pred_region
      %147 = dma.done [#allocation8], 65536
    $region69: #{tpu_custom_call.1} parent=1 // pred_fallthru
      _
    // Predicated region
    $region70: #{tpu_custom_call.1} parent=1 // pred_check
      _
    $region71: #{tpu_custom_call.1} parent=1 // pred_check_branch
      %149 = sbr.rel (0) target = $region73
    $region72: #{tpu_custom_call.1} parent=1 // pred_region
      %150 = dma.done [#allocation8], 128
    $region73: #{tpu_custom_call.1} parent=1 // pred_fallthru
      _
    // Predicated region
    $region74: #{tpu_custom_call.1} parent=1 // pred_check
      _
    $region75: #{tpu_custom_call.1} parent=1 // pred_check_branch
      %152 = sbr.rel (0) target = $region77
    $region76: #{tpu_custom_call.1} parent=1 // pred_region
      %153 = dma.done [#allocation11], 16384
    $region77: #{tpu_custom_call.1} parent=1 // pred_fallthru
      _
    // Predicated region
    $region78: #{tpu_custom_call.1} parent=1 // pred_check
      _
    $region79: #{tpu_custom_call.1} parent=1 // pred_check_branch
      %155 = sbr.rel (0) target = $region81
    $region80: #{tpu_custom_call.1} parent=1 // pred_region
      %156 = dma.done [#allocation11], 32
    $region81: #{tpu_custom_call.1} parent=1 // pred_fallthru
      _
    // Predicated region
    $region82: #{tpu_custom_call.1} parent=1 // pred_check
      _
    $region83: #{tpu_custom_call.1} parent=1 // pred_check_branch
      %158 = sbr.rel (0) target = $region85
    $region84: #{tpu_custom_call.1} parent=1 // pred_region
      %159 = dma.done [#allocation14], 16
    $region85: #{tpu_custom_call.1} parent=1 // pred_fallthru
      _
    // Predicated region
    $region86: #{tpu_custom_call.1} parent=1 // pred_check
      _
    $region87: #{tpu_custom_call.1} parent=1 // pred_check_branch
      %161 = sbr.rel (0) target = $region89
    $region88: #{tpu_custom_call.1} parent=1 // pred_region
      %162 = dma.done [#allocation14], 16
    $region89: #{tpu_custom_call.1} parent=1 // pred_fallthru
      _
    // Predicated region
    $region90: #{tpu_custom_call.1} parent=1 // pred_check
      _
    $region91: #{tpu_custom_call.1} parent=1 // pred_check_branch
      %164 = sbr.rel (0) target = $region93
    $region92: #{tpu_custom_call.1} parent=1 // pred_region
      %165 = dma.done [#allocation17], 16
    $region93: #{tpu_custom_call.1} parent=1 // pred_fallthru
      _
    %v167 = vld [vmem:[#allocation2] sm:$0xff]
    %v168 = vld [vmem:[#allocation4] sm:$0xff]
    %v169 = vld [vmem:[#allocation4 + $0x8] sm:$0xff]
    %v170 = vld [vmem:[#allocation4 + $0x10] sm:$0xff]
    %v171 = vld [vmem:[#allocation4 + $0x18] sm:$0xff]
    %v172 = vld [vmem:[#allocation4 + $0x20] sm:$0xff]
    %v173 = vld [vmem:[#allocation4 + $0x28] sm:$0xff]
    %v174 = vld [vmem:[#allocation4 + $0x30] sm:$0xff]
    %v175 = vld [vmem:[#allocation4 + $0x38] sm:$0xff]
    %v176 = vld [vmem:[#allocation4 + $0x40] sm:$0xff]
    %v177 = vld [vmem:[#allocation4 + $0x48] sm:$0xff]
    %v178 = vld [vmem:[#allocation4 + $0x50] sm:$0xff]
    %v179 = vld [vmem:[#allocation4 + $0x58] sm:$0xff]
    %v180 = vld [vmem:[#allocation4 + $0x60] sm:$0xff]
    %v181 = vld [vmem:[#allocation4 + $0x68] sm:$0xff]
    %v182 = vld [vmem:[#allocation4 + $0x70] sm:$0xff]
    %v183 = vld [vmem:[#allocation4 + $0x78] sm:$0xff]
    %v184 = vld [vmem:[#allocation4 + $0x80] sm:$0xff]
    %v185 = vld [vmem:[#allocation4 + $0x88] sm:$0xff]
    %v186 = vld [vmem:[#allocation4 + $0x90] sm:$0xff]
    %v187 = vld [vmem:[#allocation4 + $0x98] sm:$0xff]
    %v188 = vld [vmem:[#allocation4 + $0xa0] sm:$0xff]
    %v189 = vld [vmem:[#allocation4 + $0xa8] sm:$0xff]
    %v190 = vld [vmem:[#allocation4 + $0xb0] sm:$0xff]
    %v191 = vld [vmem:[#allocation4 + $0xb8] sm:$0xff]
    %v192 = vld [vmem:[#allocation4 + $0xc0] sm:$0xff]
    %v193 = vld [vmem:[#allocation4 + $0xc8] sm:$0xff]
    %v194 = vld [vmem:[#allocation4 + $0xd0] sm:$0xff]
    %v195 = vld [vmem:[#allocation4 + $0xd8] sm:$0xff]
    %v196 = vld [vmem:[#allocation4 + $0xe0] sm:$0xff]
    %v197 = vld [vmem:[#allocation4 + $0xe8] sm:$0xff]
    %v198 = vld [vmem:[#allocation4 + $0xf0] sm:$0xff]
    %v199 = vld [vmem:[#allocation4 + $0xf8] sm:$0xff]
    %v200 = vld [vmem:[#allocation4 + $0x100] sm:$0xff]
    %v201 = vld [vmem:[#allocation4 + $0x108] sm:$0xff]
    %v202 = vld [vmem:[#allocation4 + $0x110] sm:$0xff]
    %v203 = vld [vmem:[#allocation4 + $0x118] sm:$0xff]
    %v204 = vld [vmem:[#allocation4 + $0x120] sm:$0xff]
    %v205 = vld [vmem:[#allocation4 + $0x128] sm:$0xff]
    %v206 = vld [vmem:[#allocation4 + $0x130] sm:$0xff]
    %v207 = vld [vmem:[#allocation4 + $0x138] sm:$0xff]
    %v208 = vld [vmem:[#allocation4 + $0x140] sm:$0xff]
    %v209 = vld [vmem:[#allocation4 + $0x148] sm:$0xff]
    %v210 = vld [vmem:[#allocation4 + $0x150] sm:$0xff]
    %v211 = vld [vmem:[#allocation4 + $0x158] sm:$0xff]
    %v212 = vld [vmem:[#allocation4 + $0x160] sm:$0xff]
    %v213 = vld [vmem:[#allocation4 + $0x168] sm:$0xff]
    %v214 = vld [vmem:[#allocation4 + $0x170] sm:$0xff]
    %v215 = vld [vmem:[#allocation4 + $0x178] sm:$0xff]
    %v216 = vld [vmem:[#allocation4 + $0x180] sm:$0xff]
    %v217 = vld [vmem:[#allocation4 + $0x188] sm:$0xff]
    %v218 = vld [vmem:[#allocation4 + $0x190] sm:$0xff]
    %v219 = vld [vmem:[#allocation4 + $0x198] sm:$0xff]
    %v220 = vld [vmem:[#allocation4 + $0x1a0] sm:$0xff]
    %v221 = vld [vmem:[#allocation4 + $0x1a8] sm:$0xff]
    %v222 = vld [vmem:[#allocation4 + $0x1b0] sm:$0xff]
    %v223 = vld [vmem:[#allocation4 + $0x1b8] sm:$0xff]
    %v224 = vld [vmem:[#allocation4 + $0x1c0] sm:$0xff]
    %v225 = vld [vmem:[#allocation4 + $0x1c8] sm:$0xff]
    %v226 = vld [vmem:[#allocation4 + $0x1d0] sm:$0xff]
    %v227 = vld [vmem:[#allocation4 + $0x1d8] sm:$0xff]
    %v228 = vld [vmem:[#allocation4 + $0x1e0] sm:$0xff]
    %v229 = vld [vmem:[#allocation4 + $0x1e8] sm:$0xff]
    %v230 = vld [vmem:[#allocation4 + $0x1f0] sm:$0xff]
    %v231 = vld [vmem:[#allocation4 + $0x1f8] sm:$0xff]
    %v232 = vld [vmem:[#allocation4 + $0x200] sm:$0xff]
    %v233 = vld [vmem:[#allocation4 + $0x208] sm:$0xff]
    %v234 = vld [vmem:[#allocation4 + $0x210] sm:$0xff]
    %v235 = vld [vmem:[#allocation4 + $0x218] sm:$0xff]
    %v236 = vld [vmem:[#allocation4 + $0x220] sm:$0xff]
    %v237 = vld [vmem:[#allocation4 + $0x228] sm:$0xff]
    %v238 = vld [vmem:[#allocation4 + $0x230] sm:$0xff]
    %v239 = vld [vmem:[#allocation4 + $0x238] sm:$0xff]
    %v240 = vld [vmem:[#allocation4 + $0x240] sm:$0xff]
    %v241 = vld [vmem:[#allocation4 + $0x248] sm:$0xff]
    %v242 = vld [vmem:[#allocation4 + $0x250] sm:$0xff]
    %v243 = vld [vmem:[#allocation4 + $0x258] sm:$0xff]
    %v244 = vld [vmem:[#allocation4 + $0x260] sm:$0xff]
    %v245 = vld [vmem:[#allocation4 + $0x268] sm:$0xff]
    %v246 = vld [vmem:[#allocation4 + $0x270] sm:$0xff]
    %v247 = vld [vmem:[#allocation4 + $0x278] sm:$0xff]
    %v248 = vld [vmem:[#allocation4 + $0x280] sm:$0xff]
    %v249 = vld [vmem:[#allocation4 + $0x288] sm:$0xff]
    %v250 = vld [vmem:[#allocation4 + $0x290] sm:$0xff]
    %v251 = vld [vmem:[#allocation4 + $0x298] sm:$0xff]
    %v252 = vld [vmem:[#allocation4 + $0x2a0] sm:$0xff]
    %v253 = vld [vmem:[#allocation4 + $0x2a8] sm:$0xff]
    %v254 = vld [vmem:[#allocation4 + $0x2b0] sm:$0xff]
    %v255 = vld [vmem:[#allocation4 + $0x2b8] sm:$0xff]
    %v256 = vld [vmem:[#allocation4 + $0x2c0] sm:$0xff]
    %v257 = vld [vmem:[#allocation4 + $0x2c8] sm:$0xff]
    %v258 = vld [vmem:[#allocation4 + $0x2d0] sm:$0xff]
    %v259 = vld [vmem:[#allocation4 + $0x2d8] sm:$0xff]
    %v260 = vld [vmem:[#allocation4 + $0x2e0] sm:$0xff]
    %v261 = vld [vmem:[#allocation4 + $0x2e8] sm:$0xff]
    %v262 = vld [vmem:[#allocation4 + $0x2f0] sm:$0xff]
    %v263 = vld [vmem:[#allocation4 + $0x2f8] sm:$0xff]
    %v264 = vld [vmem:[#allocation4 + $0x300] sm:$0xff]
    %v265 = vld [vmem:[#allocation4 + $0x308] sm:$0xff]
    %v266 = vld [vmem:[#allocation4 + $0x310] sm:$0xff]
    %v267 = vld [vmem:[#allocation4 + $0x318] sm:$0xff]
    %v268 = vld [vmem:[#allocation4 + $0x320] sm:$0xff]
    %v269 = vld [vmem:[#allocation4 + $0x328] sm:$0xff]
    %v270 = vld [vmem:[#allocation4 + $0x330] sm:$0xff]
    %v271 = vld [vmem:[#allocation4 + $0x338] sm:$0xff]
    %v272 = vld [vmem:[#allocation4 + $0x340] sm:$0xff]
    %v273 = vld [vmem:[#allocation4 + $0x348] sm:$0xff]
    %v274 = vld [vmem:[#allocation4 + $0x350] sm:$0xff]
    %v275 = vld [vmem:[#allocation4 + $0x358] sm:$0xff]
    %v276 = vld [vmem:[#allocation4 + $0x360] sm:$0xff]
    %v277 = vld [vmem:[#allocation4 + $0x368] sm:$0xff]
    %v278 = vld [vmem:[#allocation4 + $0x370] sm:$0xff]
    %v279 = vld [vmem:[#allocation4 + $0x378] sm:$0xff]
    %v280 = vld [vmem:[#allocation6] sm:$0xff]
    %v282 = vlaneseq
    %v283 = vshrl.u32 %v282, 7
    %v284 = vsub.s32 0, %v283
    %v285 = vrot.slane %v280, %v284
    %v286 = vlaneseq
    %v287 = vshrl.u32 %v286, 7
    %v288 = vsub.s32 1, %v287
    %v289 = vrot.slane %v280, %v288
    %v290 = vlaneseq
    %v291 = vshrl.u32 %v290, 7
    %v292 = vsub.s32 2, %v291
    %v293 = vrot.slane %v280, %v292
    %v294 = vlaneseq
    %v295 = vshrl.u32 %v294, 7
    %v296 = vsub.s32 3, %v295
    %v297 = vrot.slane %v280, %v296
    %v298 = vlaneseq
    %v299 = vshrl.u32 %v298, 7
    %v300 = vsub.s32 4, %v299
    %v301 = vrot.slane %v280, %v300
    %v302 = vlaneseq
    %v303 = vshrl.u32 %v302, 7
    %v304 = vsub.s32 5, %v303
    %v305 = vrot.slane %v280, %v304
    %v306 = vlaneseq
    %v307 = vshrl.u32 %v306, 7
    %v308 = vsub.s32 6, %v307
    %v309 = vrot.slane %v280, %v308
    %v310 = vlaneseq
    %v311 = vshrl.u32 %v310, 7
    %v312 = vsub.s32 7, %v311
    %v313 = vrot.slane %v280, %v312
    %v323 = vunpack.c.l.b16 %v167
    %v324 = vunpack.c.h.b16 %v167
    %v325 = vpack.c.b16 %v323, %v323
    %v326 = vpack.c.b16 %v324, %v324
    %v440 = vunpack.c.l.b16 %v168
    %v441 = vunpack.c.h.b16 %v168
    %v442 = vunpack.c.l.b16 %v169
    %v443 = vunpack.c.h.b16 %v169
    %v444 = vunpack.c.l.b16 %v170
    %v445 = vunpack.c.h.b16 %v170
    %v446 = vunpack.c.l.b16 %v171
    %v447 = vunpack.c.h.b16 %v171
    %v448 = vunpack.c.l.b16 %v172
    %v449 = vunpack.c.h.b16 %v172
    %v450 = vunpack.c.l.b16 %v173
    %v451 = vunpack.c.h.b16 %v173
    %v452 = vunpack.c.l.b16 %v174
    %v453 = vunpack.c.h.b16 %v174
    %v454 = vunpack.c.l.b16 %v175
    %v455 = vunpack.c.h.b16 %v175
    %v456 = vunpack.c.l.b16 %v176
    %v457 = vunpack.c.h.b16 %v176
    %v458 = vunpack.c.l.b16 %v177
    %v459 = vunpack.c.h.b16 %v177
    %v460 = vunpack.c.l.b16 %v178
    %v461 = vunpack.c.h.b16 %v178
    %v462 = vunpack.c.l.b16 %v179
    %v463 = vunpack.c.h.b16 %v179
    %v464 = vunpack.c.l.b16 %v180
    %v465 = vunpack.c.h.b16 %v180
    %v466 = vunpack.c.l.b16 %v181
    %v467 = vunpack.c.h.b16 %v181
    %v468 = vunpack.c.l.b16 %v182
    %v469 = vunpack.c.h.b16 %v182
    %v470 = vunpack.c.l.b16 %v183
    %v471 = vunpack.c.h.b16 %v183
    %v472 = vunpack.c.l.b16 %v184
    %v473 = vunpack.c.h.b16 %v184
    %v474 = vunpack.c.l.b16 %v185
    %v475 = vunpack.c.h.b16 %v185
    %v476 = vunpack.c.l.b16 %v186
    %v477 = vunpack.c.h.b16 %v186
    %v478 = vunpack.c.l.b16 %v187
    %v479 = vunpack.c.h.b16 %v187
    %v480 = vunpack.c.l.b16 %v188
    %v481 = vunpack.c.h.b16 %v188
    %v482 = vunpack.c.l.b16 %v189
    %v483 = vunpack.c.h.b16 %v189
    %v484 = vunpack.c.l.b16 %v190
    %v485 = vunpack.c.h.b16 %v190
    %v486 = vunpack.c.l.b16 %v191
    %v487 = vunpack.c.h.b16 %v191
    %v488 = vunpack.c.l.b16 %v192
    %v489 = vunpack.c.h.b16 %v192
    %v490 = vunpack.c.l.b16 %v193
    %v491 = vunpack.c.h.b16 %v193
    %v492 = vunpack.c.l.b16 %v194
    %v493 = vunpack.c.h.b16 %v194
    %v494 = vunpack.c.l.b16 %v195
    %v495 = vunpack.c.h.b16 %v195
    %v496 = vunpack.c.l.b16 %v196
    %v497 = vunpack.c.h.b16 %v196
    %v498 = vunpack.c.l.b16 %v197
    %v499 = vunpack.c.h.b16 %v197
    %v500 = vunpack.c.l.b16 %v198
    %v501 = vunpack.c.h.b16 %v198
    %v502 = vunpack.c.l.b16 %v199
    %v503 = vunpack.c.h.b16 %v199
    %v504 = vunpack.c.l.b16 %v200
    %v505 = vunpack.c.h.b16 %v200
    %v506 = vunpack.c.l.b16 %v201
    %v507 = vunpack.c.h.b16 %v201
    %v508 = vunpack.c.l.b16 %v202
    %v509 = vunpack.c.h.b16 %v202
    %v510 = vunpack.c.l.b16 %v203
    %v511 = vunpack.c.h.b16 %v203
    %v512 = vunpack.c.l.b16 %v204
    %v513 = vunpack.c.h.b16 %v204
    %v514 = vunpack.c.l.b16 %v205
    %v515 = vunpack.c.h.b16 %v205
    %v516 = vunpack.c.l.b16 %v206
    %v517 = vunpack.c.h.b16 %v206
    %v518 = vunpack.c.l.b16 %v207
    %v519 = vunpack.c.h.b16 %v207
    %v520 = vunpack.c.l.b16 %v208
    %v521 = vunpack.c.h.b16 %v208
    %v522 = vunpack.c.l.b16 %v209
    %v523 = vunpack.c.h.b16 %v209
    %v524 = vunpack.c.l.b16 %v210
    %v525 = vunpack.c.h.b16 %v210
    %v526 = vunpack.c.l.b16 %v211
    %v527 = vunpack.c.h.b16 %v211
    %v528 = vunpack.c.l.b16 %v212
    %v529 = vunpack.c.h.b16 %v212
    %v530 = vunpack.c.l.b16 %v213
    %v531 = vunpack.c.h.b16 %v213
    %v532 = vunpack.c.l.b16 %v214
    %v533 = vunpack.c.h.b16 %v214
    %v534 = vunpack.c.l.b16 %v215
    %v535 = vunpack.c.h.b16 %v215
    %v536 = vunpack.c.l.b16 %v216
    %v537 = vunpack.c.h.b16 %v216
    %v538 = vunpack.c.l.b16 %v217
    %v539 = vunpack.c.h.b16 %v217
    %v540 = vunpack.c.l.b16 %v218
    %v541 = vunpack.c.h.b16 %v218
    %v542 = vunpack.c.l.b16 %v219
    %v543 = vunpack.c.h.b16 %v219
    %v544 = vunpack.c.l.b16 %v220
    %v545 = vunpack.c.h.b16 %v220
    %v546 = vunpack.c.l.b16 %v221
    %v547 = vunpack.c.h.b16 %v221
    %v548 = vunpack.c.l.b16 %v222
    %v549 = vunpack.c.h.b16 %v222
    %v550 = vunpack.c.l.b16 %v223
    %v551 = vunpack.c.h.b16 %v223
    %v552 = vunpack.c.l.b16 %v224
    %v553 = vunpack.c.h.b16 %v224
    %v554 = vunpack.c.l.b16 %v225
    %v555 = vunpack.c.h.b16 %v225
    %v556 = vunpack.c.l.b16 %v226
    %v557 = vunpack.c.h.b16 %v226
    %v558 = vunpack.c.l.b16 %v227
    %v559 = vunpack.c.h.b16 %v227
    %v560 = vunpack.c.l.b16 %v228
    %v561 = vunpack.c.h.b16 %v228
    %v562 = vunpack.c.l.b16 %v229
    %v563 = vunpack.c.h.b16 %v229
    %v564 = vunpack.c.l.b16 %v230
    %v565 = vunpack.c.h.b16 %v230
    %v566 = vunpack.c.l.b16 %v231
    %v567 = vunpack.c.h.b16 %v231
    %v568 = vunpack.c.l.b16 %v232
    %v569 = vunpack.c.h.b16 %v232
    %v570 = vunpack.c.l.b16 %v233
    %v571 = vunpack.c.h.b16 %v233
    %v572 = vunpack.c.l.b16 %v234
    %v573 = vunpack.c.h.b16 %v234
    %v574 = vunpack.c.l.b16 %v235
    %v575 = vunpack.c.h.b16 %v235
    %v576 = vunpack.c.l.b16 %v236
    %v577 = vunpack.c.h.b16 %v236
    %v578 = vunpack.c.l.b16 %v237
    %v579 = vunpack.c.h.b16 %v237
    %v580 = vunpack.c.l.b16 %v238
    %v581 = vunpack.c.h.b16 %v238
    %v582 = vunpack.c.l.b16 %v239
    %v583 = vunpack.c.h.b16 %v239
    %v584 = vunpack.c.l.b16 %v240
    %v585 = vunpack.c.h.b16 %v240
    %v586 = vunpack.c.l.b16 %v241
    %v587 = vunpack.c.h.b16 %v241
    %v588 = vunpack.c.l.b16 %v242
    %v589 = vunpack.c.h.b16 %v242
    %v590 = vunpack.c.l.b16 %v243
    %v591 = vunpack.c.h.b16 %v243
    %v592 = vunpack.c.l.b16 %v244
    %v593 = vunpack.c.h.b16 %v244
    %v594 = vunpack.c.l.b16 %v245
    %v595 = vunpack.c.h.b16 %v245
    %v596 = vunpack.c.l.b16 %v246
    %v597 = vunpack.c.h.b16 %v246
    %v598 = vunpack.c.l.b16 %v247
    %v599 = vunpack.c.h.b16 %v247
    %v600 = vunpack.c.l.b16 %v248
    %v601 = vunpack.c.h.b16 %v248
    %v602 = vunpack.c.l.b16 %v249
    %v603 = vunpack.c.h.b16 %v249
    %v604 = vunpack.c.l.b16 %v250
    %v605 = vunpack.c.h.b16 %v250
    %v606 = vunpack.c.l.b16 %v251
    %v607 = vunpack.c.h.b16 %v251
    %v608 = vunpack.c.l.b16 %v252
    %v609 = vunpack.c.h.b16 %v252
    %v610 = vunpack.c.l.b16 %v253
    %v611 = vunpack.c.h.b16 %v253
    %v612 = vunpack.c.l.b16 %v254
    %v613 = vunpack.c.h.b16 %v254
    %v614 = vunpack.c.l.b16 %v255
    %v615 = vunpack.c.h.b16 %v255
    %v616 = vunpack.c.l.b16 %v256
    %v617 = vunpack.c.h.b16 %v256
    %v618 = vunpack.c.l.b16 %v257
    %v619 = vunpack.c.h.b16 %v257
    %v620 = vunpack.c.l.b16 %v258
    %v621 = vunpack.c.h.b16 %v258
    %v622 = vunpack.c.l.b16 %v259
    %v623 = vunpack.c.h.b16 %v259
    %v624 = vunpack.c.l.b16 %v260
    %v625 = vunpack.c.h.b16 %v260
    %v626 = vunpack.c.l.b16 %v261
    %v627 = vunpack.c.h.b16 %v261
    %v628 = vunpack.c.l.b16 %v262
    %v629 = vunpack.c.h.b16 %v262
    %v630 = vunpack.c.l.b16 %v263
    %v631 = vunpack.c.h.b16 %v263
    %v632 = vunpack.c.l.b16 %v264
    %v633 = vunpack.c.h.b16 %v264
    %v634 = vunpack.c.l.b16 %v265
    %v635 = vunpack.c.h.b16 %v265
    %v636 = vunpack.c.l.b16 %v266
    %v637 = vunpack.c.h.b16 %v266
    %v638 = vunpack.c.l.b16 %v267
    %v639 = vunpack.c.h.b16 %v267
    %v640 = vunpack.c.l.b16 %v268
    %v641 = vunpack.c.h.b16 %v268
    %v642 = vunpack.c.l.b16 %v269
    %v643 = vunpack.c.h.b16 %v269
    %v644 = vunpack.c.l.b16 %v270
    %v645 = vunpack.c.h.b16 %v270
    %v646 = vunpack.c.l.b16 %v271
    %v647 = vunpack.c.h.b16 %v271
    %v648 = vunpack.c.l.b16 %v272
    %v649 = vunpack.c.h.b16 %v272
    %v650 = vunpack.c.l.b16 %v273
    %v651 = vunpack.c.h.b16 %v273
    %v652 = vunpack.c.l.b16 %v274
    %v653 = vunpack.c.h.b16 %v274
    %v654 = vunpack.c.l.b16 %v275
    %v655 = vunpack.c.h.b16 %v275
    %v656 = vunpack.c.l.b16 %v276
    %v657 = vunpack.c.h.b16 %v276
    %v658 = vunpack.c.l.b16 %v277
    %v659 = vunpack.c.h.b16 %v277
    %v660 = vunpack.c.l.b16 %v278
    %v661 = vunpack.c.h.b16 %v278
    %v662 = vunpack.c.l.b16 %v279
    %v663 = vunpack.c.h.b16 %v279
    %v664 = vpack.c.b16 %v448, %v440
    %v665 = vpack.c.b16 %v449, %v441
    %v666 = vpack.c.b16 %v450, %v442
    %v667 = vpack.c.b16 %v451, %v443
    %v668 = vpack.c.b16 %v452, %v444
    %v669 = vpack.c.b16 %v453, %v445
    %v670 = vpack.c.b16 %v454, %v446
    %v671 = vpack.c.b16 %v455, %v447
    %v672 = vpack.c.b16 %v464, %v456
    %v673 = vpack.c.b16 %v465, %v457
    %v674 = vpack.c.b16 %v466, %v458
    %v675 = vpack.c.b16 %v467, %v459
    %v676 = vpack.c.b16 %v468, %v460
    %v677 = vpack.c.b16 %v469, %v461
    %v678 = vpack.c.b16 %v470, %v462
    %v679 = vpack.c.b16 %v471, %v463
    %v680 = vpack.c.b16 %v480, %v472
    %v681 = vpack.c.b16 %v481, %v473
    %v682 = vpack.c.b16 %v482, %v474
    %v683 = vpack.c.b16 %v483, %v475
    %v684 = vpack.c.b16 %v484, %v476
    %v685 = vpack.c.b16 %v485, %v477
    %v686 = vpack.c.b16 %v486, %v478
    %v687 = vpack.c.b16 %v487, %v479
    %v688 = vpack.c.b16 %v496, %v488
    %v689 = vpack.c.b16 %v497, %v489
    %v690 = vpack.c.b16 %v498, %v490
    %v691 = vpack.c.b16 %v499, %v491
    %v692 = vpack.c.b16 %v500, %v492
    %v693 = vpack.c.b16 %v501, %v493
    %v694 = vpack.c.b16 %v502, %v494
    %v695 = vpack.c.b16 %v503, %v495
    %v696 = vpack.c.b16 %v512, %v504
    %v697 = vpack.c.b16 %v513, %v505
    %v698 = vpack.c.b16 %v514, %v506
    %v699 = vpack.c.b16 %v515, %v507
    %v700 = vpack.c.b16 %v516, %v508
    %v701 = vpack.c.b16 %v517, %v509
    %v702 = vpack.c.b16 %v518, %v510
    %v703 = vpack.c.b16 %v519, %v511
    %v704 = vpack.c.b16 %v528, %v520
    %v705 = vpack.c.b16 %v529, %v521
    %v706 = vpack.c.b16 %v530, %v522
    %v707 = vpack.c.b16 %v531, %v523
    %v708 = vpack.c.b16 %v532, %v524
    %v709 = vpack.c.b16 %v533, %v525
    %v710 = vpack.c.b16 %v534, %v526
    %v711 = vpack.c.b16 %v535, %v527
    %v712 = vpack.c.b16 %v544, %v536
    %v713 = vpack.c.b16 %v545, %v537
    %v714 = vpack.c.b16 %v546, %v538
    %v715 = vpack.c.b16 %v547, %v539
    %v716 = vpack.c.b16 %v548, %v540
    %v717 = vpack.c.b16 %v549, %v541
    %v718 = vpack.c.b16 %v550, %v542
    %v719 = vpack.c.b16 %v551, %v543
    %v720 = vpack.c.b16 %v560, %v552
    %v721 = vpack.c.b16 %v561, %v553
    %v722 = vpack.c.b16 %v562, %v554
    %v723 = vpack.c.b16 %v563, %v555
    %v724 = vpack.c.b16 %v564, %v556
    %v725 = vpack.c.b16 %v565, %v557
    %v726 = vpack.c.b16 %v566, %v558
    %v727 = vpack.c.b16 %v567, %v559
    %v728 = vpack.c.b16 %v576, %v568
    %v729 = vpack.c.b16 %v577, %v569
    %v730 = vpack.c.b16 %v578, %v570
    %v731 = vpack.c.b16 %v579, %v571
    %v732 = vpack.c.b16 %v580, %v572
    %v733 = vpack.c.b16 %v581, %v573
    %v734 = vpack.c.b16 %v582, %v574
    %v735 = vpack.c.b16 %v583, %v575
    %v736 = vpack.c.b16 %v592, %v584
    %v737 = vpack.c.b16 %v593, %v585
    %v738 = vpack.c.b16 %v594, %v586
    %v739 = vpack.c.b16 %v595, %v587
    %v740 = vpack.c.b16 %v596, %v588
    %v741 = vpack.c.b16 %v597, %v589
    %v742 = vpack.c.b16 %v598, %v590
    %v743 = vpack.c.b16 %v599, %v591
    %v744 = vpack.c.b16 %v608, %v600
    %v745 = vpack.c.b16 %v609, %v601
    %v746 = vpack.c.b16 %v610, %v602
    %v747 = vpack.c.b16 %v611, %v603
    %v748 = vpack.c.b16 %v612, %v604
    %v749 = vpack.c.b16 %v613, %v605
    %v750 = vpack.c.b16 %v614, %v606
    %v751 = vpack.c.b16 %v615, %v607
    %v752 = vpack.c.b16 %v624, %v616
    %v753 = vpack.c.b16 %v625, %v617
    %v754 = vpack.c.b16 %v626, %v618
    %v755 = vpack.c.b16 %v627, %v619
    %v756 = vpack.c.b16 %v628, %v620
    %v757 = vpack.c.b16 %v629, %v621
    %v758 = vpack.c.b16 %v630, %v622
    %v759 = vpack.c.b16 %v631, %v623
    %v760 = vpack.c.b16 %v640, %v632
    %v761 = vpack.c.b16 %v641, %v633
    %v762 = vpack.c.b16 %v642, %v634
    %v763 = vpack.c.b16 %v643, %v635
    %v764 = vpack.c.b16 %v644, %v636
    %v765 = vpack.c.b16 %v645, %v637
    %v766 = vpack.c.b16 %v646, %v638
    %v767 = vpack.c.b16 %v647, %v639
    %v768 = vpack.c.b16 %v656, %v648
    %v769 = vpack.c.b16 %v657, %v649
    %v770 = vpack.c.b16 %v658, %v650
    %v771 = vpack.c.b16 %v659, %v651
    %v772 = vpack.c.b16 %v660, %v652
    %v773 = vpack.c.b16 %v661, %v653
    %v774 = vpack.c.b16 %v662, %v654
    %v775 = vpack.c.b16 %v663, %v655
    %vm888 = vcmask 785408
    %v890 = vsel %vm888, %v326, 0
    %892 = vmatprep.subr.bf16.mxu0 %v665
    %893 = vmatpush1.bf16.msra.mxu0 %v664
    %894 = vmatprep.subr.bf16.mxu0 %v673
    %895 = vmatpush1.bf16.msra.mxu0 %v672
    %896 = vmatprep.subr.bf16.mxu0 %v681
    %897 = vmatpush1.bf16.msra.mxu0 %v680
    %898 = vmatprep.subr.bf16.mxu0 %v689
    %899 = vmatpush1.bf16.msra.mxu0 %v688
    %900 = vmatprep.subr.bf16.mxu0 %v697
    %901 = vmatpush1.bf16.msra.mxu0 %v696
    %902 = vmatprep.subr.bf16.mxu0 %v705
    %903 = vmatpush1.bf16.msra.mxu0 %v704
    %904 = vmatprep.subr.bf16.mxu0 %v713
    %905 = vmatpush1.bf16.msra.mxu0 %v712
    %906 = vmatprep.subr.bf16.mxu0 %v721
    %907 = vmatpush1.bf16.msra.mxu0 %v720
    %908 = vmatprep.subr.bf16.mxu0 %v729
    %909 = vmatpush1.bf16.msra.mxu0 %v728
    %910 = vmatprep.subr.bf16.mxu0 %v737
    %911 = vmatpush1.bf16.msra.mxu0 %v736
    %912 = vmatprep.subr.bf16.mxu0 %v745
    %913 = vmatpush1.bf16.msra.mxu0 %v744
    %914 = vmatprep.subr.bf16.mxu0 %v753
    %915 = vmatpush1.bf16.msra.mxu0 %v752
    %916 = vmatprep.subr.bf16.mxu0 %v761
    %917 = vmatpush1.bf16.msra.mxu0 %v760
    %918 = vmatprep.subr.bf16.mxu0 %v769
    %919 = vmatpush1.bf16.msra.mxu0 %v768
    %920 = vmatprep.subr.bf16.mxu0 0
    %921 = vmatpush1.bf16.msra.mxu0 0
    %922 = vmatprep.subr.bf16.mxu0 0
    %923 = vmatpush1.bf16.msra.mxu0 0
    %924 = vmatprep.mubr.bf16.mxu0 %v890
    %925 = vmatmul.mubr.bf16.gmra.mrb[0].mxu0 %v325
    %v926 = vpop.f32.mrb[0].mxu0
    %v927 = vadd.f32 %v285, %v926
    %v928 = vpop.f32.mrb[0].mxu0
    %v929 = vadd.f32 %v289, %v928
    %v930 = vpop.f32.mrb[0].mxu0
    %v931 = vpop.f32.mrb[0].mxu0
    %932 = vdwg.mxu0
    %933 = vmatprep.subr.bf16.mxu0 %v667
    %934 = vmatpush1.bf16.msra.mxu0 %v666
    %935 = vmatprep.subr.bf16.mxu0 %v675
    %936 = vmatpush1.bf16.msra.mxu0 %v674
    %937 = vmatprep.subr.bf16.mxu0 %v683
    %938 = vmatpush1.bf16.msra.mxu0 %v682
    %939 = vmatprep.subr.bf16.mxu0 %v691
    %940 = vmatpush1.bf16.msra.mxu0 %v690
    %941 = vmatprep.subr.bf16.mxu0 %v699
    %942 = vmatpush1.bf16.msra.mxu0 %v698
    %943 = vmatprep.subr.bf16.mxu0 %v707
    %944 = vmatpush1.bf16.msra.mxu0 %v706
    %945 = vmatprep.subr.bf16.mxu0 %v715
    %946 = vmatpush1.bf16.msra.mxu0 %v714
    %947 = vmatprep.subr.bf16.mxu0 %v723
    %948 = vmatpush1.bf16.msra.mxu0 %v722
    %949 = vmatprep.subr.bf16.mxu0 %v731
    %950 = vmatpush1.bf16.msra.mxu0 %v730
    %951 = vmatprep.subr.bf16.mxu0 %v739
    %952 = vmatpush1.bf16.msra.mxu0 %v738
    %953 = vmatprep.subr.bf16.mxu0 %v747
    %954 = vmatpush1.bf16.msra.mxu0 %v746
    %955 = vmatprep.subr.bf16.mxu0 %v755
    %956 = vmatpush1.bf16.msra.mxu0 %v754
    %957 = vmatprep.subr.bf16.mxu0 %v763
    %958 = vmatpush1.bf16.msra.mxu0 %v762
    %959 = vmatprep.subr.bf16.mxu0 %v771
    %960 = vmatpush1.bf16.msra.mxu0 %v770
    %961 = vmatprep.subr.bf16.mxu0 0
    %962 = vmatpush1.bf16.msra.mxu0 0
    %963 = vmatprep.subr.bf16.mxu0 0
    %964 = vmatpush1.bf16.msra.mxu0 0
    %965 = vmatprep.mubr.bf16.mxu0 %v890
    %966 = vmatmul.mubr.bf16.gmra.mrb[0].mxu0 %v325
    %v967 = vpop.f32.mrb[0].mxu0
    %v968 = vadd.f32 %v293, %v967
    %v969 = vpop.f32.mrb[0].mxu0
    %v970 = vadd.f32 %v297, %v969
    %v971 = vpop.f32.mrb[0].mxu0
    %v972 = vpop.f32.mrb[0].mxu0
    %973 = vdwg.mxu0
    %974 = vmatprep.subr.bf16.mxu0 %v669
    %975 = vmatpush1.bf16.msra.mxu0 %v668
    %976 = vmatprep.subr.bf16.mxu0 %v677
    %977 = vmatpush1.bf16.msra.mxu0 %v676
    %978 = vmatprep.subr.bf16.mxu0 %v685
    %979 = vmatpush1.bf16.msra.mxu0 %v684
    %980 = vmatprep.subr.bf16.mxu0 %v693
    %981 = vmatpush1.bf16.msra.mxu0 %v692
    %982 = vmatprep.subr.bf16.mxu0 %v701
    %983 = vmatpush1.bf16.msra.mxu0 %v700
    %984 = vmatprep.subr.bf16.mxu0 %v709
    %985 = vmatpush1.bf16.msra.mxu0 %v708
    %986 = vmatprep.subr.bf16.mxu0 %v717
    %987 = vmatpush1.bf16.msra.mxu0 %v716
    %988 = vmatprep.subr.bf16.mxu0 %v725
    %989 = vmatpush1.bf16.msra.mxu0 %v724
    %990 = vmatprep.subr.bf16.mxu0 %v733
    %991 = vmatpush1.bf16.msra.mxu0 %v732
    %992 = vmatprep.subr.bf16.mxu0 %v741
    %993 = vmatpush1.bf16.msra.mxu0 %v740
    %994 = vmatprep.subr.bf16.mxu0 %v749
    %995 = vmatpush1.bf16.msra.mxu0 %v748
    %996 = vmatprep.subr.bf16.mxu0 %v757
    %997 = vmatpush1.bf16.msra.mxu0 %v756
    %998 = vmatprep.subr.bf16.mxu0 %v765
    %999 = vmatpush1.bf16.msra.mxu0 %v764
    %1000 = vmatprep.subr.bf16.mxu0 %v773
    %1001 = vmatpush1.bf16.msra.mxu0 %v772
    %1002 = vmatprep.subr.bf16.mxu0 0
    %1003 = vmatpush1.bf16.msra.mxu0 0
    %1004 = vmatprep.subr.bf16.mxu0 0
    %1005 = vmatpush1.bf16.msra.mxu0 0
    %1006 = vmatprep.mubr.bf16.mxu0 %v890
    %1007 = vmatmul.mubr.bf16.gmra.mrb[0].mxu0 %v325
    %v1008 = vpop.f32.mrb[0].mxu0
    %v1009 = vadd.f32 %v301, %v1008
    %v1010 = vpop.f32.mrb[0].mxu0
    %v1011 = vadd.f32 %v305, %v1010
    %v1012 = vpop.f32.mrb[0].mxu0
    %v1013 = vpop.f32.mrb[0].mxu0
    %1014 = vdwg.mxu0
    %1015 = vmatprep.subr.bf16.mxu0 %v671
    %1016 = vmatpush1.bf16.msra.mxu0 %v670
    %1017 = vmatprep.subr.bf16.mxu0 %v679
    %1018 = vmatpush1.bf16.msra.mxu0 %v678
    %1019 = vmatprep.subr.bf16.mxu0 %v687
    %1020 = vmatpush1.bf16.msra.mxu0 %v686
    %1021 = vmatprep.subr.bf16.mxu0 %v695
    %1022 = vmatpush1.bf16.msra.mxu0 %v694
    %1023 = vmatprep.subr.bf16.mxu0 %v703
    %1024 = vmatpush1.bf16.msra.mxu0 %v702
    %1025 = vmatprep.subr.bf16.mxu0 %v711
    %1026 = vmatpush1.bf16.msra.mxu0 %v710
    %1027 = vmatprep.subr.bf16.mxu0 %v719
    %1028 = vmatpush1.bf16.msra.mxu0 %v718
    %1029 = vmatprep.subr.bf16.mxu0 %v727
    %1030 = vmatpush1.bf16.msra.mxu0 %v726
    %1031 = vmatprep.subr.bf16.mxu0 %v735
    %1032 = vmatpush1.bf16.msra.mxu0 %v734
    %1033 = vmatprep.subr.bf16.mxu0 %v743
    %1034 = vmatpush1.bf16.msra.mxu0 %v742
    %1035 = vmatprep.subr.bf16.mxu0 %v751
    %1036 = vmatpush1.bf16.msra.mxu0 %v750
    %1037 = vmatprep.subr.bf16.mxu0 %v759
    %1038 = vmatpush1.bf16.msra.mxu0 %v758
    %1039 = vmatprep.subr.bf16.mxu0 %v767
    %1040 = vmatpush1.bf16.msra.mxu0 %v766
    %1041 = vmatprep.subr.bf16.mxu0 %v775
    %1042 = vmatpush1.bf16.msra.mxu0 %v774
    %1043 = vmatprep.subr.bf16.mxu0 0
    %1044 = vmatpush1.bf16.msra.mxu0 0
    %1045 = vmatprep.subr.bf16.mxu0 0
    %1046 = vmatpush1.bf16.msra.mxu0 0
    %1047 = vmatprep.mubr.bf16.mxu0 %v890
    %1048 = vmatmul.mubr.bf16.gmra.mrb[0].mxu0 %v325
    %v1049 = vpop.f32.mrb[0].mxu0
    %v1050 = vadd.f32 %v309, %v1049
    %v1051 = vpop.f32.mrb[0].mxu0
    %v1052 = vadd.f32 %v313, %v1051
    %v1053 = vpop.f32.mrb[0].mxu0
    %v1054 = vpop.f32.mrb[0].mxu0
    %1055 = vdwg.mxu0
    %v1056 = vmax.f32 %v927, 0.0
    %v1057 = vmax.f32 %v929, 0.0
    %v1058 = vmax.f32 %v968, 0.0
    %v1059 = vmax.f32 %v970, 0.0
    %v1060 = vmax.f32 %v1009, 0.0
    %v1061 = vmax.f32 %v1011, 0.0
    %v1062 = vmax.f32 %v1050, 0.0
    %v1063 = vmax.f32 %v1052, 0.0
    %v1064 = vpack.c.bf16 %v1056, %v1056
    %v1065 = vpack.c.bf16 %v1057, %v1057
    %v1066 = vpack.c.bf16 %v1058, %v1058
    %v1067 = vpack.c.bf16 %v1059, %v1059
    %v1068 = vpack.c.bf16 %v1060, %v1060
    %v1069 = vpack.c.bf16 %v1061, %v1061
    %v1070 = vpack.c.bf16 %v1062, %v1062
    %v1071 = vpack.c.bf16 %v1063, %v1063
    %v1072 = vld [vmem:[#allocation7] sm:$0xff]
    %v1073 = vld [vmem:[#allocation7 + $0x8] sm:$0xff]
    %v1074 = vld [vmem:[#allocation7 + $0x10] sm:$0xff]
    %v1075 = vld [vmem:[#allocation7 + $0x18] sm:$0xff]
    %v1076 = vld [vmem:[#allocation7 + $0x20] sm:$0xff]
    %v1077 = vld [vmem:[#allocation7 + $0x28] sm:$0xff]
    %v1078 = vld [vmem:[#allocation7 + $0x30] sm:$0xff]
    %v1079 = vld [vmem:[#allocation7 + $0x38] sm:$0xff]
    %v1080 = vld [vmem:[#allocation7 + $0x40] sm:$0xff]
    %v1081 = vld [vmem:[#allocation7 + $0x48] sm:$0xff]
    %v1082 = vld [vmem:[#allocation7 + $0x50] sm:$0xff]
    %v1083 = vld [vmem:[#allocation7 + $0x58] sm:$0xff]
    %v1084 = vld [vmem:[#allocation7 + $0x60] sm:$0xff]
    %v1085 = vld [vmem:[#allocation7 + $0x68] sm:$0xff]
    %v1086 = vld [vmem:[#allocation7 + $0x70] sm:$0xff]
    %v1087 = vld [vmem:[#allocation7 + $0x78] sm:$0xff]
    %v1088 = vld [vmem:[#allocation7 + $0x80] sm:$0xff]
    %v1089 = vld [vmem:[#allocation7 + $0x88] sm:$0xff]
    %v1090 = vld [vmem:[#allocation7 + $0x90] sm:$0xff]
    %v1091 = vld [vmem:[#allocation7 + $0x98] sm:$0xff]
    %v1092 = vld [vmem:[#allocation7 + $0xa0] sm:$0xff]
    %v1093 = vld [vmem:[#allocation7 + $0xa8] sm:$0xff]
    %v1094 = vld [vmem:[#allocation7 + $0xb0] sm:$0xff]
    %v1095 = vld [vmem:[#allocation7 + $0xb8] sm:$0xff]
    %v1096 = vld [vmem:[#allocation7 + $0xc0] sm:$0xff]
    %v1097 = vld [vmem:[#allocation7 + $0xc8] sm:$0xff]
    %v1098 = vld [vmem:[#allocation7 + $0xd0] sm:$0xff]
    %v1099 = vld [vmem:[#allocation7 + $0xd8] sm:$0xff]
    %v1100 = vld [vmem:[#allocation7 + $0xe0] sm:$0xff]
    %v1101 = vld [vmem:[#allocation7 + $0xe8] sm:$0xff]
    %v1102 = vld [vmem:[#allocation7 + $0xf0] sm:$0xff]
    %v1103 = vld [vmem:[#allocation7 + $0xf8] sm:$0xff]
    %v1104 = vld [vmem:[#allocation7 + $0x100] sm:$0xff]
    %v1105 = vld [vmem:[#allocation7 + $0x108] sm:$0xff]
    %v1106 = vld [vmem:[#allocation7 + $0x110] sm:$0xff]
    %v1107 = vld [vmem:[#allocation7 + $0x118] sm:$0xff]
    %v1108 = vld [vmem:[#allocation7 + $0x120] sm:$0xff]
    %v1109 = vld [vmem:[#allocation7 + $0x128] sm:$0xff]
    %v1110 = vld [vmem:[#allocation7 + $0x130] sm:$0xff]
    %v1111 = vld [vmem:[#allocation7 + $0x138] sm:$0xff]
    %v1112 = vld [vmem:[#allocation7 + $0x140] sm:$0xff]
    %v1113 = vld [vmem:[#allocation7 + $0x148] sm:$0xff]
    %v1114 = vld [vmem:[#allocation7 + $0x150] sm:$0xff]
    %v1115 = vld [vmem:[#allocation7 + $0x158] sm:$0xff]
    %v1116 = vld [vmem:[#allocation7 + $0x160] sm:$0xff]
    %v1117 = vld [vmem:[#allocation7 + $0x168] sm:$0xff]
    %v1118 = vld [vmem:[#allocation7 + $0x170] sm:$0xff]
    %v1119 = vld [vmem:[#allocation7 + $0x178] sm:$0xff]
    %v1120 = vld [vmem:[#allocation7 + $0x180] sm:$0xff]
    %v1121 = vld [vmem:[#allocation7 + $0x188] sm:$0xff]
    %v1122 = vld [vmem:[#allocation7 + $0x190] sm:$0xff]
    %v1123 = vld [vmem:[#allocation7 + $0x198] sm:$0xff]
    %v1124 = vld [vmem:[#allocation7 + $0x1a0] sm:$0xff]
    %v1125 = vld [vmem:[#allocation7 + $0x1a8] sm:$0xff]
    %v1126 = vld [vmem:[#allocation7 + $0x1b0] sm:$0xff]
    %v1127 = vld [vmem:[#allocation7 + $0x1b8] sm:$0xff]
    %v1128 = vld [vmem:[#allocation7 + $0x1c0] sm:$0xff]
    %v1129 = vld [vmem:[#allocation7 + $0x1c8] sm:$0xff]
    %v1130 = vld [vmem:[#allocation7 + $0x1d0] sm:$0xff]
    %v1131 = vld [vmem:[#allocation7 + $0x1d8] sm:$0xff]
    %v1132 = vld [vmem:[#allocation7 + $0x1e0] sm:$0xff]
    %v1133 = vld [vmem:[#allocation7 + $0x1e8] sm:$0xff]
    %v1134 = vld [vmem:[#allocation7 + $0x1f0] sm:$0xff]
    %v1135 = vld [vmem:[#allocation7 + $0x1f8] sm:$0xff]
    %v1136 = vld [vmem:[#allocation7 + $0x200] sm:$0xff]
    %v1137 = vld [vmem:[#allocation7 + $0x208] sm:$0xff]
    %v1138 = vld [vmem:[#allocation7 + $0x210] sm:$0xff]
    %v1139 = vld [vmem:[#allocation7 + $0x218] sm:$0xff]
    %v1140 = vld [vmem:[#allocation7 + $0x220] sm:$0xff]
    %v1141 = vld [vmem:[#allocation7 + $0x228] sm:$0xff]
    %v1142 = vld [vmem:[#allocation7 + $0x230] sm:$0xff]
    %v1143 = vld [vmem:[#allocation7 + $0x238] sm:$0xff]
    %v1144 = vld [vmem:[#allocation7 + $0x240] sm:$0xff]
    %v1145 = vld [vmem:[#allocation7 + $0x248] sm:$0xff]
    %v1146 = vld [vmem:[#allocation7 + $0x250] sm:$0xff]
    %v1147 = vld [vmem:[#allocation7 + $0x258] sm:$0xff]
    %v1148 = vld [vmem:[#allocation7 + $0x260] sm:$0xff]
    %v1149 = vld [vmem:[#allocation7 + $0x268] sm:$0xff]
    %v1150 = vld [vmem:[#allocation7 + $0x270] sm:$0xff]
    %v1151 = vld [vmem:[#allocation7 + $0x278] sm:$0xff]
    %v1152 = vld [vmem:[#allocation7 + $0x280] sm:$0xff]
    %v1153 = vld [vmem:[#allocation7 + $0x288] sm:$0xff]
    %v1154 = vld [vmem:[#allocation7 + $0x290] sm:$0xff]
    %v1155 = vld [vmem:[#allocation7 + $0x298] sm:$0xff]
    %v1156 = vld [vmem:[#allocation7 + $0x2a0] sm:$0xff]
    %v1157 = vld [vmem:[#allocation7 + $0x2a8] sm:$0xff]
    %v1158 = vld [vmem:[#allocation7 + $0x2b0] sm:$0xff]
    %v1159 = vld [vmem:[#allocation7 + $0x2b8] sm:$0xff]
    %v1160 = vld [vmem:[#allocation7 + $0x2c0] sm:$0xff]
    %v1161 = vld [vmem:[#allocation7 + $0x2c8] sm:$0xff]
    %v1162 = vld [vmem:[#allocation7 + $0x2d0] sm:$0xff]
    %v1163 = vld [vmem:[#allocation7 + $0x2d8] sm:$0xff]
    %v1164 = vld [vmem:[#allocation7 + $0x2e0] sm:$0xff]
    %v1165 = vld [vmem:[#allocation7 + $0x2e8] sm:$0xff]
    %v1166 = vld [vmem:[#allocation7 + $0x2f0] sm:$0xff]
    %v1167 = vld [vmem:[#allocation7 + $0x2f8] sm:$0xff]
    %v1168 = vld [vmem:[#allocation7 + $0x300] sm:$0xff]
    %v1169 = vld [vmem:[#allocation7 + $0x308] sm:$0xff]
    %v1170 = vld [vmem:[#allocation7 + $0x310] sm:$0xff]
    %v1171 = vld [vmem:[#allocation7 + $0x318] sm:$0xff]
    %v1172 = vld [vmem:[#allocation7 + $0x320] sm:$0xff]
    %v1173 = vld [vmem:[#allocation7 + $0x328] sm:$0xff]
    %v1174 = vld [vmem:[#allocation7 + $0x330] sm:$0xff]
    %v1175 = vld [vmem:[#allocation7 + $0x338] sm:$0xff]
    %v1176 = vld [vmem:[#allocation7 + $0x340] sm:$0xff]
    %v1177 = vld [vmem:[#allocation7 + $0x348] sm:$0xff]
    %v1178 = vld [vmem:[#allocation7 + $0x350] sm:$0xff]
    %v1179 = vld [vmem:[#allocation7 + $0x358] sm:$0xff]
    %v1180 = vld [vmem:[#allocation7 + $0x360] sm:$0xff]
    %v1181 = vld [vmem:[#allocation7 + $0x368] sm:$0xff]
    %v1182 = vld [vmem:[#allocation7 + $0x370] sm:$0xff]
    %v1183 = vld [vmem:[#allocation7 + $0x378] sm:$0xff]
    %v1184 = vld [vmem:[#allocation7 + $0x380] sm:$0xff]
    %v1185 = vld [vmem:[#allocation7 + $0x388] sm:$0xff]
    %v1186 = vld [vmem:[#allocation7 + $0x390] sm:$0xff]
    %v1187 = vld [vmem:[#allocation7 + $0x398] sm:$0xff]
    %v1188 = vld [vmem:[#allocation7 + $0x3a0] sm:$0xff]
    %v1189 = vld [vmem:[#allocation7 + $0x3a8] sm:$0xff]
    %v1190 = vld [vmem:[#allocation7 + $0x3b0] sm:$0xff]
    %v1191 = vld [vmem:[#allocation7 + $0x3b8] sm:$0xff]
    %v1192 = vld [vmem:[#allocation7 + $0x3c0] sm:$0xff]
    %v1193 = vld [vmem:[#allocation7 + $0x3c8] sm:$0xff]
    %v1194 = vld [vmem:[#allocation7 + $0x3d0] sm:$0xff]
    %v1195 = vld [vmem:[#allocation7 + $0x3d8] sm:$0xff]
    %v1196 = vld [vmem:[#allocation7 + $0x3e0] sm:$0xff]
    %v1197 = vld [vmem:[#allocation7 + $0x3e8] sm:$0xff]
    %v1198 = vld [vmem:[#allocation7 + $0x3f0] sm:$0xff]
    %v1199 = vld [vmem:[#allocation7 + $0x3f8] sm:$0xff]
    %v1200 = vld [vmem:[#allocation7 + $0x400] sm:$0xff]
    %v1201 = vld [vmem:[#allocation7 + $0x408] sm:$0xff]
    %v1202 = vld [vmem:[#allocation7 + $0x410] sm:$0xff]
    %v1203 = vld [vmem:[#allocation7 + $0x418] sm:$0xff]
    %v1204 = vld [vmem:[#allocation7 + $0x420] sm:$0xff]
    %v1205 = vld [vmem:[#allocation7 + $0x428] sm:$0xff]
    %v1206 = vld [vmem:[#allocation7 + $0x430] sm:$0xff]
    %v1207 = vld [vmem:[#allocation7 + $0x438] sm:$0xff]
    %v1208 = vld [vmem:[#allocation7 + $0x440] sm:$0xff]
    %v1209 = vld [vmem:[#allocation7 + $0x448] sm:$0xff]
    %v1210 = vld [vmem:[#allocation7 + $0x450] sm:$0xff]
    %v1211 = vld [vmem:[#allocation7 + $0x458] sm:$0xff]
    %v1212 = vld [vmem:[#allocation7 + $0x460] sm:$0xff]
    %v1213 = vld [vmem:[#allocation7 + $0x468] sm:$0xff]
    %v1214 = vld [vmem:[#allocation7 + $0x470] sm:$0xff]
    %v1215 = vld [vmem:[#allocation7 + $0x478] sm:$0xff]
    %v1216 = vld [vmem:[#allocation7 + $0x480] sm:$0xff]
    %v1217 = vld [vmem:[#allocation7 + $0x488] sm:$0xff]
    %v1218 = vld [vmem:[#allocation7 + $0x490] sm:$0xff]
    %v1219 = vld [vmem:[#allocation7 + $0x498] sm:$0xff]
    %v1220 = vld [vmem:[#allocation7 + $0x4a0] sm:$0xff]
    %v1221 = vld [vmem:[#allocation7 + $0x4a8] sm:$0xff]
    %v1222 = vld [vmem:[#allocation7 + $0x4b0] sm:$0xff]
    %v1223 = vld [vmem:[#allocation7 + $0x4b8] sm:$0xff]
    %v1224 = vld [vmem:[#allocation7 + $0x4c0] sm:$0xff]
    %v1225 = vld [vmem:[#allocation7 + $0x4c8] sm:$0xff]
    %v1226 = vld [vmem:[#allocation7 + $0x4d0] sm:$0xff]
    %v1227 = vld [vmem:[#allocation7 + $0x4d8] sm:$0xff]
    %v1228 = vld [vmem:[#allocation7 + $0x4e0] sm:$0xff]
    %v1229 = vld [vmem:[#allocation7 + $0x4e8] sm:$0xff]
    %v1230 = vld [vmem:[#allocation7 + $0x4f0] sm:$0xff]
    %v1231 = vld [vmem:[#allocation7 + $0x4f8] sm:$0xff]
    %v1232 = vld [vmem:[#allocation7 + $0x500] sm:$0xff]
    %v1233 = vld [vmem:[#allocation7 + $0x508] sm:$0xff]
    %v1234 = vld [vmem:[#allocation7 + $0x510] sm:$0xff]
    %v1235 = vld [vmem:[#allocation7 + $0x518] sm:$0xff]
    %v1236 = vld [vmem:[#allocation7 + $0x520] sm:$0xff]
    %v1237 = vld [vmem:[#allocation7 + $0x528] sm:$0xff]
    %v1238 = vld [vmem:[#allocation7 + $0x530] sm:$0xff]
    %v1239 = vld [vmem:[#allocation7 + $0x538] sm:$0xff]
    %v1240 = vld [vmem:[#allocation7 + $0x540] sm:$0xff]
    %v1241 = vld [vmem:[#allocation7 + $0x548] sm:$0xff]
    %v1242 = vld [vmem:[#allocation7 + $0x550] sm:$0xff]
    %v1243 = vld [vmem:[#allocation7 + $0x558] sm:$0xff]
    %v1244 = vld [vmem:[#allocation7 + $0x560] sm:$0xff]
    %v1245 = vld [vmem:[#allocation7 + $0x568] sm:$0xff]
    %v1246 = vld [vmem:[#allocation7 + $0x570] sm:$0xff]
    %v1247 = vld [vmem:[#allocation7 + $0x578] sm:$0xff]
    %v1248 = vld [vmem:[#allocation7 + $0x580] sm:$0xff]
    %v1249 = vld [vmem:[#allocation7 + $0x588] sm:$0xff]
    %v1250 = vld [vmem:[#allocation7 + $0x590] sm:$0xff]
    %v1251 = vld [vmem:[#allocation7 + $0x598] sm:$0xff]
    %v1252 = vld [vmem:[#allocation7 + $0x5a0] sm:$0xff]
    %v1253 = vld [vmem:[#allocation7 + $0x5a8] sm:$0xff]
    %v1254 = vld [vmem:[#allocation7 + $0x5b0] sm:$0xff]
    %v1255 = vld [vmem:[#allocation7 + $0x5b8] sm:$0xff]
    %v1256 = vld [vmem:[#allocation7 + $0x5c0] sm:$0xff]
    %v1257 = vld [vmem:[#allocation7 + $0x5c8] sm:$0xff]
    %v1258 = vld [vmem:[#allocation7 + $0x5d0] sm:$0xff]
    %v1259 = vld [vmem:[#allocation7 + $0x5d8] sm:$0xff]
    %v1260 = vld [vmem:[#allocation7 + $0x5e0] sm:$0xff]
    %v1261 = vld [vmem:[#allocation7 + $0x5e8] sm:$0xff]
    %v1262 = vld [vmem:[#allocation7 + $0x5f0] sm:$0xff]
    %v1263 = vld [vmem:[#allocation7 + $0x5f8] sm:$0xff]
    %v1264 = vld [vmem:[#allocation7 + $0x600] sm:$0xff]
    %v1265 = vld [vmem:[#allocation7 + $0x608] sm:$0xff]
    %v1266 = vld [vmem:[#allocation7 + $0x610] sm:$0xff]
    %v1267 = vld [vmem:[#allocation7 + $0x618] sm:$0xff]
    %v1268 = vld [vmem:[#allocation7 + $0x620] sm:$0xff]
    %v1269 = vld [vmem:[#allocation7 + $0x628] sm:$0xff]
    %v1270 = vld [vmem:[#allocation7 + $0x630] sm:$0xff]
    %v1271 = vld [vmem:[#allocation7 + $0x638] sm:$0xff]
    %v1272 = vld [vmem:[#allocation7 + $0x640] sm:$0xff]
    %v1273 = vld [vmem:[#allocation7 + $0x648] sm:$0xff]
    %v1274 = vld [vmem:[#allocation7 + $0x650] sm:$0xff]
    %v1275 = vld [vmem:[#allocation7 + $0x658] sm:$0xff]
    %v1276 = vld [vmem:[#allocation7 + $0x660] sm:$0xff]
    %v1277 = vld [vmem:[#allocation7 + $0x668] sm:$0xff]
    %v1278 = vld [vmem:[#allocation7 + $0x670] sm:$0xff]
    %v1279 = vld [vmem:[#allocation7 + $0x678] sm:$0xff]
    %v1280 = vld [vmem:[#allocation7 + $0x680] sm:$0xff]
    %v1281 = vld [vmem:[#allocation7 + $0x688] sm:$0xff]
    %v1282 = vld [vmem:[#allocation7 + $0x690] sm:$0xff]
    %v1283 = vld [vmem:[#allocation7 + $0x698] sm:$0xff]
    %v1284 = vld [vmem:[#allocation7 + $0x6a0] sm:$0xff]
    %v1285 = vld [vmem:[#allocation7 + $0x6a8] sm:$0xff]
    %v1286 = vld [vmem:[#allocation7 + $0x6b0] sm:$0xff]
    %v1287 = vld [vmem:[#allocation7 + $0x6b8] sm:$0xff]
    %v1288 = vld [vmem:[#allocation7 + $0x6c0] sm:$0xff]
    %v1289 = vld [vmem:[#allocation7 + $0x6c8] sm:$0xff]
    %v1290 = vld [vmem:[#allocation7 + $0x6d0] sm:$0xff]
    %v1291 = vld [vmem:[#allocation7 + $0x6d8] sm:$0xff]
    %v1292 = vld [vmem:[#allocation7 + $0x6e0] sm:$0xff]
    %v1293 = vld [vmem:[#allocation7 + $0x6e8] sm:$0xff]
    %v1294 = vld [vmem:[#allocation7 + $0x6f0] sm:$0xff]
    %v1295 = vld [vmem:[#allocation7 + $0x6f8] sm:$0xff]
    %v1296 = vld [vmem:[#allocation7 + $0x700] sm:$0xff]
    %v1297 = vld [vmem:[#allocation7 + $0x708] sm:$0xff]
    %v1298 = vld [vmem:[#allocation7 + $0x710] sm:$0xff]
    %v1299 = vld [vmem:[#allocation7 + $0x718] sm:$0xff]
    %v1300 = vld [vmem:[#allocation7 + $0x720] sm:$0xff]
    %v1301 = vld [vmem:[#allocation7 + $0x728] sm:$0xff]
    %v1302 = vld [vmem:[#allocation7 + $0x730] sm:$0xff]
    %v1303 = vld [vmem:[#allocation7 + $0x738] sm:$0xff]
    %v1304 = vld [vmem:[#allocation7 + $0x740] sm:$0xff]
    %v1305 = vld [vmem:[#allocation7 + $0x748] sm:$0xff]
    %v1306 = vld [vmem:[#allocation7 + $0x750] sm:$0xff]
    %v1307 = vld [vmem:[#allocation7 + $0x758] sm:$0xff]
    %v1308 = vld [vmem:[#allocation7 + $0x760] sm:$0xff]
    %v1309 = vld [vmem:[#allocation7 + $0x768] sm:$0xff]
    %v1310 = vld [vmem:[#allocation7 + $0x770] sm:$0xff]
    %v1311 = vld [vmem:[#allocation7 + $0x778] sm:$0xff]
    %v1312 = vld [vmem:[#allocation7 + $0x780] sm:$0xff]
    %v1313 = vld [vmem:[#allocation7 + $0x788] sm:$0xff]
    %v1314 = vld [vmem:[#allocation7 + $0x790] sm:$0xff]
    %v1315 = vld [vmem:[#allocation7 + $0x798] sm:$0xff]
    %v1316 = vld [vmem:[#allocation7 + $0x7a0] sm:$0xff]
    %v1317 = vld [vmem:[#allocation7 + $0x7a8] sm:$0xff]
    %v1318 = vld [vmem:[#allocation7 + $0x7b0] sm:$0xff]
    %v1319 = vld [vmem:[#allocation7 + $0x7b8] sm:$0xff]
    %v1320 = vld [vmem:[#allocation7 + $0x7c0] sm:$0xff]
    %v1321 = vld [vmem:[#allocation7 + $0x7c8] sm:$0xff]
    %v1322 = vld [vmem:[#allocation7 + $0x7d0] sm:$0xff]
    %v1323 = vld [vmem:[#allocation7 + $0x7d8] sm:$0xff]
    %v1324 = vld [vmem:[#allocation7 + $0x7e0] sm:$0xff]
    %v1325 = vld [vmem:[#allocation7 + $0x7e8] sm:$0xff]
    %v1326 = vld [vmem:[#allocation7 + $0x7f0] sm:$0xff]
    %v1327 = vld [vmem:[#allocation7 + $0x7f8] sm:$0xff]
    %v1328 = vld [vmem:[#allocation7 + $0x800] sm:$0xff]
    %v1329 = vld [vmem:[#allocation7 + $0x808] sm:$0xff]
    %v1330 = vld [vmem:[#allocation7 + $0x810] sm:$0xff]
    %v1331 = vld [vmem:[#allocation7 + $0x818] sm:$0xff]
    %v1332 = vld [vmem:[#allocation7 + $0x820] sm:$0xff]
    %v1333 = vld [vmem:[#allocation7 + $0x828] sm:$0xff]
    %v1334 = vld [vmem:[#allocation7 + $0x830] sm:$0xff]
    %v1335 = vld [vmem:[#allocation7 + $0x838] sm:$0xff]
    %v1336 = vld [vmem:[#allocation7 + $0x840] sm:$0xff]
    %v1337 = vld [vmem:[#allocation7 + $0x848] sm:$0xff]
    %v1338 = vld [vmem:[#allocation7 + $0x850] sm:$0xff]
    %v1339 = vld [vmem:[#allocation7 + $0x858] sm:$0xff]
    %v1340 = vld [vmem:[#allocation7 + $0x860] sm:$0xff]
    %v1341 = vld [vmem:[#allocation7 + $0x868] sm:$0xff]
    %v1342 = vld [vmem:[#allocation7 + $0x870] sm:$0xff]
    %v1343 = vld [vmem:[#allocation7 + $0x878] sm:$0xff]
    %v1344 = vld [vmem:[#allocation7 + $0x880] sm:$0xff]
    %v1345 = vld [vmem:[#allocation7 + $0x888] sm:$0xff]
    %v1346 = vld [vmem:[#allocation7 + $0x890] sm:$0xff]
    %v1347 = vld [vmem:[#allocation7 + $0x898] sm:$0xff]
    %v1348 = vld [vmem:[#allocation7 + $0x8a0] sm:$0xff]
    %v1349 = vld [vmem:[#allocation7 + $0x8a8] sm:$0xff]
    %v1350 = vld [vmem:[#allocation7 + $0x8b0] sm:$0xff]
    %v1351 = vld [vmem:[#allocation7 + $0x8b8] sm:$0xff]
    %v1352 = vld [vmem:[#allocation7 + $0x8c0] sm:$0xff]
    %v1353 = vld [vmem:[#allocation7 + $0x8c8] sm:$0xff]
    %v1354 = vld [vmem:[#allocation7 + $0x8d0] sm:$0xff]
    %v1355 = vld [vmem:[#allocation7 + $0x8d8] sm:$0xff]
    %v1356 = vld [vmem:[#allocation7 + $0x8e0] sm:$0xff]
    %v1357 = vld [vmem:[#allocation7 + $0x8e8] sm:$0xff]
    %v1358 = vld [vmem:[#allocation7 + $0x8f0] sm:$0xff]
    %v1359 = vld [vmem:[#allocation7 + $0x8f8] sm:$0xff]
    %v1360 = vld [vmem:[#allocation7 + $0x900] sm:$0xff]
    %v1361 = vld [vmem:[#allocation7 + $0x908] sm:$0xff]
    %v1362 = vld [vmem:[#allocation7 + $0x910] sm:$0xff]
    %v1363 = vld [vmem:[#allocation7 + $0x918] sm:$0xff]
    %v1364 = vld [vmem:[#allocation7 + $0x920] sm:$0xff]
    %v1365 = vld [vmem:[#allocation7 + $0x928] sm:$0xff]
    %v1366 = vld [vmem:[#allocation7 + $0x930] sm:$0xff]
    %v1367 = vld [vmem:[#allocation7 + $0x938] sm:$0xff]
    %v1368 = vld [vmem:[#allocation7 + $0x940] sm:$0xff]
    %v1369 = vld [vmem:[#allocation7 + $0x948] sm:$0xff]
    %v1370 = vld [vmem:[#allocation7 + $0x950] sm:$0xff]
    %v1371 = vld [vmem:[#allocation7 + $0x958] sm:$0xff]
    %v1372 = vld [vmem:[#allocation7 + $0x960] sm:$0xff]
    %v1373 = vld [vmem:[#allocation7 + $0x968] sm:$0xff]
    %v1374 = vld [vmem:[#allocation7 + $0x970] sm:$0xff]
    %v1375 = vld [vmem:[#allocation7 + $0x978] sm:$0xff]
    %v1376 = vld [vmem:[#allocation7 + $0x980] sm:$0xff]
    %v1377 = vld [vmem:[#allocation7 + $0x988] sm:$0xff]
    %v1378 = vld [vmem:[#allocation7 + $0x990] sm:$0xff]
    %v1379 = vld [vmem:[#allocation7 + $0x998] sm:$0xff]
    %v1380 = vld [vmem:[#allocation7 + $0x9a0] sm:$0xff]
    %v1381 = vld [vmem:[#allocation7 + $0x9a8] sm:$0xff]
    %v1382 = vld [vmem:[#allocation7 + $0x9b0] sm:$0xff]
    %v1383 = vld [vmem:[#allocation7 + $0x9b8] sm:$0xff]
    %v1384 = vld [vmem:[#allocation7 + $0x9c0] sm:$0xff]
    %v1385 = vld [vmem:[#allocation7 + $0x9c8] sm:$0xff]
    %v1386 = vld [vmem:[#allocation7 + $0x9d0] sm:$0xff]
    %v1387 = vld [vmem:[#allocation7 + $0x9d8] sm:$0xff]
    %v1388 = vld [vmem:[#allocation7 + $0x9e0] sm:$0xff]
    %v1389 = vld [vmem:[#allocation7 + $0x9e8] sm:$0xff]
    %v1390 = vld [vmem:[#allocation7 + $0x9f0] sm:$0xff]
    %v1391 = vld [vmem:[#allocation7 + $0x9f8] sm:$0xff]
    %v1392 = vld [vmem:[#allocation7 + $0xa00] sm:$0xff]
    %v1393 = vld [vmem:[#allocation7 + $0xa08] sm:$0xff]
    %v1394 = vld [vmem:[#allocation7 + $0xa10] sm:$0xff]
    %v1395 = vld [vmem:[#allocation7 + $0xa18] sm:$0xff]
    %v1396 = vld [vmem:[#allocation7 + $0xa20] sm:$0xff]
    %v1397 = vld [vmem:[#allocation7 + $0xa28] sm:$0xff]
    %v1398 = vld [vmem:[#allocation7 + $0xa30] sm:$0xff]
    %v1399 = vld [vmem:[#allocation7 + $0xa38] sm:$0xff]
    %v1400 = vld [vmem:[#allocation7 + $0xa40] sm:$0xff]
    %v1401 = vld [vmem:[#allocation7 + $0xa48] sm:$0xff]
    %v1402 = vld [vmem:[#allocation7 + $0xa50] sm:$0xff]
    %v1403 = vld [vmem:[#allocation7 + $0xa58] sm:$0xff]
    %v1404 = vld [vmem:[#allocation7 + $0xa60] sm:$0xff]
    %v1405 = vld [vmem:[#allocation7 + $0xa68] sm:$0xff]
    %v1406 = vld [vmem:[#allocation7 + $0xa70] sm:$0xff]
    %v1407 = vld [vmem:[#allocation7 + $0xa78] sm:$0xff]
    %v1408 = vld [vmem:[#allocation7 + $0xa80] sm:$0xff]
    %v1409 = vld [vmem:[#allocation7 + $0xa88] sm:$0xff]
    %v1410 = vld [vmem:[#allocation7 + $0xa90] sm:$0xff]
    %v1411 = vld [vmem:[#allocation7 + $0xa98] sm:$0xff]
    %v1412 = vld [vmem:[#allocation7 + $0xaa0] sm:$0xff]
    %v1413 = vld [vmem:[#allocation7 + $0xaa8] sm:$0xff]
    %v1414 = vld [vmem:[#allocation7 + $0xab0] sm:$0xff]
    %v1415 = vld [vmem:[#allocation7 + $0xab8] sm:$0xff]
    %v1416 = vld [vmem:[#allocation7 + $0xac0] sm:$0xff]
    %v1417 = vld [vmem:[#allocation7 + $0xac8] sm:$0xff]
    %v1418 = vld [vmem:[#allocation7 + $0xad0] sm:$0xff]
    %v1419 = vld [vmem:[#allocation7 + $0xad8] sm:$0xff]
    %v1420 = vld [vmem:[#allocation7 + $0xae0] sm:$0xff]
    %v1421 = vld [vmem:[#allocation7 + $0xae8] sm:$0xff]
    %v1422 = vld [vmem:[#allocation7 + $0xaf0] sm:$0xff]
    %v1423 = vld [vmem:[#allocation7 + $0xaf8] sm:$0xff]
    %v1424 = vld [vmem:[#allocation7 + $0xb00] sm:$0xff]
    %v1425 = vld [vmem:[#allocation7 + $0xb08] sm:$0xff]
    %v1426 = vld [vmem:[#allocation7 + $0xb10] sm:$0xff]
    %v1427 = vld [vmem:[#allocation7 + $0xb18] sm:$0xff]
    %v1428 = vld [vmem:[#allocation7 + $0xb20] sm:$0xff]
    %v1429 = vld [vmem:[#allocation7 + $0xb28] sm:$0xff]
    %v1430 = vld [vmem:[#allocation7 + $0xb30] sm:$0xff]
    %v1431 = vld [vmem:[#allocation7 + $0xb38] sm:$0xff]
    %v1432 = vld [vmem:[#allocation7 + $0xb40] sm:$0xff]
    %v1433 = vld [vmem:[#allocation7 + $0xb48] sm:$0xff]
    %v1434 = vld [vmem:[#allocation7 + $0xb50] sm:$0xff]
    %v1435 = vld [vmem:[#allocation7 + $0xb58] sm:$0xff]
    %v1436 = vld [vmem:[#allocation7 + $0xb60] sm:$0xff]
    %v1437 = vld [vmem:[#allocation7 + $0xb68] sm:$0xff]
    %v1438 = vld [vmem:[#allocation7 + $0xb70] sm:$0xff]
    %v1439 = vld [vmem:[#allocation7 + $0xb78] sm:$0xff]
    %v1440 = vld [vmem:[#allocation7 + $0xb80] sm:$0xff]
    %v1441 = vld [vmem:[#allocation7 + $0xb88] sm:$0xff]
    %v1442 = vld [vmem:[#allocation7 + $0xb90] sm:$0xff]
    %v1443 = vld [vmem:[#allocation7 + $0xb98] sm:$0xff]
    %v1444 = vld [vmem:[#allocation7 + $0xba0] sm:$0xff]
    %v1445 = vld [vmem:[#allocation7 + $0xba8] sm:$0xff]
    %v1446 = vld [vmem:[#allocation7 + $0xbb0] sm:$0xff]
    %v1447 = vld [vmem:[#allocation7 + $0xbb8] sm:$0xff]
    %v1448 = vld [vmem:[#allocation7 + $0xbc0] sm:$0xff]
    %v1449 = vld [vmem:[#allocation7 + $0xbc8] sm:$0xff]
    %v1450 = vld [vmem:[#allocation7 + $0xbd0] sm:$0xff]
    %v1451 = vld [vmem:[#allocation7 + $0xbd8] sm:$0xff]
    %v1452 = vld [vmem:[#allocation7 + $0xbe0] sm:$0xff]
    %v1453 = vld [vmem:[#allocation7 + $0xbe8] sm:$0xff]
    %v1454 = vld [vmem:[#allocation7 + $0xbf0] sm:$0xff]
    %v1455 = vld [vmem:[#allocation7 + $0xbf8] sm:$0xff]
    %v1456 = vld [vmem:[#allocation7 + $0xc00] sm:$0xff]
    %v1457 = vld [vmem:[#allocation7 + $0xc08] sm:$0xff]
    %v1458 = vld [vmem:[#allocation7 + $0xc10] sm:$0xff]
    %v1459 = vld [vmem:[#allocation7 + $0xc18] sm:$0xff]
    %v1460 = vld [vmem:[#allocation7 + $0xc20] sm:$0xff]
    %v1461 = vld [vmem:[#allocation7 + $0xc28] sm:$0xff]
    %v1462 = vld [vmem:[#allocation7 + $0xc30] sm:$0xff]
    %v1463 = vld [vmem:[#allocation7 + $0xc38] sm:$0xff]
    %v1464 = vld [vmem:[#allocation7 + $0xc40] sm:$0xff]
    %v1465 = vld [vmem:[#allocation7 + $0xc48] sm:$0xff]
    %v1466 = vld [vmem:[#allocation7 + $0xc50] sm:$0xff]
    %v1467 = vld [vmem:[#allocation7 + $0xc58] sm:$0xff]
    %v1468 = vld [vmem:[#allocation7 + $0xc60] sm:$0xff]
    %v1469 = vld [vmem:[#allocation7 + $0xc68] sm:$0xff]
    %v1470 = vld [vmem:[#allocation7 + $0xc70] sm:$0xff]
    %v1471 = vld [vmem:[#allocation7 + $0xc78] sm:$0xff]
    %v1472 = vld [vmem:[#allocation7 + $0xc80] sm:$0xff]
    %v1473 = vld [vmem:[#allocation7 + $0xc88] sm:$0xff]
    %v1474 = vld [vmem:[#allocation7 + $0xc90] sm:$0xff]
    %v1475 = vld [vmem:[#allocation7 + $0xc98] sm:$0xff]
    %v1476 = vld [vmem:[#allocation7 + $0xca0] sm:$0xff]
    %v1477 = vld [vmem:[#allocation7 + $0xca8] sm:$0xff]
    %v1478 = vld [vmem:[#allocation7 + $0xcb0] sm:$0xff]
    %v1479 = vld [vmem:[#allocation7 + $0xcb8] sm:$0xff]
    %v1480 = vld [vmem:[#allocation7 + $0xcc0] sm:$0xff]
    %v1481 = vld [vmem:[#allocation7 + $0xcc8] sm:$0xff]
    %v1482 = vld [vmem:[#allocation7 + $0xcd0] sm:$0xff]
    %v1483 = vld [vmem:[#allocation7 + $0xcd8] sm:$0xff]
    %v1484 = vld [vmem:[#allocation7 + $0xce0] sm:$0xff]
    %v1485 = vld [vmem:[#allocation7 + $0xce8] sm:$0xff]
    %v1486 = vld [vmem:[#allocation7 + $0xcf0] sm:$0xff]
    %v1487 = vld [vmem:[#allocation7 + $0xcf8] sm:$0xff]
    %v1488 = vld [vmem:[#allocation7 + $0xd00] sm:$0xff]
    %v1489 = vld [vmem:[#allocation7 + $0xd08] sm:$0xff]
    %v1490 = vld [vmem:[#allocation7 + $0xd10] sm:$0xff]
    %v1491 = vld [vmem:[#allocation7 + $0xd18] sm:$0xff]
    %v1492 = vld [vmem:[#allocation7 + $0xd20] sm:$0xff]
    %v1493 = vld [vmem:[#allocation7 + $0xd28] sm:$0xff]
    %v1494 = vld [vmem:[#allocation7 + $0xd30] sm:$0xff]
    %v1495 = vld [vmem:[#allocation7 + $0xd38] sm:$0xff]
    %v1496 = vld [vmem:[#allocation7 + $0xd40] sm:$0xff]
    %v1497 = vld [vmem:[#allocation7 + $0xd48] sm:$0xff]
    %v1498 = vld [vmem:[#allocation7 + $0xd50] sm:$0xff]
    %v1499 = vld [vmem:[#allocation7 + $0xd58] sm:$0xff]
    %v1500 = vld [vmem:[#allocation7 + $0xd60] sm:$0xff]
    %v1501 = vld [vmem:[#allocation7 + $0xd68] sm:$0xff]
    %v1502 = vld [vmem:[#allocation7 + $0xd70] sm:$0xff]
    %v1503 = vld [vmem:[#allocation7 + $0xd78] sm:$0xff]
    %v1504 = vld [vmem:[#allocation7 + $0xd80] sm:$0xff]
    %v1505 = vld [vmem:[#allocation7 + $0xd88] sm:$0xff]
    %v1506 = vld [vmem:[#allocation7 + $0xd90] sm:$0xff]
    %v1507 = vld [vmem:[#allocation7 + $0xd98] sm:$0xff]
    %v1508 = vld [vmem:[#allocation7 + $0xda0] sm:$0xff]
    %v1509 = vld [vmem:[#allocation7 + $0xda8] sm:$0xff]
    %v1510 = vld [vmem:[#allocation7 + $0xdb0] sm:$0xff]
    %v1511 = vld [vmem:[#allocation7 + $0xdb8] sm:$0xff]
    %v1512 = vld [vmem:[#allocation7 + $0xdc0] sm:$0xff]
    %v1513 = vld [vmem:[#allocation7 + $0xdc8] sm:$0xff]
    %v1514 = vld [vmem:[#allocation7 + $0xdd0] sm:$0xff]
    %v1515 = vld [vmem:[#allocation7 + $0xdd8] sm:$0xff]
    %v1516 = vld [vmem:[#allocation7 + $0xde0] sm:$0xff]
    %v1517 = vld [vmem:[#allocation7 + $0xde8] sm:$0xff]
    %v1518 = vld [vmem:[#allocation7 + $0xdf0] sm:$0xff]
    %v1519 = vld [vmem:[#allocation7 + $0xdf8] sm:$0xff]
    %v1520 = vld [vmem:[#allocation7 + $0xe00] sm:$0xff]
    %v1521 = vld [vmem:[#allocation7 + $0xe08] sm:$0xff]
    %v1522 = vld [vmem:[#allocation7 + $0xe10] sm:$0xff]
    %v1523 = vld [vmem:[#allocation7 + $0xe18] sm:$0xff]
    %v1524 = vld [vmem:[#allocation7 + $0xe20] sm:$0xff]
    %v1525 = vld [vmem:[#allocation7 + $0xe28] sm:$0xff]
    %v1526 = vld [vmem:[#allocation7 + $0xe30] sm:$0xff]
    %v1527 = vld [vmem:[#allocation7 + $0xe38] sm:$0xff]
    %v1528 = vld [vmem:[#allocation7 + $0xe40] sm:$0xff]
    %v1529 = vld [vmem:[#allocation7 + $0xe48] sm:$0xff]
    %v1530 = vld [vmem:[#allocation7 + $0xe50] sm:$0xff]
    %v1531 = vld [vmem:[#allocation7 + $0xe58] sm:$0xff]
    %v1532 = vld [vmem:[#allocation7 + $0xe60] sm:$0xff]
    %v1533 = vld [vmem:[#allocation7 + $0xe68] sm:$0xff]
    %v1534 = vld [vmem:[#allocation7 + $0xe70] sm:$0xff]
    %v1535 = vld [vmem:[#allocation7 + $0xe78] sm:$0xff]
    %v1536 = vld [vmem:[#allocation7 + $0xe80] sm:$0xff]
    %v1537 = vld [vmem:[#allocation7 + $0xe88] sm:$0xff]
    %v1538 = vld [vmem:[#allocation7 + $0xe90] sm:$0xff]
    %v1539 = vld [vmem:[#allocation7 + $0xe98] sm:$0xff]
    %v1540 = vld [vmem:[#allocation7 + $0xea0] sm:$0xff]
    %v1541 = vld [vmem:[#allocation7 + $0xea8] sm:$0xff]
    %v1542 = vld [vmem:[#allocation7 + $0xeb0] sm:$0xff]
    %v1543 = vld [vmem:[#allocation7 + $0xeb8] sm:$0xff]
    %v1544 = vld [vmem:[#allocation7 + $0xec0] sm:$0xff]
    %v1545 = vld [vmem:[#allocation7 + $0xec8] sm:$0xff]
    %v1546 = vld [vmem:[#allocation7 + $0xed0] sm:$0xff]
    %v1547 = vld [vmem:[#allocation7 + $0xed8] sm:$0xff]
    %v1548 = vld [vmem:[#allocation7 + $0xee0] sm:$0xff]
    %v1549 = vld [vmem:[#allocation7 + $0xee8] sm:$0xff]
    %v1550 = vld [vmem:[#allocation7 + $0xef0] sm:$0xff]
    %v1551 = vld [vmem:[#allocation7 + $0xef8] sm:$0xff]
    %v1552 = vld [vmem:[#allocation7 + $0xf00] sm:$0xff]
    %v1553 = vld [vmem:[#allocation7 + $0xf08] sm:$0xff]
    %v1554 = vld [vmem:[#allocation7 + $0xf10] sm:$0xff]
    %v1555 = vld [vmem:[#allocation7 + $0xf18] sm:$0xff]
    %v1556 = vld [vmem:[#allocation7 + $0xf20] sm:$0xff]
    %v1557 = vld [vmem:[#allocation7 + $0xf28] sm:$0xff]
    %v1558 = vld [vmem:[#allocation7 + $0xf30] sm:$0xff]
    %v1559 = vld [vmem:[#allocation7 + $0xf38] sm:$0xff]
    %v1560 = vld [vmem:[#allocation7 + $0xf40] sm:$0xff]
    %v1561 = vld [vmem:[#allocation7 + $0xf48] sm:$0xff]
    %v1562 = vld [vmem:[#allocation7 + $0xf50] sm:$0xff]
    %v1563 = vld [vmem:[#allocation7 + $0xf58] sm:$0xff]
    %v1564 = vld [vmem:[#allocation7 + $0xf60] sm:$0xff]
    %v1565 = vld [vmem:[#allocation7 + $0xf68] sm:$0xff]
    %v1566 = vld [vmem:[#allocation7 + $0xf70] sm:$0xff]
    %v1567 = vld [vmem:[#allocation7 + $0xf78] sm:$0xff]
    %v1568 = vld [vmem:[#allocation7 + $0xf80] sm:$0xff]
    %v1569 = vld [vmem:[#allocation7 + $0xf88] sm:$0xff]
    %v1570 = vld [vmem:[#allocation7 + $0xf90] sm:$0xff]
    %v1571 = vld [vmem:[#allocation7 + $0xf98] sm:$0xff]
    %v1572 = vld [vmem:[#allocation7 + $0xfa0] sm:$0xff]
    %v1573 = vld [vmem:[#allocation7 + $0xfa8] sm:$0xff]
    %v1574 = vld [vmem:[#allocation7 + $0xfb0] sm:$0xff]
    %v1575 = vld [vmem:[#allocation7 + $0xfb8] sm:$0xff]
    %v1576 = vld [vmem:[#allocation7 + $0xfc0] sm:$0xff]
    %v1577 = vld [vmem:[#allocation7 + $0xfc8] sm:$0xff]
    %v1578 = vld [vmem:[#allocation7 + $0xfd0] sm:$0xff]
    %v1579 = vld [vmem:[#allocation7 + $0xfd8] sm:$0xff]
    %v1580 = vld [vmem:[#allocation7 + $0xfe0] sm:$0xff]
    %v1581 = vld [vmem:[#allocation7 + $0xfe8] sm:$0xff]
    %v1582 = vld [vmem:[#allocation7 + $0xff0] sm:$0xff]
    %v1583 = vld [vmem:[#allocation7 + $0xff8] sm:$0xff]
    %v1584 = vld [vmem:[#allocation9] sm:$0xff]
    %v1586 = vlaneseq
    %v1587 = vshrl.u32 %v1586, 7
    %v1588 = vsub.s32 0, %v1587
    %v1589 = vrot.slane %v1584, %v1588
    %v1590 = vlaneseq
    %v1591 = vshrl.u32 %v1590, 7
    %v1592 = vsub.s32 1, %v1591
    %v1593 = vrot.slane %v1584, %v1592
    %v1594 = vlaneseq
    %v1595 = vshrl.u32 %v1594, 7
    %v1596 = vsub.s32 2, %v1595
    %v1597 = vrot.slane %v1584, %v1596
    %v1598 = vlaneseq
    %v1599 = vshrl.u32 %v1598, 7
    %v1600 = vsub.s32 3, %v1599
    %v1601 = vrot.slane %v1584, %v1600
    %v1602 = vlaneseq
    %v1603 = vshrl.u32 %v1602, 7
    %v1604 = vsub.s32 4, %v1603
    %v1605 = vrot.slane %v1584, %v1604
    %v1606 = vlaneseq
    %v1607 = vshrl.u32 %v1606, 7
    %v1608 = vsub.s32 5, %v1607
    %v1609 = vrot.slane %v1584, %v1608
    %v1610 = vlaneseq
    %v1611 = vshrl.u32 %v1610, 7
    %v1612 = vsub.s32 6, %v1611
    %v1613 = vrot.slane %v1584, %v1612
    %v1614 = vlaneseq
    %v1615 = vshrl.u32 %v1614, 7
    %v1616 = vsub.s32 7, %v1615
    %v1617 = vrot.slane %v1584, %v1616
    %v2138 = vunpack.c.l.b16 %v1072
    %v2139 = vunpack.c.h.b16 %v1072
    %v2140 = vunpack.c.l.b16 %v1073
    %v2141 = vunpack.c.h.b16 %v1073
    %v2142 = vunpack.c.l.b16 %v1074
    %v2143 = vunpack.c.h.b16 %v1074
    %v2144 = vunpack.c.l.b16 %v1075
    %v2145 = vunpack.c.h.b16 %v1075
    %v2146 = vunpack.c.l.b16 %v1076
    %v2147 = vunpack.c.h.b16 %v1076
    %v2148 = vunpack.c.l.b16 %v1077
    %v2149 = vunpack.c.h.b16 %v1077
    %v2150 = vunpack.c.l.b16 %v1078
    %v2151 = vunpack.c.h.b16 %v1078
    %v2152 = vunpack.c.l.b16 %v1079
    %v2153 = vunpack.c.h.b16 %v1079
    %v2154 = vunpack.c.l.b16 %v1080
    %v2155 = vunpack.c.h.b16 %v1080
    %v2156 = vunpack.c.l.b16 %v1081
    %v2157 = vunpack.c.h.b16 %v1081
    %v2158 = vunpack.c.l.b16 %v1082
    %v2159 = vunpack.c.h.b16 %v1082
    %v2160 = vunpack.c.l.b16 %v1083
    %v2161 = vunpack.c.h.b16 %v1083
    %v2162 = vunpack.c.l.b16 %v1084
    %v2163 = vunpack.c.h.b16 %v1084
    %v2164 = vunpack.c.l.b16 %v1085
    %v2165 = vunpack.c.h.b16 %v1085
    %v2166 = vunpack.c.l.b16 %v1086
    %v2167 = vunpack.c.h.b16 %v1086
    %v2168 = vunpack.c.l.b16 %v1087
    %v2169 = vunpack.c.h.b16 %v1087
    %v2170 = vunpack.c.l.b16 %v1088
    %v2171 = vunpack.c.h.b16 %v1088
    %v2172 = vunpack.c.l.b16 %v1089
    %v2173 = vunpack.c.h.b16 %v1089
    %v2174 = vunpack.c.l.b16 %v1090
    %v2175 = vunpack.c.h.b16 %v1090
    %v2176 = vunpack.c.l.b16 %v1091
    %v2177 = vunpack.c.h.b16 %v1091
    %v2178 = vunpack.c.l.b16 %v1092
    %v2179 = vunpack.c.h.b16 %v1092
    %v2180 = vunpack.c.l.b16 %v1093
    %v2181 = vunpack.c.h.b16 %v1093
    %v2182 = vunpack.c.l.b16 %v1094
    %v2183 = vunpack.c.h.b16 %v1094
    %v2184 = vunpack.c.l.b16 %v1095
    %v2185 = vunpack.c.h.b16 %v1095
    %v2186 = vunpack.c.l.b16 %v1096
    %v2187 = vunpack.c.h.b16 %v1096
    %v2188 = vunpack.c.l.b16 %v1097
    %v2189 = vunpack.c.h.b16 %v1097
    %v2190 = vunpack.c.l.b16 %v1098
    %v2191 = vunpack.c.h.b16 %v1098
    %v2192 = vunpack.c.l.b16 %v1099
    %v2193 = vunpack.c.h.b16 %v1099
    %v2194 = vunpack.c.l.b16 %v1100
    %v2195 = vunpack.c.h.b16 %v1100
    %v2196 = vunpack.c.l.b16 %v1101
    %v2197 = vunpack.c.h.b16 %v1101
    %v2198 = vunpack.c.l.b16 %v1102
    %v2199 = vunpack.c.h.b16 %v1102
    %v2200 = vunpack.c.l.b16 %v1103
    %v2201 = vunpack.c.h.b16 %v1103
    %v2202 = vunpack.c.l.b16 %v1104
    %v2203 = vunpack.c.h.b16 %v1104
    %v2204 = vunpack.c.l.b16 %v1105
    %v2205 = vunpack.c.h.b16 %v1105
    %v2206 = vunpack.c.l.b16 %v1106
    %v2207 = vunpack.c.h.b16 %v1106
    %v2208 = vunpack.c.l.b16 %v1107
    %v2209 = vunpack.c.h.b16 %v1107
    %v2210 = vunpack.c.l.b16 %v1108
    %v2211 = vunpack.c.h.b16 %v1108
    %v2212 = vunpack.c.l.b16 %v1109
    %v2213 = vunpack.c.h.b16 %v1109
    %v2214 = vunpack.c.l.b16 %v1110
    %v2215 = vunpack.c.h.b16 %v1110
    %v2216 = vunpack.c.l.b16 %v1111
    %v2217 = vunpack.c.h.b16 %v1111
    %v2218 = vunpack.c.l.b16 %v1112
    %v2219 = vunpack.c.h.b16 %v1112
    %v2220 = vunpack.c.l.b16 %v1113
    %v2221 = vunpack.c.h.b16 %v1113
    %v2222 = vunpack.c.l.b16 %v1114
    %v2223 = vunpack.c.h.b16 %v1114
    %v2224 = vunpack.c.l.b16 %v1115
    %v2225 = vunpack.c.h.b16 %v1115
    %v2226 = vunpack.c.l.b16 %v1116
    %v2227 = vunpack.c.h.b16 %v1116
    %v2228 = vunpack.c.l.b16 %v1117
    %v2229 = vunpack.c.h.b16 %v1117
    %v2230 = vunpack.c.l.b16 %v1118
    %v2231 = vunpack.c.h.b16 %v1118
    %v2232 = vunpack.c.l.b16 %v1119
    %v2233 = vunpack.c.h.b16 %v1119
    %v2234 = vunpack.c.l.b16 %v1120
    %v2235 = vunpack.c.h.b16 %v1120
    %v2236 = vunpack.c.l.b16 %v1121
    %v2237 = vunpack.c.h.b16 %v1121
    %v2238 = vunpack.c.l.b16 %v1122
    %v2239 = vunpack.c.h.b16 %v1122
    %v2240 = vunpack.c.l.b16 %v1123
    %v2241 = vunpack.c.h.b16 %v1123
    %v2242 = vunpack.c.l.b16 %v1124
    %v2243 = vunpack.c.h.b16 %v1124
    %v2244 = vunpack.c.l.b16 %v1125
    %v2245 = vunpack.c.h.b16 %v1125
    %v2246 = vunpack.c.l.b16 %v1126
    %v2247 = vunpack.c.h.b16 %v1126
    %v2248 = vunpack.c.l.b16 %v1127
    %v2249 = vunpack.c.h.b16 %v1127
    %v2250 = vunpack.c.l.b16 %v1128
    %v2251 = vunpack.c.h.b16 %v1128
    %v2252 = vunpack.c.l.b16 %v1129
    %v2253 = vunpack.c.h.b16 %v1129
    %v2254 = vunpack.c.l.b16 %v1130
    %v2255 = vunpack.c.h.b16 %v1130
    %v2256 = vunpack.c.l.b16 %v1131
    %v2257 = vunpack.c.h.b16 %v1131
    %v2258 = vunpack.c.l.b16 %v1132
    %v2259 = vunpack.c.h.b16 %v1132
    %v2260 = vunpack.c.l.b16 %v1133
    %v2261 = vunpack.c.h.b16 %v1133
    %v2262 = vunpack.c.l.b16 %v1134
    %v2263 = vunpack.c.h.b16 %v1134
    %v2264 = vunpack.c.l.b16 %v1135
    %v2265 = vunpack.c.h.b16 %v1135
    %v2266 = vunpack.c.l.b16 %v1136
    %v2267 = vunpack.c.h.b16 %v1136
    %v2268 = vunpack.c.l.b16 %v1137
    %v2269 = vunpack.c.h.b16 %v1137
    %v2270 = vunpack.c.l.b16 %v1138
    %v2271 = vunpack.c.h.b16 %v1138
    %v2272 = vunpack.c.l.b16 %v1139
    %v2273 = vunpack.c.h.b16 %v1139
    %v2274 = vunpack.c.l.b16 %v1140
    %v2275 = vunpack.c.h.b16 %v1140
    %v2276 = vunpack.c.l.b16 %v1141
    %v2277 = vunpack.c.h.b16 %v1141
    %v2278 = vunpack.c.l.b16 %v1142
    %v2279 = vunpack.c.h.b16 %v1142
    %v2280 = vunpack.c.l.b16 %v1143
    %v2281 = vunpack.c.h.b16 %v1143
    %v2282 = vunpack.c.l.b16 %v1144
    %v2283 = vunpack.c.h.b16 %v1144
    %v2284 = vunpack.c.l.b16 %v1145
    %v2285 = vunpack.c.h.b16 %v1145
    %v2286 = vunpack.c.l.b16 %v1146
    %v2287 = vunpack.c.h.b16 %v1146
    %v2288 = vunpack.c.l.b16 %v1147
    %v2289 = vunpack.c.h.b16 %v1147
    %v2290 = vunpack.c.l.b16 %v1148
    %v2291 = vunpack.c.h.b16 %v1148
    %v2292 = vunpack.c.l.b16 %v1149
    %v2293 = vunpack.c.h.b16 %v1149
    %v2294 = vunpack.c.l.b16 %v1150
    %v2295 = vunpack.c.h.b16 %v1150
    %v2296 = vunpack.c.l.b16 %v1151
    %v2297 = vunpack.c.h.b16 %v1151
    %v2298 = vunpack.c.l.b16 %v1152
    %v2299 = vunpack.c.h.b16 %v1152
    %v2300 = vunpack.c.l.b16 %v1153
    %v2301 = vunpack.c.h.b16 %v1153
    %v2302 = vunpack.c.l.b16 %v1154
    %v2303 = vunpack.c.h.b16 %v1154
    %v2304 = vunpack.c.l.b16 %v1155
    %v2305 = vunpack.c.h.b16 %v1155
    %v2306 = vunpack.c.l.b16 %v1156
    %v2307 = vunpack.c.h.b16 %v1156
    %v2308 = vunpack.c.l.b16 %v1157
    %v2309 = vunpack.c.h.b16 %v1157
    %v2310 = vunpack.c.l.b16 %v1158
    %v2311 = vunpack.c.h.b16 %v1158
    %v2312 = vunpack.c.l.b16 %v1159
    %v2313 = vunpack.c.h.b16 %v1159
    %v2314 = vunpack.c.l.b16 %v1160
    %v2315 = vunpack.c.h.b16 %v1160
    %v2316 = vunpack.c.l.b16 %v1161
    %v2317 = vunpack.c.h.b16 %v1161
    %v2318 = vunpack.c.l.b16 %v1162
    %v2319 = vunpack.c.h.b16 %v1162
    %v2320 = vunpack.c.l.b16 %v1163
    %v2321 = vunpack.c.h.b16 %v1163
    %v2322 = vunpack.c.l.b16 %v1164
    %v2323 = vunpack.c.h.b16 %v1164
    %v2324 = vunpack.c.l.b16 %v1165
    %v2325 = vunpack.c.h.b16 %v1165
    %v2326 = vunpack.c.l.b16 %v1166
    %v2327 = vunpack.c.h.b16 %v1166
    %v2328 = vunpack.c.l.b16 %v1167
    %v2329 = vunpack.c.h.b16 %v1167
    %v2330 = vunpack.c.l.b16 %v1168
    %v2331 = vunpack.c.h.b16 %v1168
    %v2332 = vunpack.c.l.b16 %v1169
    %v2333 = vunpack.c.h.b16 %v1169
    %v2334 = vunpack.c.l.b16 %v1170
    %v2335 = vunpack.c.h.b16 %v1170
    %v2336 = vunpack.c.l.b16 %v1171
    %v2337 = vunpack.c.h.b16 %v1171
    %v2338 = vunpack.c.l.b16 %v1172
    %v2339 = vunpack.c.h.b16 %v1172
    %v2340 = vunpack.c.l.b16 %v1173
    %v2341 = vunpack.c.h.b16 %v1173
    %v2342 = vunpack.c.l.b16 %v1174
    %v2343 = vunpack.c.h.b16 %v1174
    %v2344 = vunpack.c.l.b16 %v1175
    %v2345 = vunpack.c.h.b16 %v1175
    %v2346 = vunpack.c.l.b16 %v1176
    %v2347 = vunpack.c.h.b16 %v1176
    %v2348 = vunpack.c.l.b16 %v1177
    %v2349 = vunpack.c.h.b16 %v1177
    %v2350 = vunpack.c.l.b16 %v1178
    %v2351 = vunpack.c.h.b16 %v1178
    %v2352 = vunpack.c.l.b16 %v1179
    %v2353 = vunpack.c.h.b16 %v1179
    %v2354 = vunpack.c.l.b16 %v1180
    %v2355 = vunpack.c.h.b16 %v1180
    %v2356 = vunpack.c.l.b16 %v1181
    %v2357 = vunpack.c.h.b16 %v1181
    %v2358 = vunpack.c.l.b16 %v1182
    %v2359 = vunpack.c.h.b16 %v1182
    %v2360 = vunpack.c.l.b16 %v1183
    %v2361 = vunpack.c.h.b16 %v1183
    %v2362 = vunpack.c.l.b16 %v1184
    %v2363 = vunpack.c.h.b16 %v1184
    %v2364 = vunpack.c.l.b16 %v1185
    %v2365 = vunpack.c.h.b16 %v1185
    %v2366 = vunpack.c.l.b16 %v1186
    %v2367 = vunpack.c.h.b16 %v1186
    %v2368 = vunpack.c.l.b16 %v1187
    %v2369 = vunpack.c.h.b16 %v1187
    %v2370 = vunpack.c.l.b16 %v1188
    %v2371 = vunpack.c.h.b16 %v1188
    %v2372 = vunpack.c.l.b16 %v1189
    %v2373 = vunpack.c.h.b16 %v1189
    %v2374 = vunpack.c.l.b16 %v1190
    %v2375 = vunpack.c.h.b16 %v1190
    %v2376 = vunpack.c.l.b16 %v1191
    %v2377 = vunpack.c.h.b16 %v1191
    %v2378 = vunpack.c.l.b16 %v1192
    %v2379 = vunpack.c.h.b16 %v1192
    %v2380 = vunpack.c.l.b16 %v1193
    %v2381 = vunpack.c.h.b16 %v1193
    %v2382 = vunpack.c.l.b16 %v1194
    %v2383 = vunpack.c.h.b16 %v1194
    %v2384 = vunpack.c.l.b16 %v1195
    %v2385 = vunpack.c.h.b16 %v1195
    %v2386 = vunpack.c.l.b16 %v1196
    %v2387 = vunpack.c.h.b16 %v1196
    %v2388 = vunpack.c.l.b16 %v1197
    %v2389 = vunpack.c.h.b16 %v1197
    %v2390 = vunpack.c.l.b16 %v1198
    %v2391 = vunpack.c.h.b16 %v1198
    %v2392 = vunpack.c.l.b16 %v1199
    %v2393 = vunpack.c.h.b16 %v1199
    %v2394 = vunpack.c.l.b16 %v1200
    %v2395 = vunpack.c.h.b16 %v1200
    %v2396 = vunpack.c.l.b16 %v1201
    %v2397 = vunpack.c.h.b16 %v1201
    %v2398 = vunpack.c.l.b16 %v1202
    %v2399 = vunpack.c.h.b16 %v1202
    %v2400 = vunpack.c.l.b16 %v1203
    %v2401 = vunpack.c.h.b16 %v1203
    %v2402 = vunpack.c.l.b16 %v1204
    %v2403 = vunpack.c.h.b16 %v1204
    %v2404 = vunpack.c.l.b16 %v1205
    %v2405 = vunpack.c.h.b16 %v1205
    %v2406 = vunpack.c.l.b16 %v1206
    %v2407 = vunpack.c.h.b16 %v1206
    %v2408 = vunpack.c.l.b16 %v1207
    %v2409 = vunpack.c.h.b16 %v1207
    %v2410 = vunpack.c.l.b16 %v1208
    %v2411 = vunpack.c.h.b16 %v1208
    %v2412 = vunpack.c.l.b16 %v1209
    %v2413 = vunpack.c.h.b16 %v1209
    %v2414 = vunpack.c.l.b16 %v1210
    %v2415 = vunpack.c.h.b16 %v1210
    %v2416 = vunpack.c.l.b16 %v1211
    %v2417 = vunpack.c.h.b16 %v1211
    %v2418 = vunpack.c.l.b16 %v1212
    %v2419 = vunpack.c.h.b16 %v1212
    %v2420 = vunpack.c.l.b16 %v1213
    %v2421 = vunpack.c.h.b16 %v1213
    %v2422 = vunpack.c.l.b16 %v1214
    %v2423 = vunpack.c.h.b16 %v1214
    %v2424 = vunpack.c.l.b16 %v1215
    %v2425 = vunpack.c.h.b16 %v1215
    %v2426 = vunpack.c.l.b16 %v1216
    %v2427 = vunpack.c.h.b16 %v1216
    %v2428 = vunpack.c.l.b16 %v1217
    %v2429 = vunpack.c.h.b16 %v1217
    %v2430 = vunpack.c.l.b16 %v1218
    %v2431 = vunpack.c.h.b16 %v1218
    %v2432 = vunpack.c.l.b16 %v1219
    %v2433 = vunpack.c.h.b16 %v1219
    %v2434 = vunpack.c.l.b16 %v1220
    %v2435 = vunpack.c.h.b16 %v1220
    %v2436 = vunpack.c.l.b16 %v1221
    %v2437 = vunpack.c.h.b16 %v1221
    %v2438 = vunpack.c.l.b16 %v1222
    %v2439 = vunpack.c.h.b16 %v1222
    %v2440 = vunpack.c.l.b16 %v1223
    %v2441 = vunpack.c.h.b16 %v1223
    %v2442 = vunpack.c.l.b16 %v1224
    %v2443 = vunpack.c.h.b16 %v1224
    %v2444 = vunpack.c.l.b16 %v1225
    %v2445 = vunpack.c.h.b16 %v1225
    %v2446 = vunpack.c.l.b16 %v1226
    %v2447 = vunpack.c.h.b16 %v1226
    %v2448 = vunpack.c.l.b16 %v1227
    %v2449 = vunpack.c.h.b16 %v1227
    %v2450 = vunpack.c.l.b16 %v1228
    %v2451 = vunpack.c.h.b16 %v1228
    %v2452 = vunpack.c.l.b16 %v1229
    %v2453 = vunpack.c.h.b16 %v1229
    %v2454 = vunpack.c.l.b16 %v1230
    %v2455 = vunpack.c.h.b16 %v1230
    %v2456 = vunpack.c.l.b16 %v1231
    %v2457 = vunpack.c.h.b16 %v1231
    %v2458 = vunpack.c.l.b16 %v1232
    %v2459 = vunpack.c.h.b16 %v1232
    %v2460 = vunpack.c.l.b16 %v1233
    %v2461 = vunpack.c.h.b16 %v1233
    %v2462 = vunpack.c.l.b16 %v1234
    %v2463 = vunpack.c.h.b16 %v1234
    %v2464 = vunpack.c.l.b16 %v1235
    %v2465 = vunpack.c.h.b16 %v1235
    %v2466 = vunpack.c.l.b16 %v1236
    %v2467 = vunpack.c.h.b16 %v1236
    %v2468 = vunpack.c.l.b16 %v1237
    %v2469 = vunpack.c.h.b16 %v1237
    %v2470 = vunpack.c.l.b16 %v1238
    %v2471 = vunpack.c.h.b16 %v1238
    %v2472 = vunpack.c.l.b16 %v1239
    %v2473 = vunpack.c.h.b16 %v1239
    %v2474 = vunpack.c.l.b16 %v1240
    %v2475 = vunpack.c.h.b16 %v1240
    %v2476 = vunpack.c.l.b16 %v1241
    %v2477 = vunpack.c.h.b16 %v1241
    %v2478 = vunpack.c.l.b16 %v1242
    %v2479 = vunpack.c.h.b16 %v1242
    %v2480 = vunpack.c.l.b16 %v1243
    %v2481 = vunpack.c.h.b16 %v1243
    %v2482 = vunpack.c.l.b16 %v1244
    %v2483 = vunpack.c.h.b16 %v1244
    %v2484 = vunpack.c.l.b16 %v1245
    %v2485 = vunpack.c.h.b16 %v1245
    %v2486 = vunpack.c.l.b16 %v1246
    %v2487 = vunpack.c.h.b16 %v1246
    %v2488 = vunpack.c.l.b16 %v1247
    %v2489 = vunpack.c.h.b16 %v1247
    %v2490 = vunpack.c.l.b16 %v1248
    %v2491 = vunpack.c.h.b16 %v1248
    %v2492 = vunpack.c.l.b16 %v1249
    %v2493 = vunpack.c.h.b16 %v1249
    %v2494 = vunpack.c.l.b16 %v1250
    %v2495 = vunpack.c.h.b16 %v1250
    %v2496 = vunpack.c.l.b16 %v1251
    %v2497 = vunpack.c.h.b16 %v1251
    %v2498 = vunpack.c.l.b16 %v1252
    %v2499 = vunpack.c.h.b16 %v1252
    %v2500 = vunpack.c.l.b16 %v1253
    %v2501 = vunpack.c.h.b16 %v1253
    %v2502 = vunpack.c.l.b16 %v1254
    %v2503 = vunpack.c.h.b16 %v1254
    %v2504 = vunpack.c.l.b16 %v1255
    %v2505 = vunpack.c.h.b16 %v1255
    %v2506 = vunpack.c.l.b16 %v1256
    %v2507 = vunpack.c.h.b16 %v1256
    %v2508 = vunpack.c.l.b16 %v1257
    %v2509 = vunpack.c.h.b16 %v1257
    %v2510 = vunpack.c.l.b16 %v1258
    %v2511 = vunpack.c.h.b16 %v1258
    %v2512 = vunpack.c.l.b16 %v1259
    %v2513 = vunpack.c.h.b16 %v1259
    %v2514 = vunpack.c.l.b16 %v1260
    %v2515 = vunpack.c.h.b16 %v1260
    %v2516 = vunpack.c.l.b16 %v1261
    %v2517 = vunpack.c.h.b16 %v1261
    %v2518 = vunpack.c.l.b16 %v1262
    %v2519 = vunpack.c.h.b16 %v1262
    %v2520 = vunpack.c.l.b16 %v1263
    %v2521 = vunpack.c.h.b16 %v1263
    %v2522 = vunpack.c.l.b16 %v1264
    %v2523 = vunpack.c.h.b16 %v1264
    %v2524 = vunpack.c.l.b16 %v1265
    %v2525 = vunpack.c.h.b16 %v1265
    %v2526 = vunpack.c.l.b16 %v1266
    %v2527 = vunpack.c.h.b16 %v1266
    %v2528 = vunpack.c.l.b16 %v1267
    %v2529 = vunpack.c.h.b16 %v1267
    %v2530 = vunpack.c.l.b16 %v1268
    %v2531 = vunpack.c.h.b16 %v1268
    %v2532 = vunpack.c.l.b16 %v1269
    %v2533 = vunpack.c.h.b16 %v1269
    %v2534 = vunpack.c.l.b16 %v1270
    %v2535 = vunpack.c.h.b16 %v1270
    %v2536 = vunpack.c.l.b16 %v1271
    %v2537 = vunpack.c.h.b16 %v1271
    %v2538 = vunpack.c.l.b16 %v1272
    %v2539 = vunpack.c.h.b16 %v1272
    %v2540 = vunpack.c.l.b16 %v1273
    %v2541 = vunpack.c.h.b16 %v1273
    %v2542 = vunpack.c.l.b16 %v1274
    %v2543 = vunpack.c.h.b16 %v1274
    %v2544 = vunpack.c.l.b16 %v1275
    %v2545 = vunpack.c.h.b16 %v1275
    %v2546 = vunpack.c.l.b16 %v1276
    %v2547 = vunpack.c.h.b16 %v1276
    %v2548 = vunpack.c.l.b16 %v1277
    %v2549 = vunpack.c.h.b16 %v1277
    %v2550 = vunpack.c.l.b16 %v1278
    %v2551 = vunpack.c.h.b16 %v1278
    %v2552 = vunpack.c.l.b16 %v1279
    %v2553 = vunpack.c.h.b16 %v1279
    %v2554 = vunpack.c.l.b16 %v1280
    %v2555 = vunpack.c.h.b16 %v1280
    %v2556 = vunpack.c.l.b16 %v1281
    %v2557 = vunpack.c.h.b16 %v1281
    %v2558 = vunpack.c.l.b16 %v1282
    %v2559 = vunpack.c.h.b16 %v1282
    %v2560 = vunpack.c.l.b16 %v1283
    %v2561 = vunpack.c.h.b16 %v1283
    %v2562 = vunpack.c.l.b16 %v1284
    %v2563 = vunpack.c.h.b16 %v1284
    %v2564 = vunpack.c.l.b16 %v1285
    %v2565 = vunpack.c.h.b16 %v1285
    %v2566 = vunpack.c.l.b16 %v1286
    %v2567 = vunpack.c.h.b16 %v1286
    %v2568 = vunpack.c.l.b16 %v1287
    %v2569 = vunpack.c.h.b16 %v1287
    %v2570 = vunpack.c.l.b16 %v1288
    %v2571 = vunpack.c.h.b16 %v1288
    %v2572 = vunpack.c.l.b16 %v1289
    %v2573 = vunpack.c.h.b16 %v1289
    %v2574 = vunpack.c.l.b16 %v1290
    %v2575 = vunpack.c.h.b16 %v1290
    %v2576 = vunpack.c.l.b16 %v1291
    %v2577 = vunpack.c.h.b16 %v1291
    %v2578 = vunpack.c.l.b16 %v1292
    %v2579 = vunpack.c.h.b16 %v1292
    %v2580 = vunpack.c.l.b16 %v1293
    %v2581 = vunpack.c.h.b16 %v1293
    %v2582 = vunpack.c.l.b16 %v1294
    %v2583 = vunpack.c.h.b16 %v1294
    %v2584 = vunpack.c.l.b16 %v1295
    %v2585 = vunpack.c.h.b16 %v1295
    %v2586 = vunpack.c.l.b16 %v1296
    %v2587 = vunpack.c.h.b16 %v1296
    %v2588 = vunpack.c.l.b16 %v1297
    %v2589 = vunpack.c.h.b16 %v1297
    %v2590 = vunpack.c.l.b16 %v1298
    %v2591 = vunpack.c.h.b16 %v1298
    %v2592 = vunpack.c.l.b16 %v1299
    %v2593 = vunpack.c.h.b16 %v1299
    %v2594 = vunpack.c.l.b16 %v1300
    %v2595 = vunpack.c.h.b16 %v1300
    %v2596 = vunpack.c.l.b16 %v1301
    %v2597 = vunpack.c.h.b16 %v1301
    %v2598 = vunpack.c.l.b16 %v1302
    %v2599 = vunpack.c.h.b16 %v1302
    %v2600 = vunpack.c.l.b16 %v1303
    %v2601 = vunpack.c.h.b16 %v1303
    %v2602 = vunpack.c.l.b16 %v1304
    %v2603 = vunpack.c.h.b16 %v1304
    %v2604 = vunpack.c.l.b16 %v1305
    %v2605 = vunpack.c.h.b16 %v1305
    %v2606 = vunpack.c.l.b16 %v1306
    %v2607 = vunpack.c.h.b16 %v1306
    %v2608 = vunpack.c.l.b16 %v1307
    %v2609 = vunpack.c.h.b16 %v1307
    %v2610 = vunpack.c.l.b16 %v1308
    %v2611 = vunpack.c.h.b16 %v1308
    %v2612 = vunpack.c.l.b16 %v1309
    %v2613 = vunpack.c.h.b16 %v1309
    %v2614 = vunpack.c.l.b16 %v1310
    %v2615 = vunpack.c.h.b16 %v1310
    %v2616 = vunpack.c.l.b16 %v1311
    %v2617 = vunpack.c.h.b16 %v1311
    %v2618 = vunpack.c.l.b16 %v1312
    %v2619 = vunpack.c.h.b16 %v1312
    %v2620 = vunpack.c.l.b16 %v1313
    %v2621 = vunpack.c.h.b16 %v1313
    %v2622 = vunpack.c.l.b16 %v1314
    %v2623 = vunpack.c.h.b16 %v1314
    %v2624 = vunpack.c.l.b16 %v1315
    %v2625 = vunpack.c.h.b16 %v1315
    %v2626 = vunpack.c.l.b16 %v1316
    %v2627 = vunpack.c.h.b16 %v1316
    %v2628 = vunpack.c.l.b16 %v1317
    %v2629 = vunpack.c.h.b16 %v1317
    %v2630 = vunpack.c.l.b16 %v1318
    %v2631 = vunpack.c.h.b16 %v1318
    %v2632 = vunpack.c.l.b16 %v1319
    %v2633 = vunpack.c.h.b16 %v1319
    %v2634 = vunpack.c.l.b16 %v1320
    %v2635 = vunpack.c.h.b16 %v1320
    %v2636 = vunpack.c.l.b16 %v1321
    %v2637 = vunpack.c.h.b16 %v1321
    %v2638 = vunpack.c.l.b16 %v1322
    %v2639 = vunpack.c.h.b16 %v1322
    %v2640 = vunpack.c.l.b16 %v1323
    %v2641 = vunpack.c.h.b16 %v1323
    %v2642 = vunpack.c.l.b16 %v1324
    %v2643 = vunpack.c.h.b16 %v1324
    %v2644 = vunpack.c.l.b16 %v1325
    %v2645 = vunpack.c.h.b16 %v1325
    %v2646 = vunpack.c.l.b16 %v1326
    %v2647 = vunpack.c.h.b16 %v1326
    %v2648 = vunpack.c.l.b16 %v1327
    %v2649 = vunpack.c.h.b16 %v1327
    %v2650 = vunpack.c.l.b16 %v1328
    %v2651 = vunpack.c.h.b16 %v1328
    %v2652 = vunpack.c.l.b16 %v1329
    %v2653 = vunpack.c.h.b16 %v1329
    %v2654 = vunpack.c.l.b16 %v1330
    %v2655 = vunpack.c.h.b16 %v1330
    %v2656 = vunpack.c.l.b16 %v1331
    %v2657 = vunpack.c.h.b16 %v1331
    %v2658 = vunpack.c.l.b16 %v1332
    %v2659 = vunpack.c.h.b16 %v1332
    %v2660 = vunpack.c.l.b16 %v1333
    %v2661 = vunpack.c.h.b16 %v1333
    %v2662 = vunpack.c.l.b16 %v1334
    %v2663 = vunpack.c.h.b16 %v1334
    %v2664 = vunpack.c.l.b16 %v1335
    %v2665 = vunpack.c.h.b16 %v1335
    %v2666 = vunpack.c.l.b16 %v1336
    %v2667 = vunpack.c.h.b16 %v1336
    %v2668 = vunpack.c.l.b16 %v1337
    %v2669 = vunpack.c.h.b16 %v1337
    %v2670 = vunpack.c.l.b16 %v1338
    %v2671 = vunpack.c.h.b16 %v1338
    %v2672 = vunpack.c.l.b16 %v1339
    %v2673 = vunpack.c.h.b16 %v1339
    %v2674 = vunpack.c.l.b16 %v1340
    %v2675 = vunpack.c.h.b16 %v1340
    %v2676 = vunpack.c.l.b16 %v1341
    %v2677 = vunpack.c.h.b16 %v1341
    %v2678 = vunpack.c.l.b16 %v1342
    %v2679 = vunpack.c.h.b16 %v1342
    %v2680 = vunpack.c.l.b16 %v1343
    %v2681 = vunpack.c.h.b16 %v1343
    %v2682 = vunpack.c.l.b16 %v1344
    %v2683 = vunpack.c.h.b16 %v1344
    %v2684 = vunpack.c.l.b16 %v1345
    %v2685 = vunpack.c.h.b16 %v1345
    %v2686 = vunpack.c.l.b16 %v1346
    %v2687 = vunpack.c.h.b16 %v1346
    %v2688 = vunpack.c.l.b16 %v1347
    %v2689 = vunpack.c.h.b16 %v1347
    %v2690 = vunpack.c.l.b16 %v1348
    %v2691 = vunpack.c.h.b16 %v1348
    %v2692 = vunpack.c.l.b16 %v1349
    %v2693 = vunpack.c.h.b16 %v1349
    %v2694 = vunpack.c.l.b16 %v1350
    %v2695 = vunpack.c.h.b16 %v1350
    %v2696 = vunpack.c.l.b16 %v1351
    %v2697 = vunpack.c.h.b16 %v1351
    %v2698 = vunpack.c.l.b16 %v1352
    %v2699 = vunpack.c.h.b16 %v1352
    %v2700 = vunpack.c.l.b16 %v1353
    %v2701 = vunpack.c.h.b16 %v1353
    %v2702 = vunpack.c.l.b16 %v1354
    %v2703 = vunpack.c.h.b16 %v1354
    %v2704 = vunpack.c.l.b16 %v1355
    %v2705 = vunpack.c.h.b16 %v1355
    %v2706 = vunpack.c.l.b16 %v1356
    %v2707 = vunpack.c.h.b16 %v1356
    %v2708 = vunpack.c.l.b16 %v1357
    %v2709 = vunpack.c.h.b16 %v1357
    %v2710 = vunpack.c.l.b16 %v1358
    %v2711 = vunpack.c.h.b16 %v1358
    %v2712 = vunpack.c.l.b16 %v1359
    %v2713 = vunpack.c.h.b16 %v1359
    %v2714 = vunpack.c.l.b16 %v1360
    %v2715 = vunpack.c.h.b16 %v1360
    %v2716 = vunpack.c.l.b16 %v1361
    %v2717 = vunpack.c.h.b16 %v1361
    %v2718 = vunpack.c.l.b16 %v1362
    %v2719 = vunpack.c.h.b16 %v1362
    %v2720 = vunpack.c.l.b16 %v1363
    %v2721 = vunpack.c.h.b16 %v1363
    %v2722 = vunpack.c.l.b16 %v1364
    %v2723 = vunpack.c.h.b16 %v1364
    %v2724 = vunpack.c.l.b16 %v1365
    %v2725 = vunpack.c.h.b16 %v1365
    %v2726 = vunpack.c.l.b16 %v1366
    %v2727 = vunpack.c.h.b16 %v1366
    %v2728 = vunpack.c.l.b16 %v1367
    %v2729 = vunpack.c.h.b16 %v1367
    %v2730 = vunpack.c.l.b16 %v1368
    %v2731 = vunpack.c.h.b16 %v1368
    %v2732 = vunpack.c.l.b16 %v1369
    %v2733 = vunpack.c.h.b16 %v1369
    %v2734 = vunpack.c.l.b16 %v1370
    %v2735 = vunpack.c.h.b16 %v1370
    %v2736 = vunpack.c.l.b16 %v1371
    %v2737 = vunpack.c.h.b16 %v1371
    %v2738 = vunpack.c.l.b16 %v1372
    %v2739 = vunpack.c.h.b16 %v1372
    %v2740 = vunpack.c.l.b16 %v1373
    %v2741 = vunpack.c.h.b16 %v1373
    %v2742 = vunpack.c.l.b16 %v1374
    %v2743 = vunpack.c.h.b16 %v1374
    %v2744 = vunpack.c.l.b16 %v1375
    %v2745 = vunpack.c.h.b16 %v1375
    %v2746 = vunpack.c.l.b16 %v1376
    %v2747 = vunpack.c.h.b16 %v1376
    %v2748 = vunpack.c.l.b16 %v1377
    %v2749 = vunpack.c.h.b16 %v1377
    %v2750 = vunpack.c.l.b16 %v1378
    %v2751 = vunpack.c.h.b16 %v1378
    %v2752 = vunpack.c.l.b16 %v1379
    %v2753 = vunpack.c.h.b16 %v1379
    %v2754 = vunpack.c.l.b16 %v1380
    %v2755 = vunpack.c.h.b16 %v1380
    %v2756 = vunpack.c.l.b16 %v1381
    %v2757 = vunpack.c.h.b16 %v1381
    %v2758 = vunpack.c.l.b16 %v1382
    %v2759 = vunpack.c.h.b16 %v1382
    %v2760 = vunpack.c.l.b16 %v1383
    %v2761 = vunpack.c.h.b16 %v1383
    %v2762 = vunpack.c.l.b16 %v1384
    %v2763 = vunpack.c.h.b16 %v1384
    %v2764 = vunpack.c.l.b16 %v1385
    %v2765 = vunpack.c.h.b16 %v1385
    %v2766 = vunpack.c.l.b16 %v1386
    %v2767 = vunpack.c.h.b16 %v1386
    %v2768 = vunpack.c.l.b16 %v1387
    %v2769 = vunpack.c.h.b16 %v1387
    %v2770 = vunpack.c.l.b16 %v1388
    %v2771 = vunpack.c.h.b16 %v1388
    %v2772 = vunpack.c.l.b16 %v1389
    %v2773 = vunpack.c.h.b16 %v1389
    %v2774 = vunpack.c.l.b16 %v1390
    %v2775 = vunpack.c.h.b16 %v1390
    %v2776 = vunpack.c.l.b16 %v1391
    %v2777 = vunpack.c.h.b16 %v1391
    %v2778 = vunpack.c.l.b16 %v1392
    %v2779 = vunpack.c.h.b16 %v1392
    %v2780 = vunpack.c.l.b16 %v1393
    %v2781 = vunpack.c.h.b16 %v1393
    %v2782 = vunpack.c.l.b16 %v1394
    %v2783 = vunpack.c.h.b16 %v1394
    %v2784 = vunpack.c.l.b16 %v1395
    %v2785 = vunpack.c.h.b16 %v1395
    %v2786 = vunpack.c.l.b16 %v1396
    %v2787 = vunpack.c.h.b16 %v1396
    %v2788 = vunpack.c.l.b16 %v1397
    %v2789 = vunpack.c.h.b16 %v1397
    %v2790 = vunpack.c.l.b16 %v1398
    %v2791 = vunpack.c.h.b16 %v1398
    %v2792 = vunpack.c.l.b16 %v1399
    %v2793 = vunpack.c.h.b16 %v1399
    %v2794 = vunpack.c.l.b16 %v1400
    %v2795 = vunpack.c.h.b16 %v1400
    %v2796 = vunpack.c.l.b16 %v1401
    %v2797 = vunpack.c.h.b16 %v1401
    %v2798 = vunpack.c.l.b16 %v1402
    %v2799 = vunpack.c.h.b16 %v1402
    %v2800 = vunpack.c.l.b16 %v1403
    %v2801 = vunpack.c.h.b16 %v1403
    %v2802 = vunpack.c.l.b16 %v1404
    %v2803 = vunpack.c.h.b16 %v1404
    %v2804 = vunpack.c.l.b16 %v1405
    %v2805 = vunpack.c.h.b16 %v1405
    %v2806 = vunpack.c.l.b16 %v1406
    %v2807 = vunpack.c.h.b16 %v1406
    %v2808 = vunpack.c.l.b16 %v1407
    %v2809 = vunpack.c.h.b16 %v1407
    %v2810 = vunpack.c.l.b16 %v1408
    %v2811 = vunpack.c.h.b16 %v1408
    %v2812 = vunpack.c.l.b16 %v1409
    %v2813 = vunpack.c.h.b16 %v1409
    %v2814 = vunpack.c.l.b16 %v1410
    %v2815 = vunpack.c.h.b16 %v1410
    %v2816 = vunpack.c.l.b16 %v1411
    %v2817 = vunpack.c.h.b16 %v1411
    %v2818 = vunpack.c.l.b16 %v1412
    %v2819 = vunpack.c.h.b16 %v1412
    %v2820 = vunpack.c.l.b16 %v1413
    %v2821 = vunpack.c.h.b16 %v1413
    %v2822 = vunpack.c.l.b16 %v1414
    %v2823 = vunpack.c.h.b16 %v1414
    %v2824 = vunpack.c.l.b16 %v1415
    %v2825 = vunpack.c.h.b16 %v1415
    %v2826 = vunpack.c.l.b16 %v1416
    %v2827 = vunpack.c.h.b16 %v1416
    %v2828 = vunpack.c.l.b16 %v1417
    %v2829 = vunpack.c.h.b16 %v1417
    %v2830 = vunpack.c.l.b16 %v1418
    %v2831 = vunpack.c.h.b16 %v1418
    %v2832 = vunpack.c.l.b16 %v1419
    %v2833 = vunpack.c.h.b16 %v1419
    %v2834 = vunpack.c.l.b16 %v1420
    %v2835 = vunpack.c.h.b16 %v1420
    %v2836 = vunpack.c.l.b16 %v1421
    %v2837 = vunpack.c.h.b16 %v1421
    %v2838 = vunpack.c.l.b16 %v1422
    %v2839 = vunpack.c.h.b16 %v1422
    %v2840 = vunpack.c.l.b16 %v1423
    %v2841 = vunpack.c.h.b16 %v1423
    %v2842 = vunpack.c.l.b16 %v1424
    %v2843 = vunpack.c.h.b16 %v1424
    %v2844 = vunpack.c.l.b16 %v1425
    %v2845 = vunpack.c.h.b16 %v1425
    %v2846 = vunpack.c.l.b16 %v1426
    %v2847 = vunpack.c.h.b16 %v1426
    %v2848 = vunpack.c.l.b16 %v1427
    %v2849 = vunpack.c.h.b16 %v1427
    %v2850 = vunpack.c.l.b16 %v1428
    %v2851 = vunpack.c.h.b16 %v1428
    %v2852 = vunpack.c.l.b16 %v1429
    %v2853 = vunpack.c.h.b16 %v1429
    %v2854 = vunpack.c.l.b16 %v1430
    %v2855 = vunpack.c.h.b16 %v1430
    %v2856 = vunpack.c.l.b16 %v1431
    %v2857 = vunpack.c.h.b16 %v1431
    %v2858 = vunpack.c.l.b16 %v1432
    %v2859 = vunpack.c.h.b16 %v1432
    %v2860 = vunpack.c.l.b16 %v1433
    %v2861 = vunpack.c.h.b16 %v1433
    %v2862 = vunpack.c.l.b16 %v1434
    %v2863 = vunpack.c.h.b16 %v1434
    %v2864 = vunpack.c.l.b16 %v1435
    %v2865 = vunpack.c.h.b16 %v1435
    %v2866 = vunpack.c.l.b16 %v1436
    %v2867 = vunpack.c.h.b16 %v1436
    %v2868 = vunpack.c.l.b16 %v1437
    %v2869 = vunpack.c.h.b16 %v1437
    %v2870 = vunpack.c.l.b16 %v1438
    %v2871 = vunpack.c.h.b16 %v1438
    %v2872 = vunpack.c.l.b16 %v1439
    %v2873 = vunpack.c.h.b16 %v1439
    %v2874 = vunpack.c.l.b16 %v1440
    %v2875 = vunpack.c.h.b16 %v1440
    %v2876 = vunpack.c.l.b16 %v1441
    %v2877 = vunpack.c.h.b16 %v1441
    %v2878 = vunpack.c.l.b16 %v1442
    %v2879 = vunpack.c.h.b16 %v1442
    %v2880 = vunpack.c.l.b16 %v1443
    %v2881 = vunpack.c.h.b16 %v1443
    %v2882 = vunpack.c.l.b16 %v1444
    %v2883 = vunpack.c.h.b16 %v1444
    %v2884 = vunpack.c.l.b16 %v1445
    %v2885 = vunpack.c.h.b16 %v1445
    %v2886 = vunpack.c.l.b16 %v1446
    %v2887 = vunpack.c.h.b16 %v1446
    %v2888 = vunpack.c.l.b16 %v1447
    %v2889 = vunpack.c.h.b16 %v1447
    %v2890 = vunpack.c.l.b16 %v1448
    %v2891 = vunpack.c.h.b16 %v1448
    %v2892 = vunpack.c.l.b16 %v1449
    %v2893 = vunpack.c.h.b16 %v1449
    %v2894 = vunpack.c.l.b16 %v1450
    %v2895 = vunpack.c.h.b16 %v1450
    %v2896 = vunpack.c.l.b16 %v1451
    %v2897 = vunpack.c.h.b16 %v1451
    %v2898 = vunpack.c.l.b16 %v1452
    %v2899 = vunpack.c.h.b16 %v1452
    %v2900 = vunpack.c.l.b16 %v1453
    %v2901 = vunpack.c.h.b16 %v1453
    %v2902 = vunpack.c.l.b16 %v1454
    %v2903 = vunpack.c.h.b16 %v1454
    %v2904 = vunpack.c.l.b16 %v1455
    %v2905 = vunpack.c.h.b16 %v1455
    %v2906 = vunpack.c.l.b16 %v1456
    %v2907 = vunpack.c.h.b16 %v1456
    %v2908 = vunpack.c.l.b16 %v1457
    %v2909 = vunpack.c.h.b16 %v1457
    %v2910 = vunpack.c.l.b16 %v1458
    %v2911 = vunpack.c.h.b16 %v1458
    %v2912 = vunpack.c.l.b16 %v1459
    %v2913 = vunpack.c.h.b16 %v1459
    %v2914 = vunpack.c.l.b16 %v1460
    %v2915 = vunpack.c.h.b16 %v1460
    %v2916 = vunpack.c.l.b16 %v1461
    %v2917 = vunpack.c.h.b16 %v1461
    %v2918 = vunpack.c.l.b16 %v1462
    %v2919 = vunpack.c.h.b16 %v1462
    %v2920 = vunpack.c.l.b16 %v1463
    %v2921 = vunpack.c.h.b16 %v1463
    %v2922 = vunpack.c.l.b16 %v1464
    %v2923 = vunpack.c.h.b16 %v1464
    %v2924 = vunpack.c.l.b16 %v1465
    %v2925 = vunpack.c.h.b16 %v1465
    %v2926 = vunpack.c.l.b16 %v1466
    %v2927 = vunpack.c.h.b16 %v1466
    %v2928 = vunpack.c.l.b16 %v1467
    %v2929 = vunpack.c.h.b16 %v1467
    %v2930 = vunpack.c.l.b16 %v1468
    %v2931 = vunpack.c.h.b16 %v1468
    %v2932 = vunpack.c.l.b16 %v1469
    %v2933 = vunpack.c.h.b16 %v1469
    %v2934 = vunpack.c.l.b16 %v1470
    %v2935 = vunpack.c.h.b16 %v1470
    %v2936 = vunpack.c.l.b16 %v1471
    %v2937 = vunpack.c.h.b16 %v1471
    %v2938 = vunpack.c.l.b16 %v1472
    %v2939 = vunpack.c.h.b16 %v1472
    %v2940 = vunpack.c.l.b16 %v1473
    %v2941 = vunpack.c.h.b16 %v1473
    %v2942 = vunpack.c.l.b16 %v1474
    %v2943 = vunpack.c.h.b16 %v1474
    %v2944 = vunpack.c.l.b16 %v1475
    %v2945 = vunpack.c.h.b16 %v1475
    %v2946 = vunpack.c.l.b16 %v1476
    %v2947 = vunpack.c.h.b16 %v1476
    %v2948 = vunpack.c.l.b16 %v1477
    %v2949 = vunpack.c.h.b16 %v1477
    %v2950 = vunpack.c.l.b16 %v1478
    %v2951 = vunpack.c.h.b16 %v1478
    %v2952 = vunpack.c.l.b16 %v1479
    %v2953 = vunpack.c.h.b16 %v1479
    %v2954 = vunpack.c.l.b16 %v1480
    %v2955 = vunpack.c.h.b16 %v1480
    %v2956 = vunpack.c.l.b16 %v1481
    %v2957 = vunpack.c.h.b16 %v1481
    %v2958 = vunpack.c.l.b16 %v1482
    %v2959 = vunpack.c.h.b16 %v1482
    %v2960 = vunpack.c.l.b16 %v1483
    %v2961 = vunpack.c.h.b16 %v1483
    %v2962 = vunpack.c.l.b16 %v1484
    %v2963 = vunpack.c.h.b16 %v1484
    %v2964 = vunpack.c.l.b16 %v1485
    %v2965 = vunpack.c.h.b16 %v1485
    %v2966 = vunpack.c.l.b16 %v1486
    %v2967 = vunpack.c.h.b16 %v1486
    %v2968 = vunpack.c.l.b16 %v1487
    %v2969 = vunpack.c.h.b16 %v1487
    %v2970 = vunpack.c.l.b16 %v1488
    %v2971 = vunpack.c.h.b16 %v1488
    %v2972 = vunpack.c.l.b16 %v1489
    %v2973 = vunpack.c.h.b16 %v1489
    %v2974 = vunpack.c.l.b16 %v1490
    %v2975 = vunpack.c.h.b16 %v1490
    %v2976 = vunpack.c.l.b16 %v1491
    %v2977 = vunpack.c.h.b16 %v1491
    %v2978 = vunpack.c.l.b16 %v1492
    %v2979 = vunpack.c.h.b16 %v1492
    %v2980 = vunpack.c.l.b16 %v1493
    %v2981 = vunpack.c.h.b16 %v1493
    %v2982 = vunpack.c.l.b16 %v1494
    %v2983 = vunpack.c.h.b16 %v1494
    %v2984 = vunpack.c.l.b16 %v1495
    %v2985 = vunpack.c.h.b16 %v1495
    %v2986 = vunpack.c.l.b16 %v1496
    %v2987 = vunpack.c.h.b16 %v1496
    %v2988 = vunpack.c.l.b16 %v1497
    %v2989 = vunpack.c.h.b16 %v1497
    %v2990 = vunpack.c.l.b16 %v1498
    %v2991 = vunpack.c.h.b16 %v1498
    %v2992 = vunpack.c.l.b16 %v1499
    %v2993 = vunpack.c.h.b16 %v1499
    %v2994 = vunpack.c.l.b16 %v1500
    %v2995 = vunpack.c.h.b16 %v1500
    %v2996 = vunpack.c.l.b16 %v1501
    %v2997 = vunpack.c.h.b16 %v1501
    %v2998 = vunpack.c.l.b16 %v1502
    %v2999 = vunpack.c.h.b16 %v1502
    %v3000 = vunpack.c.l.b16 %v1503
    %v3001 = vunpack.c.h.b16 %v1503
    %v3002 = vunpack.c.l.b16 %v1504
    %v3003 = vunpack.c.h.b16 %v1504
    %v3004 = vunpack.c.l.b16 %v1505
    %v3005 = vunpack.c.h.b16 %v1505
    %v3006 = vunpack.c.l.b16 %v1506
    %v3007 = vunpack.c.h.b16 %v1506
    %v3008 = vunpack.c.l.b16 %v1507
    %v3009 = vunpack.c.h.b16 %v1507
    %v3010 = vunpack.c.l.b16 %v1508
    %v3011 = vunpack.c.h.b16 %v1508
    %v3012 = vunpack.c.l.b16 %v1509
    %v3013 = vunpack.c.h.b16 %v1509
    %v3014 = vunpack.c.l.b16 %v1510
    %v3015 = vunpack.c.h.b16 %v1510
    %v3016 = vunpack.c.l.b16 %v1511
    %v3017 = vunpack.c.h.b16 %v1511
    %v3018 = vunpack.c.l.b16 %v1512
    %v3019 = vunpack.c.h.b16 %v1512
    %v3020 = vunpack.c.l.b16 %v1513
    %v3021 = vunpack.c.h.b16 %v1513
    %v3022 = vunpack.c.l.b16 %v1514
    %v3023 = vunpack.c.h.b16 %v1514
    %v3024 = vunpack.c.l.b16 %v1515
    %v3025 = vunpack.c.h.b16 %v1515
    %v3026 = vunpack.c.l.b16 %v1516
    %v3027 = vunpack.c.h.b16 %v1516
    %v3028 = vunpack.c.l.b16 %v1517
    %v3029 = vunpack.c.h.b16 %v1517
    %v3030 = vunpack.c.l.b16 %v1518
    %v3031 = vunpack.c.h.b16 %v1518
    %v3032 = vunpack.c.l.b16 %v1519
    %v3033 = vunpack.c.h.b16 %v1519
    %v3034 = vunpack.c.l.b16 %v1520
    %v3035 = vunpack.c.h.b16 %v1520
    %v3036 = vunpack.c.l.b16 %v1521
    %v3037 = vunpack.c.h.b16 %v1521
    %v3038 = vunpack.c.l.b16 %v1522
    %v3039 = vunpack.c.h.b16 %v1522
    %v3040 = vunpack.c.l.b16 %v1523
    %v3041 = vunpack.c.h.b16 %v1523
    %v3042 = vunpack.c.l.b16 %v1524
    %v3043 = vunpack.c.h.b16 %v1524
    %v3044 = vunpack.c.l.b16 %v1525
    %v3045 = vunpack.c.h.b16 %v1525
    %v3046 = vunpack.c.l.b16 %v1526
    %v3047 = vunpack.c.h.b16 %v1526
    %v3048 = vunpack.c.l.b16 %v1527
    %v3049 = vunpack.c.h.b16 %v1527
    %v3050 = vunpack.c.l.b16 %v1528
    %v3051 = vunpack.c.h.b16 %v1528
    %v3052 = vunpack.c.l.b16 %v1529
    %v3053 = vunpack.c.h.b16 %v1529
    %v3054 = vunpack.c.l.b16 %v1530
    %v3055 = vunpack.c.h.b16 %v1530
    %v3056 = vunpack.c.l.b16 %v1531
    %v3057 = vunpack.c.h.b16 %v1531
    %v3058 = vunpack.c.l.b16 %v1532
    %v3059 = vunpack.c.h.b16 %v1532
    %v3060 = vunpack.c.l.b16 %v1533
    %v3061 = vunpack.c.h.b16 %v1533
    %v3062 = vunpack.c.l.b16 %v1534
    %v3063 = vunpack.c.h.b16 %v1534
    %v3064 = vunpack.c.l.b16 %v1535
    %v3065 = vunpack.c.h.b16 %v1535
    %v3066 = vunpack.c.l.b16 %v1536
    %v3067 = vunpack.c.h.b16 %v1536
    %v3068 = vunpack.c.l.b16 %v1537
    %v3069 = vunpack.c.h.b16 %v1537
    %v3070 = vunpack.c.l.b16 %v1538
    %v3071 = vunpack.c.h.b16 %v1538
    %v3072 = vunpack.c.l.b16 %v1539
    %v3073 = vunpack.c.h.b16 %v1539
    %v3074 = vunpack.c.l.b16 %v1540
    %v3075 = vunpack.c.h.b16 %v1540
    %v3076 = vunpack.c.l.b16 %v1541
    %v3077 = vunpack.c.h.b16 %v1541
    %v3078 = vunpack.c.l.b16 %v1542
    %v3079 = vunpack.c.h.b16 %v1542
    %v3080 = vunpack.c.l.b16 %v1543
    %v3081 = vunpack.c.h.b16 %v1543
    %v3082 = vunpack.c.l.b16 %v1544
    %v3083 = vunpack.c.h.b16 %v1544
    %v3084 = vunpack.c.l.b16 %v1545
    %v3085 = vunpack.c.h.b16 %v1545
    %v3086 = vunpack.c.l.b16 %v1546
    %v3087 = vunpack.c.h.b16 %v1546
    %v3088 = vunpack.c.l.b16 %v1547
    %v3089 = vunpack.c.h.b16 %v1547
    %v3090 = vunpack.c.l.b16 %v1548
    %v3091 = vunpack.c.h.b16 %v1548
    %v3092 = vunpack.c.l.b16 %v1549
    %v3093 = vunpack.c.h.b16 %v1549
    %v3094 = vunpack.c.l.b16 %v1550
    %v3095 = vunpack.c.h.b16 %v1550
    %v3096 = vunpack.c.l.b16 %v1551
    %v3097 = vunpack.c.h.b16 %v1551
    %v3098 = vunpack.c.l.b16 %v1552
    %v3099 = vunpack.c.h.b16 %v1552
    %v3100 = vunpack.c.l.b16 %v1553
    %v3101 = vunpack.c.h.b16 %v1553
    %v3102 = vunpack.c.l.b16 %v1554
    %v3103 = vunpack.c.h.b16 %v1554
    %v3104 = vunpack.c.l.b16 %v1555
    %v3105 = vunpack.c.h.b16 %v1555
    %v3106 = vunpack.c.l.b16 %v1556
    %v3107 = vunpack.c.h.b16 %v1556
    %v3108 = vunpack.c.l.b16 %v1557
    %v3109 = vunpack.c.h.b16 %v1557
    %v3110 = vunpack.c.l.b16 %v1558
    %v3111 = vunpack.c.h.b16 %v1558
    %v3112 = vunpack.c.l.b16 %v1559
    %v3113 = vunpack.c.h.b16 %v1559
    %v3114 = vunpack.c.l.b16 %v1560
    %v3115 = vunpack.c.h.b16 %v1560
    %v3116 = vunpack.c.l.b16 %v1561
    %v3117 = vunpack.c.h.b16 %v1561
    %v3118 = vunpack.c.l.b16 %v1562
    %v3119 = vunpack.c.h.b16 %v1562
    %v3120 = vunpack.c.l.b16 %v1563
    %v3121 = vunpack.c.h.b16 %v1563
    %v3122 = vunpack.c.l.b16 %v1564
    %v3123 = vunpack.c.h.b16 %v1564
    %v3124 = vunpack.c.l.b16 %v1565
    %v3125 = vunpack.c.h.b16 %v1565
    %v3126 = vunpack.c.l.b16 %v1566
    %v3127 = vunpack.c.h.b16 %v1566
    %v3128 = vunpack.c.l.b16 %v1567
    %v3129 = vunpack.c.h.b16 %v1567
    %v3130 = vunpack.c.l.b16 %v1568
    %v3131 = vunpack.c.h.b16 %v1568
    %v3132 = vunpack.c.l.b16 %v1569
    %v3133 = vunpack.c.h.b16 %v1569
    %v3134 = vunpack.c.l.b16 %v1570
    %v3135 = vunpack.c.h.b16 %v1570
    %v3136 = vunpack.c.l.b16 %v1571
    %v3137 = vunpack.c.h.b16 %v1571
    %v3138 = vunpack.c.l.b16 %v1572
    %v3139 = vunpack.c.h.b16 %v1572
    %v3140 = vunpack.c.l.b16 %v1573
    %v3141 = vunpack.c.h.b16 %v1573
    %v3142 = vunpack.c.l.b16 %v1574
    %v3143 = vunpack.c.h.b16 %v1574
    %v3144 = vunpack.c.l.b16 %v1575
    %v3145 = vunpack.c.h.b16 %v1575
    %v3146 = vunpack.c.l.b16 %v1576
    %v3147 = vunpack.c.h.b16 %v1576
    %v3148 = vunpack.c.l.b16 %v1577
    %v3149 = vunpack.c.h.b16 %v1577
    %v3150 = vunpack.c.l.b16 %v1578
    %v3151 = vunpack.c.h.b16 %v1578
    %v3152 = vunpack.c.l.b16 %v1579
    %v3153 = vunpack.c.h.b16 %v1579
    %v3154 = vunpack.c.l.b16 %v1580
    %v3155 = vunpack.c.h.b16 %v1580
    %v3156 = vunpack.c.l.b16 %v1581
    %v3157 = vunpack.c.h.b16 %v1581
    %v3158 = vunpack.c.l.b16 %v1582
    %v3159 = vunpack.c.h.b16 %v1582
    %v3160 = vunpack.c.l.b16 %v1583
    %v3161 = vunpack.c.h.b16 %v1583
    %v3162 = vpack.c.b16 %v2146, %v2138
    %v3163 = vpack.c.b16 %v2147, %v2139
    %v3164 = vpack.c.b16 %v2148, %v2140
    %v3165 = vpack.c.b16 %v2149, %v2141
    %v3166 = vpack.c.b16 %v2150, %v2142
    %v3167 = vpack.c.b16 %v2151, %v2143
    %v3168 = vpack.c.b16 %v2152, %v2144
    %v3169 = vpack.c.b16 %v2153, %v2145
    %v3170 = vpack.c.b16 %v2162, %v2154
    %v3171 = vpack.c.b16 %v2163, %v2155
    %v3172 = vpack.c.b16 %v2164, %v2156
    %v3173 = vpack.c.b16 %v2165, %v2157
    %v3174 = vpack.c.b16 %v2166, %v2158
    %v3175 = vpack.c.b16 %v2167, %v2159
    %v3176 = vpack.c.b16 %v2168, %v2160
    %v3177 = vpack.c.b16 %v2169, %v2161
    %v3178 = vpack.c.b16 %v2178, %v2170
    %v3179 = vpack.c.b16 %v2179, %v2171
    %v3180 = vpack.c.b16 %v2180, %v2172
    %v3181 = vpack.c.b16 %v2181, %v2173
    %v3182 = vpack.c.b16 %v2182, %v2174
    %v3183 = vpack.c.b16 %v2183, %v2175
    %v3184 = vpack.c.b16 %v2184, %v2176
    %v3185 = vpack.c.b16 %v2185, %v2177
    %v3186 = vpack.c.b16 %v2194, %v2186
    %v3187 = vpack.c.b16 %v2195, %v2187
    %v3188 = vpack.c.b16 %v2196, %v2188
    %v3189 = vpack.c.b16 %v2197, %v2189
    %v3190 = vpack.c.b16 %v2198, %v2190
    %v3191 = vpack.c.b16 %v2199, %v2191
    %v3192 = vpack.c.b16 %v2200, %v2192
    %v3193 = vpack.c.b16 %v2201, %v2193
    %v3194 = vpack.c.b16 %v2210, %v2202
    %v3195 = vpack.c.b16 %v2211, %v2203
    %v3196 = vpack.c.b16 %v2212, %v2204
    %v3197 = vpack.c.b16 %v2213, %v2205
    %v3198 = vpack.c.b16 %v2214, %v2206
    %v3199 = vpack.c.b16 %v2215, %v2207
    %v3200 = vpack.c.b16 %v2216, %v2208
    %v3201 = vpack.c.b16 %v2217, %v2209
    %v3202 = vpack.c.b16 %v2226, %v2218
    %v3203 = vpack.c.b16 %v2227, %v2219
    %v3204 = vpack.c.b16 %v2228, %v2220
    %v3205 = vpack.c.b16 %v2229, %v2221
    %v3206 = vpack.c.b16 %v2230, %v2222
    %v3207 = vpack.c.b16 %v2231, %v2223
    %v3208 = vpack.c.b16 %v2232, %v2224
    %v3209 = vpack.c.b16 %v2233, %v2225
    %v3210 = vpack.c.b16 %v2242, %v2234
    %v3211 = vpack.c.b16 %v2243, %v2235
    %v3212 = vpack.c.b16 %v2244, %v2236
    %v3213 = vpack.c.b16 %v2245, %v2237
    %v3214 = vpack.c.b16 %v2246, %v2238
    %v3215 = vpack.c.b16 %v2247, %v2239
    %v3216 = vpack.c.b16 %v2248, %v2240
    %v3217 = vpack.c.b16 %v2249, %v2241
    %v3218 = vpack.c.b16 %v2258, %v2250
    %v3219 = vpack.c.b16 %v2259, %v2251
    %v3220 = vpack.c.b16 %v2260, %v2252
    %v3221 = vpack.c.b16 %v2261, %v2253
    %v3222 = vpack.c.b16 %v2262, %v2254
    %v3223 = vpack.c.b16 %v2263, %v2255
    %v3224 = vpack.c.b16 %v2264, %v2256
    %v3225 = vpack.c.b16 %v2265, %v2257
    %v3226 = vpack.c.b16 %v2274, %v2266
    %v3227 = vpack.c.b16 %v2275, %v2267
    %v3228 = vpack.c.b16 %v2276, %v2268
    %v3229 = vpack.c.b16 %v2277, %v2269
    %v3230 = vpack.c.b16 %v2278, %v2270
    %v3231 = vpack.c.b16 %v2279, %v2271
    %v3232 = vpack.c.b16 %v2280, %v2272
    %v3233 = vpack.c.b16 %v2281, %v2273
    %v3234 = vpack.c.b16 %v2290, %v2282
    %v3235 = vpack.c.b16 %v2291, %v2283
    %v3236 = vpack.c.b16 %v2292, %v2284
    %v3237 = vpack.c.b16 %v2293, %v2285
    %v3238 = vpack.c.b16 %v2294, %v2286
    %v3239 = vpack.c.b16 %v2295, %v2287
    %v3240 = vpack.c.b16 %v2296, %v2288
    %v3241 = vpack.c.b16 %v2297, %v2289
    %v3242 = vpack.c.b16 %v2306, %v2298
    %v3243 = vpack.c.b16 %v2307, %v2299
    %v3244 = vpack.c.b16 %v2308, %v2300
    %v3245 = vpack.c.b16 %v2309, %v2301
    %v3246 = vpack.c.b16 %v2310, %v2302
    %v3247 = vpack.c.b16 %v2311, %v2303
    %v3248 = vpack.c.b16 %v2312, %v2304
    %v3249 = vpack.c.b16 %v2313, %v2305
    %v3250 = vpack.c.b16 %v2322, %v2314
    %v3251 = vpack.c.b16 %v2323, %v2315
    %v3252 = vpack.c.b16 %v2324, %v2316
    %v3253 = vpack.c.b16 %v2325, %v2317
    %v3254 = vpack.c.b16 %v2326, %v2318
    %v3255 = vpack.c.b16 %v2327, %v2319
    %v3256 = vpack.c.b16 %v2328, %v2320
    %v3257 = vpack.c.b16 %v2329, %v2321
    %v3258 = vpack.c.b16 %v2338, %v2330
    %v3259 = vpack.c.b16 %v2339, %v2331
    %v3260 = vpack.c.b16 %v2340, %v2332
    %v3261 = vpack.c.b16 %v2341, %v2333
    %v3262 = vpack.c.b16 %v2342, %v2334
    %v3263 = vpack.c.b16 %v2343, %v2335
    %v3264 = vpack.c.b16 %v2344, %v2336
    %v3265 = vpack.c.b16 %v2345, %v2337
    %v3266 = vpack.c.b16 %v2354, %v2346
    %v3267 = vpack.c.b16 %v2355, %v2347
    %v3268 = vpack.c.b16 %v2356, %v2348
    %v3269 = vpack.c.b16 %v2357, %v2349
    %v3270 = vpack.c.b16 %v2358, %v2350
    %v3271 = vpack.c.b16 %v2359, %v2351
    %v3272 = vpack.c.b16 %v2360, %v2352
    %v3273 = vpack.c.b16 %v2361, %v2353
    %v3274 = vpack.c.b16 %v2370, %v2362
    %v3275 = vpack.c.b16 %v2371, %v2363
    %v3276 = vpack.c.b16 %v2372, %v2364
    %v3277 = vpack.c.b16 %v2373, %v2365
    %v3278 = vpack.c.b16 %v2374, %v2366
    %v3279 = vpack.c.b16 %v2375, %v2367
    %v3280 = vpack.c.b16 %v2376, %v2368
    %v3281 = vpack.c.b16 %v2377, %v2369
    %v3282 = vpack.c.b16 %v2386, %v2378
    %v3283 = vpack.c.b16 %v2387, %v2379
    %v3284 = vpack.c.b16 %v2388, %v2380
    %v3285 = vpack.c.b16 %v2389, %v2381
    %v3286 = vpack.c.b16 %v2390, %v2382
    %v3287 = vpack.c.b16 %v2391, %v2383
    %v3288 = vpack.c.b16 %v2392, %v2384
    %v3289 = vpack.c.b16 %v2393, %v2385
    %v3290 = vpack.c.b16 %v2402, %v2394
    %v3291 = vpack.c.b16 %v2403, %v2395
    %v3292 = vpack.c.b16 %v2404, %v2396
    %v3293 = vpack.c.b16 %v2405, %v2397
    %v3294 = vpack.c.b16 %v2406, %v2398
    %v3295 = vpack.c.b16 %v2407, %v2399
    %v3296 = vpack.c.b16 %v2408, %v2400
    %v3297 = vpack.c.b16 %v2409, %v2401
    %v3298 = vpack.c.b16 %v2418, %v2410
    %v3299 = vpack.c.b16 %v2419, %v2411
    %v3300 = vpack.c.b16 %v2420, %v2412
    %v3301 = vpack.c.b16 %v2421, %v2413
    %v3302 = vpack.c.b16 %v2422, %v2414
    %v3303 = vpack.c.b16 %v2423, %v2415
    %v3304 = vpack.c.b16 %v2424, %v2416
    %v3305 = vpack.c.b16 %v2425, %v2417
    %v3306 = vpack.c.b16 %v2434, %v2426
    %v3307 = vpack.c.b16 %v2435, %v2427
    %v3308 = vpack.c.b16 %v2436, %v2428
    %v3309 = vpack.c.b16 %v2437, %v2429
    %v3310 = vpack.c.b16 %v2438, %v2430
    %v3311 = vpack.c.b16 %v2439, %v2431
    %v3312 = vpack.c.b16 %v2440, %v2432
    %v3313 = vpack.c.b16 %v2441, %v2433
    %v3314 = vpack.c.b16 %v2450, %v2442
    %v3315 = vpack.c.b16 %v2451, %v2443
    %v3316 = vpack.c.b16 %v2452, %v2444
    %v3317 = vpack.c.b16 %v2453, %v2445
    %v3318 = vpack.c.b16 %v2454, %v2446
    %v3319 = vpack.c.b16 %v2455, %v2447
    %v3320 = vpack.c.b16 %v2456, %v2448
    %v3321 = vpack.c.b16 %v2457, %v2449
    %v3322 = vpack.c.b16 %v2466, %v2458
    %v3323 = vpack.c.b16 %v2467, %v2459
    %v3324 = vpack.c.b16 %v2468, %v2460
    %v3325 = vpack.c.b16 %v2469, %v2461
    %v3326 = vpack.c.b16 %v2470, %v2462
    %v3327 = vpack.c.b16 %v2471, %v2463
    %v3328 = vpack.c.b16 %v2472, %v2464
    %v3329 = vpack.c.b16 %v2473, %v2465
    %v3330 = vpack.c.b16 %v2482, %v2474
    %v3331 = vpack.c.b16 %v2483, %v2475
    %v3332 = vpack.c.b16 %v2484, %v2476
    %v3333 = vpack.c.b16 %v2485, %v2477
    %v3334 = vpack.c.b16 %v2486, %v2478
    %v3335 = vpack.c.b16 %v2487, %v2479
    %v3336 = vpack.c.b16 %v2488, %v2480
    %v3337 = vpack.c.b16 %v2489, %v2481
    %v3338 = vpack.c.b16 %v2498, %v2490
    %v3339 = vpack.c.b16 %v2499, %v2491
    %v3340 = vpack.c.b16 %v2500, %v2492
    %v3341 = vpack.c.b16 %v2501, %v2493
    %v3342 = vpack.c.b16 %v2502, %v2494
    %v3343 = vpack.c.b16 %v2503, %v2495
    %v3344 = vpack.c.b16 %v2504, %v2496
    %v3345 = vpack.c.b16 %v2505, %v2497
    %v3346 = vpack.c.b16 %v2514, %v2506
    %v3347 = vpack.c.b16 %v2515, %v2507
    %v3348 = vpack.c.b16 %v2516, %v2508
    %v3349 = vpack.c.b16 %v2517, %v2509
    %v3350 = vpack.c.b16 %v2518, %v2510
    %v3351 = vpack.c.b16 %v2519, %v2511
    %v3352 = vpack.c.b16 %v2520, %v2512
    %v3353 = vpack.c.b16 %v2521, %v2513
    %v3354 = vpack.c.b16 %v2530, %v2522
    %v3355 = vpack.c.b16 %v2531, %v2523
    %v3356 = vpack.c.b16 %v2532, %v2524
    %v3357 = vpack.c.b16 %v2533, %v2525
    %v3358 = vpack.c.b16 %v2534, %v2526
    %v3359 = vpack.c.b16 %v2535, %v2527
    %v3360 = vpack.c.b16 %v2536, %v2528
    %v3361 = vpack.c.b16 %v2537, %v2529
    %v3362 = vpack.c.b16 %v2546, %v2538
    %v3363 = vpack.c.b16 %v2547, %v2539
    %v3364 = vpack.c.b16 %v2548, %v2540
    %v3365 = vpack.c.b16 %v2549, %v2541
    %v3366 = vpack.c.b16 %v2550, %v2542
    %v3367 = vpack.c.b16 %v2551, %v2543
    %v3368 = vpack.c.b16 %v2552, %v2544
    %v3369 = vpack.c.b16 %v2553, %v2545
    %v3370 = vpack.c.b16 %v2562, %v2554
    %v3371 = vpack.c.b16 %v2563, %v2555
    %v3372 = vpack.c.b16 %v2564, %v2556
    %v3373 = vpack.c.b16 %v2565, %v2557
    %v3374 = vpack.c.b16 %v2566, %v2558
    %v3375 = vpack.c.b16 %v2567, %v2559
    %v3376 = vpack.c.b16 %v2568, %v2560
    %v3377 = vpack.c.b16 %v2569, %v2561
    %v3378 = vpack.c.b16 %v2578, %v2570
    %v3379 = vpack.c.b16 %v2579, %v2571
    %v3380 = vpack.c.b16 %v2580, %v2572
    %v3381 = vpack.c.b16 %v2581, %v2573
    %v3382 = vpack.c.b16 %v2582, %v2574
    %v3383 = vpack.c.b16 %v2583, %v2575
    %v3384 = vpack.c.b16 %v2584, %v2576
    %v3385 = vpack.c.b16 %v2585, %v2577
    %v3386 = vpack.c.b16 %v2594, %v2586
    %v3387 = vpack.c.b16 %v2595, %v2587
    %v3388 = vpack.c.b16 %v2596, %v2588
    %v3389 = vpack.c.b16 %v2597, %v2589
    %v3390 = vpack.c.b16 %v2598, %v2590
    %v3391 = vpack.c.b16 %v2599, %v2591
    %v3392 = vpack.c.b16 %v2600, %v2592
    %v3393 = vpack.c.b16 %v2601, %v2593
    %v3394 = vpack.c.b16 %v2610, %v2602
    %v3395 = vpack.c.b16 %v2611, %v2603
    %v3396 = vpack.c.b16 %v2612, %v2604
    %v3397 = vpack.c.b16 %v2613, %v2605
    %v3398 = vpack.c.b16 %v2614, %v2606
    %v3399 = vpack.c.b16 %v2615, %v2607
    %v3400 = vpack.c.b16 %v2616, %v2608
    %v3401 = vpack.c.b16 %v2617, %v2609
    %v3402 = vpack.c.b16 %v2626, %v2618
    %v3403 = vpack.c.b16 %v2627, %v2619
    %v3404 = vpack.c.b16 %v2628, %v2620
    %v3405 = vpack.c.b16 %v2629, %v2621
    %v3406 = vpack.c.b16 %v2630, %v2622
    %v3407 = vpack.c.b16 %v2631, %v2623
    %v3408 = vpack.c.b16 %v2632, %v2624
    %v3409 = vpack.c.b16 %v2633, %v2625
    %v3410 = vpack.c.b16 %v2642, %v2634
    %v3411 = vpack.c.b16 %v2643, %v2635
    %v3412 = vpack.c.b16 %v2644, %v2636
    %v3413 = vpack.c.b16 %v2645, %v2637
    %v3414 = vpack.c.b16 %v2646, %v2638
    %v3415 = vpack.c.b16 %v2647, %v2639
    %v3416 = vpack.c.b16 %v2648, %v2640
    %v3417 = vpack.c.b16 %v2649, %v2641
    %v3418 = vpack.c.b16 %v2658, %v2650
    %v3419 = vpack.c.b16 %v2659, %v2651
    %v3420 = vpack.c.b16 %v2660, %v2652
    %v3421 = vpack.c.b16 %v2661, %v2653
    %v3422 = vpack.c.b16 %v2662, %v2654
    %v3423 = vpack.c.b16 %v2663, %v2655
    %v3424 = vpack.c.b16 %v2664, %v2656
    %v3425 = vpack.c.b16 %v2665, %v2657
    %v3426 = vpack.c.b16 %v2674, %v2666
    %v3427 = vpack.c.b16 %v2675, %v2667
    %v3428 = vpack.c.b16 %v2676, %v2668
    %v3429 = vpack.c.b16 %v2677, %v2669
    %v3430 = vpack.c.b16 %v2678, %v2670
    %v3431 = vpack.c.b16 %v2679, %v2671
    %v3432 = vpack.c.b16 %v2680, %v2672
    %v3433 = vpack.c.b16 %v2681, %v2673
    %v3434 = vpack.c.b16 %v2690, %v2682
    %v3435 = vpack.c.b16 %v2691, %v2683
    %v3436 = vpack.c.b16 %v2692, %v2684
    %v3437 = vpack.c.b16 %v2693, %v2685
    %v3438 = vpack.c.b16 %v2694, %v2686
    %v3439 = vpack.c.b16 %v2695, %v2687
    %v3440 = vpack.c.b16 %v2696, %v2688
    %v3441 = vpack.c.b16 %v2697, %v2689
    %v3442 = vpack.c.b16 %v2706, %v2698
    %v3443 = vpack.c.b16 %v2707, %v2699
    %v3444 = vpack.c.b16 %v2708, %v2700
    %v3445 = vpack.c.b16 %v2709, %v2701
    %v3446 = vpack.c.b16 %v2710, %v2702
    %v3447 = vpack.c.b16 %v2711, %v2703
    %v3448 = vpack.c.b16 %v2712, %v2704
    %v3449 = vpack.c.b16 %v2713, %v2705
    %v3450 = vpack.c.b16 %v2722, %v2714
    %v3451 = vpack.c.b16 %v2723, %v2715
    %v3452 = vpack.c.b16 %v2724, %v2716
    %v3453 = vpack.c.b16 %v2725, %v2717
    %v3454 = vpack.c.b16 %v2726, %v2718
    %v3455 = vpack.c.b16 %v2727, %v2719
    %v3456 = vpack.c.b16 %v2728, %v2720
    %v3457 = vpack.c.b16 %v2729, %v2721
    %v3458 = vpack.c.b16 %v2738, %v2730
    %v3459 = vpack.c.b16 %v2739, %v2731
    %v3460 = vpack.c.b16 %v2740, %v2732
    %v3461 = vpack.c.b16 %v2741, %v2733
    %v3462 = vpack.c.b16 %v2742, %v2734
    %v3463 = vpack.c.b16 %v2743, %v2735
    %v3464 = vpack.c.b16 %v2744, %v2736
    %v3465 = vpack.c.b16 %v2745, %v2737
    %v3466 = vpack.c.b16 %v2754, %v2746
    %v3467 = vpack.c.b16 %v2755, %v2747
    %v3468 = vpack.c.b16 %v2756, %v2748
    %v3469 = vpack.c.b16 %v2757, %v2749
    %v3470 = vpack.c.b16 %v2758, %v2750
    %v3471 = vpack.c.b16 %v2759, %v2751
    %v3472 = vpack.c.b16 %v2760, %v2752
    %v3473 = vpack.c.b16 %v2761, %v2753
    %v3474 = vpack.c.b16 %v2770, %v2762
    %v3475 = vpack.c.b16 %v2771, %v2763
    %v3476 = vpack.c.b16 %v2772, %v2764
    %v3477 = vpack.c.b16 %v2773, %v2765
    %v3478 = vpack.c.b16 %v2774, %v2766
    %v3479 = vpack.c.b16 %v2775, %v2767
    %v3480 = vpack.c.b16 %v2776, %v2768
    %v3481 = vpack.c.b16 %v2777, %v2769
    %v3482 = vpack.c.b16 %v2786, %v2778
    %v3483 = vpack.c.b16 %v2787, %v2779
    %v3484 = vpack.c.b16 %v2788, %v2780
    %v3485 = vpack.c.b16 %v2789, %v2781
    %v3486 = vpack.c.b16 %v2790, %v2782
    %v3487 = vpack.c.b16 %v2791, %v2783
    %v3488 = vpack.c.b16 %v2792, %v2784
    %v3489 = vpack.c.b16 %v2793, %v2785
    %v3490 = vpack.c.b16 %v2802, %v2794
    %v3491 = vpack.c.b16 %v2803, %v2795
    %v3492 = vpack.c.b16 %v2804, %v2796
    %v3493 = vpack.c.b16 %v2805, %v2797
    %v3494 = vpack.c.b16 %v2806, %v2798
    %v3495 = vpack.c.b16 %v2807, %v2799
    %v3496 = vpack.c.b16 %v2808, %v2800
    %v3497 = vpack.c.b16 %v2809, %v2801
    %v3498 = vpack.c.b16 %v2818, %v2810
    %v3499 = vpack.c.b16 %v2819, %v2811
    %v3500 = vpack.c.b16 %v2820, %v2812
    %v3501 = vpack.c.b16 %v2821, %v2813
    %v3502 = vpack.c.b16 %v2822, %v2814
    %v3503 = vpack.c.b16 %v2823, %v2815
    %v3504 = vpack.c.b16 %v2824, %v2816
    %v3505 = vpack.c.b16 %v2825, %v2817
    %v3506 = vpack.c.b16 %v2834, %v2826
    %v3507 = vpack.c.b16 %v2835, %v2827
    %v3508 = vpack.c.b16 %v2836, %v2828
    %v3509 = vpack.c.b16 %v2837, %v2829
    %v3510 = vpack.c.b16 %v2838, %v2830
    %v3511 = vpack.c.b16 %v2839, %v2831
    %v3512 = vpack.c.b16 %v2840, %v2832
    %v3513 = vpack.c.b16 %v2841, %v2833
    %v3514 = vpack.c.b16 %v2850, %v2842
    %v3515 = vpack.c.b16 %v2851, %v2843
    %v3516 = vpack.c.b16 %v2852, %v2844
    %v3517 = vpack.c.b16 %v2853, %v2845
    %v3518 = vpack.c.b16 %v2854, %v2846
    %v3519 = vpack.c.b16 %v2855, %v2847
    %v3520 = vpack.c.b16 %v2856, %v2848
    %v3521 = vpack.c.b16 %v2857, %v2849
    %v3522 = vpack.c.b16 %v2866, %v2858
    %v3523 = vpack.c.b16 %v2867, %v2859
    %v3524 = vpack.c.b16 %v2868, %v2860
    %v3525 = vpack.c.b16 %v2869, %v2861
    %v3526 = vpack.c.b16 %v2870, %v2862
    %v3527 = vpack.c.b16 %v2871, %v2863
    %v3528 = vpack.c.b16 %v2872, %v2864
    %v3529 = vpack.c.b16 %v2873, %v2865
    %v3530 = vpack.c.b16 %v2882, %v2874
    %v3531 = vpack.c.b16 %v2883, %v2875
    %v3532 = vpack.c.b16 %v2884, %v2876
    %v3533 = vpack.c.b16 %v2885, %v2877
    %v3534 = vpack.c.b16 %v2886, %v2878
    %v3535 = vpack.c.b16 %v2887, %v2879
    %v3536 = vpack.c.b16 %v2888, %v2880
    %v3537 = vpack.c.b16 %v2889, %v2881
    %v3538 = vpack.c.b16 %v2898, %v2890
    %v3539 = vpack.c.b16 %v2899, %v2891
    %v3540 = vpack.c.b16 %v2900, %v2892
    %v3541 = vpack.c.b16 %v2901, %v2893
    %v3542 = vpack.c.b16 %v2902, %v2894
    %v3543 = vpack.c.b16 %v2903, %v2895
    %v3544 = vpack.c.b16 %v2904, %v2896
    %v3545 = vpack.c.b16 %v2905, %v2897
    %v3546 = vpack.c.b16 %v2914, %v2906
    %v3547 = vpack.c.b16 %v2915, %v2907
    %v3548 = vpack.c.b16 %v2916, %v2908
    %v3549 = vpack.c.b16 %v2917, %v2909
    %v3550 = vpack.c.b16 %v2918, %v2910
    %v3551 = vpack.c.b16 %v2919, %v2911
    %v3552 = vpack.c.b16 %v2920, %v2912
    %v3553 = vpack.c.b16 %v2921, %v2913
    %v3554 = vpack.c.b16 %v2930, %v2922
    %v3555 = vpack.c.b16 %v2931, %v2923
    %v3556 = vpack.c.b16 %v2932, %v2924
    %v3557 = vpack.c.b16 %v2933, %v2925
    %v3558 = vpack.c.b16 %v2934, %v2926
    %v3559 = vpack.c.b16 %v2935, %v2927
    %v3560 = vpack.c.b16 %v2936, %v2928
    %v3561 = vpack.c.b16 %v2937, %v2929
    %v3562 = vpack.c.b16 %v2946, %v2938
    %v3563 = vpack.c.b16 %v2947, %v2939
    %v3564 = vpack.c.b16 %v2948, %v2940
    %v3565 = vpack.c.b16 %v2949, %v2941
    %v3566 = vpack.c.b16 %v2950, %v2942
    %v3567 = vpack.c.b16 %v2951, %v2943
    %v3568 = vpack.c.b16 %v2952, %v2944
    %v3569 = vpack.c.b16 %v2953, %v2945
    %v3570 = vpack.c.b16 %v2962, %v2954
    %v3571 = vpack.c.b16 %v2963, %v2955
    %v3572 = vpack.c.b16 %v2964, %v2956
    %v3573 = vpack.c.b16 %v2965, %v2957
    %v3574 = vpack.c.b16 %v2966, %v2958
    %v3575 = vpack.c.b16 %v2967, %v2959
    %v3576 = vpack.c.b16 %v2968, %v2960
    %v3577 = vpack.c.b16 %v2969, %v2961
    %v3578 = vpack.c.b16 %v2978, %v2970
    %v3579 = vpack.c.b16 %v2979, %v2971
    %v3580 = vpack.c.b16 %v2980, %v2972
    %v3581 = vpack.c.b16 %v2981, %v2973
    %v3582 = vpack.c.b16 %v2982, %v2974
    %v3583 = vpack.c.b16 %v2983, %v2975
    %v3584 = vpack.c.b16 %v2984, %v2976
    %v3585 = vpack.c.b16 %v2985, %v2977
    %v3586 = vpack.c.b16 %v2994, %v2986
    %v3587 = vpack.c.b16 %v2995, %v2987
    %v3588 = vpack.c.b16 %v2996, %v2988
    %v3589 = vpack.c.b16 %v2997, %v2989
    %v3590 = vpack.c.b16 %v2998, %v2990
    %v3591 = vpack.c.b16 %v2999, %v2991
    %v3592 = vpack.c.b16 %v3000, %v2992
    %v3593 = vpack.c.b16 %v3001, %v2993
    %v3594 = vpack.c.b16 %v3010, %v3002
    %v3595 = vpack.c.b16 %v3011, %v3003
    %v3596 = vpack.c.b16 %v3012, %v3004
    %v3597 = vpack.c.b16 %v3013, %v3005
    %v3598 = vpack.c.b16 %v3014, %v3006
    %v3599 = vpack.c.b16 %v3015, %v3007
    %v3600 = vpack.c.b16 %v3016, %v3008
    %v3601 = vpack.c.b16 %v3017, %v3009
    %v3602 = vpack.c.b16 %v3026, %v3018
    %v3603 = vpack.c.b16 %v3027, %v3019
    %v3604 = vpack.c.b16 %v3028, %v3020
    %v3605 = vpack.c.b16 %v3029, %v3021
    %v3606 = vpack.c.b16 %v3030, %v3022
    %v3607 = vpack.c.b16 %v3031, %v3023
    %v3608 = vpack.c.b16 %v3032, %v3024
    %v3609 = vpack.c.b16 %v3033, %v3025
    %v3610 = vpack.c.b16 %v3042, %v3034
    %v3611 = vpack.c.b16 %v3043, %v3035
    %v3612 = vpack.c.b16 %v3044, %v3036
    %v3613 = vpack.c.b16 %v3045, %v3037
    %v3614 = vpack.c.b16 %v3046, %v3038
    %v3615 = vpack.c.b16 %v3047, %v3039
    %v3616 = vpack.c.b16 %v3048, %v3040
    %v3617 = vpack.c.b16 %v3049, %v3041
    %v3618 = vpack.c.b16 %v3058, %v3050
    %v3619 = vpack.c.b16 %v3059, %v3051
    %v3620 = vpack.c.b16 %v3060, %v3052
    %v3621 = vpack.c.b16 %v3061, %v3053
    %v3622 = vpack.c.b16 %v3062, %v3054
    %v3623 = vpack.c.b16 %v3063, %v3055
    %v3624 = vpack.c.b16 %v3064, %v3056
    %v3625 = vpack.c.b16 %v3065, %v3057
    %v3626 = vpack.c.b16 %v3074, %v3066
    %v3627 = vpack.c.b16 %v3075, %v3067
    %v3628 = vpack.c.b16 %v3076, %v3068
    %v3629 = vpack.c.b16 %v3077, %v3069
    %v3630 = vpack.c.b16 %v3078, %v3070
    %v3631 = vpack.c.b16 %v3079, %v3071
    %v3632 = vpack.c.b16 %v3080, %v3072
    %v3633 = vpack.c.b16 %v3081, %v3073
    %v3634 = vpack.c.b16 %v3090, %v3082
    %v3635 = vpack.c.b16 %v3091, %v3083
    %v3636 = vpack.c.b16 %v3092, %v3084
    %v3637 = vpack.c.b16 %v3093, %v3085
    %v3638 = vpack.c.b16 %v3094, %v3086
    %v3639 = vpack.c.b16 %v3095, %v3087
    %v3640 = vpack.c.b16 %v3096, %v3088
    %v3641 = vpack.c.b16 %v3097, %v3089
    %v3642 = vpack.c.b16 %v3106, %v3098
    %v3643 = vpack.c.b16 %v3107, %v3099
    %v3644 = vpack.c.b16 %v3108, %v3100
    %v3645 = vpack.c.b16 %v3109, %v3101
    %v3646 = vpack.c.b16 %v3110, %v3102
    %v3647 = vpack.c.b16 %v3111, %v3103
    %v3648 = vpack.c.b16 %v3112, %v3104
    %v3649 = vpack.c.b16 %v3113, %v3105
    %v3650 = vpack.c.b16 %v3122, %v3114
    %v3651 = vpack.c.b16 %v3123, %v3115
    %v3652 = vpack.c.b16 %v3124, %v3116
    %v3653 = vpack.c.b16 %v3125, %v3117
    %v3654 = vpack.c.b16 %v3126, %v3118
    %v3655 = vpack.c.b16 %v3127, %v3119
    %v3656 = vpack.c.b16 %v3128, %v3120
    %v3657 = vpack.c.b16 %v3129, %v3121
    %v3658 = vpack.c.b16 %v3138, %v3130
    %v3659 = vpack.c.b16 %v3139, %v3131
    %v3660 = vpack.c.b16 %v3140, %v3132
    %v3661 = vpack.c.b16 %v3141, %v3133
    %v3662 = vpack.c.b16 %v3142, %v3134
    %v3663 = vpack.c.b16 %v3143, %v3135
    %v3664 = vpack.c.b16 %v3144, %v3136
    %v3665 = vpack.c.b16 %v3145, %v3137
    %v3666 = vpack.c.b16 %v3154, %v3146
    %v3667 = vpack.c.b16 %v3155, %v3147
    %v3668 = vpack.c.b16 %v3156, %v3148
    %v3669 = vpack.c.b16 %v3157, %v3149
    %v3670 = vpack.c.b16 %v3158, %v3150
    %v3671 = vpack.c.b16 %v3159, %v3151
    %v3672 = vpack.c.b16 %v3160, %v3152
    %v3673 = vpack.c.b16 %v3161, %v3153
    %4186 = vmatprep.subr.bf16.mxu0 %v3163
    %4187 = vmatpush1.bf16.msra.mxu0 %v3162
    %4188 = vmatprep.subr.bf16.mxu0 %v3171
    %4189 = vmatpush1.bf16.msra.mxu0 %v3170
    %4190 = vmatprep.subr.bf16.mxu0 %v3179
    %4191 = vmatpush1.bf16.msra.mxu0 %v3178
    %4192 = vmatprep.subr.bf16.mxu0 %v3187
    %4193 = vmatpush1.bf16.msra.mxu0 %v3186
    %4194 = vmatprep.subr.bf16.mxu0 %v3195
    %4195 = vmatpush1.bf16.msra.mxu0 %v3194
    %4196 = vmatprep.subr.bf16.mxu0 %v3203
    %4197 = vmatpush1.bf16.msra.mxu0 %v3202
    %4198 = vmatprep.subr.bf16.mxu0 %v3211
    %4199 = vmatpush1.bf16.msra.mxu0 %v3210
    %4200 = vmatprep.subr.bf16.mxu0 %v3219
    %4201 = vmatpush1.bf16.msra.mxu0 %v3218
    %4202 = vmatprep.subr.bf16.mxu0 %v3227
    %4203 = vmatpush1.bf16.msra.mxu0 %v3226
    %4204 = vmatprep.subr.bf16.mxu0 %v3235
    %4205 = vmatpush1.bf16.msra.mxu0 %v3234
    %4206 = vmatprep.subr.bf16.mxu0 %v3243
    %4207 = vmatpush1.bf16.msra.mxu0 %v3242
    %4208 = vmatprep.subr.bf16.mxu0 %v3251
    %4209 = vmatpush1.bf16.msra.mxu0 %v3250
    %4210 = vmatprep.subr.bf16.mxu0 %v3259
    %4211 = vmatpush1.bf16.msra.mxu0 %v3258
    %4212 = vmatprep.subr.bf16.mxu0 %v3267
    %4213 = vmatpush1.bf16.msra.mxu0 %v3266
    %4214 = vmatprep.subr.bf16.mxu0 %v3275
    %4215 = vmatpush1.bf16.msra.mxu0 %v3274
    %4216 = vmatprep.subr.bf16.mxu0 %v3283
    %4217 = vmatpush1.bf16.msra.mxu0 %v3282
    %4218 = vmatprep.mubr.bf16.mxu0 %v1065
    %4219 = vmatmul.mubr.bf16.gmra.mrb[0].mxu0 %v1064
    %v4220 = vpop.f32.mrb[0].mxu0
    %v4221 = vadd.f32 %v1589, %v4220
    %v4222 = vpop.f32.mrb[0].mxu0
    %v4223 = vadd.f32 %v1593, %v4222
    %v4224 = vpop.f32.mrb[0].mxu0
    %v4225 = vpop.f32.mrb[0].mxu0
    %4226 = vdwg.mxu0
    %4227 = vmatprep.subr.bf16.mxu0 %v3291
    %4228 = vmatpush1.bf16.msra.mxu0 %v3290
    %4229 = vmatprep.subr.bf16.mxu0 %v3299
    %4230 = vmatpush1.bf16.msra.mxu0 %v3298
    %4231 = vmatprep.subr.bf16.mxu0 %v3307
    %4232 = vmatpush1.bf16.msra.mxu0 %v3306
    %4233 = vmatprep.subr.bf16.mxu0 %v3315
    %4234 = vmatpush1.bf16.msra.mxu0 %v3314
    %4235 = vmatprep.subr.bf16.mxu0 %v3323
    %4236 = vmatpush1.bf16.msra.mxu0 %v3322
    %4237 = vmatprep.subr.bf16.mxu0 %v3331
    %4238 = vmatpush1.bf16.msra.mxu0 %v3330
    %4239 = vmatprep.subr.bf16.mxu0 %v3339
    %4240 = vmatpush1.bf16.msra.mxu0 %v3338
    %4241 = vmatprep.subr.bf16.mxu0 %v3347
    %4242 = vmatpush1.bf16.msra.mxu0 %v3346
    %4243 = vmatprep.subr.bf16.mxu0 %v3355
    %4244 = vmatpush1.bf16.msra.mxu0 %v3354
    %4245 = vmatprep.subr.bf16.mxu0 %v3363
    %4246 = vmatpush1.bf16.msra.mxu0 %v3362
    %4247 = vmatprep.subr.bf16.mxu0 %v3371
    %4248 = vmatpush1.bf16.msra.mxu0 %v3370
    %4249 = vmatprep.subr.bf16.mxu0 %v3379
    %4250 = vmatpush1.bf16.msra.mxu0 %v3378
    %4251 = vmatprep.subr.bf16.mxu0 %v3387
    %4252 = vmatpush1.bf16.msra.mxu0 %v3386
    %4253 = vmatprep.subr.bf16.mxu0 %v3395
    %4254 = vmatpush1.bf16.msra.mxu0 %v3394
    %4255 = vmatprep.subr.bf16.mxu0 %v3403
    %4256 = vmatpush1.bf16.msra.mxu0 %v3402
    %4257 = vmatprep.subr.bf16.mxu0 %v3411
    %4258 = vmatpush1.bf16.msra.mxu0 %v3410
    %4259 = vmatprep.mubr.bf16.mxu0 %v1067
    %4260 = vmatmul.mubr.bf16.gmra.mrb[0].mxu0 %v1066
    %v4261 = vpop.f32.mrb[0].mxu0
    %v4262 = vadd.f32 %v4221, %v4261
    %v4263 = vpop.f32.mrb[0].mxu0
    %v4264 = vadd.f32 %v4223, %v4263
    %v4265 = vpop.f32.mrb[0].mxu0
    %v4266 = vpop.f32.mrb[0].mxu0
    %4267 = vdwg.mxu0
    %4268 = vmatprep.subr.bf16.mxu0 %v3419
    %4269 = vmatpush1.bf16.msra.mxu0 %v3418
    %4270 = vmatprep.subr.bf16.mxu0 %v3427
    %4271 = vmatpush1.bf16.msra.mxu0 %v3426
    %4272 = vmatprep.subr.bf16.mxu0 %v3435
    %4273 = vmatpush1.bf16.msra.mxu0 %v3434
    %4274 = vmatprep.subr.bf16.mxu0 %v3443
    %4275 = vmatpush1.bf16.msra.mxu0 %v3442
    %4276 = vmatprep.subr.bf16.mxu0 %v3451
    %4277 = vmatpush1.bf16.msra.mxu0 %v3450
    %4278 = vmatprep.subr.bf16.mxu0 %v3459
    %4279 = vmatpush1.bf16.msra.mxu0 %v3458
    %4280 = vmatprep.subr.bf16.mxu0 %v3467
    %4281 = vmatpush1.bf16.msra.mxu0 %v3466
    %4282 = vmatprep.subr.bf16.mxu0 %v3475
    %4283 = vmatpush1.bf16.msra.mxu0 %v3474
    %4284 = vmatprep.subr.bf16.mxu0 %v3483
    %4285 = vmatpush1.bf16.msra.mxu0 %v3482
    %4286 = vmatprep.subr.bf16.mxu0 %v3491
    %4287 = vmatpush1.bf16.msra.mxu0 %v3490
    %4288 = vmatprep.subr.bf16.mxu0 %v3499
    %4289 = vmatpush1.bf16.msra.mxu0 %v3498
    %4290 = vmatprep.subr.bf16.mxu0 %v3507
    %4291 = vmatpush1.bf16.msra.mxu0 %v3506
    %4292 = vmatprep.subr.bf16.mxu0 %v3515
    %4293 = vmatpush1.bf16.msra.mxu0 %v3514
    %4294 = vmatprep.subr.bf16.mxu0 %v3523
    %4295 = vmatpush1.bf16.msra.mxu0 %v3522
    %4296 = vmatprep.subr.bf16.mxu0 %v3531
    %4297 = vmatpush1.bf16.msra.mxu0 %v3530
    %4298 = vmatprep.subr.bf16.mxu0 %v3539
    %4299 = vmatpush1.bf16.msra.mxu0 %v3538
    %4300 = vmatprep.mubr.bf16.mxu0 %v1069
    %4301 = vmatmul.mubr.bf16.gmra.mrb[0].mxu0 %v1068
    %v4302 = vpop.f32.mrb[0].mxu0
    %v4303 = vadd.f32 %v4262, %v4302
    %v4304 = vpop.f32.mrb[0].mxu0
    %v4305 = vadd.f32 %v4264, %v4304
    %v4306 = vpop.f32.mrb[0].mxu0
    %v4307 = vpop.f32.mrb[0].mxu0
    %4308 = vdwg.mxu0
    %4309 = vmatprep.subr.bf16.mxu0 %v3547
    %4310 = vmatpush1.bf16.msra.mxu0 %v3546
    %4311 = vmatprep.subr.bf16.mxu0 %v3555
    %4312 = vmatpush1.bf16.msra.mxu0 %v3554
    %4313 = vmatprep.subr.bf16.mxu0 %v3563
    %4314 = vmatpush1.bf16.msra.mxu0 %v3562
    %4315 = vmatprep.subr.bf16.mxu0 %v3571
    %4316 = vmatpush1.bf16.msra.mxu0 %v3570
    %4317 = vmatprep.subr.bf16.mxu0 %v3579
    %4318 = vmatpush1.bf16.msra.mxu0 %v3578
    %4319 = vmatprep.subr.bf16.mxu0 %v3587
    %4320 = vmatpush1.bf16.msra.mxu0 %v3586
    %4321 = vmatprep.subr.bf16.mxu0 %v3595
    %4322 = vmatpush1.bf16.msra.mxu0 %v3594
    %4323 = vmatprep.subr.bf16.mxu0 %v3603
    %4324 = vmatpush1.bf16.msra.mxu0 %v3602
    %4325 = vmatprep.subr.bf16.mxu0 %v3611
    %4326 = vmatpush1.bf16.msra.mxu0 %v3610
    %4327 = vmatprep.subr.bf16.mxu0 %v3619
    %4328 = vmatpush1.bf16.msra.mxu0 %v3618
    %4329 = vmatprep.subr.bf16.mxu0 %v3627
    %4330 = vmatpush1.bf16.msra.mxu0 %v3626
    %4331 = vmatprep.subr.bf16.mxu0 %v3635
    %4332 = vmatpush1.bf16.msra.mxu0 %v3634
    %4333 = vmatprep.subr.bf16.mxu0 %v3643
    %4334 = vmatpush1.bf16.msra.mxu0 %v3642
    %4335 = vmatprep.subr.bf16.mxu0 %v3651
    %4336 = vmatpush1.bf16.msra.mxu0 %v3650
    %4337 = vmatprep.subr.bf16.mxu0 %v3659
    %4338 = vmatpush1.bf16.msra.mxu0 %v3658
    %4339 = vmatprep.subr.bf16.mxu0 %v3667
    %4340 = vmatpush1.bf16.msra.mxu0 %v3666
    %4341 = vmatprep.mubr.bf16.mxu0 %v1071
    %4342 = vmatmul.mubr.bf16.gmra.mrb[0].mxu0 %v1070
    %v4343 = vpop.f32.mrb[0].mxu0
    %v4344 = vadd.f32 %v4303, %v4343
    %v4345 = vpop.f32.mrb[0].mxu0
    %v4346 = vadd.f32 %v4305, %v4345
    %v4347 = vpop.f32.mrb[0].mxu0
    %v4348 = vpop.f32.mrb[0].mxu0
    %4349 = vdwg.mxu0
    %4350 = vmatprep.subr.bf16.mxu0 %v3165
    %4351 = vmatpush1.bf16.msra.mxu0 %v3164
    %4352 = vmatprep.subr.bf16.mxu0 %v3173
    %4353 = vmatpush1.bf16.msra.mxu0 %v3172
    %4354 = vmatprep.subr.bf16.mxu0 %v3181
    %4355 = vmatpush1.bf16.msra.mxu0 %v3180
    %4356 = vmatprep.subr.bf16.mxu0 %v3189
    %4357 = vmatpush1.bf16.msra.mxu0 %v3188
    %4358 = vmatprep.subr.bf16.mxu0 %v3197
    %4359 = vmatpush1.bf16.msra.mxu0 %v3196
    %4360 = vmatprep.subr.bf16.mxu0 %v3205
    %4361 = vmatpush1.bf16.msra.mxu0 %v3204
    %4362 = vmatprep.subr.bf16.mxu0 %v3213
    %4363 = vmatpush1.bf16.msra.mxu0 %v3212
    %4364 = vmatprep.subr.bf16.mxu0 %v3221
    %4365 = vmatpush1.bf16.msra.mxu0 %v3220
    %4366 = vmatprep.subr.bf16.mxu0 %v3229
    %4367 = vmatpush1.bf16.msra.mxu0 %v3228
    %4368 = vmatprep.subr.bf16.mxu0 %v3237
    %4369 = vmatpush1.bf16.msra.mxu0 %v3236
    %4370 = vmatprep.subr.bf16.mxu0 %v3245
    %4371 = vmatpush1.bf16.msra.mxu0 %v3244
    %4372 = vmatprep.subr.bf16.mxu0 %v3253
    %4373 = vmatpush1.bf16.msra.mxu0 %v3252
    %4374 = vmatprep.subr.bf16.mxu0 %v3261
    %4375 = vmatpush1.bf16.msra.mxu0 %v3260
    %4376 = vmatprep.subr.bf16.mxu0 %v3269
    %4377 = vmatpush1.bf16.msra.mxu0 %v3268
    %4378 = vmatprep.subr.bf16.mxu0 %v3277
    %4379 = vmatpush1.bf16.msra.mxu0 %v3276
    %4380 = vmatprep.subr.bf16.mxu0 %v3285
    %4381 = vmatpush1.bf16.msra.mxu0 %v3284
    %4382 = vmatprep.mubr.bf16.mxu0 %v1065
    %4383 = vmatmul.mubr.bf16.gmra.mrb[0].mxu0 %v1064
    %v4384 = vpop.f32.mrb[0].mxu0
    %v4385 = vadd.f32 %v1597, %v4384
    %v4386 = vpop.f32.mrb[0].mxu0
    %v4387 = vadd.f32 %v1601, %v4386
    %v4388 = vpop.f32.mrb[0].mxu0
    %v4389 = vpop.f32.mrb[0].mxu0
    %4390 = vdwg.mxu0
    %4391 = vmatprep.subr.bf16.mxu0 %v3293
    %4392 = vmatpush1.bf16.msra.mxu0 %v3292
    %4393 = vmatprep.subr.bf16.mxu0 %v3301
    %4394 = vmatpush1.bf16.msra.mxu0 %v3300
    %4395 = vmatprep.subr.bf16.mxu0 %v3309
    %4396 = vmatpush1.bf16.msra.mxu0 %v3308
    %4397 = vmatprep.subr.bf16.mxu0 %v3317
    %4398 = vmatpush1.bf16.msra.mxu0 %v3316
    %4399 = vmatprep.subr.bf16.mxu0 %v3325
    %4400 = vmatpush1.bf16.msra.mxu0 %v3324
    %4401 = vmatprep.subr.bf16.mxu0 %v3333
    %4402 = vmatpush1.bf16.msra.mxu0 %v3332
    %4403 = vmatprep.subr.bf16.mxu0 %v3341
    %4404 = vmatpush1.bf16.msra.mxu0 %v3340
    %4405 = vmatprep.subr.bf16.mxu0 %v3349
    %4406 = vmatpush1.bf16.msra.mxu0 %v3348
    %4407 = vmatprep.subr.bf16.mxu0 %v3357
    %4408 = vmatpush1.bf16.msra.mxu0 %v3356
    %4409 = vmatprep.subr.bf16.mxu0 %v3365
    %4410 = vmatpush1.bf16.msra.mxu0 %v3364
    %4411 = vmatprep.subr.bf16.mxu0 %v3373
    %4412 = vmatpush1.bf16.msra.mxu0 %v3372
    %4413 = vmatprep.subr.bf16.mxu0 %v3381
    %4414 = vmatpush1.bf16.msra.mxu0 %v3380
    %4415 = vmatprep.subr.bf16.mxu0 %v3389
    %4416 = vmatpush1.bf16.msra.mxu0 %v3388
    %4417 = vmatprep.subr.bf16.mxu0 %v3397
    %4418 = vmatpush1.bf16.msra.mxu0 %v3396
    %4419 = vmatprep.subr.bf16.mxu0 %v3405
    %4420 = vmatpush1.bf16.msra.mxu0 %v3404
    %4421 = vmatprep.subr.bf16.mxu0 %v3413
    %4422 = vmatpush1.bf16.msra.mxu0 %v3412
    %4423 = vmatprep.mubr.bf16.mxu0 %v1067
    %4424 = vmatmul.mubr.bf16.gmra.mrb[0].mxu0 %v1066
    %v4425 = vpop.f32.mrb[0].mxu0
    %v4426 = vadd.f32 %v4385, %v4425
    %v4427 = vpop.f32.mrb[0].mxu0
    %v4428 = vadd.f32 %v4387, %v4427
    %v4429 = vpop.f32.mrb[0].mxu0
    %v4430 = vpop.f32.mrb[0].mxu0
    %4431 = vdwg.mxu0
    %4432 = vmatprep.subr.bf16.mxu0 %v3421
    %4433 = vmatpush1.bf16.msra.mxu0 %v3420
    %4434 = vmatprep.subr.bf16.mxu0 %v3429
    %4435 = vmatpush1.bf16.msra.mxu0 %v3428
    %4436 = vmatprep.subr.bf16.mxu0 %v3437
    %4437 = vmatpush1.bf16.msra.mxu0 %v3436
    %4438 = vmatprep.subr.bf16.mxu0 %v3445
    %4439 = vmatpush1.bf16.msra.mxu0 %v3444
    %4440 = vmatprep.subr.bf16.mxu0 %v3453
    %4441 = vmatpush1.bf16.msra.mxu0 %v3452
    %4442 = vmatprep.subr.bf16.mxu0 %v3461
    %4443 = vmatpush1.bf16.msra.mxu0 %v3460
    %4444 = vmatprep.subr.bf16.mxu0 %v3469
    %4445 = vmatpush1.bf16.msra.mxu0 %v3468
    %4446 = vmatprep.subr.bf16.mxu0 %v3477
    %4447 = vmatpush1.bf16.msra.mxu0 %v3476
    %4448 = vmatprep.subr.bf16.mxu0 %v3485
    %4449 = vmatpush1.bf16.msra.mxu0 %v3484
    %4450 = vmatprep.subr.bf16.mxu0 %v3493
    %4451 = vmatpush1.bf16.msra.mxu0 %v3492
    %4452 = vmatprep.subr.bf16.mxu0 %v3501
    %4453 = vmatpush1.bf16.msra.mxu0 %v3500
    %4454 = vmatprep.subr.bf16.mxu0 %v3509
    %4455 = vmatpush1.bf16.msra.mxu0 %v3508
    %4456 = vmatprep.subr.bf16.mxu0 %v3517
    %4457 = vmatpush1.bf16.msra.mxu0 %v3516
    %4458 = vmatprep.subr.bf16.mxu0 %v3525
    %4459 = vmatpush1.bf16.msra.mxu0 %v3524
    %4460 = vmatprep.subr.bf16.mxu0 %v3533
    %4461 = vmatpush1.bf16.msra.mxu0 %v3532
    %4462 = vmatprep.subr.bf16.mxu0 %v3541
    %4463 = vmatpush1.bf16.msra.mxu0 %v3540
    %4464 = vmatprep.mubr.bf16.mxu0 %v1069
    %4465 = vmatmul.mubr.bf16.gmra.mrb[0].mxu0 %v1068
    %v4466 = vpop.f32.mrb[0].mxu0
    %v4467 = vadd.f32 %v4426, %v4466
    %v4468 = vpop.f32.mrb[0].mxu0
    %v4469 = vadd.f32 %v4428, %v4468
    %v4470 = vpop.f32.mrb[0].mxu0
    %v4471 = vpop.f32.mrb[0].mxu0
    %4472 = vdwg.mxu0
    %4473 = vmatprep.subr.bf16.mxu0 %v3549
    %4474 = vmatpush1.bf16.msra.mxu0 %v3548
    %4475 = vmatprep.subr.bf16.mxu0 %v3557
    %4476 = vmatpush1.bf16.msra.mxu0 %v3556
    %4477 = vmatprep.subr.bf16.mxu0 %v3565
    %4478 = vmatpush1.bf16.msra.mxu0 %v3564
    %4479 = vmatprep.subr.bf16.mxu0 %v3573
    %4480 = vmatpush1.bf16.msra.mxu0 %v3572
    %4481 = vmatprep.subr.bf16.mxu0 %v3581
    %4482 = vmatpush1.bf16.msra.mxu0 %v3580
    %4483 = vmatprep.subr.bf16.mxu0 %v3589
    %4484 = vmatpush1.bf16.msra.mxu0 %v3588
    %4485 = vmatprep.subr.bf16.mxu0 %v3597
    %4486 = vmatpush1.bf16.msra.mxu0 %v3596
    %4487 = vmatprep.subr.bf16.mxu0 %v3605
    %4488 = vmatpush1.bf16.msra.mxu0 %v3604
    %4489 = vmatprep.subr.bf16.mxu0 %v3613
    %4490 = vmatpush1.bf16.msra.mxu0 %v3612
    %4491 = vmatprep.subr.bf16.mxu0 %v3621
    %4492 = vmatpush1.bf16.msra.mxu0 %v3620
    %4493 = vmatprep.subr.bf16.mxu0 %v3629
    %4494 = vmatpush1.bf16.msra.mxu0 %v3628
    %4495 = vmatprep.subr.bf16.mxu0 %v3637
    %4496 = vmatpush1.bf16.msra.mxu0 %v3636
    %4497 = vmatprep.subr.bf16.mxu0 %v3645
    %4498 = vmatpush1.bf16.msra.mxu0 %v3644
    %4499 = vmatprep.subr.bf16.mxu0 %v3653
    %4500 = vmatpush1.bf16.msra.mxu0 %v3652
    %4501 = vmatprep.subr.bf16.mxu0 %v3661
    %4502 = vmatpush1.bf16.msra.mxu0 %v3660
    %4503 = vmatprep.subr.bf16.mxu0 %v3669
    %4504 = vmatpush1.bf16.msra.mxu0 %v3668
    %4505 = vmatprep.mubr.bf16.mxu0 %v1071
    %4506 = vmatmul.mubr.bf16.gmra.mrb[0].mxu0 %v1070
    %v4507 = vpop.f32.mrb[0].mxu0
    %v4508 = vadd.f32 %v4467, %v4507
    %v4509 = vpop.f32.mrb[0].mxu0
    %v4510 = vadd.f32 %v4469, %v4509
    %v4511 = vpop.f32.mrb[0].mxu0
    %v4512 = vpop.f32.mrb[0].mxu0
    %4513 = vdwg.mxu0
    %4514 = vmatprep.subr.bf16.mxu0 %v3167
    %4515 = vmatpush1.bf16.msra.mxu0 %v3166
    %4516 = vmatprep.subr.bf16.mxu0 %v3175
    %4517 = vmatpush1.bf16.msra.mxu0 %v3174
    %4518 = vmatprep.subr.bf16.mxu0 %v3183
    %4519 = vmatpush1.bf16.msra.mxu0 %v3182
    %4520 = vmatprep.subr.bf16.mxu0 %v3191
    %4521 = vmatpush1.bf16.msra.mxu0 %v3190
    %4522 = vmatprep.subr.bf16.mxu0 %v3199
    %4523 = vmatpush1.bf16.msra.mxu0 %v3198
    %4524 = vmatprep.subr.bf16.mxu0 %v3207
    %4525 = vmatpush1.bf16.msra.mxu0 %v3206
    %4526 = vmatprep.subr.bf16.mxu0 %v3215
    %4527 = vmatpush1.bf16.msra.mxu0 %v3214
    %4528 = vmatprep.subr.bf16.mxu0 %v3223
    %4529 = vmatpush1.bf16.msra.mxu0 %v3222
    %4530 = vmatprep.subr.bf16.mxu0 %v3231
    %4531 = vmatpush1.bf16.msra.mxu0 %v3230
    %4532 = vmatprep.subr.bf16.mxu0 %v3239
    %4533 = vmatpush1.bf16.msra.mxu0 %v3238
    %4534 = vmatprep.subr.bf16.mxu0 %v3247
    %4535 = vmatpush1.bf16.msra.mxu0 %v3246
    %4536 = vmatprep.subr.bf16.mxu0 %v3255
    %4537 = vmatpush1.bf16.msra.mxu0 %v3254
    %4538 = vmatprep.subr.bf16.mxu0 %v3263
    %4539 = vmatpush1.bf16.msra.mxu0 %v3262
    %4540 = vmatprep.subr.bf16.mxu0 %v3271
    %4541 = vmatpush1.bf16.msra.mxu0 %v3270
    %4542 = vmatprep.subr.bf16.mxu0 %v3279
    %4543 = vmatpush1.bf16.msra.mxu0 %v3278
    %4544 = vmatprep.subr.bf16.mxu0 %v3287
    %4545 = vmatpush1.bf16.msra.mxu0 %v3286
    %4546 = vmatprep.mubr.bf16.mxu0 %v1065
    %4547 = vmatmul.mubr.bf16.gmra.mrb[0].mxu0 %v1064
    %v4548 = vpop.f32.mrb[0].mxu0
    %v4549 = vadd.f32 %v1605, %v4548
    %v4550 = vpop.f32.mrb[0].mxu0
    %v4551 = vadd.f32 %v1609, %v4550
    %v4552 = vpop.f32.mrb[0].mxu0
    %v4553 = vpop.f32.mrb[0].mxu0
    %4554 = vdwg.mxu0
    %4555 = vmatprep.subr.bf16.mxu0 %v3295
    %4556 = vmatpush1.bf16.msra.mxu0 %v3294
    %4557 = vmatprep.subr.bf16.mxu0 %v3303
    %4558 = vmatpush1.bf16.msra.mxu0 %v3302
    %4559 = vmatprep.subr.bf16.mxu0 %v3311
    %4560 = vmatpush1.bf16.msra.mxu0 %v3310
    %4561 = vmatprep.subr.bf16.mxu0 %v3319
    %4562 = vmatpush1.bf16.msra.mxu0 %v3318
    %4563 = vmatprep.subr.bf16.mxu0 %v3327
    %4564 = vmatpush1.bf16.msra.mxu0 %v3326
    %4565 = vmatprep.subr.bf16.mxu0 %v3335
    %4566 = vmatpush1.bf16.msra.mxu0 %v3334
    %4567 = vmatprep.subr.bf16.mxu0 %v3343
    %4568 = vmatpush1.bf16.msra.mxu0 %v3342
    %4569 = vmatprep.subr.bf16.mxu0 %v3351
    %4570 = vmatpush1.bf16.msra.mxu0 %v3350
    %4571 = vmatprep.subr.bf16.mxu0 %v3359
    %4572 = vmatpush1.bf16.msra.mxu0 %v3358
    %4573 = vmatprep.subr.bf16.mxu0 %v3367
    %4574 = vmatpush1.bf16.msra.mxu0 %v3366
    %4575 = vmatprep.subr.bf16.mxu0 %v3375
    %4576 = vmatpush1.bf16.msra.mxu0 %v3374
    %4577 = vmatprep.subr.bf16.mxu0 %v3383
    %4578 = vmatpush1.bf16.msra.mxu0 %v3382
    %4579 = vmatprep.subr.bf16.mxu0 %v3391
    %4580 = vmatpush1.bf16.msra.mxu0 %v3390
    %4581 = vmatprep.subr.bf16.mxu0 %v3399
    %4582 = vmatpush1.bf16.msra.mxu0 %v3398
    %4583 = vmatprep.subr.bf16.mxu0 %v3407
    %4584 = vmatpush1.bf16.msra.mxu0 %v3406
    %4585 = vmatprep.subr.bf16.mxu0 %v3415
    %4586 = vmatpush1.bf16.msra.mxu0 %v3414
    %4587 = vmatprep.mubr.bf16.mxu0 %v1067
    %4588 = vmatmul.mubr.bf16.gmra.mrb[0].mxu0 %v1066
    %v4589 = vpop.f32.mrb[0].mxu0
    %v4590 = vadd.f32 %v4549, %v4589
    %v4591 = vpop.f32.mrb[0].mxu0
    %v4592 = vadd.f32 %v4551, %v4591
    %v4593 = vpop.f32.mrb[0].mxu0
    %v4594 = vpop.f32.mrb[0].mxu0
    %4595 = vdwg.mxu0
    %4596 = vmatprep.subr.bf16.mxu0 %v3423
    %4597 = vmatpush1.bf16.msra.mxu0 %v3422
    %4598 = vmatprep.subr.bf16.mxu0 %v3431
    %4599 = vmatpush1.bf16.msra.mxu0 %v3430
    %4600 = vmatprep.subr.bf16.mxu0 %v3439
    %4601 = vmatpush1.bf16.msra.mxu0 %v3438
    %4602 = vmatprep.subr.bf16.mxu0 %v3447
    %4603 = vmatpush1.bf16.msra.mxu0 %v3446
    %4604 = vmatprep.subr.bf16.mxu0 %v3455
    %4605 = vmatpush1.bf16.msra.mxu0 %v3454
    %4606 = vmatprep.subr.bf16.mxu0 %v3463
    %4607 = vmatpush1.bf16.msra.mxu0 %v3462
    %4608 = vmatprep.subr.bf16.mxu0 %v3471
    %4609 = vmatpush1.bf16.msra.mxu0 %v3470
    %4610 = vmatprep.subr.bf16.mxu0 %v3479
    %4611 = vmatpush1.bf16.msra.mxu0 %v3478
    %4612 = vmatprep.subr.bf16.mxu0 %v3487
    %4613 = vmatpush1.bf16.msra.mxu0 %v3486
    %4614 = vmatprep.subr.bf16.mxu0 %v3495
    %4615 = vmatpush1.bf16.msra.mxu0 %v3494
    %4616 = vmatprep.subr.bf16.mxu0 %v3503
    %4617 = vmatpush1.bf16.msra.mxu0 %v3502
    %4618 = vmatprep.subr.bf16.mxu0 %v3511
    %4619 = vmatpush1.bf16.msra.mxu0 %v3510
    %4620 = vmatprep.subr.bf16.mxu0 %v3519
    %4621 = vmatpush1.bf16.msra.mxu0 %v3518
    %4622 = vmatprep.subr.bf16.mxu0 %v3527
    %4623 = vmatpush1.bf16.msra.mxu0 %v3526
    %4624 = vmatprep.subr.bf16.mxu0 %v3535
    %4625 = vmatpush1.bf16.msra.mxu0 %v3534
    %4626 = vmatprep.subr.bf16.mxu0 %v3543
    %4627 = vmatpush1.bf16.msra.mxu0 %v3542
    %4628 = vmatprep.mubr.bf16.mxu0 %v1069
    %4629 = vmatmul.mubr.bf16.gmra.mrb[0].mxu0 %v1068
    %v4630 = vpop.f32.mrb[0].mxu0
    %v4631 = vadd.f32 %v4590, %v4630
    %v4632 = vpop.f32.mrb[0].mxu0
    %v4633 = vadd.f32 %v4592, %v4632
    %v4634 = vpop.f32.mrb[0].mxu0
    %v4635 = vpop.f32.mrb[0].mxu0
    %4636 = vdwg.mxu0
    %4637 = vmatprep.subr.bf16.mxu0 %v3551
    %4638 = vmatpush1.bf16.msra.mxu0 %v3550
    %4639 = vmatprep.subr.bf16.mxu0 %v3559
    %4640 = vmatpush1.bf16.msra.mxu0 %v3558
    %4641 = vmatprep.subr.bf16.mxu0 %v3567
    %4642 = vmatpush1.bf16.msra.mxu0 %v3566
    %4643 = vmatprep.subr.bf16.mxu0 %v3575
    %4644 = vmatpush1.bf16.msra.mxu0 %v3574
    %4645 = vmatprep.subr.bf16.mxu0 %v3583
    %4646 = vmatpush1.bf16.msra.mxu0 %v3582
    %4647 = vmatprep.subr.bf16.mxu0 %v3591
    %4648 = vmatpush1.bf16.msra.mxu0 %v3590
    %4649 = vmatprep.subr.bf16.mxu0 %v3599
    %4650 = vmatpush1.bf16.msra.mxu0 %v3598
    %4651 = vmatprep.subr.bf16.mxu0 %v3607
    %4652 = vmatpush1.bf16.msra.mxu0 %v3606
    %4653 = vmatprep.subr.bf16.mxu0 %v3615
    %4654 = vmatpush1.bf16.msra.mxu0 %v3614
    %4655 = vmatprep.subr.bf16.mxu0 %v3623
    %4656 = vmatpush1.bf16.msra.mxu0 %v3622
    %4657 = vmatprep.subr.bf16.mxu0 %v3631
    %4658 = vmatpush1.bf16.msra.mxu0 %v3630
    %4659 = vmatprep.subr.bf16.mxu0 %v3639
    %4660 = vmatpush1.bf16.msra.mxu0 %v3638
    %4661 = vmatprep.subr.bf16.mxu0 %v3647
    %4662 = vmatpush1.bf16.msra.mxu0 %v3646
    %4663 = vmatprep.subr.bf16.mxu0 %v3655
    %4664 = vmatpush1.bf16.msra.mxu0 %v3654
    %4665 = vmatprep.subr.bf16.mxu0 %v3663
    %4666 = vmatpush1.bf16.msra.mxu0 %v3662
    %4667 = vmatprep.subr.bf16.mxu0 %v3671
    %4668 = vmatpush1.bf16.msra.mxu0 %v3670
    %4669 = vmatprep.mubr.bf16.mxu0 %v1071
    %4670 = vmatmul.mubr.bf16.gmra.mrb[0].mxu0 %v1070
    %v4671 = vpop.f32.mrb[0].mxu0
    %v4672 = vadd.f32 %v4631, %v4671
    %v4673 = vpop.f32.mrb[0].mxu0
    %v4674 = vadd.f32 %v4633, %v4673
    %v4675 = vpop.f32.mrb[0].mxu0
    %v4676 = vpop.f32.mrb[0].mxu0
    %4677 = vdwg.mxu0
    %4678 = vmatprep.subr.bf16.mxu0 %v3169
    %4679 = vmatpush1.bf16.msra.mxu0 %v3168
    %4680 = vmatprep.subr.bf16.mxu0 %v3177
    %4681 = vmatpush1.bf16.msra.mxu0 %v3176
    %4682 = vmatprep.subr.bf16.mxu0 %v3185
    %4683 = vmatpush1.bf16.msra.mxu0 %v3184
    %4684 = vmatprep.subr.bf16.mxu0 %v3193
    %4685 = vmatpush1.bf16.msra.mxu0 %v3192
    %4686 = vmatprep.subr.bf16.mxu0 %v3201
    %4687 = vmatpush1.bf16.msra.mxu0 %v3200
    %4688 = vmatprep.subr.bf16.mxu0 %v3209
    %4689 = vmatpush1.bf16.msra.mxu0 %v3208
    %4690 = vmatprep.subr.bf16.mxu0 %v3217
    %4691 = vmatpush1.bf16.msra.mxu0 %v3216
    %4692 = vmatprep.subr.bf16.mxu0 %v3225
    %4693 = vmatpush1.bf16.msra.mxu0 %v3224
    %4694 = vmatprep.subr.bf16.mxu0 %v3233
    %4695 = vmatpush1.bf16.msra.mxu0 %v3232
    %4696 = vmatprep.subr.bf16.mxu0 %v3241
    %4697 = vmatpush1.bf16.msra.mxu0 %v3240
    %4698 = vmatprep.subr.bf16.mxu0 %v3249
    %4699 = vmatpush1.bf16.msra.mxu0 %v3248
    %4700 = vmatprep.subr.bf16.mxu0 %v3257
    %4701 = vmatpush1.bf16.msra.mxu0 %v3256
    %4702 = vmatprep.subr.bf16.mxu0 %v3265
    %4703 = vmatpush1.bf16.msra.mxu0 %v3264
    %4704 = vmatprep.subr.bf16.mxu0 %v3273
    %4705 = vmatpush1.bf16.msra.mxu0 %v3272
    %4706 = vmatprep.subr.bf16.mxu0 %v3281
    %4707 = vmatpush1.bf16.msra.mxu0 %v3280
    %4708 = vmatprep.subr.bf16.mxu0 %v3289
    %4709 = vmatpush1.bf16.msra.mxu0 %v3288
    %4710 = vmatprep.mubr.bf16.mxu0 %v1065
    %4711 = vmatmul.mubr.bf16.gmra.mrb[0].mxu0 %v1064
    %v4712 = vpop.f32.mrb[0].mxu0
    %v4713 = vadd.f32 %v1613, %v4712
    %v4714 = vpop.f32.mrb[0].mxu0
    %v4715 = vadd.f32 %v1617, %v4714
    %v4716 = vpop.f32.mrb[0].mxu0
    %v4717 = vpop.f32.mrb[0].mxu0
    %4718 = vdwg.mxu0
    %4719 = vmatprep.subr.bf16.mxu0 %v3297
    %4720 = vmatpush1.bf16.msra.mxu0 %v3296
    %4721 = vmatprep.subr.bf16.mxu0 %v3305
    %4722 = vmatpush1.bf16.msra.mxu0 %v3304
    %4723 = vmatprep.subr.bf16.mxu0 %v3313
    %4724 = vmatpush1.bf16.msra.mxu0 %v3312
    %4725 = vmatprep.subr.bf16.mxu0 %v3321
    %4726 = vmatpush1.bf16.msra.mxu0 %v3320
    %4727 = vmatprep.subr.bf16.mxu0 %v3329
    %4728 = vmatpush1.bf16.msra.mxu0 %v3328
    %4729 = vmatprep.subr.bf16.mxu0 %v3337
    %4730 = vmatpush1.bf16.msra.mxu0 %v3336
    %4731 = vmatprep.subr.bf16.mxu0 %v3345
    %4732 = vmatpush1.bf16.msra.mxu0 %v3344
    %4733 = vmatprep.subr.bf16.mxu0 %v3353
    %4734 = vmatpush1.bf16.msra.mxu0 %v3352
    %4735 = vmatprep.subr.bf16.mxu0 %v3361
    %4736 = vmatpush1.bf16.msra.mxu0 %v3360
    %4737 = vmatprep.subr.bf16.mxu0 %v3369
    %4738 = vmatpush1.bf16.msra.mxu0 %v3368
    %4739 = vmatprep.subr.bf16.mxu0 %v3377
    %4740 = vmatpush1.bf16.msra.mxu0 %v3376
    %4741 = vmatprep.subr.bf16.mxu0 %v3385
    %4742 = vmatpush1.bf16.msra.mxu0 %v3384
    %4743 = vmatprep.subr.bf16.mxu0 %v3393
    %4744 = vmatpush1.bf16.msra.mxu0 %v3392
    %4745 = vmatprep.subr.bf16.mxu0 %v3401
    %4746 = vmatpush1.bf16.msra.mxu0 %v3400
    %4747 = vmatprep.subr.bf16.mxu0 %v3409
    %4748 = vmatpush1.bf16.msra.mxu0 %v3408
    %4749 = vmatprep.subr.bf16.mxu0 %v3417
    %4750 = vmatpush1.bf16.msra.mxu0 %v3416
    %4751 = vmatprep.mubr.bf16.mxu0 %v1067
    %4752 = vmatmul.mubr.bf16.gmra.mrb[0].mxu0 %v1066
    %v4753 = vpop.f32.mrb[0].mxu0
    %v4754 = vadd.f32 %v4713, %v4753
    %v4755 = vpop.f32.mrb[0].mxu0
    %v4756 = vadd.f32 %v4715, %v4755
    %v4757 = vpop.f32.mrb[0].mxu0
    %v4758 = vpop.f32.mrb[0].mxu0
    %4759 = vdwg.mxu0
    %4760 = vmatprep.subr.bf16.mxu0 %v3425
    %4761 = vmatpush1.bf16.msra.mxu0 %v3424
    %4762 = vmatprep.subr.bf16.mxu0 %v3433
    %4763 = vmatpush1.bf16.msra.mxu0 %v3432
    %4764 = vmatprep.subr.bf16.mxu0 %v3441
    %4765 = vmatpush1.bf16.msra.mxu0 %v3440
    %4766 = vmatprep.subr.bf16.mxu0 %v3449
    %4767 = vmatpush1.bf16.msra.mxu0 %v3448
    %4768 = vmatprep.subr.bf16.mxu0 %v3457
    %4769 = vmatpush1.bf16.msra.mxu0 %v3456
    %4770 = vmatprep.subr.bf16.mxu0 %v3465
    %4771 = vmatpush1.bf16.msra.mxu0 %v3464
    %4772 = vmatprep.subr.bf16.mxu0 %v3473
    %4773 = vmatpush1.bf16.msra.mxu0 %v3472
    %4774 = vmatprep.subr.bf16.mxu0 %v3481
    %4775 = vmatpush1.bf16.msra.mxu0 %v3480
    %4776 = vmatprep.subr.bf16.mxu0 %v3489
    %4777 = vmatpush1.bf16.msra.mxu0 %v3488
    %4778 = vmatprep.subr.bf16.mxu0 %v3497
    %4779 = vmatpush1.bf16.msra.mxu0 %v3496
    %4780 = vmatprep.subr.bf16.mxu0 %v3505
    %4781 = vmatpush1.bf16.msra.mxu0 %v3504
    %4782 = vmatprep.subr.bf16.mxu0 %v3513
    %4783 = vmatpush1.bf16.msra.mxu0 %v3512
    %4784 = vmatprep.subr.bf16.mxu0 %v3521
    %4785 = vmatpush1.bf16.msra.mxu0 %v3520
    %4786 = vmatprep.subr.bf16.mxu0 %v3529
    %4787 = vmatpush1.bf16.msra.mxu0 %v3528
    %4788 = vmatprep.subr.bf16.mxu0 %v3537
    %4789 = vmatpush1.bf16.msra.mxu0 %v3536
    %4790 = vmatprep.subr.bf16.mxu0 %v3545
    %4791 = vmatpush1.bf16.msra.mxu0 %v3544
    %4792 = vmatprep.mubr.bf16.mxu0 %v1069
    %4793 = vmatmul.mubr.bf16.gmra.mrb[0].mxu0 %v1068
    %v4794 = vpop.f32.mrb[0].mxu0
    %v4795 = vadd.f32 %v4754, %v4794
    %v4796 = vpop.f32.mrb[0].mxu0
    %v4797 = vadd.f32 %v4756, %v4796
    %v4798 = vpop.f32.mrb[0].mxu0
    %v4799 = vpop.f32.mrb[0].mxu0
    %4800 = vdwg.mxu0
    %4801 = vmatprep.subr.bf16.mxu0 %v3553
    %4802 = vmatpush1.bf16.msra.mxu0 %v3552
    %4803 = vmatprep.subr.bf16.mxu0 %v3561
    %4804 = vmatpush1.bf16.msra.mxu0 %v3560
    %4805 = vmatprep.subr.bf16.mxu0 %v3569
    %4806 = vmatpush1.bf16.msra.mxu0 %v3568
    %4807 = vmatprep.subr.bf16.mxu0 %v3577
    %4808 = vmatpush1.bf16.msra.mxu0 %v3576
    %4809 = vmatprep.subr.bf16.mxu0 %v3585
    %4810 = vmatpush1.bf16.msra.mxu0 %v3584
    %4811 = vmatprep.subr.bf16.mxu0 %v3593
    %4812 = vmatpush1.bf16.msra.mxu0 %v3592
    %4813 = vmatprep.subr.bf16.mxu0 %v3601
    %4814 = vmatpush1.bf16.msra.mxu0 %v3600
    %4815 = vmatprep.subr.bf16.mxu0 %v3609
    %4816 = vmatpush1.bf16.msra.mxu0 %v3608
    %4817 = vmatprep.subr.bf16.mxu0 %v3617
    %4818 = vmatpush1.bf16.msra.mxu0 %v3616
    %4819 = vmatprep.subr.bf16.mxu0 %v3625
    %4820 = vmatpush1.bf16.msra.mxu0 %v3624
    %4821 = vmatprep.subr.bf16.mxu0 %v3633
    %4822 = vmatpush1.bf16.msra.mxu0 %v3632
    %4823 = vmatprep.subr.bf16.mxu0 %v3641
    %4824 = vmatpush1.bf16.msra.mxu0 %v3640
    %4825 = vmatprep.subr.bf16.mxu0 %v3649
    %4826 = vmatpush1.bf16.msra.mxu0 %v3648
    %4827 = vmatprep.subr.bf16.mxu0 %v3657
    %4828 = vmatpush1.bf16.msra.mxu0 %v3656
    %4829 = vmatprep.subr.bf16.mxu0 %v3665
    %4830 = vmatpush1.bf16.msra.mxu0 %v3664
    %4831 = vmatprep.subr.bf16.mxu0 %v3673
    %4832 = vmatpush1.bf16.msra.mxu0 %v3672
    %4833 = vmatprep.mubr.bf16.mxu0 %v1071
    %4834 = vmatmul.mubr.bf16.gmra.mrb[0].mxu0 %v1070
    %v4835 = vpop.f32.mrb[0].mxu0
    %v4836 = vadd.f32 %v4795, %v4835
    %v4837 = vpop.f32.mrb[0].mxu0
    %v4838 = vadd.f32 %v4797, %v4837
    %v4839 = vpop.f32.mrb[0].mxu0
    %v4840 = vpop.f32.mrb[0].mxu0
    %4841 = vdwg.mxu0
    %v4842 = vmax.f32 %v4344, 0.0
    %v4843 = vmax.f32 %v4346, 0.0
    %v4844 = vmax.f32 %v4508, 0.0
    %v4845 = vmax.f32 %v4510, 0.0
    %v4846 = vmax.f32 %v4672, 0.0
    %v4847 = vmax.f32 %v4674, 0.0
    %v4848 = vmax.f32 %v4836, 0.0
    %v4849 = vmax.f32 %v4838, 0.0
    %v4850 = vpack.c.bf16 %v4842, %v4842
    %v4851 = vpack.c.bf16 %v4843, %v4843
    %v4852 = vpack.c.bf16 %v4844, %v4844
    %v4853 = vpack.c.bf16 %v4845, %v4845
    %v4854 = vpack.c.bf16 %v4846, %v4846
    %v4855 = vpack.c.bf16 %v4847, %v4847
    %v4856 = vpack.c.bf16 %v4848, %v4848
    %v4857 = vpack.c.bf16 %v4849, %v4849
    %v4858 = vld [vmem:[#allocation10] sm:$0xff]
    %v4859 = vld [vmem:[#allocation10 + $0x8] sm:$0xff]
    %v4860 = vld [vmem:[#allocation10 + $0x10] sm:$0xff]
    %v4861 = vld [vmem:[#allocation10 + $0x18] sm:$0xff]
    %v4862 = vld [vmem:[#allocation10 + $0x20] sm:$0xff]
    %v4863 = vld [vmem:[#allocation10 + $0x28] sm:$0xff]
    %v4864 = vld [vmem:[#allocation10 + $0x30] sm:$0xff]
    %v4865 = vld [vmem:[#allocation10 + $0x38] sm:$0xff]
    %v4866 = vld [vmem:[#allocation10 + $0x40] sm:$0xff]
    %v4867 = vld [vmem:[#allocation10 + $0x48] sm:$0xff]
    %v4868 = vld [vmem:[#allocation10 + $0x50] sm:$0xff]
    %v4869 = vld [vmem:[#allocation10 + $0x58] sm:$0xff]
    %v4870 = vld [vmem:[#allocation10 + $0x60] sm:$0xff]
    %v4871 = vld [vmem:[#allocation10 + $0x68] sm:$0xff]
    %v4872 = vld [vmem:[#allocation10 + $0x70] sm:$0xff]
    %v4873 = vld [vmem:[#allocation10 + $0x78] sm:$0xff]
    %v4874 = vld [vmem:[#allocation10 + $0x80] sm:$0xff]
    %v4875 = vld [vmem:[#allocation10 + $0x88] sm:$0xff]
    %v4876 = vld [vmem:[#allocation10 + $0x90] sm:$0xff]
    %v4877 = vld [vmem:[#allocation10 + $0x98] sm:$0xff]
    %v4878 = vld [vmem:[#allocation10 + $0xa0] sm:$0xff]
    %v4879 = vld [vmem:[#allocation10 + $0xa8] sm:$0xff]
    %v4880 = vld [vmem:[#allocation10 + $0xb0] sm:$0xff]
    %v4881 = vld [vmem:[#allocation10 + $0xb8] sm:$0xff]
    %v4882 = vld [vmem:[#allocation10 + $0xc0] sm:$0xff]
    %v4883 = vld [vmem:[#allocation10 + $0xc8] sm:$0xff]
    %v4884 = vld [vmem:[#allocation10 + $0xd0] sm:$0xff]
    %v4885 = vld [vmem:[#allocation10 + $0xd8] sm:$0xff]
    %v4886 = vld [vmem:[#allocation10 + $0xe0] sm:$0xff]
    %v4887 = vld [vmem:[#allocation10 + $0xe8] sm:$0xff]
    %v4888 = vld [vmem:[#allocation10 + $0xf0] sm:$0xff]
    %v4889 = vld [vmem:[#allocation10 + $0xf8] sm:$0xff]
    %v4890 = vld [vmem:[#allocation10 + $0x100] sm:$0xff]
    %v4891 = vld [vmem:[#allocation10 + $0x108] sm:$0xff]
    %v4892 = vld [vmem:[#allocation10 + $0x110] sm:$0xff]
    %v4893 = vld [vmem:[#allocation10 + $0x118] sm:$0xff]
    %v4894 = vld [vmem:[#allocation10 + $0x120] sm:$0xff]
    %v4895 = vld [vmem:[#allocation10 + $0x128] sm:$0xff]
    %v4896 = vld [vmem:[#allocation10 + $0x130] sm:$0xff]
    %v4897 = vld [vmem:[#allocation10 + $0x138] sm:$0xff]
    %v4898 = vld [vmem:[#allocation10 + $0x140] sm:$0xff]
    %v4899 = vld [vmem:[#allocation10 + $0x148] sm:$0xff]
    %v4900 = vld [vmem:[#allocation10 + $0x150] sm:$0xff]
    %v4901 = vld [vmem:[#allocation10 + $0x158] sm:$0xff]
    %v4902 = vld [vmem:[#allocation10 + $0x160] sm:$0xff]
    %v4903 = vld [vmem:[#allocation10 + $0x168] sm:$0xff]
    %v4904 = vld [vmem:[#allocation10 + $0x170] sm:$0xff]
    %v4905 = vld [vmem:[#allocation10 + $0x178] sm:$0xff]
    %v4906 = vld [vmem:[#allocation10 + $0x180] sm:$0xff]
    %v4907 = vld [vmem:[#allocation10 + $0x188] sm:$0xff]
    %v4908 = vld [vmem:[#allocation10 + $0x190] sm:$0xff]
    %v4909 = vld [vmem:[#allocation10 + $0x198] sm:$0xff]
    %v4910 = vld [vmem:[#allocation10 + $0x1a0] sm:$0xff]
    %v4911 = vld [vmem:[#allocation10 + $0x1a8] sm:$0xff]
    %v4912 = vld [vmem:[#allocation10 + $0x1b0] sm:$0xff]
    %v4913 = vld [vmem:[#allocation10 + $0x1b8] sm:$0xff]
    %v4914 = vld [vmem:[#allocation10 + $0x1c0] sm:$0xff]
    %v4915 = vld [vmem:[#allocation10 + $0x1c8] sm:$0xff]
    %v4916 = vld [vmem:[#allocation10 + $0x1d0] sm:$0xff]
    %v4917 = vld [vmem:[#allocation10 + $0x1d8] sm:$0xff]
    %v4918 = vld [vmem:[#allocation10 + $0x1e0] sm:$0xff]
    %v4919 = vld [vmem:[#allocation10 + $0x1e8] sm:$0xff]
    %v4920 = vld [vmem:[#allocation10 + $0x1f0] sm:$0xff]
    %v4921 = vld [vmem:[#allocation10 + $0x1f8] sm:$0xff]
    %v4922 = vld [vmem:[#allocation10 + $0x200] sm:$0xff]
    %v4923 = vld [vmem:[#allocation10 + $0x208] sm:$0xff]
    %v4924 = vld [vmem:[#allocation10 + $0x210] sm:$0xff]
    %v4925 = vld [vmem:[#allocation10 + $0x218] sm:$0xff]
    %v4926 = vld [vmem:[#allocation10 + $0x220] sm:$0xff]
    %v4927 = vld [vmem:[#allocation10 + $0x228] sm:$0xff]
    %v4928 = vld [vmem:[#allocation10 + $0x230] sm:$0xff]
    %v4929 = vld [vmem:[#allocation10 + $0x238] sm:$0xff]
    %v4930 = vld [vmem:[#allocation10 + $0x240] sm:$0xff]
    %v4931 = vld [vmem:[#allocation10 + $0x248] sm:$0xff]
    %v4932 = vld [vmem:[#allocation10 + $0x250] sm:$0xff]
    %v4933 = vld [vmem:[#allocation10 + $0x258] sm:$0xff]
    %v4934 = vld [vmem:[#allocation10 + $0x260] sm:$0xff]
    %v4935 = vld [vmem:[#allocation10 + $0x268] sm:$0xff]
    %v4936 = vld [vmem:[#allocation10 + $0x270] sm:$0xff]
    %v4937 = vld [vmem:[#allocation10 + $0x278] sm:$0xff]
    %v4938 = vld [vmem:[#allocation10 + $0x280] sm:$0xff]
    %v4939 = vld [vmem:[#allocation10 + $0x288] sm:$0xff]
    %v4940 = vld [vmem:[#allocation10 + $0x290] sm:$0xff]
    %v4941 = vld [vmem:[#allocation10 + $0x298] sm:$0xff]
    %v4942 = vld [vmem:[#allocation10 + $0x2a0] sm:$0xff]
    %v4943 = vld [vmem:[#allocation10 + $0x2a8] sm:$0xff]
    %v4944 = vld [vmem:[#allocation10 + $0x2b0] sm:$0xff]
    %v4945 = vld [vmem:[#allocation10 + $0x2b8] sm:$0xff]
    %v4946 = vld [vmem:[#allocation10 + $0x2c0] sm:$0xff]
    %v4947 = vld [vmem:[#allocation10 + $0x2c8] sm:$0xff]
    %v4948 = vld [vmem:[#allocation10 + $0x2d0] sm:$0xff]
    %v4949 = vld [vmem:[#allocation10 + $0x2d8] sm:$0xff]
    %v4950 = vld [vmem:[#allocation10 + $0x2e0] sm:$0xff]
    %v4951 = vld [vmem:[#allocation10 + $0x2e8] sm:$0xff]
    %v4952 = vld [vmem:[#allocation10 + $0x2f0] sm:$0xff]
    %v4953 = vld [vmem:[#allocation10 + $0x2f8] sm:$0xff]
    %v4954 = vld [vmem:[#allocation10 + $0x300] sm:$0xff]
    %v4955 = vld [vmem:[#allocation10 + $0x308] sm:$0xff]
    %v4956 = vld [vmem:[#allocation10 + $0x310] sm:$0xff]
    %v4957 = vld [vmem:[#allocation10 + $0x318] sm:$0xff]
    %v4958 = vld [vmem:[#allocation10 + $0x320] sm:$0xff]
    %v4959 = vld [vmem:[#allocation10 + $0x328] sm:$0xff]
    %v4960 = vld [vmem:[#allocation10 + $0x330] sm:$0xff]
    %v4961 = vld [vmem:[#allocation10 + $0x338] sm:$0xff]
    %v4962 = vld [vmem:[#allocation10 + $0x340] sm:$0xff]
    %v4963 = vld [vmem:[#allocation10 + $0x348] sm:$0xff]
    %v4964 = vld [vmem:[#allocation10 + $0x350] sm:$0xff]
    %v4965 = vld [vmem:[#allocation10 + $0x358] sm:$0xff]
    %v4966 = vld [vmem:[#allocation10 + $0x360] sm:$0xff]
    %v4967 = vld [vmem:[#allocation10 + $0x368] sm:$0xff]
    %v4968 = vld [vmem:[#allocation10 + $0x370] sm:$0xff]
    %v4969 = vld [vmem:[#allocation10 + $0x378] sm:$0xff]
    %v4970 = vld [vmem:[#allocation10 + $0x380] sm:$0xff]
    %v4971 = vld [vmem:[#allocation10 + $0x388] sm:$0xff]
    %v4972 = vld [vmem:[#allocation10 + $0x390] sm:$0xff]
    %v4973 = vld [vmem:[#allocation10 + $0x398] sm:$0xff]
    %v4974 = vld [vmem:[#allocation10 + $0x3a0] sm:$0xff]
    %v4975 = vld [vmem:[#allocation10 + $0x3a8] sm:$0xff]
    %v4976 = vld [vmem:[#allocation10 + $0x3b0] sm:$0xff]
    %v4977 = vld [vmem:[#allocation10 + $0x3b8] sm:$0xff]
    %v4978 = vld [vmem:[#allocation10 + $0x3c0] sm:$0xff]
    %v4979 = vld [vmem:[#allocation10 + $0x3c8] sm:$0xff]
    %v4980 = vld [vmem:[#allocation10 + $0x3d0] sm:$0xff]
    %v4981 = vld [vmem:[#allocation10 + $0x3d8] sm:$0xff]
    %v4982 = vld [vmem:[#allocation10 + $0x3e0] sm:$0xff]
    %v4983 = vld [vmem:[#allocation10 + $0x3e8] sm:$0xff]
    %v4984 = vld [vmem:[#allocation10 + $0x3f0] sm:$0xff]
    %v4985 = vld [vmem:[#allocation10 + $0x3f8] sm:$0xff]
    %v4986 = vld [vmem:[#allocation12] sm:$0x3]
    %v4988 = vlaneseq
    %v4989 = vshrl.u32 %v4988, 7
    %v4990 = vsub.s32 0, %v4989
    %v4991 = vrot.slane %v4986, %v4990
    %v4992 = vlaneseq
    %v4993 = vshrl.u32 %v4992, 7
    %v4994 = vsub.s32 1, %v4993
    %v4995 = vrot.slane %v4986, %v4994
    %v5126 = vunpack.c.l.b16 %v4858
    %v5127 = vunpack.c.h.b16 %v4858
    %v5128 = vunpack.c.l.b16 %v4859
    %v5129 = vunpack.c.h.b16 %v4859
    %v5130 = vunpack.c.l.b16 %v4860
    %v5131 = vunpack.c.h.b16 %v4860
    %v5132 = vunpack.c.l.b16 %v4861
    %v5133 = vunpack.c.h.b16 %v4861
    %v5134 = vunpack.c.l.b16 %v4862
    %v5135 = vunpack.c.h.b16 %v4862
    %v5136 = vunpack.c.l.b16 %v4863
    %v5137 = vunpack.c.h.b16 %v4863
    %v5138 = vunpack.c.l.b16 %v4864
    %v5139 = vunpack.c.h.b16 %v4864
    %v5140 = vunpack.c.l.b16 %v4865
    %v5141 = vunpack.c.h.b16 %v4865
    %v5142 = vunpack.c.l.b16 %v4866
    %v5143 = vunpack.c.h.b16 %v4866
    %v5144 = vunpack.c.l.b16 %v4867
    %v5145 = vunpack.c.h.b16 %v4867
    %v5146 = vunpack.c.l.b16 %v4868
    %v5147 = vunpack.c.h.b16 %v4868
    %v5148 = vunpack.c.l.b16 %v4869
    %v5149 = vunpack.c.h.b16 %v4869
    %v5150 = vunpack.c.l.b16 %v4870
    %v5151 = vunpack.c.h.b16 %v4870
    %v5152 = vunpack.c.l.b16 %v4871
    %v5153 = vunpack.c.h.b16 %v4871
    %v5154 = vunpack.c.l.b16 %v4872
    %v5155 = vunpack.c.h.b16 %v4872
    %v5156 = vunpack.c.l.b16 %v4873
    %v5157 = vunpack.c.h.b16 %v4873
    %v5158 = vunpack.c.l.b16 %v4874
    %v5159 = vunpack.c.h.b16 %v4874
    %v5160 = vunpack.c.l.b16 %v4875
    %v5161 = vunpack.c.h.b16 %v4875
    %v5162 = vunpack.c.l.b16 %v4876
    %v5163 = vunpack.c.h.b16 %v4876
    %v5164 = vunpack.c.l.b16 %v4877
    %v5165 = vunpack.c.h.b16 %v4877
    %v5166 = vunpack.c.l.b16 %v4878
    %v5167 = vunpack.c.h.b16 %v4878
    %v5168 = vunpack.c.l.b16 %v4879
    %v5169 = vunpack.c.h.b16 %v4879
    %v5170 = vunpack.c.l.b16 %v4880
    %v5171 = vunpack.c.h.b16 %v4880
    %v5172 = vunpack.c.l.b16 %v4881
    %v5173 = vunpack.c.h.b16 %v4881
    %v5174 = vunpack.c.l.b16 %v4882
    %v5175 = vunpack.c.h.b16 %v4882
    %v5176 = vunpack.c.l.b16 %v4883
    %v5177 = vunpack.c.h.b16 %v4883
    %v5178 = vunpack.c.l.b16 %v4884
    %v5179 = vunpack.c.h.b16 %v4884
    %v5180 = vunpack.c.l.b16 %v4885
    %v5181 = vunpack.c.h.b16 %v4885
    %v5182 = vunpack.c.l.b16 %v4886
    %v5183 = vunpack.c.h.b16 %v4886
    %v5184 = vunpack.c.l.b16 %v4887
    %v5185 = vunpack.c.h.b16 %v4887
    %v5186 = vunpack.c.l.b16 %v4888
    %v5187 = vunpack.c.h.b16 %v4888
    %v5188 = vunpack.c.l.b16 %v4889
    %v5189 = vunpack.c.h.b16 %v4889
    %v5190 = vunpack.c.l.b16 %v4890
    %v5191 = vunpack.c.h.b16 %v4890
    %v5192 = vunpack.c.l.b16 %v4891
    %v5193 = vunpack.c.h.b16 %v4891
    %v5194 = vunpack.c.l.b16 %v4892
    %v5195 = vunpack.c.h.b16 %v4892
    %v5196 = vunpack.c.l.b16 %v4893
    %v5197 = vunpack.c.h.b16 %v4893
    %v5198 = vunpack.c.l.b16 %v4894
    %v5199 = vunpack.c.h.b16 %v4894
    %v5200 = vunpack.c.l.b16 %v4895
    %v5201 = vunpack.c.h.b16 %v4895
    %v5202 = vunpack.c.l.b16 %v4896
    %v5203 = vunpack.c.h.b16 %v4896
    %v5204 = vunpack.c.l.b16 %v4897
    %v5205 = vunpack.c.h.b16 %v4897
    %v5206 = vunpack.c.l.b16 %v4898
    %v5207 = vunpack.c.h.b16 %v4898
    %v5208 = vunpack.c.l.b16 %v4899
    %v5209 = vunpack.c.h.b16 %v4899
    %v5210 = vunpack.c.l.b16 %v4900
    %v5211 = vunpack.c.h.b16 %v4900
    %v5212 = vunpack.c.l.b16 %v4901
    %v5213 = vunpack.c.h.b16 %v4901
    %v5214 = vunpack.c.l.b16 %v4902
    %v5215 = vunpack.c.h.b16 %v4902
    %v5216 = vunpack.c.l.b16 %v4903
    %v5217 = vunpack.c.h.b16 %v4903
    %v5218 = vunpack.c.l.b16 %v4904
    %v5219 = vunpack.c.h.b16 %v4904
    %v5220 = vunpack.c.l.b16 %v4905
    %v5221 = vunpack.c.h.b16 %v4905
    %v5222 = vunpack.c.l.b16 %v4906
    %v5223 = vunpack.c.h.b16 %v4906
    %v5224 = vunpack.c.l.b16 %v4907
    %v5225 = vunpack.c.h.b16 %v4907
    %v5226 = vunpack.c.l.b16 %v4908
    %v5227 = vunpack.c.h.b16 %v4908
    %v5228 = vunpack.c.l.b16 %v4909
    %v5229 = vunpack.c.h.b16 %v4909
    %v5230 = vunpack.c.l.b16 %v4910
    %v5231 = vunpack.c.h.b16 %v4910
    %v5232 = vunpack.c.l.b16 %v4911
    %v5233 = vunpack.c.h.b16 %v4911
    %v5234 = vunpack.c.l.b16 %v4912
    %v5235 = vunpack.c.h.b16 %v4912
    %v5236 = vunpack.c.l.b16 %v4913
    %v5237 = vunpack.c.h.b16 %v4913
    %v5238 = vunpack.c.l.b16 %v4914
    %v5239 = vunpack.c.h.b16 %v4914
    %v5240 = vunpack.c.l.b16 %v4915
    %v5241 = vunpack.c.h.b16 %v4915
    %v5242 = vunpack.c.l.b16 %v4916
    %v5243 = vunpack.c.h.b16 %v4916
    %v5244 = vunpack.c.l.b16 %v4917
    %v5245 = vunpack.c.h.b16 %v4917
    %v5246 = vunpack.c.l.b16 %v4918
    %v5247 = vunpack.c.h.b16 %v4918
    %v5248 = vunpack.c.l.b16 %v4919
    %v5249 = vunpack.c.h.b16 %v4919
    %v5250 = vunpack.c.l.b16 %v4920
    %v5251 = vunpack.c.h.b16 %v4920
    %v5252 = vunpack.c.l.b16 %v4921
    %v5253 = vunpack.c.h.b16 %v4921
    %v5254 = vunpack.c.l.b16 %v4922
    %v5255 = vunpack.c.h.b16 %v4922
    %v5256 = vunpack.c.l.b16 %v4923
    %v5257 = vunpack.c.h.b16 %v4923
    %v5258 = vunpack.c.l.b16 %v4924
    %v5259 = vunpack.c.h.b16 %v4924
    %v5260 = vunpack.c.l.b16 %v4925
    %v5261 = vunpack.c.h.b16 %v4925
    %v5262 = vunpack.c.l.b16 %v4926
    %v5263 = vunpack.c.h.b16 %v4926
    %v5264 = vunpack.c.l.b16 %v4927
    %v5265 = vunpack.c.h.b16 %v4927
    %v5266 = vunpack.c.l.b16 %v4928
    %v5267 = vunpack.c.h.b16 %v4928
    %v5268 = vunpack.c.l.b16 %v4929
    %v5269 = vunpack.c.h.b16 %v4929
    %v5270 = vunpack.c.l.b16 %v4930
    %v5271 = vunpack.c.h.b16 %v4930
    %v5272 = vunpack.c.l.b16 %v4931
    %v5273 = vunpack.c.h.b16 %v4931
    %v5274 = vunpack.c.l.b16 %v4932
    %v5275 = vunpack.c.h.b16 %v4932
    %v5276 = vunpack.c.l.b16 %v4933
    %v5277 = vunpack.c.h.b16 %v4933
    %v5278 = vunpack.c.l.b16 %v4934
    %v5279 = vunpack.c.h.b16 %v4934
    %v5280 = vunpack.c.l.b16 %v4935
    %v5281 = vunpack.c.h.b16 %v4935
    %v5282 = vunpack.c.l.b16 %v4936
    %v5283 = vunpack.c.h.b16 %v4936
    %v5284 = vunpack.c.l.b16 %v4937
    %v5285 = vunpack.c.h.b16 %v4937
    %v5286 = vunpack.c.l.b16 %v4938
    %v5287 = vunpack.c.h.b16 %v4938
    %v5288 = vunpack.c.l.b16 %v4939
    %v5289 = vunpack.c.h.b16 %v4939
    %v5290 = vunpack.c.l.b16 %v4940
    %v5291 = vunpack.c.h.b16 %v4940
    %v5292 = vunpack.c.l.b16 %v4941
    %v5293 = vunpack.c.h.b16 %v4941
    %v5294 = vunpack.c.l.b16 %v4942
    %v5295 = vunpack.c.h.b16 %v4942
    %v5296 = vunpack.c.l.b16 %v4943
    %v5297 = vunpack.c.h.b16 %v4943
    %v5298 = vunpack.c.l.b16 %v4944
    %v5299 = vunpack.c.h.b16 %v4944
    %v5300 = vunpack.c.l.b16 %v4945
    %v5301 = vunpack.c.h.b16 %v4945
    %v5302 = vunpack.c.l.b16 %v4946
    %v5303 = vunpack.c.h.b16 %v4946
    %v5304 = vunpack.c.l.b16 %v4947
    %v5305 = vunpack.c.h.b16 %v4947
    %v5306 = vunpack.c.l.b16 %v4948
    %v5307 = vunpack.c.h.b16 %v4948
    %v5308 = vunpack.c.l.b16 %v4949
    %v5309 = vunpack.c.h.b16 %v4949
    %v5310 = vunpack.c.l.b16 %v4950
    %v5311 = vunpack.c.h.b16 %v4950
    %v5312 = vunpack.c.l.b16 %v4951
    %v5313 = vunpack.c.h.b16 %v4951
    %v5314 = vunpack.c.l.b16 %v4952
    %v5315 = vunpack.c.h.b16 %v4952
    %v5316 = vunpack.c.l.b16 %v4953
    %v5317 = vunpack.c.h.b16 %v4953
    %v5318 = vunpack.c.l.b16 %v4954
    %v5319 = vunpack.c.h.b16 %v4954
    %v5320 = vunpack.c.l.b16 %v4955
    %v5321 = vunpack.c.h.b16 %v4955
    %v5322 = vunpack.c.l.b16 %v4956
    %v5323 = vunpack.c.h.b16 %v4956
    %v5324 = vunpack.c.l.b16 %v4957
    %v5325 = vunpack.c.h.b16 %v4957
    %v5326 = vunpack.c.l.b16 %v4958
    %v5327 = vunpack.c.h.b16 %v4958
    %v5328 = vunpack.c.l.b16 %v4959
    %v5329 = vunpack.c.h.b16 %v4959
    %v5330 = vunpack.c.l.b16 %v4960
    %v5331 = vunpack.c.h.b16 %v4960
    %v5332 = vunpack.c.l.b16 %v4961
    %v5333 = vunpack.c.h.b16 %v4961
    %v5334 = vunpack.c.l.b16 %v4962
    %v5335 = vunpack.c.h.b16 %v4962
    %v5336 = vunpack.c.l.b16 %v4963
    %v5337 = vunpack.c.h.b16 %v4963
    %v5338 = vunpack.c.l.b16 %v4964
    %v5339 = vunpack.c.h.b16 %v4964
    %v5340 = vunpack.c.l.b16 %v4965
    %v5341 = vunpack.c.h.b16 %v4965
    %v5342 = vunpack.c.l.b16 %v4966
    %v5343 = vunpack.c.h.b16 %v4966
    %v5344 = vunpack.c.l.b16 %v4967
    %v5345 = vunpack.c.h.b16 %v4967
    %v5346 = vunpack.c.l.b16 %v4968
    %v5347 = vunpack.c.h.b16 %v4968
    %v5348 = vunpack.c.l.b16 %v4969
    %v5349 = vunpack.c.h.b16 %v4969
    %v5350 = vunpack.c.l.b16 %v4970
    %v5351 = vunpack.c.h.b16 %v4970
    %v5352 = vunpack.c.l.b16 %v4971
    %v5353 = vunpack.c.h.b16 %v4971
    %v5354 = vunpack.c.l.b16 %v4972
    %v5355 = vunpack.c.h.b16 %v4972
    %v5356 = vunpack.c.l.b16 %v4973
    %v5357 = vunpack.c.h.b16 %v4973
    %v5358 = vunpack.c.l.b16 %v4974
    %v5359 = vunpack.c.h.b16 %v4974
    %v5360 = vunpack.c.l.b16 %v4975
    %v5361 = vunpack.c.h.b16 %v4975
    %v5362 = vunpack.c.l.b16 %v4976
    %v5363 = vunpack.c.h.b16 %v4976
    %v5364 = vunpack.c.l.b16 %v4977
    %v5365 = vunpack.c.h.b16 %v4977
    %v5366 = vunpack.c.l.b16 %v4978
    %v5367 = vunpack.c.h.b16 %v4978
    %v5368 = vunpack.c.l.b16 %v4979
    %v5369 = vunpack.c.h.b16 %v4979
    %v5370 = vunpack.c.l.b16 %v4980
    %v5371 = vunpack.c.h.b16 %v4980
    %v5372 = vunpack.c.l.b16 %v4981
    %v5373 = vunpack.c.h.b16 %v4981
    %v5374 = vunpack.c.l.b16 %v4982
    %v5375 = vunpack.c.h.b16 %v4982
    %v5376 = vunpack.c.l.b16 %v4983
    %v5377 = vunpack.c.h.b16 %v4983
    %v5378 = vunpack.c.l.b16 %v4984
    %v5379 = vunpack.c.h.b16 %v4984
    %v5380 = vunpack.c.l.b16 %v4985
    %v5381 = vunpack.c.h.b16 %v4985
    %v5382 = vpack.c.b16 %v5128, %v5126
    %v5383 = vpack.c.b16 %v5129, %v5127
    %v5384 = vpack.c.b16 %v5132, %v5130
    %v5385 = vpack.c.b16 %v5133, %v5131
    %v5386 = vpack.c.b16 %v5136, %v5134
    %v5387 = vpack.c.b16 %v5137, %v5135
    %v5388 = vpack.c.b16 %v5140, %v5138
    %v5389 = vpack.c.b16 %v5141, %v5139
    %v5390 = vpack.c.b16 %v5144, %v5142
    %v5391 = vpack.c.b16 %v5145, %v5143
    %v5392 = vpack.c.b16 %v5148, %v5146
    %v5393 = vpack.c.b16 %v5149, %v5147
    %v5394 = vpack.c.b16 %v5152, %v5150
    %v5395 = vpack.c.b16 %v5153, %v5151
    %v5396 = vpack.c.b16 %v5156, %v5154
    %v5397 = vpack.c.b16 %v5157, %v5155
    %v5398 = vpack.c.b16 %v5160, %v5158
    %v5399 = vpack.c.b16 %v5161, %v5159
    %v5400 = vpack.c.b16 %v5164, %v5162
    %v5401 = vpack.c.b16 %v5165, %v5163
    %v5402 = vpack.c.b16 %v5168, %v5166
    %v5403 = vpack.c.b16 %v5169, %v5167
    %v5404 = vpack.c.b16 %v5172, %v5170
    %v5405 = vpack.c.b16 %v5173, %v5171
    %v5406 = vpack.c.b16 %v5176, %v5174
    %v5407 = vpack.c.b16 %v5177, %v5175
    %v5408 = vpack.c.b16 %v5180, %v5178
    %v5409 = vpack.c.b16 %v5181, %v5179
    %v5410 = vpack.c.b16 %v5184, %v5182
    %v5411 = vpack.c.b16 %v5185, %v5183
    %v5412 = vpack.c.b16 %v5188, %v5186
    %v5413 = vpack.c.b16 %v5189, %v5187
    %v5414 = vpack.c.b16 %v5192, %v5190
    %v5415 = vpack.c.b16 %v5193, %v5191
    %v5416 = vpack.c.b16 %v5196, %v5194
    %v5417 = vpack.c.b16 %v5197, %v5195
    %v5418 = vpack.c.b16 %v5200, %v5198
    %v5419 = vpack.c.b16 %v5201, %v5199
    %v5420 = vpack.c.b16 %v5204, %v5202
    %v5421 = vpack.c.b16 %v5205, %v5203
    %v5422 = vpack.c.b16 %v5208, %v5206
    %v5423 = vpack.c.b16 %v5209, %v5207
    %v5424 = vpack.c.b16 %v5212, %v5210
    %v5425 = vpack.c.b16 %v5213, %v5211
    %v5426 = vpack.c.b16 %v5216, %v5214
    %v5427 = vpack.c.b16 %v5217, %v5215
    %v5428 = vpack.c.b16 %v5220, %v5218
    %v5429 = vpack.c.b16 %v5221, %v5219
    %v5430 = vpack.c.b16 %v5224, %v5222
    %v5431 = vpack.c.b16 %v5225, %v5223
    %v5432 = vpack.c.b16 %v5228, %v5226
    %v5433 = vpack.c.b16 %v5229, %v5227
    %v5434 = vpack.c.b16 %v5232, %v5230
    %v5435 = vpack.c.b16 %v5233, %v5231
    %v5436 = vpack.c.b16 %v5236, %v5234
    %v5437 = vpack.c.b16 %v5237, %v5235
    %v5438 = vpack.c.b16 %v5240, %v5238
    %v5439 = vpack.c.b16 %v5241, %v5239
    %v5440 = vpack.c.b16 %v5244, %v5242
    %v5441 = vpack.c.b16 %v5245, %v5243
    %v5442 = vpack.c.b16 %v5248, %v5246
    %v5443 = vpack.c.b16 %v5249, %v5247
    %v5444 = vpack.c.b16 %v5252, %v5250
    %v5445 = vpack.c.b16 %v5253, %v5251
    %v5446 = vpack.c.b16 %v5256, %v5254
    %v5447 = vpack.c.b16 %v5257, %v5255
    %v5448 = vpack.c.b16 %v5260, %v5258
    %v5449 = vpack.c.b16 %v5261, %v5259
    %v5450 = vpack.c.b16 %v5264, %v5262
    %v5451 = vpack.c.b16 %v5265, %v5263
    %v5452 = vpack.c.b16 %v5268, %v5266
    %v5453 = vpack.c.b16 %v5269, %v5267
    %v5454 = vpack.c.b16 %v5272, %v5270
    %v5455 = vpack.c.b16 %v5273, %v5271
    %v5456 = vpack.c.b16 %v5276, %v5274
    %v5457 = vpack.c.b16 %v5277, %v5275
    %v5458 = vpack.c.b16 %v5280, %v5278
    %v5459 = vpack.c.b16 %v5281, %v5279
    %v5460 = vpack.c.b16 %v5284, %v5282
    %v5461 = vpack.c.b16 %v5285, %v5283
    %v5462 = vpack.c.b16 %v5288, %v5286
    %v5463 = vpack.c.b16 %v5289, %v5287
    %v5464 = vpack.c.b16 %v5292, %v5290
    %v5465 = vpack.c.b16 %v5293, %v5291
    %v5466 = vpack.c.b16 %v5296, %v5294
    %v5467 = vpack.c.b16 %v5297, %v5295
    %v5468 = vpack.c.b16 %v5300, %v5298
    %v5469 = vpack.c.b16 %v5301, %v5299
    %v5470 = vpack.c.b16 %v5304, %v5302
    %v5471 = vpack.c.b16 %v5305, %v5303
    %v5472 = vpack.c.b16 %v5308, %v5306
    %v5473 = vpack.c.b16 %v5309, %v5307
    %v5474 = vpack.c.b16 %v5312, %v5310
    %v5475 = vpack.c.b16 %v5313, %v5311
    %v5476 = vpack.c.b16 %v5316, %v5314
    %v5477 = vpack.c.b16 %v5317, %v5315
    %v5478 = vpack.c.b16 %v5320, %v5318
    %v5479 = vpack.c.b16 %v5321, %v5319
    %v5480 = vpack.c.b16 %v5324, %v5322
    %v5481 = vpack.c.b16 %v5325, %v5323
    %v5482 = vpack.c.b16 %v5328, %v5326
    %v5483 = vpack.c.b16 %v5329, %v5327
    %v5484 = vpack.c.b16 %v5332, %v5330
    %v5485 = vpack.c.b16 %v5333, %v5331
    %v5486 = vpack.c.b16 %v5336, %v5334
    %v5487 = vpack.c.b16 %v5337, %v5335
    %v5488 = vpack.c.b16 %v5340, %v5338
    %v5489 = vpack.c.b16 %v5341, %v5339
    %v5490 = vpack.c.b16 %v5344, %v5342
    %v5491 = vpack.c.b16 %v5345, %v5343
    %v5492 = vpack.c.b16 %v5348, %v5346
    %v5493 = vpack.c.b16 %v5349, %v5347
    %v5494 = vpack.c.b16 %v5352, %v5350
    %v5495 = vpack.c.b16 %v5353, %v5351
    %v5496 = vpack.c.b16 %v5356, %v5354
    %v5497 = vpack.c.b16 %v5357, %v5355
    %v5498 = vpack.c.b16 %v5360, %v5358
    %v5499 = vpack.c.b16 %v5361, %v5359
    %v5500 = vpack.c.b16 %v5364, %v5362
    %v5501 = vpack.c.b16 %v5365, %v5363
    %v5502 = vpack.c.b16 %v5368, %v5366
    %v5503 = vpack.c.b16 %v5369, %v5367
    %v5504 = vpack.c.b16 %v5372, %v5370
    %v5505 = vpack.c.b16 %v5373, %v5371
    %v5506 = vpack.c.b16 %v5376, %v5374
    %v5507 = vpack.c.b16 %v5377, %v5375
    %v5508 = vpack.c.b16 %v5380, %v5378
    %v5509 = vpack.c.b16 %v5381, %v5379
    %5638 = vmatprep.subr.bf16.mxu0 %v5383
    %5639 = vmatpush1.bf16.msra.mxu0 %v5382
    %5640 = vmatprep.subr.bf16.mxu0 %v5385
    %5641 = vmatpush1.bf16.msra.mxu0 %v5384
    %5642 = vmatprep.subr.bf16.mxu0 %v5387
    %5643 = vmatpush1.bf16.msra.mxu0 %v5386
    %5644 = vmatprep.subr.bf16.mxu0 %v5389
    %5645 = vmatpush1.bf16.msra.mxu0 %v5388
    %5646 = vmatprep.subr.bf16.mxu0 %v5391
    %5647 = vmatpush1.bf16.msra.mxu0 %v5390
    %5648 = vmatprep.subr.bf16.mxu0 %v5393
    %5649 = vmatpush1.bf16.msra.mxu0 %v5392
    %5650 = vmatprep.subr.bf16.mxu0 %v5395
    %5651 = vmatpush1.bf16.msra.mxu0 %v5394
    %5652 = vmatprep.subr.bf16.mxu0 %v5397
    %5653 = vmatpush1.bf16.msra.mxu0 %v5396
    %5654 = vmatprep.subr.bf16.mxu0 %v5399
    %5655 = vmatpush1.bf16.msra.mxu0 %v5398
    %5656 = vmatprep.subr.bf16.mxu0 %v5401
    %5657 = vmatpush1.bf16.msra.mxu0 %v5400
    %5658 = vmatprep.subr.bf16.mxu0 %v5403
    %5659 = vmatpush1.bf16.msra.mxu0 %v5402
    %5660 = vmatprep.subr.bf16.mxu0 %v5405
    %5661 = vmatpush1.bf16.msra.mxu0 %v5404
    %5662 = vmatprep.subr.bf16.mxu0 %v5407
    %5663 = vmatpush1.bf16.msra.mxu0 %v5406
    %5664 = vmatprep.subr.bf16.mxu0 %v5409
    %5665 = vmatpush1.bf16.msra.mxu0 %v5408
    %5666 = vmatprep.subr.bf16.mxu0 %v5411
    %5667 = vmatpush1.bf16.msra.mxu0 %v5410
    %5668 = vmatprep.subr.bf16.mxu0 %v5413
    %5669 = vmatpush1.bf16.msra.mxu0 %v5412
    %5670 = vmatprep.mubr.bf16.mxu0 %v4851
    %5671 = vmatmul.mubr.bf16.gmra.mrb[0].mxu0 %v4850
    %v5672 = vpop.f32.mrb[0].mxu0
    %v5673 = vadd.f32 %v4991, %v5672
    %v5674 = vpop.f32.mrb[0].mxu0
    %v5675 = vadd.f32 %v4995, %v5674
    %v5676 = vpop.f32.mrb[0].mxu0
    %v5677 = vpop.f32.mrb[0].mxu0
    %5678 = vdwg.mxu0
    %5679 = vmatprep.subr.bf16.mxu0 %v5415
    %5680 = vmatpush1.bf16.msra.mxu0 %v5414
    %5681 = vmatprep.subr.bf16.mxu0 %v5417
    %5682 = vmatpush1.bf16.msra.mxu0 %v5416
    %5683 = vmatprep.subr.bf16.mxu0 %v5419
    %5684 = vmatpush1.bf16.msra.mxu0 %v5418
    %5685 = vmatprep.subr.bf16.mxu0 %v5421
    %5686 = vmatpush1.bf16.msra.mxu0 %v5420
    %5687 = vmatprep.subr.bf16.mxu0 %v5423
    %5688 = vmatpush1.bf16.msra.mxu0 %v5422
    %5689 = vmatprep.subr.bf16.mxu0 %v5425
    %5690 = vmatpush1.bf16.msra.mxu0 %v5424
    %5691 = vmatprep.subr.bf16.mxu0 %v5427
    %5692 = vmatpush1.bf16.msra.mxu0 %v5426
    %5693 = vmatprep.subr.bf16.mxu0 %v5429
    %5694 = vmatpush1.bf16.msra.mxu0 %v5428
    %5695 = vmatprep.subr.bf16.mxu0 %v5431
    %5696 = vmatpush1.bf16.msra.mxu0 %v5430
    %5697 = vmatprep.subr.bf16.mxu0 %v5433
    %5698 = vmatpush1.bf16.msra.mxu0 %v5432
    %5699 = vmatprep.subr.bf16.mxu0 %v5435
    %5700 = vmatpush1.bf16.msra.mxu0 %v5434
    %5701 = vmatprep.subr.bf16.mxu0 %v5437
    %5702 = vmatpush1.bf16.msra.mxu0 %v5436
    %5703 = vmatprep.subr.bf16.mxu0 %v5439
    %5704 = vmatpush1.bf16.msra.mxu0 %v5438
    %5705 = vmatprep.subr.bf16.mxu0 %v5441
    %5706 = vmatpush1.bf16.msra.mxu0 %v5440
    %5707 = vmatprep.subr.bf16.mxu0 %v5443
    %5708 = vmatpush1.bf16.msra.mxu0 %v5442
    %5709 = vmatprep.subr.bf16.mxu0 %v5445
    %5710 = vmatpush1.bf16.msra.mxu0 %v5444
    %5711 = vmatprep.mubr.bf16.mxu0 %v4853
    %5712 = vmatmul.mubr.bf16.gmra.mrb[0].mxu0 %v4852
    %v5713 = vpop.f32.mrb[0].mxu0
    %v5714 = vadd.f32 %v5673, %v5713
    %v5715 = vpop.f32.mrb[0].mxu0
    %v5716 = vadd.f32 %v5675, %v5715
    %v5717 = vpop.f32.mrb[0].mxu0
    %v5718 = vpop.f32.mrb[0].mxu0
    %5719 = vdwg.mxu0
    %5720 = vmatprep.subr.bf16.mxu0 %v5447
    %5721 = vmatpush1.bf16.msra.mxu0 %v5446
    %5722 = vmatprep.subr.bf16.mxu0 %v5449
    %5723 = vmatpush1.bf16.msra.mxu0 %v5448
    %5724 = vmatprep.subr.bf16.mxu0 %v5451
    %5725 = vmatpush1.bf16.msra.mxu0 %v5450
    %5726 = vmatprep.subr.bf16.mxu0 %v5453
    %5727 = vmatpush1.bf16.msra.mxu0 %v5452
    %5728 = vmatprep.subr.bf16.mxu0 %v5455
    %5729 = vmatpush1.bf16.msra.mxu0 %v5454
    %5730 = vmatprep.subr.bf16.mxu0 %v5457
    %5731 = vmatpush1.bf16.msra.mxu0 %v5456
    %5732 = vmatprep.subr.bf16.mxu0 %v5459
    %5733 = vmatpush1.bf16.msra.mxu0 %v5458
    %5734 = vmatprep.subr.bf16.mxu0 %v5461
    %5735 = vmatpush1.bf16.msra.mxu0 %v5460
    %5736 = vmatprep.subr.bf16.mxu0 %v5463
    %5737 = vmatpush1.bf16.msra.mxu0 %v5462
    %5738 = vmatprep.subr.bf16.mxu0 %v5465
    %5739 = vmatpush1.bf16.msra.mxu0 %v5464
    %5740 = vmatprep.subr.bf16.mxu0 %v5467
    %5741 = vmatpush1.bf16.msra.mxu0 %v5466
    %5742 = vmatprep.subr.bf16.mxu0 %v5469
    %5743 = vmatpush1.bf16.msra.mxu0 %v5468
    %5744 = vmatprep.subr.bf16.mxu0 %v5471
    %5745 = vmatpush1.bf16.msra.mxu0 %v5470
    %5746 = vmatprep.subr.bf16.mxu0 %v5473
    %5747 = vmatpush1.bf16.msra.mxu0 %v5472
    %5748 = vmatprep.subr.bf16.mxu0 %v5475
    %5749 = vmatpush1.bf16.msra.mxu0 %v5474
    %5750 = vmatprep.subr.bf16.mxu0 %v5477
    %5751 = vmatpush1.bf16.msra.mxu0 %v5476
    %5752 = vmatprep.mubr.bf16.mxu0 %v4855
    %5753 = vmatmul.mubr.bf16.gmra.mrb[0].mxu0 %v4854
    %v5754 = vpop.f32.mrb[0].mxu0
    %v5755 = vadd.f32 %v5714, %v5754
    %v5756 = vpop.f32.mrb[0].mxu0
    %v5757 = vadd.f32 %v5716, %v5756
    %v5758 = vpop.f32.mrb[0].mxu0
    %v5759 = vpop.f32.mrb[0].mxu0
    %5760 = vdwg.mxu0
    %5761 = vmatprep.subr.bf16.mxu0 %v5479
    %5762 = vmatpush1.bf16.msra.mxu0 %v5478
    %5763 = vmatprep.subr.bf16.mxu0 %v5481
    %5764 = vmatpush1.bf16.msra.mxu0 %v5480
    %5765 = vmatprep.subr.bf16.mxu0 %v5483
    %5766 = vmatpush1.bf16.msra.mxu0 %v5482
    %5767 = vmatprep.subr.bf16.mxu0 %v5485
    %5768 = vmatpush1.bf16.msra.mxu0 %v5484
    %5769 = vmatprep.subr.bf16.mxu0 %v5487
    %5770 = vmatpush1.bf16.msra.mxu0 %v5486
    %5771 = vmatprep.subr.bf16.mxu0 %v5489
    %5772 = vmatpush1.bf16.msra.mxu0 %v5488
    %5773 = vmatprep.subr.bf16.mxu0 %v5491
    %5774 = vmatpush1.bf16.msra.mxu0 %v5490
    %5775 = vmatprep.subr.bf16.mxu0 %v5493
    %5776 = vmatpush1.bf16.msra.mxu0 %v5492
    %5777 = vmatprep.subr.bf16.mxu0 %v5495
    %5778 = vmatpush1.bf16.msra.mxu0 %v5494
    %5779 = vmatprep.subr.bf16.mxu0 %v5497
    %5780 = vmatpush1.bf16.msra.mxu0 %v5496
    %5781 = vmatprep.subr.bf16.mxu0 %v5499
    %5782 = vmatpush1.bf16.msra.mxu0 %v5498
    %5783 = vmatprep.subr.bf16.mxu0 %v5501
    %5784 = vmatpush1.bf16.msra.mxu0 %v5500
    %5785 = vmatprep.subr.bf16.mxu0 %v5503
    %5786 = vmatpush1.bf16.msra.mxu0 %v5502
    %5787 = vmatprep.subr.bf16.mxu0 %v5505
    %5788 = vmatpush1.bf16.msra.mxu0 %v5504
    %5789 = vmatprep.subr.bf16.mxu0 %v5507
    %5790 = vmatpush1.bf16.msra.mxu0 %v5506
    %5791 = vmatprep.subr.bf16.mxu0 %v5509
    %5792 = vmatpush1.bf16.msra.mxu0 %v5508
    %5793 = vmatprep.mubr.bf16.mxu0 %v4857
    %5794 = vmatmul.mubr.bf16.gmra.mrb[0].mxu0 %v4856
    %v5795 = vpop.f32.mrb[0].mxu0
    %v5796 = vadd.f32 %v5755, %v5795
    %v5797 = vpop.f32.mrb[0].mxu0
    %v5798 = vadd.f32 %v5757, %v5797
    %v5799 = vpop.f32.mrb[0].mxu0
    %v5800 = vpop.f32.mrb[0].mxu0
    %5801 = vdwg.mxu0
    %v5802 = vmax.f32 %v5796, 0.0
    %v5803 = vmax.f32 %v5798, 0.0
    %v5804 = vpack.c.bf16 %v5802, %v5802
    %v5805 = vpack.c.bf16 %v5803, %v5803
    %v5806 = vld [vmem:[%s7] sm:$0xf]
    %v5807 = vld [vmem:[%s7 + $0x4] sm:$0xf]
    %v5808 = vld [vmem:[%s7 + $0x8] sm:$0xf]
    %v5809 = vld [vmem:[%s7 + $0xc] sm:$0xf]
    %v5810 = vld [vmem:[%s7 + $0x10] sm:$0xf]
    %v5811 = vld [vmem:[%s7 + $0x14] sm:$0xf]
    %v5812 = vld [vmem:[%s7 + $0x18] sm:$0xf]
    %v5813 = vld [vmem:[%s7 + $0x1c] sm:$0xf]
    %v5814 = vld [vmem:[%s7 + $0x20] sm:$0xf]
    %v5815 = vld [vmem:[%s7 + $0x24] sm:$0xf]
    %v5816 = vld [vmem:[%s7 + $0x28] sm:$0xf]
    %v5817 = vld [vmem:[%s7 + $0x2c] sm:$0xf]
    %v5818 = vld [vmem:[%s7 + $0x30] sm:$0xf]
    %v5819 = vld [vmem:[%s7 + $0x34] sm:$0xf]
    %v5820 = vld [vmem:[%s7 + $0x38] sm:$0xf]
    %v5821 = vld [vmem:[%s7 + $0x3c] sm:$0xf]
    %v5822 = vld [vmem:[%s7 + $0x40] sm:$0xf]
    %v5823 = vld [vmem:[%s7 + $0x44] sm:$0xf]
    %v5824 = vld [vmem:[%s7 + $0x48] sm:$0xf]
    %v5825 = vld [vmem:[%s7 + $0x4c] sm:$0xf]
    %v5826 = vld [vmem:[%s7 + $0x50] sm:$0xf]
    %v5827 = vld [vmem:[%s7 + $0x54] sm:$0xf]
    %v5828 = vld [vmem:[%s7 + $0x58] sm:$0xf]
    %v5829 = vld [vmem:[%s7 + $0x5c] sm:$0xf]
    %v5830 = vld [vmem:[%s7 + $0x60] sm:$0xf]
    %v5831 = vld [vmem:[%s7 + $0x64] sm:$0xf]
    %v5832 = vld [vmem:[%s7 + $0x68] sm:$0xf]
    %v5833 = vld [vmem:[%s7 + $0x6c] sm:$0xf]
    %v5834 = vld [vmem:[%s7 + $0x70] sm:$0xf]
    %v5835 = vld [vmem:[%s7 + $0x74] sm:$0xf]
    %v5836 = vld [vmem:[%s7 + $0x78] sm:$0xf]
    %v5837 = vld [vmem:[%s7 + $0x7c] sm:$0xf]
    %v5838 = vld [vmem:[#allocation13] sm:$0x1]
    %v5840 = vlaneseq
    %v5841 = vshrl.u32 %v5840, 7
    %v5842 = vsub.s32 0, %v5841
    %v5843 = vrot.slane %v5838, %v5842
    %v5877 = vunpack.c.l.b16 %v5806
    %v5878 = vunpack.c.l.b16 %v5807
    %v5879 = vunpack.c.l.b16 %v5808
    %v5880 = vunpack.c.l.b16 %v5809
    %v5881 = vunpack.c.l.b16 %v5810
    %v5882 = vunpack.c.l.b16 %v5811
    %v5883 = vunpack.c.l.b16 %v5812
    %v5884 = vunpack.c.l.b16 %v5813
    %v5885 = vunpack.c.l.b16 %v5814
    %v5886 = vunpack.c.l.b16 %v5815
    %v5887 = vunpack.c.l.b16 %v5816
    %v5888 = vunpack.c.l.b16 %v5817
    %v5889 = vunpack.c.l.b16 %v5818
    %v5890 = vunpack.c.l.b16 %v5819
    %v5891 = vunpack.c.l.b16 %v5820
    %v5892 = vunpack.c.l.b16 %v5821
    %v5893 = vunpack.c.l.b16 %v5822
    %v5894 = vunpack.c.l.b16 %v5823
    %v5895 = vunpack.c.l.b16 %v5824
    %v5896 = vunpack.c.l.b16 %v5825
    %v5897 = vunpack.c.l.b16 %v5826
    %v5898 = vunpack.c.l.b16 %v5827
    %v5899 = vunpack.c.l.b16 %v5828
    %v5900 = vunpack.c.l.b16 %v5829
    %v5901 = vunpack.c.l.b16 %v5830
    %v5902 = vunpack.c.l.b16 %v5831
    %v5903 = vunpack.c.l.b16 %v5832
    %v5904 = vunpack.c.l.b16 %v5833
    %v5905 = vunpack.c.l.b16 %v5834
    %v5906 = vunpack.c.l.b16 %v5835
    %v5907 = vunpack.c.l.b16 %v5836
    %v5908 = vunpack.c.l.b16 %v5837
    %v5909 = vpack.c.b16 %v5878, %v5877
    %v5910 = vpack.c.b16 %v5880, %v5879
    %v5911 = vpack.c.b16 %v5882, %v5881
    %v5912 = vpack.c.b16 %v5884, %v5883
    %v5913 = vpack.c.b16 %v5886, %v5885
    %v5914 = vpack.c.b16 %v5888, %v5887
    %v5915 = vpack.c.b16 %v5890, %v5889
    %v5916 = vpack.c.b16 %v5892, %v5891
    %v5917 = vpack.c.b16 %v5894, %v5893
    %v5918 = vpack.c.b16 %v5896, %v5895
    %v5919 = vpack.c.b16 %v5898, %v5897
    %v5920 = vpack.c.b16 %v5900, %v5899
    %v5921 = vpack.c.b16 %v5902, %v5901
    %v5922 = vpack.c.b16 %v5904, %v5903
    %v5923 = vpack.c.b16 %v5906, %v5905
    %v5924 = vpack.c.b16 %v5908, %v5907
    %5941 = vmatprep.subr.bf16.mxu0 0
    %5942 = vmatpush1.bf16.msra.mxu0 %v5909
    %5943 = vmatprep.subr.bf16.mxu0 0
    %5944 = vmatpush1.bf16.msra.mxu0 %v5910
    %5945 = vmatprep.subr.bf16.mxu0 0
    %5946 = vmatpush1.bf16.msra.mxu0 %v5911
    %5947 = vmatprep.subr.bf16.mxu0 0
    %5948 = vmatpush1.bf16.msra.mxu0 %v5912
    %5949 = vmatprep.subr.bf16.mxu0 0
    %5950 = vmatpush1.bf16.msra.mxu0 %v5913
    %5951 = vmatprep.subr.bf16.mxu0 0
    %5952 = vmatpush1.bf16.msra.mxu0 %v5914
    %5953 = vmatprep.subr.bf16.mxu0 0
    %5954 = vmatpush1.bf16.msra.mxu0 %v5915
    %5955 = vmatprep.subr.bf16.mxu0 0
    %5956 = vmatpush1.bf16.msra.mxu0 %v5916
    %5957 = vmatprep.subr.bf16.mxu0 0
    %5958 = vmatpush1.bf16.msra.mxu0 %v5917
    %5959 = vmatprep.subr.bf16.mxu0 0
    %5960 = vmatpush1.bf16.msra.mxu0 %v5918
    %5961 = vmatprep.subr.bf16.mxu0 0
    %5962 = vmatpush1.bf16.msra.mxu0 %v5919
    %5963 = vmatprep.subr.bf16.mxu0 0
    %5964 = vmatpush1.bf16.msra.mxu0 %v5920
    %5965 = vmatprep.subr.bf16.mxu0 0
    %5966 = vmatpush1.bf16.msra.mxu0 %v5921
    %5967 = vmatprep.subr.bf16.mxu0 0
    %5968 = vmatpush1.bf16.msra.mxu0 %v5922
    %5969 = vmatprep.subr.bf16.mxu0 0
    %5970 = vmatpush1.bf16.msra.mxu0 %v5923
    %5971 = vmatprep.subr.bf16.mxu0 0
    %5972 = vmatpush1.bf16.msra.mxu0 %v5924
    %5973 = vmatprep.mubr.bf16.mxu0 %v5805
    %5974 = vmatmul.mubr.bf16.gmra.mrb[0].mxu0 %v5804
    %v5975 = vpop.f32.mrb[0].mxu0
    %v5976 = vadd.f32 %v5843, %v5975
    %v5977 = vpop.f32.mrb[0].mxu0
    %v5978 = vpop.f32.mrb[0].mxu0
    %v5979 = vpop.f32.mrb[0].mxu0
    %5980 = vdwg.mxu0
    %v5981 = vmax.f32 %v5976, 0.0
    %v5982 = vpack.c.bf16 %v5981, %v5981
    %v5983 = vld [vmem:[%s9] sm:$0xf]
    %v5984 = vld [vmem:[%s9 + $0x4] sm:$0xf]
    %v5985 = vld [vmem:[%s9 + $0x8] sm:$0xf]
    %v5986 = vld [vmem:[%s9 + $0xc] sm:$0xf]
    %v5987 = vld [vmem:[%s9 + $0x10] sm:$0xf]
    %v5988 = vld [vmem:[%s9 + $0x14] sm:$0xf]
    %v5989 = vld [vmem:[%s9 + $0x18] sm:$0xf]
    %v5990 = vld [vmem:[%s9 + $0x1c] sm:$0xf]
    %v5991 = vld [vmem:[#allocation15] sm:$0x1]
    %v5993 = vlaneseq
    %v5994 = vshrl.u32 %v5993, 7
    %v5995 = vsub.s32 0, %v5994
    %v5996 = vrot.slane %v5991, %v5995
    %v6006 = vunpack.c.l.b16 %v5983
    %v6007 = vunpack.c.l.b16 %v5984
    %v6008 = vunpack.c.l.b16 %v5985
    %v6009 = vunpack.c.l.b16 %v5986
    %v6010 = vunpack.c.l.b16 %v5987
    %v6011 = vunpack.c.l.b16 %v5988
    %v6012 = vunpack.c.l.b16 %v5989
    %v6013 = vunpack.c.l.b16 %v5990
    %v6014 = vpack.c.b16 %v6007, %v6006
    %v6015 = vpack.c.b16 %v6009, %v6008
    %v6016 = vpack.c.b16 %v6011, %v6010
    %v6017 = vpack.c.b16 %v6013, %v6012
    %vm6022 = vcmask 523264
    %v6024 = vsel %vm6022, %v5982, 0
    %6026 = vmatprep.subr.bf16.mxu0 0
    %6027 = vmatpush1.bf16.msra.mxu0 %v6014
    %6028 = vmatprep.subr.bf16.mxu0 0
    %6029 = vmatpush1.bf16.msra.mxu0 %v6015
    %6030 = vmatprep.subr.bf16.mxu0 0
    %6031 = vmatpush1.bf16.msra.mxu0 %v6016
    %6032 = vmatprep.subr.bf16.mxu0 0
    %6033 = vmatpush1.bf16.msra.mxu0 %v6017
    %6034 = vmatprep.subr.bf16.mxu0 0
    %6035 = vmatpush1.bf16.msra.mxu0 0
    %6036 = vmatprep.subr.bf16.mxu0 0
    %6037 = vmatpush1.bf16.msra.mxu0 0
    %6038 = vmatprep.subr.bf16.mxu0 0
    %6039 = vmatpush1.bf16.msra.mxu0 0
    %6040 = vmatprep.subr.bf16.mxu0 0
    %6041 = vmatpush1.bf16.msra.mxu0 0
    %6042 = vmatprep.subr.bf16.mxu0 0
    %6043 = vmatpush1.bf16.msra.mxu0 0
    %6044 = vmatprep.subr.bf16.mxu0 0
    %6045 = vmatpush1.bf16.msra.mxu0 0
    %6046 = vmatprep.subr.bf16.mxu0 0
    %6047 = vmatpush1.bf16.msra.mxu0 0
    %6048 = vmatprep.subr.bf16.mxu0 0
    %6049 = vmatpush1.bf16.msra.mxu0 0
    %6050 = vmatprep.subr.bf16.mxu0 0
    %6051 = vmatpush1.bf16.msra.mxu0 0
    %6052 = vmatprep.subr.bf16.mxu0 0
    %6053 = vmatpush1.bf16.msra.mxu0 0
    %6054 = vmatprep.subr.bf16.mxu0 0
    %6055 = vmatpush1.bf16.msra.mxu0 0
    %6056 = vmatprep.subr.bf16.mxu0 0
    %6057 = vmatpush1.bf16.msra.mxu0 0
    %6058 = vmatprep.mubr.bf16.mxu0 0
    %6059 = vmatmul.mubr.bf16.gmra.mrb[0].mxu0 %v6024
    %v6060 = vpop.f32.mrb[0].mxu0
    %v6061 = vadd.f32 %v5996, %v6060
    %v6062 = vpop.f32.mrb[0].mxu0
    %v6063 = vpop.f32.mrb[0].mxu0
    %v6064 = vpop.f32.mrb[0].mxu0
    %6065 = vdwg.mxu0
    %v6066 = vmax.f32 %v6061, 0.0
    %v6067 = vpack.c.bf16 %v6066, %v6066
    %v6068 = vld [vmem:[%s11] sm:$0xf]
    %v6069 = vld [vmem:[%s11 + $0x4] sm:$0xf]
    %v6070 = vld [vmem:[#allocation16] sm:$0x1]
    %v6072 = vlaneseq
    %v6073 = vshrl.u32 %v6072, 7
    %v6074 = vsub.s32 0, %v6073
    %v6075 = vrot.slane %v6070, %v6074
    %v6079 = vunpack.c.l.b16 %v6068
    %v6080 = vunpack.c.l.b16 %v6069
    %v6081 = vpack.c.b16 %v6080, %v6079
    %vm6083 = vcmask 130048
    %v6085 = vsel %vm6083, %v6067, 0
    %6087 = vmatprep.subr.bf16.mxu0 0
    %6088 = vmatpush1.bf16.msra.mxu0 %v6081
    %6089 = vmatprep.subr.bf16.mxu0 0
    %6090 = vmatpush1.bf16.msra.mxu0 0
    %6091 = vmatprep.subr.bf16.mxu0 0
    %6092 = vmatpush1.bf16.msra.mxu0 0
    %6093 = vmatprep.subr.bf16.mxu0 0
    %6094 = vmatpush1.bf16.msra.mxu0 0
    %6095 = vmatprep.subr.bf16.mxu0 0
    %6096 = vmatpush1.bf16.msra.mxu0 0
    %6097 = vmatprep.subr.bf16.mxu0 0
    %6098 = vmatpush1.bf16.msra.mxu0 0
    %6099 = vmatprep.subr.bf16.mxu0 0
    %6100 = vmatpush1.bf16.msra.mxu0 0
    %6101 = vmatprep.subr.bf16.mxu0 0
    %6102 = vmatpush1.bf16.msra.mxu0 0
    %6103 = vmatprep.subr.bf16.mxu0 0
    %6104 = vmatpush1.bf16.msra.mxu0 0
    %6105 = vmatprep.subr.bf16.mxu0 0
    %6106 = vmatpush1.bf16.msra.mxu0 0
    %6107 = vmatprep.subr.bf16.mxu0 0
    %6108 = vmatpush1.bf16.msra.mxu0 0
    %6109 = vmatprep.subr.bf16.mxu0 0
    %6110 = vmatpush1.bf16.msra.mxu0 0
    %6111 = vmatprep.subr.bf16.mxu0 0
    %6112 = vmatpush1.bf16.msra.mxu0 0
    %6113 = vmatprep.subr.bf16.mxu0 0
    %6114 = vmatpush1.bf16.msra.mxu0 0
    %6115 = vmatprep.subr.bf16.mxu0 0
    %6116 = vmatpush1.bf16.msra.mxu0 0
    %6117 = vmatprep.subr.bf16.mxu0 0
    %6118 = vmatpush1.bf16.msra.mxu0 0
    %6119 = vmatprep.mubr.bf16.mxu0 0
    %6120 = vmatmul.mubr.bf16.gmra.mrb[0].mxu0 %v6085
    %v6121 = vpop.f32.mrb[0].mxu0
    %v6122 = vadd.f32 %v6075, %v6121
    %v6123 = vpop.f32.mrb[0].mxu0
    %v6124 = vpop.f32.mrb[0].mxu0
    %v6125 = vpop.f32.mrb[0].mxu0
    %6126 = vdwg.mxu0
    %vm6127 = vcmask 15360
    %6128 = vst.msk [vmem:[%s13] sm:$0xff] %vm6127, %v6122
    // Predicated region
    $region94: #{tpu_custom_call.1} parent=1 // pred_check
      _
    $region95: #{tpu_custom_call.1} parent=1 // pred_check_branch
      %6130 = sbr.rel (0) target = $region97
    $region96: #{tpu_custom_call.1} parent=1 // pred_region
      _
    $region97: #{tpu_custom_call.1} parent=1 // pred_fallthru
      _
    // Predicated region
    $region98: #{tpu_custom_call.1} parent=1 // pred_check
      _
    $region99: #{tpu_custom_call.1} parent=1 // pred_check_branch
      %6132 = sbr.rel (0) target = $region101
    $region100: #{tpu_custom_call.1} parent=1 // pred_region
      _
    $region101: #{tpu_custom_call.1} parent=1 // pred_fallthru
      _
    %6133 = vsyncpa [#allocation3], 1
    %6134 = vsyncpa [#allocation5], 1
    %6135 = vsyncpa [#allocation8], 1
    %6136 = vsyncpa [#allocation11], 1
    %6137 = vsyncpa [#allocation14], 1
    %6138 = vsyncpa [#allocation17], 1

// kernel: tpu_custom_call.1
$region0: #{tpu_custom_call.1}
  #allocation0 [shape = 'u32[]', space=smem, size = 0x4, offset = 0x4, fixed_abs, tag = 'smem constant byte address 0x4 - core index']
  #allocation1 [shape = 'u32[144,128]{1,0:T(1,128)}', space=vmem, size = 0x12000, scoped, tag = 'internal scratch']
  %s0 = inlined_call_operand.hbm [shape: bf16[8,224], index: 0, kind: input, shape index: {}]
  %s1 = inlined_call_operand.hbm [shape: bf16[224,1024], index: 1, kind: input, shape index: {}]
  %s2 = inlined_call_operand.hbm [shape: f32[1,1024], index: 2, kind: input, shape index: {}]
  %s3 = inlined_call_operand.hbm [shape: bf16[1024,1024], index: 3, kind: input, shape index: {}]
  %s4 = inlined_call_operand.hbm [shape: f32[1,1024], index: 4, kind: input, shape index: {}]
  %s5 = inlined_call_operand.hbm [shape: bf16[1024,256], index: 5, kind: input, shape index: {}]
  %s6 = inlined_call_operand.hbm [shape: f32[1,256], index: 6, kind: input, shape index: {}]
  %s7 = inlined_call_operand.vmem [shape: bf16[256,64], index: 7, kind: input, shape index: {}]
  %s8 = inlined_call_operand.hbm [shape: f32[1,64], index: 8, kind: input, shape index: {}]
  %s9 = inlined_call_operand.vmem [shape: bf16[64,16], index: 9, kind: input, shape index: {}]
  %s10 = inlined_call_operand.hbm [shape: f32[1,16], index: 10, kind: input, shape index: {}]
  %s11 = inlined_call_operand.vmem [shape: bf16[16,2], index: 11, kind: input, shape index: {}]
  %s12 = inlined_call_operand.hbm [shape: f32[1,2], index: 12, kind: input, shape index: {}]
  %s13 = inlined_call_operand.vmem [shape: f32[8,2], index: 13, kind: output, shape index: {}]
  %s14 = sld [smem:[#allocation0]]
  $region102: #{tpu_custom_call.1} parent=0
    _
  %s16 = ssub.s32 1, %s14
  %s17 = scalar_select 0, %s16, %s14
  $region1: #{tpu_custom_call.1} parent=0
    #allocation2 [shape = 'u8[4096]{0}', space=vmem, size = 0x1000, scoped, tag = 'input window, operand 0, single buffered']
    #allocation3 [shape = 's32[1]{0}', space=sflag, size = 0x4, scoped, tag = 'scoped memory for tpu_custom_call.1']
    #allocation4 [shape = 'u8[458752]{0}', space=vmem, size = 0x70000, scoped, tag = 'input window, operand 1, single buffered']
    #allocation5 [shape = 's32[1]{0}', space=sflag, size = 0x4, scoped, tag = 'scoped memory for tpu_custom_call.1']
    #allocation6 [shape = 'u8[4096]{0}', space=vmem, size = 0x1000, scoped, tag = 'input window, operand 2, single buffered']
    #allocation7 [shape = 'u8[2097152]{0}', space=vmem, size = 0x200000, scoped, tag = 'input window, operand 3, single buffered']
    #allocation8 [shape = 's32[1]{0}', space=sflag, size = 0x4, scoped, tag = 'scoped memory for tpu_custom_call.1']
    #allocation9 [shape = 'u8[4096]{0}', space=vmem, size = 0x1000, scoped, tag = 'input window, operand 4, single buffered']
    #allocation10 [shape = 'u8[524288]{0}', space=vmem, size = 0x80000, scoped, tag = 'input window, operand 5, single buffered']
    #allocation11 [shape = 's32[1]{0}', space=sflag, size = 0x4, scoped, tag = 'scoped memory for tpu_custom_call.1']
    #allocation12 [shape = 'u8[1024]{0}', space=vmem, size = 0x400, scoped, tag = 'input window, operand 6, single buffered']
    #allocation13 [shape = 'u8[512]{0}', space=vmem, size = 0x400, scoped, tag = 'input window, operand 8, single buffered']
    #allocation14 [shape = 's32[1]{0}', space=sflag, size = 0x4, scoped, tag = 'scoped memory for tpu_custom_call.1']
    #allocation15 [shape = 'u8[512]{0}', space=vmem, size = 0x400, scoped, tag = 'input window, operand 10, single buffered']
    #allocation16 [shape = 'u8[512]{0}', space=vmem, size = 0x400, scoped, tag = 'input window, operand 12, single buffered']
    #allocation17 [shape = 's32[1]{0}', space=sflag, size = 0x4, scoped, tag = 'scoped memory for tpu_custom_call.1']
    %18 = vsyncpa [#allocation3], 0
    %19 = vsyncpa [#allocation5], 0
    %20 = vsyncpa [#allocation8], 0
    %21 = vsyncpa [#allocation11], 0
    %22 = vsyncpa [#allocation14], 0
    %23 = vsyncpa [#allocation17], 0
    // Predicated region
    $region2: #{tpu_custom_call.1} parent=1 // pred_check
      _
    $region3: #{tpu_custom_call.1} parent=1 // pred_check_branch
      %25 = sbr.rel (0) target = $region5
    $region4: #{tpu_custom_call.1} parent=1 // pred_region
      %s27 = ssub.s32 128, 128
      %28 = vsyncadd [#allocation3], %s27
      %s30 = sshll.u32 [#allocation2], 4
      %s31 = int_to_ptr.vmem [resolvable:$true] %s30
      %33 = dma.hbm_to_vmem [thread:$0]  %s0, 128, %s31, [#allocation3]
    $region5: #{tpu_custom_call.1} parent=1 // pred_fallthru
      _
    // Predicated region
    $region6: #{tpu_custom_call.1} parent=1 // pred_check
      _
    $region7: #{tpu_custom_call.1} parent=1 // pred_check_branch
      %35 = sbr.rel (0) target = $region9
    $region8: #{tpu_custom_call.1} parent=1 // pred_region
      %s37 = ssub.s32 14336, 14336
      %38 = vsyncadd [#allocation5], %s37
      %s39 = sshll.u32 [#allocation4], 4
      %s40 = int_to_ptr.vmem [resolvable:$true] %s39
      %45 = dma.hbm_to_vmem [thread:$0]  %s1, 14336, %s40, [#allocation5], 512, 512, 32
    $region9: #{tpu_custom_call.1} parent=1 // pred_fallthru
      _
    // Predicated region
    $region10: #{tpu_custom_call.1} parent=1 // pred_check
      _
    $region11: #{tpu_custom_call.1} parent=1 // pred_check_branch
      %47 = sbr.rel (0) target = $region13
    $region12: #{tpu_custom_call.1} parent=1 // pred_region
      %s49 = ssub.s32 128, 128
      %50 = vsyncadd [#allocation5], %s49
      %s52 = sshll.u32 [#allocation6], 4
      %s53 = int_to_ptr.vmem [resolvable:$true] %s52
      %55 = dma.hbm_to_vmem [thread:$0]  %s2, 128, %s53, [#allocation5]
    $region13: #{tpu_custom_call.1} parent=1 // pred_fallthru
      _
    // Predicated region
    $region14: #{tpu_custom_call.1} parent=1 // pred_check
      _
    $region15: #{tpu_custom_call.1} parent=1 // pred_check_branch
      %57 = sbr.rel (0) target = $region17
    $region16: #{tpu_custom_call.1} parent=1 // pred_region
      %s59 = ssub.s32 65536, 65536
      %60 = vsyncadd [#allocation8], %s59
      %s61 = sshll.u32 [#allocation7], 4
      %s62 = int_to_ptr.vmem [resolvable:$true] %s61
      %67 = dma.hbm_to_vmem [thread:$0]  %s3, 65536, %s62, [#allocation8], 512, 512, 32
    $region17: #{tpu_custom_call.1} parent=1 // pred_fallthru
      _
    // Predicated region
    $region18: #{tpu_custom_call.1} parent=1 // pred_check
      _
    $region19: #{tpu_custom_call.1} parent=1 // pred_check_branch
      %69 = sbr.rel (0) target = $region21
    $region20: #{tpu_custom_call.1} parent=1 // pred_region
      %s71 = ssub.s32 128, 128
      %72 = vsyncadd [#allocation8], %s71
      %s74 = sshll.u32 [#allocation9], 4
      %s75 = int_to_ptr.vmem [resolvable:$true] %s74
      %77 = dma.hbm_to_vmem [thread:$0]  %s4, 128, %s75, [#allocation8]
    $region21: #{tpu_custom_call.1} parent=1 // pred_fallthru
      _
    // Predicated region
    $region22: #{tpu_custom_call.1} parent=1 // pred_check
      _
    $region23: #{tpu_custom_call.1} parent=1 // pred_check_branch
      %79 = sbr.rel (0) target = $region25
    $region24: #{tpu_custom_call.1} parent=1 // pred_region
      %s81 = ssub.s32 16384, 16384
      %82 = vsyncadd [#allocation11], %s81
      %s83 = sshll.u32 [#allocation10], 4
      %s84 = int_to_ptr.vmem [resolvable:$true] %s83
      %89 = dma.hbm_to_vmem [thread:$0]  %s5, 16384, %s84, [#allocation11], 128, 128, 8
    $region25: #{tpu_custom_call.1} parent=1 // pred_fallthru
      _
    // Predicated region
    $region26: #{tpu_custom_call.1} parent=1 // pred_check
      _
    $region27: #{tpu_custom_call.1} parent=1 // pred_check_branch
      %91 = sbr.rel (0) target = $region29
    $region28: #{tpu_custom_call.1} parent=1 // pred_region
      %s93 = ssub.s32 32, 32
      %94 = vsyncadd [#allocation11], %s93
      %s96 = sshll.u32 [#allocation12], 4
      %s97 = int_to_ptr.vmem [resolvable:$true] %s96
      %99 = dma.hbm_to_vmem [thread:$0]  %s6, 32, %s97, [#allocation11]
    $region29: #{tpu_custom_call.1} parent=1 // pred_fallthru
      _
    // Predicated region
    $region30: #{tpu_custom_call.1} parent=1 // pred_check
      _
    $region31: #{tpu_custom_call.1} parent=1 // pred_check_branch
      %101 = sbr.rel (0) target = $region33
    $region32: #{tpu_custom_call.1} parent=1 // pred_region
      _
    $region33: #{tpu_custom_call.1} parent=1 // pred_fallthru
      _
    // Predicated region
    $region34: #{tpu_custom_call.1} parent=1 // pred_check
      _
    $region35: #{tpu_custom_call.1} parent=1 // pred_check_branch
      %103 = sbr.rel (0) target = $region37
    $region36: #{tpu_custom_call.1} parent=1 // pred_region
      %s105 = ssub.s32 16, 16
      %106 = vsyncadd [#allocation14], %s105
      %s108 = sshll.u32 [#allocation13], 4
      %s109 = int_to_ptr.vmem [resolvable:$true] %s108
      %111 = dma.hbm_to_vmem [thread:$0]  %s8, 16, %s109, [#allocation14]
    $region37: #{tpu_custom_call.1} parent=1 // pred_fallthru
      _
    // Predicated region
    $region38: #{tpu_custom_call.1} parent=1 // pred_check
      _
    $region39: #{tpu_custom_call.1} parent=1 // pred_check_branch
      %113 = sbr.rel (0) target = $region41
    $region40: #{tpu_custom_call.1} parent=1 // pred_region
      _
    $region41: #{tpu_custom_call.1} parent=1 // pred_fallthru
      _
    // Predicated region
    $region42: #{tpu_custom_call.1} parent=1 // pred_check
      _
    $region43: #{tpu_custom_call.1} parent=1 // pred_check_branch
      %115 = sbr.rel (0) target = $region45
    $region44: #{tpu_custom_call.1} parent=1 // pred_region
      %s117 = ssub.s32 16, 16
      %118 = vsyncadd [#allocation14], %s117
      %s120 = sshll.u32 [#allocation15], 4
      %s121 = int_to_ptr.vmem [resolvable:$true] %s120
      %123 = dma.hbm_to_vmem [thread:$0]  %s10, 16, %s121, [#allocation14]
    $region45: #{tpu_custom_call.1} parent=1 // pred_fallthru
      _
    // Predicated region
    $region46: #{tpu_custom_call.1} parent=1 // pred_check
      _
    $region47: #{tpu_custom_call.1} parent=1 // pred_check_branch
      %125 = sbr.rel (0) target = $region49
    $region48: #{tpu_custom_call.1} parent=1 // pred_region
      _
    $region49: #{tpu_custom_call.1} parent=1 // pred_fallthru
      _
    // Predicated region
    $region50: #{tpu_custom_call.1} parent=1 // pred_check
      _
    $region51: #{tpu_custom_call.1} parent=1 // pred_check_branch
      %127 = sbr.rel (0) target = $region53
    $region52: #{tpu_custom_call.1} parent=1 // pred_region
      %s129 = ssub.s32 16, 16
      %130 = vsyncadd [#allocation17], %s129
      %s132 = sshll.u32 [#allocation16], 4
      %s133 = int_to_ptr.vmem [resolvable:$true] %s132
      %135 = dma.hbm_to_vmem [thread:$0]  %s12, 16, %s133, [#allocation17]
    $region53: #{tpu_custom_call.1} parent=1 // pred_fallthru
      _
    // Predicated region
    $region54: #{tpu_custom_call.1} parent=1 // pred_check
      _
    $region55: #{tpu_custom_call.1} parent=1 // pred_check_branch
      %137 = sbr.rel (0) target = $region57
    $region56: #{tpu_custom_call.1} parent=1 // pred_region
      %138 = dma.done [#allocation3], 128
    $region57: #{tpu_custom_call.1} parent=1 // pred_fallthru
      _
    // Predicated region
    $region58: #{tpu_custom_call.1} parent=1 // pred_check
      _
    $region59: #{tpu_custom_call.1} parent=1 // pred_check_branch
      %140 = sbr.rel (0) target = $region61
    $region60: #{tpu_custom_call.1} parent=1 // pred_region
      %141 = dma.done [#allocation5], 14336
    $region61: #{tpu_custom_call.1} parent=1 // pred_fallthru
      _
    // Predicated region
    $region62: #{tpu_custom_call.1} parent=1 // pred_check
      _
    $region63: #{tpu_custom_call.1} parent=1 // pred_check_branch
      %143 = sbr.rel (0) target = $region65
    $region64: #{tpu_custom_call.1} parent=1 // pred_region
      %144 = dma.done [#allocation5], 128
    $region65: #{tpu_custom_call.1} parent=1 // pred_fallthru
      _
    // Predicated region
    $region66: #{tpu_custom_call.1} parent=1 // pred_check
      _
    $region67: #{tpu_custom_call.1} parent=1 // pred_check_branch
      %146 = sbr.rel (0) target = $region69
    $region68: #{tpu_custom_call.1} parent=1 // pred_region
      %147 = dma.done [#allocation8], 65536
    $region69: #{tpu_custom_call.1} parent=1 // pred_fallthru
      _
    // Predicated region
    $region70: #{tpu_custom_call.1} parent=1 // pred_check
      _
    $region71: #{tpu_custom_call.1} parent=1 // pred_check_branch
      %149 = sbr.rel (0) target = $region73
    $region72: #{tpu_custom_call.1} parent=1 // pred_region
      %150 = dma.done [#allocation8], 128
    $region73: #{tpu_custom_call.1} parent=1 // pred_fallthru
      _
    // Predicated region
    $region74: #{tpu_custom_call.1} parent=1 // pred_check
      _
    $region75: #{tpu_custom_call.1} parent=1 // pred_check_branch
      %152 = sbr.rel (0) target = $region77
    $region76: #{tpu_custom_call.1} parent=1 // pred_region
      %153 = dma.done [#allocation11], 16384
    $region77: #{tpu_custom_call.1} parent=1 // pred_fallthru
      _
    // Predicated region
    $region78: #{tpu_custom_call.1} parent=1 // pred_check
      _
    $region79: #{tpu_custom_call.1} parent=1 // pred_check_branch
      %155 = sbr.rel (0) target = $region81
    $region80: #{tpu_custom_call.1} parent=1 // pred_region
      %156 = dma.done [#allocation11], 32
    $region81: #{tpu_custom_call.1} parent=1 // pred_fallthru
      _
    // Predicated region
    $region82: #{tpu_custom_call.1} parent=1 // pred_check
      _
    $region83: #{tpu_custom_call.1} parent=1 // pred_check_branch
      %158 = sbr.rel (0) target = $region85
    $region84: #{tpu_custom_call.1} parent=1 // pred_region
      %159 = dma.done [#allocation14], 16
    $region85: #{tpu_custom_call.1} parent=1 // pred_fallthru
      _
    // Predicated region
    $region86: #{tpu_custom_call.1} parent=1 // pred_check
      _
    $region87: #{tpu_custom_call.1} parent=1 // pred_check_branch
      %161 = sbr.rel (0) target = $region89
    $region88: #{tpu_custom_call.1} parent=1 // pred_region
      %162 = dma.done [#allocation14], 16
    $region89: #{tpu_custom_call.1} parent=1 // pred_fallthru
      _
    // Predicated region
    $region90: #{tpu_custom_call.1} parent=1 // pred_check
      _
    $region91: #{tpu_custom_call.1} parent=1 // pred_check_branch
      %164 = sbr.rel (0) target = $region93
    $region92: #{tpu_custom_call.1} parent=1 // pred_region
      %165 = dma.done [#allocation17], 16
    $region93: #{tpu_custom_call.1} parent=1 // pred_fallthru
      _
    %v167 = vld [vmem:[#allocation2] sm:$0xff]
    %v168 = vld [vmem:[#allocation4] sm:$0xff]
    %v169 = vld [vmem:[#allocation4 + $0x8] sm:$0xff]
    %v170 = vld [vmem:[#allocation4 + $0x10] sm:$0xff]
    %v171 = vld [vmem:[#allocation4 + $0x18] sm:$0xff]
    %v172 = vld [vmem:[#allocation4 + $0x20] sm:$0xff]
    %v173 = vld [vmem:[#allocation4 + $0x28] sm:$0xff]
    %v174 = vld [vmem:[#allocation4 + $0x30] sm:$0xff]
    %v175 = vld [vmem:[#allocation4 + $0x38] sm:$0xff]
    %v176 = vld [vmem:[#allocation4 + $0x40] sm:$0xff]
    %v177 = vld [vmem:[#allocation4 + $0x48] sm:$0xff]
    %v178 = vld [vmem:[#allocation4 + $0x50] sm:$0xff]
    %v179 = vld [vmem:[#allocation4 + $0x58] sm:$0xff]
    %v180 = vld [vmem:[#allocation4 + $0x60] sm:$0xff]
    %v181 = vld [vmem:[#allocation4 + $0x68] sm:$0xff]
    %v182 = vld [vmem:[#allocation4 + $0x70] sm:$0xff]
    %v183 = vld [vmem:[#allocation4 + $0x78] sm:$0xff]
    %v184 = vld [vmem:[#allocation4 + $0x80] sm:$0xff]
    %v185 = vld [vmem:[#allocation4 + $0x88] sm:$0xff]
    %v186 = vld [vmem:[#allocation4 + $0x90] sm:$0xff]
    %v187 = vld [vmem:[#allocation4 + $0x98] sm:$0xff]
    %v188 = vld [vmem:[#allocation4 + $0xa0] sm:$0xff]
    %v189 = vld [vmem:[#allocation4 + $0xa8] sm:$0xff]
    %v190 = vld [vmem:[#allocation4 + $0xb0] sm:$0xff]
    %v191 = vld [vmem:[#allocation4 + $0xb8] sm:$0xff]
    %v192 = vld [vmem:[#allocation4 + $0xc0] sm:$0xff]
    %v193 = vld [vmem:[#allocation4 + $0xc8] sm:$0xff]
    %v194 = vld [vmem:[#allocation4 + $0xd0] sm:$0xff]
    %v195 = vld [vmem:[#allocation4 + $0xd8] sm:$0xff]
    %v196 = vld [vmem:[#allocation4 + $0xe0] sm:$0xff]
    %v197 = vld [vmem:[#allocation4 + $0xe8] sm:$0xff]
    %v198 = vld [vmem:[#allocation4 + $0xf0] sm:$0xff]
    %v199 = vld [vmem:[#allocation4 + $0xf8] sm:$0xff]
    %v200 = vld [vmem:[#allocation4 + $0x100] sm:$0xff]
    %v201 = vld [vmem:[#allocation4 + $0x108] sm:$0xff]
    %v202 = vld [vmem:[#allocation4 + $0x110] sm:$0xff]
    %v203 = vld [vmem:[#allocation4 + $0x118] sm:$0xff]
    %v204 = vld [vmem:[#allocation4 + $0x120] sm:$0xff]
    %v205 = vld [vmem:[#allocation4 + $0x128] sm:$0xff]
    %v206 = vld [vmem:[#allocation4 + $0x130] sm:$0xff]
    %v207 = vld [vmem:[#allocation4 + $0x138] sm:$0xff]
    %v208 = vld [vmem:[#allocation4 + $0x140] sm:$0xff]
    %v209 = vld [vmem:[#allocation4 + $0x148] sm:$0xff]
    %v210 = vld [vmem:[#allocation4 + $0x150] sm:$0xff]
    %v211 = vld [vmem:[#allocation4 + $0x158] sm:$0xff]
    %v212 = vld [vmem:[#allocation4 + $0x160] sm:$0xff]
    %v213 = vld [vmem:[#allocation4 + $0x168] sm:$0xff]
    %v214 = vld [vmem:[#allocation4 + $0x170] sm:$0xff]
    %v215 = vld [vmem:[#allocation4 + $0x178] sm:$0xff]
    %v216 = vld [vmem:[#allocation4 + $0x180] sm:$0xff]
    %v217 = vld [vmem:[#allocation4 + $0x188] sm:$0xff]
    %v218 = vld [vmem:[#allocation4 + $0x190] sm:$0xff]
    %v219 = vld [vmem:[#allocation4 + $0x198] sm:$0xff]
    %v220 = vld [vmem:[#allocation4 + $0x1a0] sm:$0xff]
    %v221 = vld [vmem:[#allocation4 + $0x1a8] sm:$0xff]
    %v222 = vld [vmem:[#allocation4 + $0x1b0] sm:$0xff]
    %v223 = vld [vmem:[#allocation4 + $0x1b8] sm:$0xff]
    %v224 = vld [vmem:[#allocation4 + $0x1c0] sm:$0xff]
    %v225 = vld [vmem:[#allocation4 + $0x1c8] sm:$0xff]
    %v226 = vld [vmem:[#allocation4 + $0x1d0] sm:$0xff]
    %v227 = vld [vmem:[#allocation4 + $0x1d8] sm:$0xff]
    %v228 = vld [vmem:[#allocation4 + $0x1e0] sm:$0xff]
    %v229 = vld [vmem:[#allocation4 + $0x1e8] sm:$0xff]
    %v230 = vld [vmem:[#allocation4 + $0x1f0] sm:$0xff]
    %v231 = vld [vmem:[#allocation4 + $0x1f8] sm:$0xff]
    %v232 = vld [vmem:[#allocation4 + $0x200] sm:$0xff]
    %v233 = vld [vmem:[#allocation4 + $0x208] sm:$0xff]
    %v234 = vld [vmem:[#allocation4 + $0x210] sm:$0xff]
    %v235 = vld [vmem:[#allocation4 + $0x218] sm:$0xff]
    %v236 = vld [vmem:[#allocation4 + $0x220] sm:$0xff]
    %v237 = vld [vmem:[#allocation4 + $0x228] sm:$0xff]
    %v238 = vld [vmem:[#allocation4 + $0x230] sm:$0xff]
    %v239 = vld [vmem:[#allocation4 + $0x238] sm:$0xff]
    %v240 = vld [vmem:[#allocation4 + $0x240] sm:$0xff]
    %v241 = vld [vmem:[#allocation4 + $0x248] sm:$0xff]
    %v242 = vld [vmem:[#allocation4 + $0x250] sm:$0xff]
    %v243 = vld [vmem:[#allocation4 + $0x258] sm:$0xff]
    %v244 = vld [vmem:[#allocation4 + $0x260] sm:$0xff]
    %v245 = vld [vmem:[#allocation4 + $0x268] sm:$0xff]
    %v246 = vld [vmem:[#allocation4 + $0x270] sm:$0xff]
    %v247 = vld [vmem:[#allocation4 + $0x278] sm:$0xff]
    %v248 = vld [vmem:[#allocation4 + $0x280] sm:$0xff]
    %v249 = vld [vmem:[#allocation4 + $0x288] sm:$0xff]
    %v250 = vld [vmem:[#allocation4 + $0x290] sm:$0xff]
    %v251 = vld [vmem:[#allocation4 + $0x298] sm:$0xff]
    %v252 = vld [vmem:[#allocation4 + $0x2a0] sm:$0xff]
    %v253 = vld [vmem:[#allocation4 + $0x2a8] sm:$0xff]
    %v254 = vld [vmem:[#allocation4 + $0x2b0] sm:$0xff]
    %v255 = vld [vmem:[#allocation4 + $0x2b8] sm:$0xff]
    %v256 = vld [vmem:[#allocation4 + $0x2c0] sm:$0xff]
    %v257 = vld [vmem:[#allocation4 + $0x2c8] sm:$0xff]
    %v258 = vld [vmem:[#allocation4 + $0x2d0] sm:$0xff]
    %v259 = vld [vmem:[#allocation4 + $0x2d8] sm:$0xff]
    %v260 = vld [vmem:[#allocation4 + $0x2e0] sm:$0xff]
    %v261 = vld [vmem:[#allocation4 + $0x2e8] sm:$0xff]
    %v262 = vld [vmem:[#allocation4 + $0x2f0] sm:$0xff]
    %v263 = vld [vmem:[#allocation4 + $0x2f8] sm:$0xff]
    %v264 = vld [vmem:[#allocation4 + $0x300] sm:$0xff]
    %v265 = vld [vmem:[#allocation4 + $0x308] sm:$0xff]
    %v266 = vld [vmem:[#allocation4 + $0x310] sm:$0xff]
    %v267 = vld [vmem:[#allocation4 + $0x318] sm:$0xff]
    %v268 = vld [vmem:[#allocation4 + $0x320] sm:$0xff]
    %v269 = vld [vmem:[#allocation4 + $0x328] sm:$0xff]
    %v270 = vld [vmem:[#allocation4 + $0x330] sm:$0xff]
    %v271 = vld [vmem:[#allocation4 + $0x338] sm:$0xff]
    %v272 = vld [vmem:[#allocation4 + $0x340] sm:$0xff]
    %v273 = vld [vmem:[#allocation4 + $0x348] sm:$0xff]
    %v274 = vld [vmem:[#allocation4 + $0x350] sm:$0xff]
    %v275 = vld [vmem:[#allocation4 + $0x358] sm:$0xff]
    %v276 = vld [vmem:[#allocation4 + $0x360] sm:$0xff]
    %v277 = vld [vmem:[#allocation4 + $0x368] sm:$0xff]
    %v278 = vld [vmem:[#allocation4 + $0x370] sm:$0xff]
    %v279 = vld [vmem:[#allocation4 + $0x378] sm:$0xff]
    %v280 = vld [vmem:[#allocation6] sm:$0xff]
    %v282 = vlaneseq
    %v283 = vshrl.u32 %v282, 7
    %v284 = vsub.s32 0, %v283
    %v285 = vrot.slane %v280, %v284
    %v286 = vlaneseq
    %v287 = vshrl.u32 %v286, 7
    %v288 = vsub.s32 1, %v287
    %v289 = vrot.slane %v280, %v288
    %v290 = vlaneseq
    %v291 = vshrl.u32 %v290, 7
    %v292 = vsub.s32 2, %v291
    %v293 = vrot.slane %v280, %v292
    %v294 = vlaneseq
    %v295 = vshrl.u32 %v294, 7
    %v296 = vsub.s32 3, %v295
    %v297 = vrot.slane %v280, %v296
    %v298 = vlaneseq
    %v299 = vshrl.u32 %v298, 7
    %v300 = vsub.s32 4, %v299
    %v301 = vrot.slane %v280, %v300
    %v302 = vlaneseq
    %v303 = vshrl.u32 %v302, 7
    %v304 = vsub.s32 5, %v303
    %v305 = vrot.slane %v280, %v304
    %v306 = vlaneseq
    %v307 = vshrl.u32 %v306, 7
    %v308 = vsub.s32 6, %v307
    %v309 = vrot.slane %v280, %v308
    %v310 = vlaneseq
    %v311 = vshrl.u32 %v310, 7
    %v312 = vsub.s32 7, %v311
    %v313 = vrot.slane %v280, %v312
    %v323 = vunpack.c.l.b16 %v167
    %v324 = vunpack.c.h.b16 %v167
    %v325 = vpack.c.b16 %v323, %v323
    %v326 = vpack.c.b16 %v324, %v324
    %v440 = vunpack.c.l.b16 %v168
    %v441 = vunpack.c.h.b16 %v168
    %v442 = vunpack.c.l.b16 %v169
    %v443 = vunpack.c.h.b16 %v169
    %v444 = vunpack.c.l.b16 %v170
    %v445 = vunpack.c.h.b16 %v170
    %v446 = vunpack.c.l.b16 %v171
    %v447 = vunpack.c.h.b16 %v171
    %v448 = vunpack.c.l.b16 %v172
    %v449 = vunpack.c.h.b16 %v172
    %v450 = vunpack.c.l.b16 %v173
    %v451 = vunpack.c.h.b16 %v173
    %v452 = vunpack.c.l.b16 %v174
    %v453 = vunpack.c.h.b16 %v174
    %v454 = vunpack.c.l.b16 %v175
    %v455 = vunpack.c.h.b16 %v175
    %v456 = vunpack.c.l.b16 %v176
    %v457 = vunpack.c.h.b16 %v176
    %v458 = vunpack.c.l.b16 %v177
    %v459 = vunpack.c.h.b16 %v177
    %v460 = vunpack.c.l.b16 %v178
    %v461 = vunpack.c.h.b16 %v178
    %v462 = vunpack.c.l.b16 %v179
    %v463 = vunpack.c.h.b16 %v179
    %v464 = vunpack.c.l.b16 %v180
    %v465 = vunpack.c.h.b16 %v180
    %v466 = vunpack.c.l.b16 %v181
    %v467 = vunpack.c.h.b16 %v181
    %v468 = vunpack.c.l.b16 %v182
    %v469 = vunpack.c.h.b16 %v182
    %v470 = vunpack.c.l.b16 %v183
    %v471 = vunpack.c.h.b16 %v183
    %v472 = vunpack.c.l.b16 %v184
    %v473 = vunpack.c.h.b16 %v184
    %v474 = vunpack.c.l.b16 %v185
    %v475 = vunpack.c.h.b16 %v185
    %v476 = vunpack.c.l.b16 %v186
    %v477 = vunpack.c.h.b16 %v186
    %v478 = vunpack.c.l.b16 %v187
    %v479 = vunpack.c.h.b16 %v187
    %v480 = vunpack.c.l.b16 %v188
    %v481 = vunpack.c.h.b16 %v188
    %v482 = vunpack.c.l.b16 %v189
    %v483 = vunpack.c.h.b16 %v189
    %v484 = vunpack.c.l.b16 %v190
    %v485 = vunpack.c.h.b16 %v190
    %v486 = vunpack.c.l.b16 %v191
    %v487 = vunpack.c.h.b16 %v191
    %v488 = vunpack.c.l.b16 %v192
    %v489 = vunpack.c.h.b16 %v192
    %v490 = vunpack.c.l.b16 %v193
    %v491 = vunpack.c.h.b16 %v193
    %v492 = vunpack.c.l.b16 %v194
    %v493 = vunpack.c.h.b16 %v194
    %v494 = vunpack.c.l.b16 %v195
    %v495 = vunpack.c.h.b16 %v195
    %v496 = vunpack.c.l.b16 %v196
    %v497 = vunpack.c.h.b16 %v196
    %v498 = vunpack.c.l.b16 %v197
    %v499 = vunpack.c.h.b16 %v197
    %v500 = vunpack.c.l.b16 %v198
    %v501 = vunpack.c.h.b16 %v198
    %v502 = vunpack.c.l.b16 %v199
    %v503 = vunpack.c.h.b16 %v199
    %v504 = vunpack.c.l.b16 %v200
    %v505 = vunpack.c.h.b16 %v200
    %v506 = vunpack.c.l.b16 %v201
    %v507 = vunpack.c.h.b16 %v201
    %v508 = vunpack.c.l.b16 %v202
    %v509 = vunpack.c.h.b16 %v202
    %v510 = vunpack.c.l.b16 %v203
    %v511 = vunpack.c.h.b16 %v203
    %v512 = vunpack.c.l.b16 %v204
    %v513 = vunpack.c.h.b16 %v204
    %v514 = vunpack.c.l.b16 %v205
    %v515 = vunpack.c.h.b16 %v205
    %v516 = vunpack.c.l.b16 %v206
    %v517 = vunpack.c.h.b16 %v206
    %v518 = vunpack.c.l.b16 %v207
    %v519 = vunpack.c.h.b16 %v207
    %v520 = vunpack.c.l.b16 %v208
    %v521 = vunpack.c.h.b16 %v208
    %v522 = vunpack.c.l.b16 %v209
    %v523 = vunpack.c.h.b16 %v209
    %v524 = vunpack.c.l.b16 %v210
    %v525 = vunpack.c.h.b16 %v210
    %v526 = vunpack.c.l.b16 %v211
    %v527 = vunpack.c.h.b16 %v211
    %v528 = vunpack.c.l.b16 %v212
    %v529 = vunpack.c.h.b16 %v212
    %v530 = vunpack.c.l.b16 %v213
    %v531 = vunpack.c.h.b16 %v213
    %v532 = vunpack.c.l.b16 %v214
    %v533 = vunpack.c.h.b16 %v214
    %v534 = vunpack.c.l.b16 %v215
    %v535 = vunpack.c.h.b16 %v215
    %v536 = vunpack.c.l.b16 %v216
    %v537 = vunpack.c.h.b16 %v216
    %v538 = vunpack.c.l.b16 %v217
    %v539 = vunpack.c.h.b16 %v217
    %v540 = vunpack.c.l.b16 %v218
    %v541 = vunpack.c.h.b16 %v218
    %v542 = vunpack.c.l.b16 %v219
    %v543 = vunpack.c.h.b16 %v219
    %v544 = vunpack.c.l.b16 %v220
    %v545 = vunpack.c.h.b16 %v220
    %v546 = vunpack.c.l.b16 %v221
    %v547 = vunpack.c.h.b16 %v221
    %v548 = vunpack.c.l.b16 %v222
    %v549 = vunpack.c.h.b16 %v222
    %v550 = vunpack.c.l.b16 %v223
    %v551 = vunpack.c.h.b16 %v223
    %v552 = vunpack.c.l.b16 %v224
    %v553 = vunpack.c.h.b16 %v224
    %v554 = vunpack.c.l.b16 %v225
    %v555 = vunpack.c.h.b16 %v225
    %v556 = vunpack.c.l.b16 %v226
    %v557 = vunpack.c.h.b16 %v226
    %v558 = vunpack.c.l.b16 %v227
    %v559 = vunpack.c.h.b16 %v227
    %v560 = vunpack.c.l.b16 %v228
    %v561 = vunpack.c.h.b16 %v228
    %v562 = vunpack.c.l.b16 %v229
    %v563 = vunpack.c.h.b16 %v229
    %v564 = vunpack.c.l.b16 %v230
    %v565 = vunpack.c.h.b16 %v230
    %v566 = vunpack.c.l.b16 %v231
    %v567 = vunpack.c.h.b16 %v231
    %v568 = vunpack.c.l.b16 %v232
    %v569 = vunpack.c.h.b16 %v232
    %v570 = vunpack.c.l.b16 %v233
    %v571 = vunpack.c.h.b16 %v233
    %v572 = vunpack.c.l.b16 %v234
    %v573 = vunpack.c.h.b16 %v234
    %v574 = vunpack.c.l.b16 %v235
    %v575 = vunpack.c.h.b16 %v235
    %v576 = vunpack.c.l.b16 %v236
    %v577 = vunpack.c.h.b16 %v236
    %v578 = vunpack.c.l.b16 %v237
    %v579 = vunpack.c.h.b16 %v237
    %v580 = vunpack.c.l.b16 %v238
    %v581 = vunpack.c.h.b16 %v238
    %v582 = vunpack.c.l.b16 %v239
    %v583 = vunpack.c.h.b16 %v239
    %v584 = vunpack.c.l.b16 %v240
    %v585 = vunpack.c.h.b16 %v240
    %v586 = vunpack.c.l.b16 %v241
    %v587 = vunpack.c.h.b16 %v241
    %v588 = vunpack.c.l.b16 %v242
    %v589 = vunpack.c.h.b16 %v242
    %v590 = vunpack.c.l.b16 %v243
    %v591 = vunpack.c.h.b16 %v243
    %v592 = vunpack.c.l.b16 %v244
    %v593 = vunpack.c.h.b16 %v244
    %v594 = vunpack.c.l.b16 %v245
    %v595 = vunpack.c.h.b16 %v245
    %v596 = vunpack.c.l.b16 %v246
    %v597 = vunpack.c.h.b16 %v246
    %v598 = vunpack.c.l.b16 %v247
    %v599 = vunpack.c.h.b16 %v247
    %v600 = vunpack.c.l.b16 %v248
    %v601 = vunpack.c.h.b16 %v248
    %v602 = vunpack.c.l.b16 %v249
    %v603 = vunpack.c.h.b16 %v249
    %v604 = vunpack.c.l.b16 %v250
    %v605 = vunpack.c.h.b16 %v250
    %v606 = vunpack.c.l.b16 %v251
    %v607 = vunpack.c.h.b16 %v251
    %v608 = vunpack.c.l.b16 %v252
    %v609 = vunpack.c.h.b16 %v252
    %v610 = vunpack.c.l.b16 %v253
    %v611 = vunpack.c.h.b16 %v253
    %v612 = vunpack.c.l.b16 %v254
    %v613 = vunpack.c.h.b16 %v254
    %v614 = vunpack.c.l.b16 %v255
    %v615 = vunpack.c.h.b16 %v255
    %v616 = vunpack.c.l.b16 %v256
    %v617 = vunpack.c.h.b16 %v256
    %v618 = vunpack.c.l.b16 %v257
    %v619 = vunpack.c.h.b16 %v257
    %v620 = vunpack.c.l.b16 %v258
    %v621 = vunpack.c.h.b16 %v258
    %v622 = vunpack.c.l.b16 %v259
    %v623 = vunpack.c.h.b16 %v259
    %v624 = vunpack.c.l.b16 %v260
    %v625 = vunpack.c.h.b16 %v260
    %v626 = vunpack.c.l.b16 %v261
    %v627 = vunpack.c.h.b16 %v261
    %v628 = vunpack.c.l.b16 %v262
    %v629 = vunpack.c.h.b16 %v262
    %v630 = vunpack.c.l.b16 %v263
    %v631 = vunpack.c.h.b16 %v263
    %v632 = vunpack.c.l.b16 %v264
    %v633 = vunpack.c.h.b16 %v264
    %v634 = vunpack.c.l.b16 %v265
    %v635 = vunpack.c.h.b16 %v265
    %v636 = vunpack.c.l.b16 %v266
    %v637 = vunpack.c.h.b16 %v266
    %v638 = vunpack.c.l.b16 %v267
    %v639 = vunpack.c.h.b16 %v267
    %v640 = vunpack.c.l.b16 %v268
    %v641 = vunpack.c.h.b16 %v268
    %v642 = vunpack.c.l.b16 %v269
    %v643 = vunpack.c.h.b16 %v269
    %v644 = vunpack.c.l.b16 %v270
    %v645 = vunpack.c.h.b16 %v270
    %v646 = vunpack.c.l.b16 %v271
    %v647 = vunpack.c.h.b16 %v271
    %v648 = vunpack.c.l.b16 %v272
    %v649 = vunpack.c.h.b16 %v272
    %v650 = vunpack.c.l.b16 %v273
    %v651 = vunpack.c.h.b16 %v273
    %v652 = vunpack.c.l.b16 %v274
    %v653 = vunpack.c.h.b16 %v274
    %v654 = vunpack.c.l.b16 %v275
    %v655 = vunpack.c.h.b16 %v275
    %v656 = vunpack.c.l.b16 %v276
    %v657 = vunpack.c.h.b16 %v276
    %v658 = vunpack.c.l.b16 %v277
    %v659 = vunpack.c.h.b16 %v277
    %v660 = vunpack.c.l.b16 %v278
    %v661 = vunpack.c.h.b16 %v278
    %v662 = vunpack.c.l.b16 %v279
    %v663 = vunpack.c.h.b16 %v279
    %v664 = vpack.c.b16 %v448, %v440
    %v665 = vpack.c.b16 %v449, %v441
    %v666 = vpack.c.b16 %v450, %v442
    %v667 = vpack.c.b16 %v451, %v443
    %v668 = vpack.c.b16 %v452, %v444
    %v669 = vpack.c.b16 %v453, %v445
    %v670 = vpack.c.b16 %v454, %v446
    %v671 = vpack.c.b16 %v455, %v447
    %v672 = vpack.c.b16 %v464, %v456
    %v673 = vpack.c.b16 %v465, %v457
    %v674 = vpack.c.b16 %v466, %v458
    %v675 = vpack.c.b16 %v467, %v459
    %v676 = vpack.c.b16 %v468, %v460
    %v677 = vpack.c.b16 %v469, %v461
    %v678 = vpack.c.b16 %v470, %v462
    %v679 = vpack.c.b16 %v471, %v463
    %v680 = vpack.c.b16 %v480, %v472
    %v681 = vpack.c.b16 %v481, %v473
    %v682 = vpack.c.b16 %v482, %v474
    %v683 = vpack.c.b16 %v483, %v475
    %v684 = vpack.c.b16 %v484, %v476
    %v685 = vpack.c.b16 %v485, %v477
    %v686 = vpack.c.b16 %v486, %v478
    %v687 = vpack.c.b16 %v487, %v479
    %v688 = vpack.c.b16 %v496, %v488
    %v689 = vpack.c.b16 %v497, %v489
    %v690 = vpack.c.b16 %v498, %v490
    %v691 = vpack.c.b16 %v499, %v491
    %v692 = vpack.c.b16 %v500, %v492
    %v693 = vpack.c.b16 %v501, %v493
    %v694 = vpack.c.b16 %v502, %v494
    %v695 = vpack.c.b16 %v503, %v495
    %v696 = vpack.c.b16 %v512, %v504
    %v697 = vpack.c.b16 %v513, %v505
    %v698 = vpack.c.b16 %v514, %v506
    %v699 = vpack.c.b16 %v515, %v507
    %v700 = vpack.c.b16 %v516, %v508
    %v701 = vpack.c.b16 %v517, %v509
    %v702 = vpack.c.b16 %v518, %v510
    %v703 = vpack.c.b16 %v519, %v511
    %v704 = vpack.c.b16 %v528, %v520
    %v705 = vpack.c.b16 %v529, %v521
    %v706 = vpack.c.b16 %v530, %v522
    %v707 = vpack.c.b16 %v531, %v523
    %v708 = vpack.c.b16 %v532, %v524
    %v709 = vpack.c.b16 %v533, %v525
    %v710 = vpack.c.b16 %v534, %v526
    %v711 = vpack.c.b16 %v535, %v527
    %v712 = vpack.c.b16 %v544, %v536
    %v713 = vpack.c.b16 %v545, %v537
    %v714 = vpack.c.b16 %v546, %v538
    %v715 = vpack.c.b16 %v547, %v539
    %v716 = vpack.c.b16 %v548, %v540
    %v717 = vpack.c.b16 %v549, %v541
    %v718 = vpack.c.b16 %v550, %v542
    %v719 = vpack.c.b16 %v551, %v543
    %v720 = vpack.c.b16 %v560, %v552
    %v721 = vpack.c.b16 %v561, %v553
    %v722 = vpack.c.b16 %v562, %v554
    %v723 = vpack.c.b16 %v563, %v555
    %v724 = vpack.c.b16 %v564, %v556
    %v725 = vpack.c.b16 %v565, %v557
    %v726 = vpack.c.b16 %v566, %v558
    %v727 = vpack.c.b16 %v567, %v559
    %v728 = vpack.c.b16 %v576, %v568
    %v729 = vpack.c.b16 %v577, %v569
    %v730 = vpack.c.b16 %v578, %v570
    %v731 = vpack.c.b16 %v579, %v571
    %v732 = vpack.c.b16 %v580, %v572
    %v733 = vpack.c.b16 %v581, %v573
    %v734 = vpack.c.b16 %v582, %v574
    %v735 = vpack.c.b16 %v583, %v575
    %v736 = vpack.c.b16 %v592, %v584
    %v737 = vpack.c.b16 %v593, %v585
    %v738 = vpack.c.b16 %v594, %v586
    %v739 = vpack.c.b16 %v595, %v587
    %v740 = vpack.c.b16 %v596, %v588
    %v741 = vpack.c.b16 %v597, %v589
    %v742 = vpack.c.b16 %v598, %v590
    %v743 = vpack.c.b16 %v599, %v591
    %v744 = vpack.c.b16 %v608, %v600
    %v745 = vpack.c.b16 %v609, %v601
    %v746 = vpack.c.b16 %v610, %v602
    %v747 = vpack.c.b16 %v611, %v603
    %v748 = vpack.c.b16 %v612, %v604
    %v749 = vpack.c.b16 %v613, %v605
    %v750 = vpack.c.b16 %v614, %v606
    %v751 = vpack.c.b16 %v615, %v607
    %v752 = vpack.c.b16 %v624, %v616
    %v753 = vpack.c.b16 %v625, %v617
    %v754 = vpack.c.b16 %v626, %v618
    %v755 = vpack.c.b16 %v627, %v619
    %v756 = vpack.c.b16 %v628, %v620
    %v757 = vpack.c.b16 %v629, %v621
    %v758 = vpack.c.b16 %v630, %v622
    %v759 = vpack.c.b16 %v631, %v623
    %v760 = vpack.c.b16 %v640, %v632
    %v761 = vpack.c.b16 %v641, %v633
    %v762 = vpack.c.b16 %v642, %v634
    %v763 = vpack.c.b16 %v643, %v635
    %v764 = vpack.c.b16 %v644, %v636
    %v765 = vpack.c.b16 %v645, %v637
    %v766 = vpack.c.b16 %v646, %v638
    %v767 = vpack.c.b16 %v647, %v639
    %v768 = vpack.c.b16 %v656, %v648
    %v769 = vpack.c.b16 %v657, %v649
    %v770 = vpack.c.b16 %v658, %v650
    %v771 = vpack.c.b16 %v659, %v651
    %v772 = vpack.c.b16 %v660, %v652
    %v773 = vpack.c.b16 %v661, %v653
    %v774 = vpack.c.b16 %v662, %v654
    %v775 = vpack.c.b16 %v663, %v655
    %vm888 = vcmask 785408
    %v890 = vsel %vm888, %v326, 0
    %892 = vmatprep.subr.bf16.mxu0 %v665
    %893 = vmatpush1.bf16.msra.mxu0 %v664
    %894 = vmatprep.subr.bf16.mxu0 %v673
    %895 = vmatpush1.bf16.msra.mxu0 %v672
    %896 = vmatprep.subr.bf16.mxu0 %v681
    %897 = vmatpush1.bf16.msra.mxu0 %v680
    %898 = vmatprep.subr.bf16.mxu0 %v689
    %899 = vmatpush1.bf16.msra.mxu0 %v688
    %900 = vmatprep.subr.bf16.mxu0 %v697
    %901 = vmatpush1.bf16.msra.mxu0 %v696
    %902 = vmatprep.subr.bf16.mxu0 %v705
    %903 = vmatpush1.bf16.msra.mxu0 %v704
    %904 = vmatprep.subr.bf16.mxu0 %v713
    %905 = vmatpush1.bf16.msra.mxu0 %v712
    %906 = vmatprep.subr.bf16.mxu0 %v721
    %907 = vmatpush1.bf16.msra.mxu0 %v720
    %908 = vmatprep.subr.bf16.mxu0 %v729
    %909 = vmatpush1.bf16.msra.mxu0 %v728
    %910 = vmatprep.subr.bf16.mxu0 %v737
    %911 = vmatpush1.bf16.msra.mxu0 %v736
    %912 = vmatprep.subr.bf16.mxu0 %v745
    %913 = vmatpush1.bf16.msra.mxu0 %v744
    %914 = vmatprep.subr.bf16.mxu0 %v753
    %915 = vmatpush1.bf16.msra.mxu0 %v752
    %916 = vmatprep.subr.bf16.mxu0 %v761
    %917 = vmatpush1.bf16.msra.mxu0 %v760
    %918 = vmatprep.subr.bf16.mxu0 %v769
    %919 = vmatpush1.bf16.msra.mxu0 %v768
    %920 = vmatprep.subr.bf16.mxu0 0
    %921 = vmatpush1.bf16.msra.mxu0 0
    %922 = vmatprep.subr.bf16.mxu0 0
    %923 = vmatpush1.bf16.msra.mxu0 0
    %924 = vmatprep.mubr.bf16.mxu0 %v890
    %925 = vmatmul.mubr.bf16.gmra.mrb[0].mxu0 %v325
    %v926 = vpop.f32.mrb[0].mxu0
    %v927 = vadd.f32 %v285, %v926
    %v928 = vpop.f32.mrb[0].mxu0
    %v929 = vadd.f32 %v289, %v928
    %v930 = vpop.f32.mrb[0].mxu0
    %v931 = vpop.f32.mrb[0].mxu0
    %932 = vdwg.mxu0
    %933 = vmatprep.subr.bf16.mxu0 %v667
    %934 = vmatpush1.bf16.msra.mxu0 %v666
    %935 = vmatprep.subr.bf16.mxu0 %v675
    %936 = vmatpush1.bf16.msra.mxu0 %v674
    %937 = vmatprep.subr.bf16.mxu0 %v683
    %938 = vmatpush1.bf16.msra.mxu0 %v682
    %939 = vmatprep.subr.bf16.mxu0 %v691
    %940 = vmatpush1.bf16.msra.mxu0 %v690
    %941 = vmatprep.subr.bf16.mxu0 %v699
    %942 = vmatpush1.bf16.msra.mxu0 %v698
    %943 = vmatprep.subr.bf16.mxu0 %v707
    %944 = vmatpush1.bf16.msra.mxu0 %v706
    %945 = vmatprep.subr.bf16.mxu0 %v715
    %946 = vmatpush1.bf16.msra.mxu0 %v714
    %947 = vmatprep.subr.bf16.mxu0 %v723
    %948 = vmatpush1.bf16.msra.mxu0 %v722
    %949 = vmatprep.subr.bf16.mxu0 %v731
    %950 = vmatpush1.bf16.msra.mxu0 %v730
    %951 = vmatprep.subr.bf16.mxu0 %v739
    %952 = vmatpush1.bf16.msra.mxu0 %v738
    %953 = vmatprep.subr.bf16.mxu0 %v747
    %954 = vmatpush1.bf16.msra.mxu0 %v746
    %955 = vmatprep.subr.bf16.mxu0 %v755
    %956 = vmatpush1.bf16.msra.mxu0 %v754
    %957 = vmatprep.subr.bf16.mxu0 %v763
    %958 = vmatpush1.bf16.msra.mxu0 %v762
    %959 = vmatprep.subr.bf16.mxu0 %v771
    %960 = vmatpush1.bf16.msra.mxu0 %v770
    %961 = vmatprep.subr.bf16.mxu0 0
    %962 = vmatpush1.bf16.msra.mxu0 0
    %963 = vmatprep.subr.bf16.mxu0 0
    %964 = vmatpush1.bf16.msra.mxu0 0
    %965 = vmatprep.mubr.bf16.mxu0 %v890
    %966 = vmatmul.mubr.bf16.gmra.mrb[0].mxu0 %v325
    %v967 = vpop.f32.mrb[0].mxu0
    %v968 = vadd.f32 %v293, %v967
    %v969 = vpop.f32.mrb[0].mxu0
    %v970 = vadd.f32 %v297, %v969
    %v971 = vpop.f32.mrb[0].mxu0
    %v972 = vpop.f32.mrb[0].mxu0
    %973 = vdwg.mxu0
    %974 = vmatprep.subr.bf16.mxu0 %v669
    %975 = vmatpush1.bf16.msra.mxu0 %v668
    %976 = vmatprep.subr.bf16.mxu0 %v677
    %977 = vmatpush1.bf16.msra.mxu0 %v676
    %978 = vmatprep.subr.bf16.mxu0 %v685
    %979 = vmatpush1.bf16.msra.mxu0 %v684
    %980 = vmatprep.subr.bf16.mxu0 %v693
    %981 = vmatpush1.bf16.msra.mxu0 %v692
    %982 = vmatprep.subr.bf16.mxu0 %v701
    %983 = vmatpush1.bf16.msra.mxu0 %v700
    %984 = vmatprep.subr.bf16.mxu0 %v709
    %985 = vmatpush1.bf16.msra.mxu0 %v708
    %986 = vmatprep.subr.bf16.mxu0 %v717
    %987 = vmatpush1.bf16.msra.mxu0 %v716
    %988 = vmatprep.subr.bf16.mxu0 %v725
    %989 = vmatpush1.bf16.msra.mxu0 %v724
    %990 = vmatprep.subr.bf16.mxu0 %v733
    %991 = vmatpush1.bf16.msra.mxu0 %v732
    %992 = vmatprep.subr.bf16.mxu0 %v741
    %993 = vmatpush1.bf16.msra.mxu0 %v740
    %994 = vmatprep.subr.bf16.mxu0 %v749
    %995 = vmatpush1.bf16.msra.mxu0 %v748
    %996 = vmatprep.subr.bf16.mxu0 %v757
    %997 = vmatpush1.bf16.msra.mxu0 %v756
    %998 = vmatprep.subr.bf16.mxu0 %v765
    %999 = vmatpush1.bf16.msra.mxu0 %v764
    %1000 = vmatprep.subr.bf16.mxu0 %v773
    %1001 = vmatpush1.bf16.msra.mxu0 %v772
    %1002 = vmatprep.subr.bf16.mxu0 0
    %1003 = vmatpush1.bf16.msra.mxu0 0
    %1004 = vmatprep.subr.bf16.mxu0 0
    %1005 = vmatpush1.bf16.msra.mxu0 0
    %1006 = vmatprep.mubr.bf16.mxu0 %v890
    %1007 = vmatmul.mubr.bf16.gmra.mrb[0].mxu0 %v325
    %v1008 = vpop.f32.mrb[0].mxu0
    %v1009 = vadd.f32 %v301, %v1008
    %v1010 = vpop.f32.mrb[0].mxu0
    %v1011 = vadd.f32 %v305, %v1010
    %v1012 = vpop.f32.mrb[0].mxu0
    %v1013 = vpop.f32.mrb[0].mxu0
    %1014 = vdwg.mxu0
    %1015 = vmatprep.subr.bf16.mxu0 %v671
    %1016 = vmatpush1.bf16.msra.mxu0 %v670
    %1017 = vmatprep.subr.bf16.mxu0 %v679
    %1018 = vmatpush1.bf16.msra.mxu0 %v678
    %1019 = vmatprep.subr.bf16.mxu0 %v687
    %1020 = vmatpush1.bf16.msra.mxu0 %v686
    %1021 = vmatprep.subr.bf16.mxu0 %v695
    %1022 = vmatpush1.bf16.msra.mxu0 %v694
    %1023 = vmatprep.subr.bf16.mxu0 %v703
    %1024 = vmatpush1.bf16.msra.mxu0 %v702
    %1025 = vmatprep.subr.bf16.mxu0 %v711
    %1026 = vmatpush1.bf16.msra.mxu0 %v710
    %1027 = vmatprep.subr.bf16.mxu0 %v719
    %1028 = vmatpush1.bf16.msra.mxu0 %v718
    %1029 = vmatprep.subr.bf16.mxu0 %v727
    %1030 = vmatpush1.bf16.msra.mxu0 %v726
    %1031 = vmatprep.subr.bf16.mxu0 %v735
    %1032 = vmatpush1.bf16.msra.mxu0 %v734
    %1033 = vmatprep.subr.bf16.mxu0 %v743
    %1034 = vmatpush1.bf16.msra.mxu0 %v742
    %1035 = vmatprep.subr.bf16.mxu0 %v751
    %1036 = vmatpush1.bf16.msra.mxu0 %v750
    %1037 = vmatprep.subr.bf16.mxu0 %v759
    %1038 = vmatpush1.bf16.msra.mxu0 %v758
    %1039 = vmatprep.subr.bf16.mxu0 %v767
    %1040 = vmatpush1.bf16.msra.mxu0 %v766
    %1041 = vmatprep.subr.bf16.mxu0 %v775
    %1042 = vmatpush1.bf16.msra.mxu0 %v774
    %1043 = vmatprep.subr.bf16.mxu0 0
    %1044 = vmatpush1.bf16.msra.mxu0 0
    %1045 = vmatprep.subr.bf16.mxu0 0
    %1046 = vmatpush1.bf16.msra.mxu0 0
    %1047 = vmatprep.mubr.bf16.mxu0 %v890
    %1048 = vmatmul.mubr.bf16.gmra.mrb[0].mxu0 %v325
    %v1049 = vpop.f32.mrb[0].mxu0
    %v1050 = vadd.f32 %v309, %v1049
    %v1051 = vpop.f32.mrb[0].mxu0
    %v1052 = vadd.f32 %v313, %v1051
    %v1053 = vpop.f32.mrb[0].mxu0
    %v1054 = vpop.f32.mrb[0].mxu0
    %1055 = vdwg.mxu0
    %v1056 = vmax.f32 %v927, 0.0
    %v1057 = vmax.f32 %v929, 0.0
    %v1058 = vmax.f32 %v968, 0.0
    %v1059 = vmax.f32 %v970, 0.0
    %v1060 = vmax.f32 %v1009, 0.0
    %v1061 = vmax.f32 %v1011, 0.0
    %v1062 = vmax.f32 %v1050, 0.0
    %v1063 = vmax.f32 %v1052, 0.0
    %v1064 = vpack.c.bf16 %v1056, %v1056
    %v1065 = vpack.c.bf16 %v1057, %v1057
    %v1066 = vpack.c.bf16 %v1058, %v1058
    %v1067 = vpack.c.bf16 %v1059, %v1059
    %v1068 = vpack.c.bf16 %v1060, %v1060
    %v1069 = vpack.c.bf16 %v1061, %v1061
    %v1070 = vpack.c.bf16 %v1062, %v1062
    %v1071 = vpack.c.bf16 %v1063, %v1063
    %v1072 = vld [vmem:[#allocation7] sm:$0xff]
    %v1073 = vld [vmem:[#allocation7 + $0x8] sm:$0xff]
    %v1074 = vld [vmem:[#allocation7 + $0x10] sm:$0xff]
    %v1075 = vld [vmem:[#allocation7 + $0x18] sm:$0xff]
    %v1076 = vld [vmem:[#allocation7 + $0x20] sm:$0xff]
    %v1077 = vld [vmem:[#allocation7 + $0x28] sm:$0xff]
    %v1078 = vld [vmem:[#allocation7 + $0x30] sm:$0xff]
    %v1079 = vld [vmem:[#allocation7 + $0x38] sm:$0xff]
    %v1080 = vld [vmem:[#allocation7 + $0x40] sm:$0xff]
    %v1081 = vld [vmem:[#allocation7 + $0x48] sm:$0xff]
    %v1082 = vld [vmem:[#allocation7 + $0x50] sm:$0xff]
    %v1083 = vld [vmem:[#allocation7 + $0x58] sm:$0xff]
    %v1084 = vld [vmem:[#allocation7 + $0x60] sm:$0xff]
    %v1085 = vld [vmem:[#allocation7 + $0x68] sm:$0xff]
    %v1086 = vld [vmem:[#allocation7 + $0x70] sm:$0xff]
    %v1087 = vld [vmem:[#allocation7 + $0x78] sm:$0xff]
    %v1088 = vld [vmem:[#allocation7 + $0x80] sm:$0xff]
    %v1089 = vld [vmem:[#allocation7 + $0x88] sm:$0xff]
    %v1090 = vld [vmem:[#allocation7 + $0x90] sm:$0xff]
    %v1091 = vld [vmem:[#allocation7 + $0x98] sm:$0xff]
    %v1092 = vld [vmem:[#allocation7 + $0xa0] sm:$0xff]
    %v1093 = vld [vmem:[#allocation7 + $0xa8] sm:$0xff]
    %v1094 = vld [vmem:[#allocation7 + $0xb0] sm:$0xff]
    %v1095 = vld [vmem:[#allocation7 + $0xb8] sm:$0xff]
    %v1096 = vld [vmem:[#allocation7 + $0xc0] sm:$0xff]
    %v1097 = vld [vmem:[#allocation7 + $0xc8] sm:$0xff]
    %v1098 = vld [vmem:[#allocation7 + $0xd0] sm:$0xff]
    %v1099 = vld [vmem:[#allocation7 + $0xd8] sm:$0xff]
    %v1100 = vld [vmem:[#allocation7 + $0xe0] sm:$0xff]
    %v1101 = vld [vmem:[#allocation7 + $0xe8] sm:$0xff]
    %v1102 = vld [vmem:[#allocation7 + $0xf0] sm:$0xff]
    %v1103 = vld [vmem:[#allocation7 + $0xf8] sm:$0xff]
    %v1104 = vld [vmem:[#allocation7 + $0x100] sm:$0xff]
    %v1105 = vld [vmem:[#allocation7 + $0x108] sm:$0xff]
    %v1106 = vld [vmem:[#allocation7 + $0x110] sm:$0xff]
    %v1107 = vld [vmem:[#allocation7 + $0x118] sm:$0xff]
    %v1108 = vld [vmem:[#allocation7 + $0x120] sm:$0xff]
    %v1109 = vld [vmem:[#allocation7 + $0x128] sm:$0xff]
    %v1110 = vld [vmem:[#allocation7 + $0x130] sm:$0xff]
    %v1111 = vld [vmem:[#allocation7 + $0x138] sm:$0xff]
    %v1112 = vld [vmem:[#allocation7 + $0x140] sm:$0xff]
    %v1113 = vld [vmem:[#allocation7 + $0x148] sm:$0xff]
    %v1114 = vld [vmem:[#allocation7 + $0x150] sm:$0xff]
    %v1115 = vld [vmem:[#allocation7 + $0x158] sm:$0xff]
    %v1116 = vld [vmem:[#allocation7 + $0x160] sm:$0xff]
    %v1117 = vld [vmem:[#allocation7 + $0x168] sm:$0xff]
    %v1118 = vld [vmem:[#allocation7 + $0x170] sm:$0xff]
    %v1119 = vld [vmem:[#allocation7 + $0x178] sm:$0xff]
    %v1120 = vld [vmem:[#allocation7 + $0x180] sm:$0xff]
    %v1121 = vld [vmem:[#allocation7 + $0x188] sm:$0xff]
    %v1122 = vld [vmem:[#allocation7 + $0x190] sm:$0xff]
    %v1123 = vld [vmem:[#allocation7 + $0x198] sm:$0xff]
    %v1124 = vld [vmem:[#allocation7 + $0x1a0] sm:$0xff]
    %v1125 = vld [vmem:[#allocation7 + $0x1a8] sm:$0xff]
    %v1126 = vld [vmem:[#allocation7 + $0x1b0] sm:$0xff]
    %v1127 = vld [vmem:[#allocation7 + $0x1b8] sm:$0xff]
    %v1128 = vld [vmem:[#allocation7 + $0x1c0] sm:$0xff]
    %v1129 = vld [vmem:[#allocation7 + $0x1c8] sm:$0xff]
    %v1130 = vld [vmem:[#allocation7 + $0x1d0] sm:$0xff]
    %v1131 = vld [vmem:[#allocation7 + $0x1d8] sm:$0xff]
    %v1132 = vld [vmem:[#allocation7 + $0x1e0] sm:$0xff]
    %v1133 = vld [vmem:[#allocation7 + $0x1e8] sm:$0xff]
    %v1134 = vld [vmem:[#allocation7 + $0x1f0] sm:$0xff]
    %v1135 = vld [vmem:[#allocation7 + $0x1f8] sm:$0xff]
    %v1136 = vld [vmem:[#allocation7 + $0x200] sm:$0xff]
    %v1137 = vld [vmem:[#allocation7 + $0x208] sm:$0xff]
    %v1138 = vld [vmem:[#allocation7 + $0x210] sm:$0xff]
    %v1139 = vld [vmem:[#allocation7 + $0x218] sm:$0xff]
    %v1140 = vld [vmem:[#allocation7 + $0x220] sm:$0xff]
    %v1141 = vld [vmem:[#allocation7 + $0x228] sm:$0xff]
    %v1142 = vld [vmem:[#allocation7 + $0x230] sm:$0xff]
    %v1143 = vld [vmem:[#allocation7 + $0x238] sm:$0xff]
    %v1144 = vld [vmem:[#allocation7 + $0x240] sm:$0xff]
    %v1145 = vld [vmem:[#allocation7 + $0x248] sm:$0xff]
    %v1146 = vld [vmem:[#allocation7 + $0x250] sm:$0xff]
    %v1147 = vld [vmem:[#allocation7 + $0x258] sm:$0xff]
    %v1148 = vld [vmem:[#allocation7 + $0x260] sm:$0xff]
    %v1149 = vld [vmem:[#allocation7 + $0x268] sm:$0xff]
    %v1150 = vld [vmem:[#allocation7 + $0x270] sm:$0xff]
    %v1151 = vld [vmem:[#allocation7 + $0x278] sm:$0xff]
    %v1152 = vld [vmem:[#allocation7 + $0x280] sm:$0xff]
    %v1153 = vld [vmem:[#allocation7 + $0x288] sm:$0xff]
    %v1154 = vld [vmem:[#allocation7 + $0x290] sm:$0xff]
    %v1155 = vld [vmem:[#allocation7 + $0x298] sm:$0xff]
    %v1156 = vld [vmem:[#allocation7 + $0x2a0] sm:$0xff]
    %v1157 = vld [vmem:[#allocation7 + $0x2a8] sm:$0xff]
    %v1158 = vld [vmem:[#allocation7 + $0x2b0] sm:$0xff]
    %v1159 = vld [vmem:[#allocation7 + $0x2b8] sm:$0xff]
    %v1160 = vld [vmem:[#allocation7 + $0x2c0] sm:$0xff]
    %v1161 = vld [vmem:[#allocation7 + $0x2c8] sm:$0xff]
    %v1162 = vld [vmem:[#allocation7 + $0x2d0] sm:$0xff]
    %v1163 = vld [vmem:[#allocation7 + $0x2d8] sm:$0xff]
    %v1164 = vld [vmem:[#allocation7 + $0x2e0] sm:$0xff]
    %v1165 = vld [vmem:[#allocation7 + $0x2e8] sm:$0xff]
    %v1166 = vld [vmem:[#allocation7 + $0x2f0] sm:$0xff]
    %v1167 = vld [vmem:[#allocation7 + $0x2f8] sm:$0xff]
    %v1168 = vld [vmem:[#allocation7 + $0x300] sm:$0xff]
    %v1169 = vld [vmem:[#allocation7 + $0x308] sm:$0xff]
    %v1170 = vld [vmem:[#allocation7 + $0x310] sm:$0xff]
    %v1171 = vld [vmem:[#allocation7 + $0x318] sm:$0xff]
    %v1172 = vld [vmem:[#allocation7 + $0x320] sm:$0xff]
    %v1173 = vld [vmem:[#allocation7 + $0x328] sm:$0xff]
    %v1174 = vld [vmem:[#allocation7 + $0x330] sm:$0xff]
    %v1175 = vld [vmem:[#allocation7 + $0x338] sm:$0xff]
    %v1176 = vld [vmem:[#allocation7 + $0x340] sm:$0xff]
    %v1177 = vld [vmem:[#allocation7 + $0x348] sm:$0xff]
    %v1178 = vld [vmem:[#allocation7 + $0x350] sm:$0xff]
    %v1179 = vld [vmem:[#allocation7 + $0x358] sm:$0xff]
    %v1180 = vld [vmem:[#allocation7 + $0x360] sm:$0xff]
    %v1181 = vld [vmem:[#allocation7 + $0x368] sm:$0xff]
    %v1182 = vld [vmem:[#allocation7 + $0x370] sm:$0xff]
    %v1183 = vld [vmem:[#allocation7 + $0x378] sm:$0xff]
    %v1184 = vld [vmem:[#allocation7 + $0x380] sm:$0xff]
    %v1185 = vld [vmem:[#allocation7 + $0x388] sm:$0xff]
    %v1186 = vld [vmem:[#allocation7 + $0x390] sm:$0xff]
    %v1187 = vld [vmem:[#allocation7 + $0x398] sm:$0xff]
    %v1188 = vld [vmem:[#allocation7 + $0x3a0] sm:$0xff]
    %v1189 = vld [vmem:[#allocation7 + $0x3a8] sm:$0xff]
    %v1190 = vld [vmem:[#allocation7 + $0x3b0] sm:$0xff]
    %v1191 = vld [vmem:[#allocation7 + $0x3b8] sm:$0xff]
    %v1192 = vld [vmem:[#allocation7 + $0x3c0] sm:$0xff]
    %v1193 = vld [vmem:[#allocation7 + $0x3c8] sm:$0xff]
    %v1194 = vld [vmem:[#allocation7 + $0x3d0] sm:$0xff]
    %v1195 = vld [vmem:[#allocation7 + $0x3d8] sm:$0xff]
    %v1196 = vld [vmem:[#allocation7 + $0x3e0] sm:$0xff]
    %v1197 = vld [vmem:[#allocation7 + $0x3e8] sm:$0xff]
    %v1198 = vld [vmem:[#allocation7 + $0x3f0] sm:$0xff]
    %v1199 = vld [vmem:[#allocation7 + $0x3f8] sm:$0xff]
    %v1200 = vld [vmem:[#allocation7 + $0x400] sm:$0xff]
    %v1201 = vld [vmem:[#allocation7 + $0x408] sm:$0xff]
    %v1202 = vld [vmem:[#allocation7 + $0x410] sm:$0xff]
    %v1203 = vld [vmem:[#allocation7 + $0x418] sm:$0xff]
    %v1204 = vld [vmem:[#allocation7 + $0x420] sm:$0xff]
    %v1205 = vld [vmem:[#allocation7 + $0x428] sm:$0xff]
    %v1206 = vld [vmem:[#allocation7 + $0x430] sm:$0xff]
    %v1207 = vld [vmem:[#allocation7 + $0x438] sm:$0xff]
    %v1208 = vld [vmem:[#allocation7 + $0x440] sm:$0xff]
    %v1209 = vld [vmem:[#allocation7 + $0x448] sm:$0xff]
    %v1210 = vld [vmem:[#allocation7 + $0x450] sm:$0xff]
    %v1211 = vld [vmem:[#allocation7 + $0x458] sm:$0xff]
    %v1212 = vld [vmem:[#allocation7 + $0x460] sm:$0xff]
    %v1213 = vld [vmem:[#allocation7 + $0x468] sm:$0xff]
    %v1214 = vld [vmem:[#allocation7 + $0x470] sm:$0xff]
    %v1215 = vld [vmem:[#allocation7 + $0x478] sm:$0xff]
    %v1216 = vld [vmem:[#allocation7 + $0x480] sm:$0xff]
    %v1217 = vld [vmem:[#allocation7 + $0x488] sm:$0xff]
    %v1218 = vld [vmem:[#allocation7 + $0x490] sm:$0xff]
    %v1219 = vld [vmem:[#allocation7 + $0x498] sm:$0xff]
    %v1220 = vld [vmem:[#allocation7 + $0x4a0] sm:$0xff]
    %v1221 = vld [vmem:[#allocation7 + $0x4a8] sm:$0xff]
    %v1222 = vld [vmem:[#allocation7 + $0x4b0] sm:$0xff]
    %v1223 = vld [vmem:[#allocation7 + $0x4b8] sm:$0xff]
    %v1224 = vld [vmem:[#allocation7 + $0x4c0] sm:$0xff]
    %v1225 = vld [vmem:[#allocation7 + $0x4c8] sm:$0xff]
    %v1226 = vld [vmem:[#allocation7 + $0x4d0] sm:$0xff]
    %v1227 = vld [vmem:[#allocation7 + $0x4d8] sm:$0xff]
    %v1228 = vld [vmem:[#allocation7 + $0x4e0] sm:$0xff]
    %v1229 = vld [vmem:[#allocation7 + $0x4e8] sm:$0xff]
    %v1230 = vld [vmem:[#allocation7 + $0x4f0] sm:$0xff]
    %v1231 = vld [vmem:[#allocation7 + $0x4f8] sm:$0xff]
    %v1232 = vld [vmem:[#allocation7 + $0x500] sm:$0xff]
    %v1233 = vld [vmem:[#allocation7 + $0x508] sm:$0xff]
    %v1234 = vld [vmem:[#allocation7 + $0x510] sm:$0xff]
    %v1235 = vld [vmem:[#allocation7 + $0x518] sm:$0xff]
    %v1236 = vld [vmem:[#allocation7 + $0x520] sm:$0xff]
    %v1237 = vld [vmem:[#allocation7 + $0x528] sm:$0xff]
    %v1238 = vld [vmem:[#allocation7 + $0x530] sm:$0xff]
    %v1239 = vld [vmem:[#allocation7 + $0x538] sm:$0xff]
    %v1240 = vld [vmem:[#allocation7 + $0x540] sm:$0xff]
    %v1241 = vld [vmem:[#allocation7 + $0x548] sm:$0xff]
    %v1242 = vld [vmem:[#allocation7 + $0x550] sm:$0xff]
    %v1243 = vld [vmem:[#allocation7 + $0x558] sm:$0xff]
    %v1244 = vld [vmem:[#allocation7 + $0x560] sm:$0xff]
    %v1245 = vld [vmem:[#allocation7 + $0x568] sm:$0xff]
    %v1246 = vld [vmem:[#allocation7 + $0x570] sm:$0xff]
    %v1247 = vld [vmem:[#allocation7 + $0x578] sm:$0xff]
    %v1248 = vld [vmem:[#allocation7 + $0x580] sm:$0xff]
    %v1249 = vld [vmem:[#allocation7 + $0x588] sm:$0xff]
    %v1250 = vld [vmem:[#allocation7 + $0x590] sm:$0xff]
    %v1251 = vld [vmem:[#allocation7 + $0x598] sm:$0xff]
    %v1252 = vld [vmem:[#allocation7 + $0x5a0] sm:$0xff]
    %v1253 = vld [vmem:[#allocation7 + $0x5a8] sm:$0xff]
    %v1254 = vld [vmem:[#allocation7 + $0x5b0] sm:$0xff]
    %v1255 = vld [vmem:[#allocation7 + $0x5b8] sm:$0xff]
    %v1256 = vld [vmem:[#allocation7 + $0x5c0] sm:$0xff]
    %v1257 = vld [vmem:[#allocation7 + $0x5c8] sm:$0xff]
    %v1258 = vld [vmem:[#allocation7 + $0x5d0] sm:$0xff]
    %v1259 = vld [vmem:[#allocation7 + $0x5d8] sm:$0xff]
    %v1260 = vld [vmem:[#allocation7 + $0x5e0] sm:$0xff]
    %v1261 = vld [vmem:[#allocation7 + $0x5e8] sm:$0xff]
    %v1262 = vld [vmem:[#allocation7 + $0x5f0] sm:$0xff]
    %v1263 = vld [vmem:[#allocation7 + $0x5f8] sm:$0xff]
    %v1264 = vld [vmem:[#allocation7 + $0x600] sm:$0xff]
    %v1265 = vld [vmem:[#allocation7 + $0x608] sm:$0xff]
    %v1266 = vld [vmem:[#allocation7 + $0x610] sm:$0xff]
    %v1267 = vld [vmem:[#allocation7 + $0x618] sm:$0xff]
    %v1268 = vld [vmem:[#allocation7 + $0x620] sm:$0xff]
    %v1269 = vld [vmem:[#allocation7 + $0x628] sm:$0xff]
    %v1270 = vld [vmem:[#allocation7 + $0x630] sm:$0xff]
    %v1271 = vld [vmem:[#allocation7 + $0x638] sm:$0xff]
    %v1272 = vld [vmem:[#allocation7 + $0x640] sm:$0xff]
    %v1273 = vld [vmem:[#allocation7 + $0x648] sm:$0xff]
    %v1274 = vld [vmem:[#allocation7 + $0x650] sm:$0xff]
    %v1275 = vld [vmem:[#allocation7 + $0x658] sm:$0xff]
    %v1276 = vld [vmem:[#allocation7 + $0x660] sm:$0xff]
    %v1277 = vld [vmem:[#allocation7 + $0x668] sm:$0xff]
    %v1278 = vld [vmem:[#allocation7 + $0x670] sm:$0xff]
    %v1279 = vld [vmem:[#allocation7 + $0x678] sm:$0xff]
    %v1280 = vld [vmem:[#allocation7 + $0x680] sm:$0xff]
    %v1281 = vld [vmem:[#allocation7 + $0x688] sm:$0xff]
    %v1282 = vld [vmem:[#allocation7 + $0x690] sm:$0xff]
    %v1283 = vld [vmem:[#allocation7 + $0x698] sm:$0xff]
    %v1284 = vld [vmem:[#allocation7 + $0x6a0] sm:$0xff]
    %v1285 = vld [vmem:[#allocation7 + $0x6a8] sm:$0xff]
    %v1286 = vld [vmem:[#allocation7 + $0x6b0] sm:$0xff]
    %v1287 = vld [vmem:[#allocation7 + $0x6b8] sm:$0xff]
    %v1288 = vld [vmem:[#allocation7 + $0x6c0] sm:$0xff]
    %v1289 = vld [vmem:[#allocation7 + $0x6c8] sm:$0xff]
    %v1290 = vld [vmem:[#allocation7 + $0x6d0] sm:$0xff]
    %v1291 = vld [vmem:[#allocation7 + $0x6d8] sm:$0xff]
    %v1292 = vld [vmem:[#allocation7 + $0x6e0] sm:$0xff]
    %v1293 = vld [vmem:[#allocation7 + $0x6e8] sm:$0xff]
    %v1294 = vld [vmem:[#allocation7 + $0x6f0] sm:$0xff]
    %v1295 = vld [vmem:[#allocation7 + $0x6f8] sm:$0xff]
    %v1296 = vld [vmem:[#allocation7 + $0x700] sm:$0xff]
    %v1297 = vld [vmem:[#allocation7 + $0x708] sm:$0xff]
    %v1298 = vld [vmem:[#allocation7 + $0x710] sm:$0xff]
    %v1299 = vld [vmem:[#allocation7 + $0x718] sm:$0xff]
    %v1300 = vld [vmem:[#allocation7 + $0x720] sm:$0xff]
    %v1301 = vld [vmem:[#allocation7 + $0x728] sm:$0xff]
    %v1302 = vld [vmem:[#allocation7 + $0x730] sm:$0xff]
    %v1303 = vld [vmem:[#allocation7 + $0x738] sm:$0xff]
    %v1304 = vld [vmem:[#allocation7 + $0x740] sm:$0xff]
    %v1305 = vld [vmem:[#allocation7 + $0x748] sm:$0xff]
    %v1306 = vld [vmem:[#allocation7 + $0x750] sm:$0xff]
    %v1307 = vld [vmem:[#allocation7 + $0x758] sm:$0xff]
    %v1308 = vld [vmem:[#allocation7 + $0x760] sm:$0xff]
    %v1309 = vld [vmem:[#allocation7 + $0x768] sm:$0xff]
    %v1310 = vld [vmem:[#allocation7 + $0x770] sm:$0xff]
    %v1311 = vld [vmem:[#allocation7 + $0x778] sm:$0xff]
    %v1312 = vld [vmem:[#allocation7 + $0x780] sm:$0xff]
    %v1313 = vld [vmem:[#allocation7 + $0x788] sm:$0xff]
    %v1314 = vld [vmem:[#allocation7 + $0x790] sm:$0xff]
    %v1315 = vld [vmem:[#allocation7 + $0x798] sm:$0xff]
    %v1316 = vld [vmem:[#allocation7 + $0x7a0] sm:$0xff]
    %v1317 = vld [vmem:[#allocation7 + $0x7a8] sm:$0xff]
    %v1318 = vld [vmem:[#allocation7 + $0x7b0] sm:$0xff]
    %v1319 = vld [vmem:[#allocation7 + $0x7b8] sm:$0xff]
    %v1320 = vld [vmem:[#allocation7 + $0x7c0] sm:$0xff]
    %v1321 = vld [vmem:[#allocation7 + $0x7c8] sm:$0xff]
    %v1322 = vld [vmem:[#allocation7 + $0x7d0] sm:$0xff]
    %v1323 = vld [vmem:[#allocation7 + $0x7d8] sm:$0xff]
    %v1324 = vld [vmem:[#allocation7 + $0x7e0] sm:$0xff]
    %v1325 = vld [vmem:[#allocation7 + $0x7e8] sm:$0xff]
    %v1326 = vld [vmem:[#allocation7 + $0x7f0] sm:$0xff]
    %v1327 = vld [vmem:[#allocation7 + $0x7f8] sm:$0xff]
    %v1328 = vld [vmem:[#allocation7 + $0x800] sm:$0xff]
    %v1329 = vld [vmem:[#allocation7 + $0x808] sm:$0xff]
    %v1330 = vld [vmem:[#allocation7 + $0x810] sm:$0xff]
    %v1331 = vld [vmem:[#allocation7 + $0x818] sm:$0xff]
    %v1332 = vld [vmem:[#allocation7 + $0x820] sm:$0xff]
    %v1333 = vld [vmem:[#allocation7 + $0x828] sm:$0xff]
    %v1334 = vld [vmem:[#allocation7 + $0x830] sm:$0xff]
    %v1335 = vld [vmem:[#allocation7 + $0x838] sm:$0xff]
    %v1336 = vld [vmem:[#allocation7 + $0x840] sm:$0xff]
    %v1337 = vld [vmem:[#allocation7 + $0x848] sm:$0xff]
    %v1338 = vld [vmem:[#allocation7 + $0x850] sm:$0xff]
    %v1339 = vld [vmem:[#allocation7 + $0x858] sm:$0xff]
    %v1340 = vld [vmem:[#allocation7 + $0x860] sm:$0xff]
    %v1341 = vld [vmem:[#allocation7 + $0x868] sm:$0xff]
    %v1342 = vld [vmem:[#allocation7 + $0x870] sm:$0xff]
    %v1343 = vld [vmem:[#allocation7 + $0x878] sm:$0xff]
    %v1344 = vld [vmem:[#allocation7 + $0x880] sm:$0xff]
    %v1345 = vld [vmem:[#allocation7 + $0x888] sm:$0xff]
    %v1346 = vld [vmem:[#allocation7 + $0x890] sm:$0xff]
    %v1347 = vld [vmem:[#allocation7 + $0x898] sm:$0xff]
    %v1348 = vld [vmem:[#allocation7 + $0x8a0] sm:$0xff]
    %v1349 = vld [vmem:[#allocation7 + $0x8a8] sm:$0xff]
    %v1350 = vld [vmem:[#allocation7 + $0x8b0] sm:$0xff]
    %v1351 = vld [vmem:[#allocation7 + $0x8b8] sm:$0xff]
    %v1352 = vld [vmem:[#allocation7 + $0x8c0] sm:$0xff]
    %v1353 = vld [vmem:[#allocation7 + $0x8c8] sm:$0xff]
    %v1354 = vld [vmem:[#allocation7 + $0x8d0] sm:$0xff]
    %v1355 = vld [vmem:[#allocation7 + $0x8d8] sm:$0xff]
    %v1356 = vld [vmem:[#allocation7 + $0x8e0] sm:$0xff]
    %v1357 = vld [vmem:[#allocation7 + $0x8e8] sm:$0xff]
    %v1358 = vld [vmem:[#allocation7 + $0x8f0] sm:$0xff]
    %v1359 = vld [vmem:[#allocation7 + $0x8f8] sm:$0xff]
    %v1360 = vld [vmem:[#allocation7 + $0x900] sm:$0xff]
    %v1361 = vld [vmem:[#allocation7 + $0x908] sm:$0xff]
    %v1362 = vld [vmem:[#allocation7 + $0x910] sm:$0xff]
    %v1363 = vld [vmem:[#allocation7 + $0x918] sm:$0xff]
    %v1364 = vld [vmem:[#allocation7 + $0x920] sm:$0xff]
    %v1365 = vld [vmem:[#allocation7 + $0x928] sm:$0xff]
    %v1366 = vld [vmem:[#allocation7 + $0x930] sm:$0xff]
    %v1367 = vld [vmem:[#allocation7 + $0x938] sm:$0xff]
    %v1368 = vld [vmem:[#allocation7 + $0x940] sm:$0xff]
    %v1369 = vld [vmem:[#allocation7 + $0x948] sm:$0xff]
    %v1370 = vld [vmem:[#allocation7 + $0x950] sm:$0xff]
    %v1371 = vld [vmem:[#allocation7 + $0x958] sm:$0xff]
    %v1372 = vld [vmem:[#allocation7 + $0x960] sm:$0xff]
    %v1373 = vld [vmem:[#allocation7 + $0x968] sm:$0xff]
    %v1374 = vld [vmem:[#allocation7 + $0x970] sm:$0xff]
    %v1375 = vld [vmem:[#allocation7 + $0x978] sm:$0xff]
    %v1376 = vld [vmem:[#allocation7 + $0x980] sm:$0xff]
    %v1377 = vld [vmem:[#allocation7 + $0x988] sm:$0xff]
    %v1378 = vld [vmem:[#allocation7 + $0x990] sm:$0xff]
    %v1379 = vld [vmem:[#allocation7 + $0x998] sm:$0xff]
    %v1380 = vld [vmem:[#allocation7 + $0x9a0] sm:$0xff]
    %v1381 = vld [vmem:[#allocation7 + $0x9a8] sm:$0xff]
    %v1382 = vld [vmem:[#allocation7 + $0x9b0] sm:$0xff]
    %v1383 = vld [vmem:[#allocation7 + $0x9b8] sm:$0xff]
    %v1384 = vld [vmem:[#allocation7 + $0x9c0] sm:$0xff]
    %v1385 = vld [vmem:[#allocation7 + $0x9c8] sm:$0xff]
    %v1386 = vld [vmem:[#allocation7 + $0x9d0] sm:$0xff]
    %v1387 = vld [vmem:[#allocation7 + $0x9d8] sm:$0xff]
    %v1388 = vld [vmem:[#allocation7 + $0x9e0] sm:$0xff]
    %v1389 = vld [vmem:[#allocation7 + $0x9e8] sm:$0xff]
    %v1390 = vld [vmem:[#allocation7 + $0x9f0] sm:$0xff]
    %v1391 = vld [vmem:[#allocation7 + $0x9f8] sm:$0xff]
    %v1392 = vld [vmem:[#allocation7 + $0xa00] sm:$0xff]
    %v1393 = vld [vmem:[#allocation7 + $0xa08] sm:$0xff]
    %v1394 = vld [vmem:[#allocation7 + $0xa10] sm:$0xff]
    %v1395 = vld [vmem:[#allocation7 + $0xa18] sm:$0xff]
    %v1396 = vld [vmem:[#allocation7 + $0xa20] sm:$0xff]
    %v1397 = vld [vmem:[#allocation7 + $0xa28] sm:$0xff]
    %v1398 = vld [vmem:[#allocation7 + $0xa30] sm:$0xff]
    %v1399 = vld [vmem:[#allocation7 + $0xa38] sm:$0xff]
    %v1400 = vld [vmem:[#allocation7 + $0xa40] sm:$0xff]
    %v1401 = vld [vmem:[#allocation7 + $0xa48] sm:$0xff]
    %v1402 = vld [vmem:[#allocation7 + $0xa50] sm:$0xff]
    %v1403 = vld [vmem:[#allocation7 + $0xa58] sm:$0xff]
    %v1404 = vld [vmem:[#allocation7 + $0xa60] sm:$0xff]
    %v1405 = vld [vmem:[#allocation7 + $0xa68] sm:$0xff]
    %v1406 = vld [vmem:[#allocation7 + $0xa70] sm:$0xff]
    %v1407 = vld [vmem:[#allocation7 + $0xa78] sm:$0xff]
    %v1408 = vld [vmem:[#allocation7 + $0xa80] sm:$0xff]
    %v1409 = vld [vmem:[#allocation7 + $0xa88] sm:$0xff]
    %v1410 = vld [vmem:[#allocation7 + $0xa90] sm:$0xff]
    %v1411 = vld [vmem:[#allocation7 + $0xa98] sm:$0xff]
    %v1412 = vld [vmem:[#allocation7 + $0xaa0] sm:$0xff]
    %v1413 = vld [vmem:[#allocation7 + $0xaa8] sm:$0xff]
    %v1414 = vld [vmem:[#allocation7 + $0xab0] sm:$0xff]
    %v1415 = vld [vmem:[#allocation7 + $0xab8] sm:$0xff]
    %v1416 = vld [vmem:[#allocation7 + $0xac0] sm:$0xff]
    %v1417 = vld [vmem:[#allocation7 + $0xac8] sm:$0xff]
    %v1418 = vld [vmem:[#allocation7 + $0xad0] sm:$0xff]
    %v1419 = vld [vmem:[#allocation7 + $0xad8] sm:$0xff]
    %v1420 = vld [vmem:[#allocation7 + $0xae0] sm:$0xff]
    %v1421 = vld [vmem:[#allocation7 + $0xae8] sm:$0xff]
    %v1422 = vld [vmem:[#allocation7 + $0xaf0] sm:$0xff]
    %v1423 = vld [vmem:[#allocation7 + $0xaf8] sm:$0xff]
    %v1424 = vld [vmem:[#allocation7 + $0xb00] sm:$0xff]
    %v1425 = vld [vmem:[#allocation7 + $0xb08] sm:$0xff]
    %v1426 = vld [vmem:[#allocation7 + $0xb10] sm:$0xff]
    %v1427 = vld [vmem:[#allocation7 + $0xb18] sm:$0xff]
    %v1428 = vld [vmem:[#allocation7 + $0xb20] sm:$0xff]
    %v1429 = vld [vmem:[#allocation7 + $0xb28] sm:$0xff]
    %v1430 = vld [vmem:[#allocation7 + $0xb30] sm:$0xff]
    %v1431 = vld [vmem:[#allocation7 + $0xb38] sm:$0xff]
    %v1432 = vld [vmem:[#allocation7 + $0xb40] sm:$0xff]
    %v1433 = vld [vmem:[#allocation7 + $0xb48] sm:$0xff]
    %v1434 = vld [vmem:[#allocation7 + $0xb50] sm:$0xff]
    %v1435 = vld [vmem:[#allocation7 + $0xb58] sm:$0xff]
    %v1436 = vld [vmem:[#allocation7 + $0xb60] sm:$0xff]
    %v1437 = vld [vmem:[#allocation7 + $0xb68] sm:$0xff]
    %v1438 = vld [vmem:[#allocation7 + $0xb70] sm:$0xff]
    %v1439 = vld [vmem:[#allocation7 + $0xb78] sm:$0xff]
    %v1440 = vld [vmem:[#allocation7 + $0xb80] sm:$0xff]
    %v1441 = vld [vmem:[#allocation7 + $0xb88] sm:$0xff]
    %v1442 = vld [vmem:[#allocation7 + $0xb90] sm:$0xff]
    %v1443 = vld [vmem:[#allocation7 + $0xb98] sm:$0xff]
    %v1444 = vld [vmem:[#allocation7 + $0xba0] sm:$0xff]
    %v1445 = vld [vmem:[#allocation7 + $0xba8] sm:$0xff]
    %v1446 = vld [vmem:[#allocation7 + $0xbb0] sm:$0xff]
    %v1447 = vld [vmem:[#allocation7 + $0xbb8] sm:$0xff]
    %v1448 = vld [vmem:[#allocation7 + $0xbc0] sm:$0xff]
    %v1449 = vld [vmem:[#allocation7 + $0xbc8] sm:$0xff]
    %v1450 = vld [vmem:[#allocation7 + $0xbd0] sm:$0xff]
    %v1451 = vld [vmem:[#allocation7 + $0xbd8] sm:$0xff]
    %v1452 = vld [vmem:[#allocation7 + $0xbe0] sm:$0xff]
    %v1453 = vld [vmem:[#allocation7 + $0xbe8] sm:$0xff]
    %v1454 = vld [vmem:[#allocation7 + $0xbf0] sm:$0xff]
    %v1455 = vld [vmem:[#allocation7 + $0xbf8] sm:$0xff]
    %v1456 = vld [vmem:[#allocation7 + $0xc00] sm:$0xff]
    %v1457 = vld [vmem:[#allocation7 + $0xc08] sm:$0xff]
    %v1458 = vld [vmem:[#allocation7 + $0xc10] sm:$0xff]
    %v1459 = vld [vmem:[#allocation7 + $0xc18] sm:$0xff]
    %v1460 = vld [vmem:[#allocation7 + $0xc20] sm:$0xff]
    %v1461 = vld [vmem:[#allocation7 + $0xc28] sm:$0xff]
    %v1462 = vld [vmem:[#allocation7 + $0xc30] sm:$0xff]
    %v1463 = vld [vmem:[#allocation7 + $0xc38] sm:$0xff]
    %v1464 = vld [vmem:[#allocation7 + $0xc40] sm:$0xff]
    %v1465 = vld [vmem:[#allocation7 + $0xc48] sm:$0xff]
    %v1466 = vld [vmem:[#allocation7 + $0xc50] sm:$0xff]
    %v1467 = vld [vmem:[#allocation7 + $0xc58] sm:$0xff]
    %v1468 = vld [vmem:[#allocation7 + $0xc60] sm:$0xff]
    %v1469 = vld [vmem:[#allocation7 + $0xc68] sm:$0xff]
    %v1470 = vld [vmem:[#allocation7 + $0xc70] sm:$0xff]
    %v1471 = vld [vmem:[#allocation7 + $0xc78] sm:$0xff]
    %v1472 = vld [vmem:[#allocation7 + $0xc80] sm:$0xff]
    %v1473 = vld [vmem:[#allocation7 + $0xc88] sm:$0xff]
    %v1474 = vld [vmem:[#allocation7 + $0xc90] sm:$0xff]
    %v1475 = vld [vmem:[#allocation7 + $0xc98] sm:$0xff]
    %v1476 = vld [vmem:[#allocation7 + $0xca0] sm:$0xff]
    %v1477 = vld [vmem:[#allocation7 + $0xca8] sm:$0xff]
    %v1478 = vld [vmem:[#allocation7 + $0xcb0] sm:$0xff]
    %v1479 = vld [vmem:[#allocation7 + $0xcb8] sm:$0xff]
    %v1480 = vld [vmem:[#allocation7 + $0xcc0] sm:$0xff]
    %v1481 = vld [vmem:[#allocation7 + $0xcc8] sm:$0xff]
    %v1482 = vld [vmem:[#allocation7 + $0xcd0] sm:$0xff]
    %v1483 = vld [vmem:[#allocation7 + $0xcd8] sm:$0xff]
    %v1484 = vld [vmem:[#allocation7 + $0xce0] sm:$0xff]
    %v1485 = vld [vmem:[#allocation7 + $0xce8] sm:$0xff]
    %v1486 = vld [vmem:[#allocation7 + $0xcf0] sm:$0xff]
    %v1487 = vld [vmem:[#allocation7 + $0xcf8] sm:$0xff]
    %v1488 = vld [vmem:[#allocation7 + $0xd00] sm:$0xff]
    %v1489 = vld [vmem:[#allocation7 + $0xd08] sm:$0xff]
    %v1490 = vld [vmem:[#allocation7 + $0xd10] sm:$0xff]
    %v1491 = vld [vmem:[#allocation7 + $0xd18] sm:$0xff]
    %v1492 = vld [vmem:[#allocation7 + $0xd20] sm:$0xff]
    %v1493 = vld [vmem:[#allocation7 + $0xd28] sm:$0xff]
    %v1494 = vld [vmem:[#allocation7 + $0xd30] sm:$0xff]
    %v1495 = vld [vmem:[#allocation7 + $0xd38] sm:$0xff]
    %v1496 = vld [vmem:[#allocation7 + $0xd40] sm:$0xff]
    %v1497 = vld [vmem:[#allocation7 + $0xd48] sm:$0xff]
    %v1498 = vld [vmem:[#allocation7 + $0xd50] sm:$0xff]
    %v1499 = vld [vmem:[#allocation7 + $0xd58] sm:$0xff]
    %v1500 = vld [vmem:[#allocation7 + $0xd60] sm:$0xff]
    %v1501 = vld [vmem:[#allocation7 + $0xd68] sm:$0xff]
    %v1502 = vld [vmem:[#allocation7 + $0xd70] sm:$0xff]
    %v1503 = vld [vmem:[#allocation7 + $0xd78] sm:$0xff]
    %v1504 = vld [vmem:[#allocation7 + $0xd80] sm:$0xff]
    %v1505 = vld [vmem:[#allocation7 + $0xd88] sm:$0xff]
    %v1506 = vld [vmem:[#allocation7 + $0xd90] sm:$0xff]
    %v1507 = vld [vmem:[#allocation7 + $0xd98] sm:$0xff]
    %v1508 = vld [vmem:[#allocation7 + $0xda0] sm:$0xff]
    %v1509 = vld [vmem:[#allocation7 + $0xda8] sm:$0xff]
    %v1510 = vld [vmem:[#allocation7 + $0xdb0] sm:$0xff]
    %v1511 = vld [vmem:[#allocation7 + $0xdb8] sm:$0xff]
    %v1512 = vld [vmem:[#allocation7 + $0xdc0] sm:$0xff]
    %v1513 = vld [vmem:[#allocation7 + $0xdc8] sm:$0xff]
    %v1514 = vld [vmem:[#allocation7 + $0xdd0] sm:$0xff]
    %v1515 = vld [vmem:[#allocation7 + $0xdd8] sm:$0xff]
    %v1516 = vld [vmem:[#allocation7 + $0xde0] sm:$0xff]
    %v1517 = vld [vmem:[#allocation7 + $0xde8] sm:$0xff]
    %v1518 = vld [vmem:[#allocation7 + $0xdf0] sm:$0xff]
    %v1519 = vld [vmem:[#allocation7 + $0xdf8] sm:$0xff]
    %v1520 = vld [vmem:[#allocation7 + $0xe00] sm:$0xff]
    %v1521 = vld [vmem:[#allocation7 + $0xe08] sm:$0xff]
    %v1522 = vld [vmem:[#allocation7 + $0xe10] sm:$0xff]
    %v1523 = vld [vmem:[#allocation7 + $0xe18] sm:$0xff]
    %v1524 = vld [vmem:[#allocation7 + $0xe20] sm:$0xff]
    %v1525 = vld [vmem:[#allocation7 + $0xe28] sm:$0xff]
    %v1526 = vld [vmem:[#allocation7 + $0xe30] sm:$0xff]
    %v1527 = vld [vmem:[#allocation7 + $0xe38] sm:$0xff]
    %v1528 = vld [vmem:[#allocation7 + $0xe40] sm:$0xff]
    %v1529 = vld [vmem:[#allocation7 + $0xe48] sm:$0xff]
    %v1530 = vld [vmem:[#allocation7 + $0xe50] sm:$0xff]
    %v1531 = vld [vmem:[#allocation7 + $0xe58] sm:$0xff]
    %v1532 = vld [vmem:[#allocation7 + $0xe60] sm:$0xff]
    %v1533 = vld [vmem:[#allocation7 + $0xe68] sm:$0xff]
    %v1534 = vld [vmem:[#allocation7 + $0xe70] sm:$0xff]
    %v1535 = vld [vmem:[#allocation7 + $0xe78] sm:$0xff]
    %v1536 = vld [vmem:[#allocation7 + $0xe80] sm:$0xff]
    %v1537 = vld [vmem:[#allocation7 + $0xe88] sm:$0xff]
    %v1538 = vld [vmem:[#allocation7 + $0xe90] sm:$0xff]
    %v1539 = vld [vmem:[#allocation7 + $0xe98] sm:$0xff]
    %v1540 = vld [vmem:[#allocation7 + $0xea0] sm:$0xff]
    %v1541 = vld [vmem:[#allocation7 + $0xea8] sm:$0xff]
    %v1542 = vld [vmem:[#allocation7 + $0xeb0] sm:$0xff]
    %v1543 = vld [vmem:[#allocation7 + $0xeb8] sm:$0xff]
    %v1544 = vld [vmem:[#allocation7 + $0xec0] sm:$0xff]
    %v1545 = vld [vmem:[#allocation7 + $0xec8] sm:$0xff]
    %v1546 = vld [vmem:[#allocation7 + $0xed0] sm:$0xff]
    %v1547 = vld [vmem:[#allocation7 + $0xed8] sm:$0xff]
    %v1548 = vld [vmem:[#allocation7 + $0xee0] sm:$0xff]
    %v1549 = vld [vmem:[#allocation7 + $0xee8] sm:$0xff]
    %v1550 = vld [vmem:[#allocation7 + $0xef0] sm:$0xff]
    %v1551 = vld [vmem:[#allocation7 + $0xef8] sm:$0xff]
    %v1552 = vld [vmem:[#allocation7 + $0xf00] sm:$0xff]
    %v1553 = vld [vmem:[#allocation7 + $0xf08] sm:$0xff]
    %v1554 = vld [vmem:[#allocation7 + $0xf10] sm:$0xff]
    %v1555 = vld [vmem:[#allocation7 + $0xf18] sm:$0xff]
    %v1556 = vld [vmem:[#allocation7 + $0xf20] sm:$0xff]
    %v1557 = vld [vmem:[#allocation7 + $0xf28] sm:$0xff]
    %v1558 = vld [vmem:[#allocation7 + $0xf30] sm:$0xff]
    %v1559 = vld [vmem:[#allocation7 + $0xf38] sm:$0xff]
    %v1560 = vld [vmem:[#allocation7 + $0xf40] sm:$0xff]
    %v1561 = vld [vmem:[#allocation7 + $0xf48] sm:$0xff]
    %v1562 = vld [vmem:[#allocation7 + $0xf50] sm:$0xff]
    %v1563 = vld [vmem:[#allocation7 + $0xf58] sm:$0xff]
    %v1564 = vld [vmem:[#allocation7 + $0xf60] sm:$0xff]
    %v1565 = vld [vmem:[#allocation7 + $0xf68] sm:$0xff]
    %v1566 = vld [vmem:[#allocation7 + $0xf70] sm:$0xff]
    %v1567 = vld [vmem:[#allocation7 + $0xf78] sm:$0xff]
    %v1568 = vld [vmem:[#allocation7 + $0xf80] sm:$0xff]
    %v1569 = vld [vmem:[#allocation7 + $0xf88] sm:$0xff]
    %v1570 = vld [vmem:[#allocation7 + $0xf90] sm:$0xff]
    %v1571 = vld [vmem:[#allocation7 + $0xf98] sm:$0xff]
    %v1572 = vld [vmem:[#allocation7 + $0xfa0] sm:$0xff]
    %v1573 = vld [vmem:[#allocation7 + $0xfa8] sm:$0xff]
    %v1574 = vld [vmem:[#allocation7 + $0xfb0] sm:$0xff]
    %v1575 = vld [vmem:[#allocation7 + $0xfb8] sm:$0xff]
    %v1576 = vld [vmem:[#allocation7 + $0xfc0] sm:$0xff]
    %v1577 = vld [vmem:[#allocation7 + $0xfc8] sm:$0xff]
    %v1578 = vld [vmem:[#allocation7 + $0xfd0] sm:$0xff]
    %v1579 = vld [vmem:[#allocation7 + $0xfd8] sm:$0xff]
    %v1580 = vld [vmem:[#allocation7 + $0xfe0] sm:$0xff]
    %v1581 = vld [vmem:[#allocation7 + $0xfe8] sm:$0xff]
    %v1582 = vld [vmem:[#allocation7 + $0xff0] sm:$0xff]
    %v1583 = vld [vmem:[#allocation7 + $0xff8] sm:$0xff]
    %v1584 = vld [vmem:[#allocation9] sm:$0xff]
    %v1586 = vlaneseq
    %v1587 = vshrl.u32 %v1586, 7
    %v1588 = vsub.s32 0, %v1587
    %v1589 = vrot.slane %v1584, %v1588
    %v1590 = vlaneseq
    %v1591 = vshrl.u32 %v1590, 7
    %v1592 = vsub.s32 1, %v1591
    %v1593 = vrot.slane %v1584, %v1592
    %v1594 = vlaneseq
    %v1595 = vshrl.u32 %v1594, 7
    %v1596 = vsub.s32 2, %v1595
    %v1597 = vrot.slane %v1584, %v1596
    %v1598 = vlaneseq
    %v1599 = vshrl.u32 %v1598, 7
    %v1600 = vsub.s32 3, %v1599
    %v1601 = vrot.slane %v1584, %v1600
    %v1602 = vlaneseq
    %v1603 = vshrl.u32 %v1602, 7
    %v1604 = vsub.s32 4, %v1603
    %v1605 = vrot.slane %v1584, %v1604
    %v1606 = vlaneseq
    %v1607 = vshrl.u32 %v1606, 7
    %v1608 = vsub.s32 5, %v1607
    %v1609 = vrot.slane %v1584, %v1608
    %v1610 = vlaneseq
    %v1611 = vshrl.u32 %v1610, 7
    %v1612 = vsub.s32 6, %v1611
    %v1613 = vrot.slane %v1584, %v1612
    %v1614 = vlaneseq
    %v1615 = vshrl.u32 %v1614, 7
    %v1616 = vsub.s32 7, %v1615
    %v1617 = vrot.slane %v1584, %v1616
    %v2138 = vunpack.c.l.b16 %v1072
    %v2139 = vunpack.c.h.b16 %v1072
    %v2140 = vunpack.c.l.b16 %v1073
    %v2141 = vunpack.c.h.b16 %v1073
    %v2142 = vunpack.c.l.b16 %v1074
    %v2143 = vunpack.c.h.b16 %v1074
    %v2144 = vunpack.c.l.b16 %v1075
    %v2145 = vunpack.c.h.b16 %v1075
    %v2146 = vunpack.c.l.b16 %v1076
    %v2147 = vunpack.c.h.b16 %v1076
    %v2148 = vunpack.c.l.b16 %v1077
    %v2149 = vunpack.c.h.b16 %v1077
    %v2150 = vunpack.c.l.b16 %v1078
    %v2151 = vunpack.c.h.b16 %v1078
    %v2152 = vunpack.c.l.b16 %v1079
    %v2153 = vunpack.c.h.b16 %v1079
    %v2154 = vunpack.c.l.b16 %v1080
    %v2155 = vunpack.c.h.b16 %v1080
    %v2156 = vunpack.c.l.b16 %v1081
    %v2157 = vunpack.c.h.b16 %v1081
    %v2158 = vunpack.c.l.b16 %v1082
    %v2159 = vunpack.c.h.b16 %v1082
    %v2160 = vunpack.c.l.b16 %v1083
    %v2161 = vunpack.c.h.b16 %v1083
    %v2162 = vunpack.c.l.b16 %v1084
    %v2163 = vunpack.c.h.b16 %v1084
    %v2164 = vunpack.c.l.b16 %v1085
    %v2165 = vunpack.c.h.b16 %v1085
    %v2166 = vunpack.c.l.b16 %v1086
    %v2167 = vunpack.c.h.b16 %v1086
    %v2168 = vunpack.c.l.b16 %v1087
    %v2169 = vunpack.c.h.b16 %v1087
    %v2170 = vunpack.c.l.b16 %v1088
    %v2171 = vunpack.c.h.b16 %v1088
    %v2172 = vunpack.c.l.b16 %v1089
    %v2173 = vunpack.c.h.b16 %v1089
    %v2174 = vunpack.c.l.b16 %v1090
    %v2175 = vunpack.c.h.b16 %v1090
    %v2176 = vunpack.c.l.b16 %v1091
    %v2177 = vunpack.c.h.b16 %v1091
    %v2178 = vunpack.c.l.b16 %v1092
    %v2179 = vunpack.c.h.b16 %v1092
    %v2180 = vunpack.c.l.b16 %v1093
    %v2181 = vunpack.c.h.b16 %v1093
    %v2182 = vunpack.c.l.b16 %v1094
    %v2183 = vunpack.c.h.b16 %v1094
    %v2184 = vunpack.c.l.b16 %v1095
    %v2185 = vunpack.c.h.b16 %v1095
    %v2186 = vunpack.c.l.b16 %v1096
    %v2187 = vunpack.c.h.b16 %v1096
    %v2188 = vunpack.c.l.b16 %v1097
    %v2189 = vunpack.c.h.b16 %v1097
    %v2190 = vunpack.c.l.b16 %v1098
    %v2191 = vunpack.c.h.b16 %v1098
    %v2192 = vunpack.c.l.b16 %v1099
    %v2193 = vunpack.c.h.b16 %v1099
    %v2194 = vunpack.c.l.b16 %v1100
    %v2195 = vunpack.c.h.b16 %v1100
    %v2196 = vunpack.c.l.b16 %v1101
    %v2197 = vunpack.c.h.b16 %v1101
    %v2198 = vunpack.c.l.b16 %v1102
    %v2199 = vunpack.c.h.b16 %v1102
    %v2200 = vunpack.c.l.b16 %v1103
    %v2201 = vunpack.c.h.b16 %v1103
    %v2202 = vunpack.c.l.b16 %v1104
    %v2203 = vunpack.c.h.b16 %v1104
    %v2204 = vunpack.c.l.b16 %v1105
    %v2205 = vunpack.c.h.b16 %v1105
    %v2206 = vunpack.c.l.b16 %v1106
    %v2207 = vunpack.c.h.b16 %v1106
    %v2208 = vunpack.c.l.b16 %v1107
    %v2209 = vunpack.c.h.b16 %v1107
    %v2210 = vunpack.c.l.b16 %v1108
    %v2211 = vunpack.c.h.b16 %v1108
    %v2212 = vunpack.c.l.b16 %v1109
    %v2213 = vunpack.c.h.b16 %v1109
    %v2214 = vunpack.c.l.b16 %v1110
    %v2215 = vunpack.c.h.b16 %v1110
    %v2216 = vunpack.c.l.b16 %v1111
    %v2217 = vunpack.c.h.b16 %v1111
    %v2218 = vunpack.c.l.b16 %v1112
    %v2219 = vunpack.c.h.b16 %v1112
    %v2220 = vunpack.c.l.b16 %v1113
    %v2221 = vunpack.c.h.b16 %v1113
    %v2222 = vunpack.c.l.b16 %v1114
    %v2223 = vunpack.c.h.b16 %v1114
    %v2224 = vunpack.c.l.b16 %v1115
    %v2225 = vunpack.c.h.b16 %v1115
    %v2226 = vunpack.c.l.b16 %v1116
    %v2227 = vunpack.c.h.b16 %v1116
    %v2228 = vunpack.c.l.b16 %v1117
    %v2229 = vunpack.c.h.b16 %v1117
    %v2230 = vunpack.c.l.b16 %v1118
    %v2231 = vunpack.c.h.b16 %v1118
    %v2232 = vunpack.c.l.b16 %v1119
    %v2233 = vunpack.c.h.b16 %v1119
    %v2234 = vunpack.c.l.b16 %v1120
    %v2235 = vunpack.c.h.b16 %v1120
    %v2236 = vunpack.c.l.b16 %v1121
    %v2237 = vunpack.c.h.b16 %v1121
    %v2238 = vunpack.c.l.b16 %v1122
    %v2239 = vunpack.c.h.b16 %v1122
    %v2240 = vunpack.c.l.b16 %v1123
    %v2241 = vunpack.c.h.b16 %v1123
    %v2242 = vunpack.c.l.b16 %v1124
    %v2243 = vunpack.c.h.b16 %v1124
    %v2244 = vunpack.c.l.b16 %v1125
    %v2245 = vunpack.c.h.b16 %v1125
    %v2246 = vunpack.c.l.b16 %v1126
    %v2247 = vunpack.c.h.b16 %v1126
    %v2248 = vunpack.c.l.b16 %v1127
    %v2249 = vunpack.c.h.b16 %v1127
    %v2250 = vunpack.c.l.b16 %v1128
    %v2251 = vunpack.c.h.b16 %v1128
    %v2252 = vunpack.c.l.b16 %v1129
    %v2253 = vunpack.c.h.b16 %v1129
    %v2254 = vunpack.c.l.b16 %v1130
    %v2255 = vunpack.c.h.b16 %v1130
    %v2256 = vunpack.c.l.b16 %v1131
    %v2257 = vunpack.c.h.b16 %v1131
    %v2258 = vunpack.c.l.b16 %v1132
    %v2259 = vunpack.c.h.b16 %v1132
    %v2260 = vunpack.c.l.b16 %v1133
    %v2261 = vunpack.c.h.b16 %v1133
    %v2262 = vunpack.c.l.b16 %v1134
    %v2263 = vunpack.c.h.b16 %v1134
    %v2264 = vunpack.c.l.b16 %v1135
    %v2265 = vunpack.c.h.b16 %v1135
    %v2266 = vunpack.c.l.b16 %v1136
    %v2267 = vunpack.c.h.b16 %v1136
    %v2268 = vunpack.c.l.b16 %v1137
    %v2269 = vunpack.c.h.b16 %v1137
    %v2270 = vunpack.c.l.b16 %v1138
    %v2271 = vunpack.c.h.b16 %v1138
    %v2272 = vunpack.c.l.b16 %v1139
    %v2273 = vunpack.c.h.b16 %v1139
    %v2274 = vunpack.c.l.b16 %v1140
    %v2275 = vunpack.c.h.b16 %v1140
    %v2276 = vunpack.c.l.b16 %v1141
    %v2277 = vunpack.c.h.b16 %v1141
    %v2278 = vunpack.c.l.b16 %v1142
    %v2279 = vunpack.c.h.b16 %v1142
    %v2280 = vunpack.c.l.b16 %v1143
    %v2281 = vunpack.c.h.b16 %v1143
    %v2282 = vunpack.c.l.b16 %v1144
    %v2283 = vunpack.c.h.b16 %v1144
    %v2284 = vunpack.c.l.b16 %v1145
    %v2285 = vunpack.c.h.b16 %v1145
    %v2286 = vunpack.c.l.b16 %v1146
    %v2287 = vunpack.c.h.b16 %v1146
    %v2288 = vunpack.c.l.b16 %v1147
    %v2289 = vunpack.c.h.b16 %v1147
    %v2290 = vunpack.c.l.b16 %v1148
    %v2291 = vunpack.c.h.b16 %v1148
    %v2292 = vunpack.c.l.b16 %v1149
    %v2293 = vunpack.c.h.b16 %v1149
    %v2294 = vunpack.c.l.b16 %v1150
    %v2295 = vunpack.c.h.b16 %v1150
    %v2296 = vunpack.c.l.b16 %v1151
    %v2297 = vunpack.c.h.b16 %v1151
    %v2298 = vunpack.c.l.b16 %v1152
    %v2299 = vunpack.c.h.b16 %v1152
    %v2300 = vunpack.c.l.b16 %v1153
    %v2301 = vunpack.c.h.b16 %v1153
    %v2302 = vunpack.c.l.b16 %v1154
    %v2303 = vunpack.c.h.b16 %v1154
    %v2304 = vunpack.c.l.b16 %v1155
    %v2305 = vunpack.c.h.b16 %v1155
    %v2306 = vunpack.c.l.b16 %v1156
    %v2307 = vunpack.c.h.b16 %v1156
    %v2308 = vunpack.c.l.b16 %v1157
    %v2309 = vunpack.c.h.b16 %v1157
    %v2310 = vunpack.c.l.b16 %v1158
    %v2311 = vunpack.c.h.b16 %v1158
    %v2312 = vunpack.c.l.b16 %v1159
    %v2313 = vunpack.c.h.b16 %v1159
    %v2314 = vunpack.c.l.b16 %v1160
    %v2315 = vunpack.c.h.b16 %v1160
    %v2316 = vunpack.c.l.b16 %v1161
    %v2317 = vunpack.c.h.b16 %v1161
    %v2318 = vunpack.c.l.b16 %v1162
    %v2319 = vunpack.c.h.b16 %v1162
    %v2320 = vunpack.c.l.b16 %v1163
    %v2321 = vunpack.c.h.b16 %v1163
    %v2322 = vunpack.c.l.b16 %v1164
    %v2323 = vunpack.c.h.b16 %v1164
    %v2324 = vunpack.c.l.b16 %v1165
    %v2325 = vunpack.c.h.b16 %v1165
    %v2326 = vunpack.c.l.b16 %v1166
    %v2327 = vunpack.c.h.b16 %v1166
    %v2328 = vunpack.c.l.b16 %v1167
    %v2329 = vunpack.c.h.b16 %v1167
    %v2330 = vunpack.c.l.b16 %v1168
    %v2331 = vunpack.c.h.b16 %v1168
    %v2332 = vunpack.c.l.b16 %v1169
    %v2333 = vunpack.c.h.b16 %v1169
    %v2334 = vunpack.c.l.b16 %v1170
    %v2335 = vunpack.c.h.b16 %v1170
    %v2336 = vunpack.c.l.b16 %v1171
    %v2337 = vunpack.c.h.b16 %v1171
    %v2338 = vunpack.c.l.b16 %v1172
    %v2339 = vunpack.c.h.b16 %v1172
    %v2340 = vunpack.c.l.b16 %v1173
    %v2341 = vunpack.c.h.b16 %v1173
    %v2342 = vunpack.c.l.b16 %v1174
    %v2343 = vunpack.c.h.b16 %v1174
    %v2344 = vunpack.c.l.b16 %v1175
    %v2345 = vunpack.c.h.b16 %v1175
    %v2346 = vunpack.c.l.b16 %v1176
    %v2347 = vunpack.c.h.b16 %v1176
    %v2348 = vunpack.c.l.b16 %v1177
    %v2349 = vunpack.c.h.b16 %v1177
    %v2350 = vunpack.c.l.b16 %v1178
    %v2351 = vunpack.c.h.b16 %v1178
    %v2352 = vunpack.c.l.b16 %v1179
    %v2353 = vunpack.c.h.b16 %v1179
    %v2354 = vunpack.c.l.b16 %v1180
    %v2355 = vunpack.c.h.b16 %v1180
    %v2356 = vunpack.c.l.b16 %v1181
    %v2357 = vunpack.c.h.b16 %v1181
    %v2358 = vunpack.c.l.b16 %v1182
    %v2359 = vunpack.c.h.b16 %v1182
    %v2360 = vunpack.c.l.b16 %v1183
    %v2361 = vunpack.c.h.b16 %v1183
    %v2362 = vunpack.c.l.b16 %v1184
    %v2363 = vunpack.c.h.b16 %v1184
    %v2364 = vunpack.c.l.b16 %v1185
    %v2365 = vunpack.c.h.b16 %v1185
    %v2366 = vunpack.c.l.b16 %v1186
    %v2367 = vunpack.c.h.b16 %v1186
    %v2368 = vunpack.c.l.b16 %v1187
    %v2369 = vunpack.c.h.b16 %v1187
    %v2370 = vunpack.c.l.b16 %v1188
    %v2371 = vunpack.c.h.b16 %v1188
    %v2372 = vunpack.c.l.b16 %v1189
    %v2373 = vunpack.c.h.b16 %v1189
    %v2374 = vunpack.c.l.b16 %v1190
    %v2375 = vunpack.c.h.b16 %v1190
    %v2376 = vunpack.c.l.b16 %v1191
    %v2377 = vunpack.c.h.b16 %v1191
    %v2378 = vunpack.c.l.b16 %v1192
    %v2379 = vunpack.c.h.b16 %v1192
    %v2380 = vunpack.c.l.b16 %v1193
    %v2381 = vunpack.c.h.b16 %v1193
    %v2382 = vunpack.c.l.b16 %v1194
    %v2383 = vunpack.c.h.b16 %v1194
    %v2384 = vunpack.c.l.b16 %v1195
    %v2385 = vunpack.c.h.b16 %v1195
    %v2386 = vunpack.c.l.b16 %v1196
    %v2387 = vunpack.c.h.b16 %v1196
    %v2388 = vunpack.c.l.b16 %v1197
    %v2389 = vunpack.c.h.b16 %v1197
    %v2390 = vunpack.c.l.b16 %v1198
    %v2391 = vunpack.c.h.b16 %v1198
    %v2392 = vunpack.c.l.b16 %v1199
    %v2393 = vunpack.c.h.b16 %v1199
    %v2394 = vunpack.c.l.b16 %v1200
    %v2395 = vunpack.c.h.b16 %v1200
    %v2396 = vunpack.c.l.b16 %v1201
    %v2397 = vunpack.c.h.b16 %v1201
    %v2398 = vunpack.c.l.b16 %v1202
    %v2399 = vunpack.c.h.b16 %v1202
    %v2400 = vunpack.c.l.b16 %v1203
    %v2401 = vunpack.c.h.b16 %v1203
    %v2402 = vunpack.c.l.b16 %v1204
    %v2403 = vunpack.c.h.b16 %v1204
    %v2404 = vunpack.c.l.b16 %v1205
    %v2405 = vunpack.c.h.b16 %v1205
    %v2406 = vunpack.c.l.b16 %v1206
    %v2407 = vunpack.c.h.b16 %v1206
    %v2408 = vunpack.c.l.b16 %v1207
    %v2409 = vunpack.c.h.b16 %v1207
    %v2410 = vunpack.c.l.b16 %v1208
    %v2411 = vunpack.c.h.b16 %v1208
    %v2412 = vunpack.c.l.b16 %v1209
    %v2413 = vunpack.c.h.b16 %v1209
    %v2414 = vunpack.c.l.b16 %v1210
    %v2415 = vunpack.c.h.b16 %v1210
    %v2416 = vunpack.c.l.b16 %v1211
    %v2417 = vunpack.c.h.b16 %v1211
    %v2418 = vunpack.c.l.b16 %v1212
    %v2419 = vunpack.c.h.b16 %v1212
    %v2420 = vunpack.c.l.b16 %v1213
    %v2421 = vunpack.c.h.b16 %v1213
    %v2422 = vunpack.c.l.b16 %v1214
    %v2423 = vunpack.c.h.b16 %v1214
    %v2424 = vunpack.c.l.b16 %v1215
    %v2425 = vunpack.c.h.b16 %v1215
    %v2426 = vunpack.c.l.b16 %v1216
    %v2427 = vunpack.c.h.b16 %v1216
    %v2428 = vunpack.c.l.b16 %v1217
    %v2429 = vunpack.c.h.b16 %v1217
    %v2430 = vunpack.c.l.b16 %v1218
    %v2431 = vunpack.c.h.b16 %v1218
    %v2432 = vunpack.c.l.b16 %v1219
    %v2433 = vunpack.c.h.b16 %v1219
    %v2434 = vunpack.c.l.b16 %v1220
    %v2435 = vunpack.c.h.b16 %v1220
    %v2436 = vunpack.c.l.b16 %v1221
    %v2437 = vunpack.c.h.b16 %v1221
    %v2438 = vunpack.c.l.b16 %v1222
    %v2439 = vunpack.c.h.b16 %v1222
    %v2440 = vunpack.c.l.b16 %v1223
    %v2441 = vunpack.c.h.b16 %v1223
    %v2442 = vunpack.c.l.b16 %v1224
    %v2443 = vunpack.c.h.b16 %v1224
    %v2444 = vunpack.c.l.b16 %v1225
    %v2445 = vunpack.c.h.b16 %v1225
    %v2446 = vunpack.c.l.b16 %v1226
    %v2447 = vunpack.c.h.b16 %v1226
    %v2448 = vunpack.c.l.b16 %v1227
    %v2449 = vunpack.c.h.b16 %v1227
    %v2450 = vunpack.c.l.b16 %v1228
    %v2451 = vunpack.c.h.b16 %v1228
    %v2452 = vunpack.c.l.b16 %v1229
    %v2453 = vunpack.c.h.b16 %v1229
    %v2454 = vunpack.c.l.b16 %v1230
    %v2455 = vunpack.c.h.b16 %v1230
    %v2456 = vunpack.c.l.b16 %v1231
    %v2457 = vunpack.c.h.b16 %v1231
    %v2458 = vunpack.c.l.b16 %v1232
    %v2459 = vunpack.c.h.b16 %v1232
    %v2460 = vunpack.c.l.b16 %v1233
    %v2461 = vunpack.c.h.b16 %v1233
    %v2462 = vunpack.c.l.b16 %v1234
    %v2463 = vunpack.c.h.b16 %v1234
    %v2464 = vunpack.c.l.b16 %v1235
    %v2465 = vunpack.c.h.b16 %v1235
    %v2466 = vunpack.c.l.b16 %v1236
    %v2467 = vunpack.c.h.b16 %v1236
    %v2468 = vunpack.c.l.b16 %v1237
    %v2469 = vunpack.c.h.b16 %v1237
    %v2470 = vunpack.c.l.b16 %v1238
    %v2471 = vunpack.c.h.b16 %v1238
    %v2472 = vunpack.c.l.b16 %v1239
    %v2473 = vunpack.c.h.b16 %v1239
    %v2474 = vunpack.c.l.b16 %v1240
    %v2475 = vunpack.c.h.b16 %v1240
    %v2476 = vunpack.c.l.b16 %v1241
    %v2477 = vunpack.c.h.b16 %v1241
    %v2478 = vunpack.c.l.b16 %v1242
    %v2479 = vunpack.c.h.b16 %v1242
    %v2480 = vunpack.c.l.b16 %v1243
    %v2481 = vunpack.c.h.b16 %v1243
    %v2482 = vunpack.c.l.b16 %v1244
    %v2483 = vunpack.c.h.b16 %v1244
    %v2484 = vunpack.c.l.b16 %v1245
    %v2485 = vunpack.c.h.b16 %v1245
    %v2486 = vunpack.c.l.b16 %v1246
    %v2487 = vunpack.c.h.b16 %v1246
    %v2488 = vunpack.c.l.b16 %v1247
    %v2489 = vunpack.c.h.b16 %v1247
    %v2490 = vunpack.c.l.b16 %v1248
    %v2491 = vunpack.c.h.b16 %v1248
    %v2492 = vunpack.c.l.b16 %v1249
    %v2493 = vunpack.c.h.b16 %v1249
    %v2494 = vunpack.c.l.b16 %v1250
    %v2495 = vunpack.c.h.b16 %v1250
    %v2496 = vunpack.c.l.b16 %v1251
    %v2497 = vunpack.c.h.b16 %v1251
    %v2498 = vunpack.c.l.b16 %v1252
    %v2499 = vunpack.c.h.b16 %v1252
    %v2500 = vunpack.c.l.b16 %v1253
    %v2501 = vunpack.c.h.b16 %v1253
    %v2502 = vunpack.c.l.b16 %v1254
    %v2503 = vunpack.c.h.b16 %v1254
    %v2504 = vunpack.c.l.b16 %v1255
    %v2505 = vunpack.c.h.b16 %v1255
    %v2506 = vunpack.c.l.b16 %v1256
    %v2507 = vunpack.c.h.b16 %v1256
    %v2508 = vunpack.c.l.b16 %v1257
    %v2509 = vunpack.c.h.b16 %v1257
    %v2510 = vunpack.c.l.b16 %v1258
    %v2511 = vunpack.c.h.b16 %v1258
    %v2512 = vunpack.c.l.b16 %v1259
    %v2513 = vunpack.c.h.b16 %v1259
    %v2514 = vunpack.c.l.b16 %v1260
    %v2515 = vunpack.c.h.b16 %v1260
    %v2516 = vunpack.c.l.b16 %v1261
    %v2517 = vunpack.c.h.b16 %v1261
    %v2518 = vunpack.c.l.b16 %v1262
    %v2519 = vunpack.c.h.b16 %v1262
    %v2520 = vunpack.c.l.b16 %v1263
    %v2521 = vunpack.c.h.b16 %v1263
    %v2522 = vunpack.c.l.b16 %v1264
    %v2523 = vunpack.c.h.b16 %v1264
    %v2524 = vunpack.c.l.b16 %v1265
    %v2525 = vunpack.c.h.b16 %v1265
    %v2526 = vunpack.c.l.b16 %v1266
    %v2527 = vunpack.c.h.b16 %v1266
    %v2528 = vunpack.c.l.b16 %v1267
    %v2529 = vunpack.c.h.b16 %v1267
    %v2530 = vunpack.c.l.b16 %v1268
    %v2531 = vunpack.c.h.b16 %v1268
    %v2532 = vunpack.c.l.b16 %v1269
    %v2533 = vunpack.c.h.b16 %v1269
    %v2534 = vunpack.c.l.b16 %v1270
    %v2535 = vunpack.c.h.b16 %v1270
    %v2536 = vunpack.c.l.b16 %v1271
    %v2537 = vunpack.c.h.b16 %v1271
    %v2538 = vunpack.c.l.b16 %v1272
    %v2539 = vunpack.c.h.b16 %v1272
    %v2540 = vunpack.c.l.b16 %v1273
    %v2541 = vunpack.c.h.b16 %v1273
    %v2542 = vunpack.c.l.b16 %v1274
    %v2543 = vunpack.c.h.b16 %v1274
    %v2544 = vunpack.c.l.b16 %v1275
    %v2545 = vunpack.c.h.b16 %v1275
    %v2546 = vunpack.c.l.b16 %v1276
    %v2547 = vunpack.c.h.b16 %v1276
    %v2548 = vunpack.c.l.b16 %v1277
    %v2549 = vunpack.c.h.b16 %v1277
    %v2550 = vunpack.c.l.b16 %v1278
    %v2551 = vunpack.c.h.b16 %v1278
    %v2552 = vunpack.c.l.b16 %v1279
    %v2553 = vunpack.c.h.b16 %v1279
    %v2554 = vunpack.c.l.b16 %v1280
    %v2555 = vunpack.c.h.b16 %v1280
    %v2556 = vunpack.c.l.b16 %v1281
    %v2557 = vunpack.c.h.b16 %v1281
    %v2558 = vunpack.c.l.b16 %v1282
    %v2559 = vunpack.c.h.b16 %v1282
    %v2560 = vunpack.c.l.b16 %v1283
    %v2561 = vunpack.c.h.b16 %v1283
    %v2562 = vunpack.c.l.b16 %v1284
    %v2563 = vunpack.c.h.b16 %v1284
    %v2564 = vunpack.c.l.b16 %v1285
    %v2565 = vunpack.c.h.b16 %v1285
    %v2566 = vunpack.c.l.b16 %v1286
    %v2567 = vunpack.c.h.b16 %v1286
    %v2568 = vunpack.c.l.b16 %v1287
    %v2569 = vunpack.c.h.b16 %v1287
    %v2570 = vunpack.c.l.b16 %v1288
    %v2571 = vunpack.c.h.b16 %v1288
    %v2572 = vunpack.c.l.b16 %v1289
    %v2573 = vunpack.c.h.b16 %v1289
    %v2574 = vunpack.c.l.b16 %v1290
    %v2575 = vunpack.c.h.b16 %v1290
    %v2576 = vunpack.c.l.b16 %v1291
    %v2577 = vunpack.c.h.b16 %v1291
    %v2578 = vunpack.c.l.b16 %v1292
    %v2579 = vunpack.c.h.b16 %v1292
    %v2580 = vunpack.c.l.b16 %v1293
    %v2581 = vunpack.c.h.b16 %v1293
    %v2582 = vunpack.c.l.b16 %v1294
    %v2583 = vunpack.c.h.b16 %v1294
    %v2584 = vunpack.c.l.b16 %v1295
    %v2585 = vunpack.c.h.b16 %v1295
    %v2586 = vunpack.c.l.b16 %v1296
    %v2587 = vunpack.c.h.b16 %v1296
    %v2588 = vunpack.c.l.b16 %v1297
    %v2589 = vunpack.c.h.b16 %v1297
    %v2590 = vunpack.c.l.b16 %v1298
    %v2591 = vunpack.c.h.b16 %v1298
    %v2592 = vunpack.c.l.b16 %v1299
    %v2593 = vunpack.c.h.b16 %v1299
    %v2594 = vunpack.c.l.b16 %v1300
    %v2595 = vunpack.c.h.b16 %v1300
    %v2596 = vunpack.c.l.b16 %v1301
    %v2597 = vunpack.c.h.b16 %v1301
    %v2598 = vunpack.c.l.b16 %v1302
    %v2599 = vunpack.c.h.b16 %v1302
    %v2600 = vunpack.c.l.b16 %v1303
    %v2601 = vunpack.c.h.b16 %v1303
    %v2602 = vunpack.c.l.b16 %v1304
    %v2603 = vunpack.c.h.b16 %v1304
    %v2604 = vunpack.c.l.b16 %v1305
    %v2605 = vunpack.c.h.b16 %v1305
    %v2606 = vunpack.c.l.b16 %v1306
    %v2607 = vunpack.c.h.b16 %v1306
    %v2608 = vunpack.c.l.b16 %v1307
    %v2609 = vunpack.c.h.b16 %v1307
    %v2610 = vunpack.c.l.b16 %v1308
    %v2611 = vunpack.c.h.b16 %v1308
    %v2612 = vunpack.c.l.b16 %v1309
    %v2613 = vunpack.c.h.b16 %v1309
    %v2614 = vunpack.c.l.b16 %v1310
    %v2615 = vunpack.c.h.b16 %v1310
    %v2616 = vunpack.c.l.b16 %v1311
    %v2617 = vunpack.c.h.b16 %v1311
    %v2618 = vunpack.c.l.b16 %v1312
    %v2619 = vunpack.c.h.b16 %v1312
    %v2620 = vunpack.c.l.b16 %v1313
    %v2621 = vunpack.c.h.b16 %v1313
    %v2622 = vunpack.c.l.b16 %v1314
    %v2623 = vunpack.c.h.b16 %v1314
    %v2624 = vunpack.c.l.b16 %v1315
    %v2625 = vunpack.c.h.b16 %v1315
    %v2626 = vunpack.c.l.b16 %v1316
    %v2627 = vunpack.c.h.b16 %v1316
    %v2628 = vunpack.c.l.b16 %v1317
    %v2629 = vunpack.c.h.b16 %v1317
    %v2630 = vunpack.c.l.b16 %v1318
    %v2631 = vunpack.c.h.b16 %v1318
    %v2632 = vunpack.c.l.b16 %v1319
    %v2633 = vunpack.c.h.b16 %v1319
    %v2634 = vunpack.c.l.b16 %v1320
    %v2635 = vunpack.c.h.b16 %v1320
    %v2636 = vunpack.c.l.b16 %v1321
    %v2637 = vunpack.c.h.b16 %v1321
    %v2638 = vunpack.c.l.b16 %v1322
    %v2639 = vunpack.c.h.b16 %v1322
    %v2640 = vunpack.c.l.b16 %v1323
    %v2641 = vunpack.c.h.b16 %v1323
    %v2642 = vunpack.c.l.b16 %v1324
    %v2643 = vunpack.c.h.b16 %v1324
    %v2644 = vunpack.c.l.b16 %v1325
    %v2645 = vunpack.c.h.b16 %v1325
    %v2646 = vunpack.c.l.b16 %v1326
    %v2647 = vunpack.c.h.b16 %v1326
    %v2648 = vunpack.c.l.b16 %v1327
    %v2649 = vunpack.c.h.b16 %v1327
    %v2650 = vunpack.c.l.b16 %v1328
    %v2651 = vunpack.c.h.b16 %v1328
    %v2652 = vunpack.c.l.b16 %v1329
    %v2653 = vunpack.c.h.b16 %v1329
    %v2654 = vunpack.c.l.b16 %v1330
    %v2655 = vunpack.c.h.b16 %v1330
    %v2656 = vunpack.c.l.b16 %v1331
    %v2657 = vunpack.c.h.b16 %v1331
    %v2658 = vunpack.c.l.b16 %v1332
    %v2659 = vunpack.c.h.b16 %v1332
    %v2660 = vunpack.c.l.b16 %v1333
    %v2661 = vunpack.c.h.b16 %v1333
    %v2662 = vunpack.c.l.b16 %v1334
    %v2663 = vunpack.c.h.b16 %v1334
    %v2664 = vunpack.c.l.b16 %v1335
    %v2665 = vunpack.c.h.b16 %v1335
    %v2666 = vunpack.c.l.b16 %v1336
    %v2667 = vunpack.c.h.b16 %v1336
    %v2668 = vunpack.c.l.b16 %v1337
    %v2669 = vunpack.c.h.b16 %v1337
    %v2670 = vunpack.c.l.b16 %v1338
    %v2671 = vunpack.c.h.b16 %v1338
    %v2672 = vunpack.c.l.b16 %v1339
    %v2673 = vunpack.c.h.b16 %v1339
    %v2674 = vunpack.c.l.b16 %v1340
    %v2675 = vunpack.c.h.b16 %v1340
    %v2676 = vunpack.c.l.b16 %v1341
    %v2677 = vunpack.c.h.b16 %v1341
    %v2678 = vunpack.c.l.b16 %v1342
    %v2679 = vunpack.c.h.b16 %v1342
    %v2680 = vunpack.c.l.b16 %v1343
    %v2681 = vunpack.c.h.b16 %v1343
    %v2682 = vunpack.c.l.b16 %v1344
    %v2683 = vunpack.c.h.b16 %v1344
    %v2684 = vunpack.c.l.b16 %v1345
    %v2685 = vunpack.c.h.b16 %v1345
    %v2686 = vunpack.c.l.b16 %v1346
    %v2687 = vunpack.c.h.b16 %v1346
    %v2688 = vunpack.c.l.b16 %v1347
    %v2689 = vunpack.c.h.b16 %v1347
    %v2690 = vunpack.c.l.b16 %v1348
    %v2691 = vunpack.c.h.b16 %v1348
    %v2692 = vunpack.c.l.b16 %v1349
    %v2693 = vunpack.c.h.b16 %v1349
    %v2694 = vunpack.c.l.b16 %v1350
    %v2695 = vunpack.c.h.b16 %v1350
    %v2696 = vunpack.c.l.b16 %v1351
    %v2697 = vunpack.c.h.b16 %v1351
    %v2698 = vunpack.c.l.b16 %v1352
    %v2699 = vunpack.c.h.b16 %v1352
    %v2700 = vunpack.c.l.b16 %v1353
    %v2701 = vunpack.c.h.b16 %v1353
    %v2702 = vunpack.c.l.b16 %v1354
    %v2703 = vunpack.c.h.b16 %v1354
    %v2704 = vunpack.c.l.b16 %v1355
    %v2705 = vunpack.c.h.b16 %v1355
    %v2706 = vunpack.c.l.b16 %v1356
    %v2707 = vunpack.c.h.b16 %v1356
    %v2708 = vunpack.c.l.b16 %v1357
    %v2709 = vunpack.c.h.b16 %v1357
    %v2710 = vunpack.c.l.b16 %v1358
    %v2711 = vunpack.c.h.b16 %v1358
    %v2712 = vunpack.c.l.b16 %v1359
    %v2713 = vunpack.c.h.b16 %v1359
    %v2714 = vunpack.c.l.b16 %v1360
    %v2715 = vunpack.c.h.b16 %v1360
    %v2716 = vunpack.c.l.b16 %v1361
    %v2717 = vunpack.c.h.b16 %v1361
    %v2718 = vunpack.c.l.b16 %v1362
    %v2719 = vunpack.c.h.b16 %v1362
    %v2720 = vunpack.c.l.b16 %v1363
    %v2721 = vunpack.c.h.b16 %v1363
    %v2722 = vunpack.c.l.b16 %v1364
    %v2723 = vunpack.c.h.b16 %v1364
    %v2724 = vunpack.c.l.b16 %v1365
    %v2725 = vunpack.c.h.b16 %v1365
    %v2726 = vunpack.c.l.b16 %v1366
    %v2727 = vunpack.c.h.b16 %v1366
    %v2728 = vunpack.c.l.b16 %v1367
    %v2729 = vunpack.c.h.b16 %v1367
    %v2730 = vunpack.c.l.b16 %v1368
    %v2731 = vunpack.c.h.b16 %v1368
    %v2732 = vunpack.c.l.b16 %v1369
    %v2733 = vunpack.c.h.b16 %v1369
    %v2734 = vunpack.c.l.b16 %v1370
    %v2735 = vunpack.c.h.b16 %v1370
    %v2736 = vunpack.c.l.b16 %v1371
    %v2737 = vunpack.c.h.b16 %v1371
    %v2738 = vunpack.c.l.b16 %v1372
    %v2739 = vunpack.c.h.b16 %v1372
    %v2740 = vunpack.c.l.b16 %v1373
    %v2741 = vunpack.c.h.b16 %v1373
    %v2742 = vunpack.c.l.b16 %v1374
    %v2743 = vunpack.c.h.b16 %v1374
    %v2744 = vunpack.c.l.b16 %v1375
    %v2745 = vunpack.c.h.b16 %v1375
    %v2746 = vunpack.c.l.b16 %v1376
    %v2747 = vunpack.c.h.b16 %v1376
    %v2748 = vunpack.c.l.b16 %v1377
    %v2749 = vunpack.c.h.b16 %v1377
    %v2750 = vunpack.c.l.b16 %v1378
    %v2751 = vunpack.c.h.b16 %v1378
    %v2752 = vunpack.c.l.b16 %v1379
    %v2753 = vunpack.c.h.b16 %v1379
    %v2754 = vunpack.c.l.b16 %v1380
    %v2755 = vunpack.c.h.b16 %v1380
    %v2756 = vunpack.c.l.b16 %v1381
    %v2757 = vunpack.c.h.b16 %v1381
    %v2758 = vunpack.c.l.b16 %v1382
    %v2759 = vunpack.c.h.b16 %v1382
    %v2760 = vunpack.c.l.b16 %v1383
    %v2761 = vunpack.c.h.b16 %v1383
    %v2762 = vunpack.c.l.b16 %v1384
    %v2763 = vunpack.c.h.b16 %v1384
    %v2764 = vunpack.c.l.b16 %v1385
    %v2765 = vunpack.c.h.b16 %v1385
    %v2766 = vunpack.c.l.b16 %v1386
    %v2767 = vunpack.c.h.b16 %v1386
    %v2768 = vunpack.c.l.b16 %v1387
    %v2769 = vunpack.c.h.b16 %v1387
    %v2770 = vunpack.c.l.b16 %v1388
    %v2771 = vunpack.c.h.b16 %v1388
    %v2772 = vunpack.c.l.b16 %v1389
    %v2773 = vunpack.c.h.b16 %v1389
    %v2774 = vunpack.c.l.b16 %v1390
    %v2775 = vunpack.c.h.b16 %v1390
    %v2776 = vunpack.c.l.b16 %v1391
    %v2777 = vunpack.c.h.b16 %v1391
    %v2778 = vunpack.c.l.b16 %v1392
    %v2779 = vunpack.c.h.b16 %v1392
    %v2780 = vunpack.c.l.b16 %v1393
    %v2781 = vunpack.c.h.b16 %v1393
    %v2782 = vunpack.c.l.b16 %v1394
    %v2783 = vunpack.c.h.b16 %v1394
    %v2784 = vunpack.c.l.b16 %v1395
    %v2785 = vunpack.c.h.b16 %v1395
    %v2786 = vunpack.c.l.b16 %v1396
    %v2787 = vunpack.c.h.b16 %v1396
    %v2788 = vunpack.c.l.b16 %v1397
    %v2789 = vunpack.c.h.b16 %v1397
    %v2790 = vunpack.c.l.b16 %v1398
    %v2791 = vunpack.c.h.b16 %v1398
    %v2792 = vunpack.c.l.b16 %v1399
    %v2793 = vunpack.c.h.b16 %v1399
    %v2794 = vunpack.c.l.b16 %v1400
    %v2795 = vunpack.c.h.b16 %v1400
    %v2796 = vunpack.c.l.b16 %v1401
    %v2797 = vunpack.c.h.b16 %v1401
    %v2798 = vunpack.c.l.b16 %v1402
    %v2799 = vunpack.c.h.b16 %v1402
    %v2800 = vunpack.c.l.b16 %v1403
    %v2801 = vunpack.c.h.b16 %v1403
    %v2802 = vunpack.c.l.b16 %v1404
    %v2803 = vunpack.c.h.b16 %v1404
    %v2804 = vunpack.c.l.b16 %v1405
    %v2805 = vunpack.c.h.b16 %v1405
    %v2806 = vunpack.c.l.b16 %v1406
    %v2807 = vunpack.c.h.b16 %v1406
    %v2808 = vunpack.c.l.b16 %v1407
    %v2809 = vunpack.c.h.b16 %v1407
    %v2810 = vunpack.c.l.b16 %v1408
    %v2811 = vunpack.c.h.b16 %v1408
    %v2812 = vunpack.c.l.b16 %v1409
    %v2813 = vunpack.c.h.b16 %v1409
    %v2814 = vunpack.c.l.b16 %v1410
    %v2815 = vunpack.c.h.b16 %v1410
    %v2816 = vunpack.c.l.b16 %v1411
    %v2817 = vunpack.c.h.b16 %v1411
    %v2818 = vunpack.c.l.b16 %v1412
    %v2819 = vunpack.c.h.b16 %v1412
    %v2820 = vunpack.c.l.b16 %v1413
    %v2821 = vunpack.c.h.b16 %v1413
    %v2822 = vunpack.c.l.b16 %v1414
    %v2823 = vunpack.c.h.b16 %v1414
    %v2824 = vunpack.c.l.b16 %v1415
    %v2825 = vunpack.c.h.b16 %v1415
    %v2826 = vunpack.c.l.b16 %v1416
    %v2827 = vunpack.c.h.b16 %v1416
    %v2828 = vunpack.c.l.b16 %v1417
    %v2829 = vunpack.c.h.b16 %v1417
    %v2830 = vunpack.c.l.b16 %v1418
    %v2831 = vunpack.c.h.b16 %v1418
    %v2832 = vunpack.c.l.b16 %v1419
    %v2833 = vunpack.c.h.b16 %v1419
    %v2834 = vunpack.c.l.b16 %v1420
    %v2835 = vunpack.c.h.b16 %v1420
    %v2836 = vunpack.c.l.b16 %v1421
    %v2837 = vunpack.c.h.b16 %v1421
    %v2838 = vunpack.c.l.b16 %v1422
    %v2839 = vunpack.c.h.b16 %v1422
    %v2840 = vunpack.c.l.b16 %v1423
    %v2841 = vunpack.c.h.b16 %v1423
    %v2842 = vunpack.c.l.b16 %v1424
    %v2843 = vunpack.c.h.b16 %v1424
    %v2844 = vunpack.c.l.b16 %v1425
    %v2845 = vunpack.c.h.b16 %v1425
    %v2846 = vunpack.c.l.b16 %v1426
    %v2847 = vunpack.c.h.b16 %v1426
    %v2848 = vunpack.c.l.b16 %v1427
    %v2849 = vunpack.c.h.b16 %v1427
    %v2850 = vunpack.c.l.b16 %v1428
    %v2851 = vunpack.c.h.b16 %v1428
    %v2852 = vunpack.c.l.b16 %v1429
    %v2853 = vunpack.c.h.b16 %v1429
    %v2854 = vunpack.c.l.b16 %v1430
    %v2855 = vunpack.c.h.b16 %v1430
    %v2856 = vunpack.c.l.b16 %v1431
    %v2857 = vunpack.c.h.b16 %v1431
    %v2858 = vunpack.c.l.b16 %v1432
    %v2859 = vunpack.c.h.b16 %v1432
    %v2860 = vunpack.c.l.b16 %v1433
    %v2861 = vunpack.c.h.b16 %v1433
    %v2862 = vunpack.c.l.b16 %v1434
    %v2863 = vunpack.c.h.b16 %v1434
    %v2864 = vunpack.c.l.b16 %v1435
    %v2865 = vunpack.c.h.b16 %v1435
    %v2866 = vunpack.c.l.b16 %v1436
    %v2867 = vunpack.c.h.b16 %v1436
    %v2868 = vunpack.c.l.b16 %v1437
    %v2869 = vunpack.c.h.b16 %v1437
    %v2870 = vunpack.c.l.b16 %v1438
    %v2871 = vunpack.c.h.b16 %v1438
    %v2872 = vunpack.c.l.b16 %v1439
    %v2873 = vunpack.c.h.b16 %v1439
    %v2874 = vunpack.c.l.b16 %v1440
    %v2875 = vunpack.c.h.b16 %v1440
    %v2876 = vunpack.c.l.b16 %v1441
    %v2877 = vunpack.c.h.b16 %v1441
    %v2878 = vunpack.c.l.b16 %v1442
    %v2879 = vunpack.c.h.b16 %v1442
    %v2880 = vunpack.c.l.b16 %v1443
    %v2881 = vunpack.c.h.b16 %v1443
    %v2882 = vunpack.c.l.b16 %v1444
    %v2883 = vunpack.c.h.b16 %v1444
    %v2884 = vunpack.c.l.b16 %v1445
    %v2885 = vunpack.c.h.b16 %v1445
    %v2886 = vunpack.c.l.b16 %v1446
    %v2887 = vunpack.c.h.b16 %v1446
    %v2888 = vunpack.c.l.b16 %v1447
    %v2889 = vunpack.c.h.b16 %v1447
    %v2890 = vunpack.c.l.b16 %v1448
    %v2891 = vunpack.c.h.b16 %v1448
    %v2892 = vunpack.c.l.b16 %v1449
    %v2893 = vunpack.c.h.b16 %v1449
    %v2894 = vunpack.c.l.b16 %v1450
    %v2895 = vunpack.c.h.b16 %v1450
    %v2896 = vunpack.c.l.b16 %v1451
    %v2897 = vunpack.c.h.b16 %v1451
    %v2898 = vunpack.c.l.b16 %v1452
    %v2899 = vunpack.c.h.b16 %v1452
    %v2900 = vunpack.c.l.b16 %v1453
    %v2901 = vunpack.c.h.b16 %v1453
    %v2902 = vunpack.c.l.b16 %v1454
    %v2903 = vunpack.c.h.b16 %v1454
    %v2904 = vunpack.c.l.b16 %v1455
    %v2905 = vunpack.c.h.b16 %v1455
    %v2906 = vunpack.c.l.b16 %v1456
    %v2907 = vunpack.c.h.b16 %v1456
    %v2908 = vunpack.c.l.b16 %v1457
    %v2909 = vunpack.c.h.b16 %v1457
    %v2910 = vunpack.c.l.b16 %v1458
    %v2911 = vunpack.c.h.b16 %v1458
    %v2912 = vunpack.c.l.b16 %v1459
    %v2913 = vunpack.c.h.b16 %v1459
    %v2914 = vunpack.c.l.b16 %v1460
    %v2915 = vunpack.c.h.b16 %v1460
    %v2916 = vunpack.c.l.b16 %v1461
    %v2917 = vunpack.c.h.b16 %v1461
    %v2918 = vunpack.c.l.b16 %v1462
    %v2919 = vunpack.c.h.b16 %v1462
    %v2920 = vunpack.c.l.b16 %v1463
    %v2921 = vunpack.c.h.b16 %v1463
    %v2922 = vunpack.c.l.b16 %v1464
    %v2923 = vunpack.c.h.b16 %v1464
    %v2924 = vunpack.c.l.b16 %v1465
    %v2925 = vunpack.c.h.b16 %v1465
    %v2926 = vunpack.c.l.b16 %v1466
    %v2927 = vunpack.c.h.b16 %v1466
    %v2928 = vunpack.c.l.b16 %v1467
    %v2929 = vunpack.c.h.b16 %v1467
    %v2930 = vunpack.c.l.b16 %v1468
    %v2931 = vunpack.c.h.b16 %v1468
    %v2932 = vunpack.c.l.b16 %v1469
    %v2933 = vunpack.c.h.b16 %v1469
    %v2934 = vunpack.c.l.b16 %v1470
    %v2935 = vunpack.c.h.b16 %v1470
    %v2936 = vunpack.c.l.b16 %v1471
    %v2937 = vunpack.c.h.b16 %v1471
    %v2938 = vunpack.c.l.b16 %v1472
    %v2939 = vunpack.c.h.b16 %v1472
    %v2940 = vunpack.c.l.b16 %v1473
    %v2941 = vunpack.c.h.b16 %v1473
    %v2942 = vunpack.c.l.b16 %v1474
    %v2943 = vunpack.c.h.b16 %v1474
    %v2944 = vunpack.c.l.b16 %v1475
    %v2945 = vunpack.c.h.b16 %v1475
    %v2946 = vunpack.c.l.b16 %v1476
    %v2947 = vunpack.c.h.b16 %v1476
    %v2948 = vunpack.c.l.b16 %v1477
    %v2949 = vunpack.c.h.b16 %v1477
    %v2950 = vunpack.c.l.b16 %v1478
    %v2951 = vunpack.c.h.b16 %v1478
    %v2952 = vunpack.c.l.b16 %v1479
    %v2953 = vunpack.c.h.b16 %v1479
    %v2954 = vunpack.c.l.b16 %v1480
    %v2955 = vunpack.c.h.b16 %v1480
    %v2956 = vunpack.c.l.b16 %v1481
    %v2957 = vunpack.c.h.b16 %v1481
    %v2958 = vunpack.c.l.b16 %v1482
    %v2959 = vunpack.c.h.b16 %v1482
    %v2960 = vunpack.c.l.b16 %v1483
    %v2961 = vunpack.c.h.b16 %v1483
    %v2962 = vunpack.c.l.b16 %v1484
    %v2963 = vunpack.c.h.b16 %v1484
    %v2964 = vunpack.c.l.b16 %v1485
    %v2965 = vunpack.c.h.b16 %v1485
    %v2966 = vunpack.c.l.b16 %v1486
    %v2967 = vunpack.c.h.b16 %v1486
    %v2968 = vunpack.c.l.b16 %v1487
    %v2969 = vunpack.c.h.b16 %v1487
    %v2970 = vunpack.c.l.b16 %v1488
    %v2971 = vunpack.c.h.b16 %v1488
    %v2972 = vunpack.c.l.b16 %v1489
    %v2973 = vunpack.c.h.b16 %v1489
    %v2974 = vunpack.c.l.b16 %v1490
    %v2975 = vunpack.c.h.b16 %v1490
    %v2976 = vunpack.c.l.b16 %v1491
    %v2977 = vunpack.c.h.b16 %v1491
    %v2978 = vunpack.c.l.b16 %v1492
    %v2979 = vunpack.c.h.b16 %v1492
    %v2980 = vunpack.c.l.b16 %v1493
    %v2981 = vunpack.c.h.b16 %v1493
    %v2982 = vunpack.c.l.b16 %v1494
    %v2983 = vunpack.c.h.b16 %v1494
    %v2984 = vunpack.c.l.b16 %v1495
    %v2985 = vunpack.c.h.b16 %v1495
    %v2986 = vunpack.c.l.b16 %v1496
    %v2987 = vunpack.c.h.b16 %v1496
    %v2988 = vunpack.c.l.b16 %v1497
    %v2989 = vunpack.c.h.b16 %v1497
    %v2990 = vunpack.c.l.b16 %v1498
    %v2991 = vunpack.c.h.b16 %v1498
    %v2992 = vunpack.c.l.b16 %v1499
    %v2993 = vunpack.c.h.b16 %v1499
    %v2994 = vunpack.c.l.b16 %v1500
    %v2995 = vunpack.c.h.b16 %v1500
    %v2996 = vunpack.c.l.b16 %v1501
    %v2997 = vunpack.c.h.b16 %v1501
    %v2998 = vunpack.c.l.b16 %v1502
    %v2999 = vunpack.c.h.b16 %v1502
    %v3000 = vunpack.c.l.b16 %v1503
    %v3001 = vunpack.c.h.b16 %v1503
    %v3002 = vunpack.c.l.b16 %v1504
    %v3003 = vunpack.c.h.b16 %v1504
    %v3004 = vunpack.c.l.b16 %v1505
    %v3005 = vunpack.c.h.b16 %v1505
    %v3006 = vunpack.c.l.b16 %v1506
    %v3007 = vunpack.c.h.b16 %v1506
    %v3008 = vunpack.c.l.b16 %v1507
    %v3009 = vunpack.c.h.b16 %v1507
    %v3010 = vunpack.c.l.b16 %v1508
    %v3011 = vunpack.c.h.b16 %v1508
    %v3012 = vunpack.c.l.b16 %v1509
    %v3013 = vunpack.c.h.b16 %v1509
    %v3014 = vunpack.c.l.b16 %v1510
    %v3015 = vunpack.c.h.b16 %v1510
    %v3016 = vunpack.c.l.b16 %v1511
    %v3017 = vunpack.c.h.b16 %v1511
    %v3018 = vunpack.c.l.b16 %v1512
    %v3019 = vunpack.c.h.b16 %v1512
    %v3020 = vunpack.c.l.b16 %v1513
    %v3021 = vunpack.c.h.b16 %v1513
    %v3022 = vunpack.c.l.b16 %v1514
    %v3023 = vunpack.c.h.b16 %v1514
    %v3024 = vunpack.c.l.b16 %v1515
    %v3025 = vunpack.c.h.b16 %v1515
    %v3026 = vunpack.c.l.b16 %v1516
    %v3027 = vunpack.c.h.b16 %v1516
    %v3028 = vunpack.c.l.b16 %v1517
    %v3029 = vunpack.c.h.b16 %v1517
    %v3030 = vunpack.c.l.b16 %v1518
    %v3031 = vunpack.c.h.b16 %v1518
    %v3032 = vunpack.c.l.b16 %v1519
    %v3033 = vunpack.c.h.b16 %v1519
    %v3034 = vunpack.c.l.b16 %v1520
    %v3035 = vunpack.c.h.b16 %v1520
    %v3036 = vunpack.c.l.b16 %v1521
    %v3037 = vunpack.c.h.b16 %v1521
    %v3038 = vunpack.c.l.b16 %v1522
    %v3039 = vunpack.c.h.b16 %v1522
    %v3040 = vunpack.c.l.b16 %v1523
    %v3041 = vunpack.c.h.b16 %v1523
    %v3042 = vunpack.c.l.b16 %v1524
    %v3043 = vunpack.c.h.b16 %v1524
    %v3044 = vunpack.c.l.b16 %v1525
    %v3045 = vunpack.c.h.b16 %v1525
    %v3046 = vunpack.c.l.b16 %v1526
    %v3047 = vunpack.c.h.b16 %v1526
    %v3048 = vunpack.c.l.b16 %v1527
    %v3049 = vunpack.c.h.b16 %v1527
    %v3050 = vunpack.c.l.b16 %v1528
    %v3051 = vunpack.c.h.b16 %v1528
    %v3052 = vunpack.c.l.b16 %v1529
    %v3053 = vunpack.c.h.b16 %v1529
    %v3054 = vunpack.c.l.b16 %v1530
    %v3055 = vunpack.c.h.b16 %v1530
    %v3056 = vunpack.c.l.b16 %v1531
    %v3057 = vunpack.c.h.b16 %v1531
    %v3058 = vunpack.c.l.b16 %v1532
    %v3059 = vunpack.c.h.b16 %v1532
    %v3060 = vunpack.c.l.b16 %v1533
    %v3061 = vunpack.c.h.b16 %v1533
    %v3062 = vunpack.c.l.b16 %v1534
    %v3063 = vunpack.c.h.b16 %v1534
    %v3064 = vunpack.c.l.b16 %v1535
    %v3065 = vunpack.c.h.b16 %v1535
    %v3066 = vunpack.c.l.b16 %v1536
    %v3067 = vunpack.c.h.b16 %v1536
    %v3068 = vunpack.c.l.b16 %v1537
    %v3069 = vunpack.c.h.b16 %v1537
    %v3070 = vunpack.c.l.b16 %v1538
    %v3071 = vunpack.c.h.b16 %v1538
    %v3072 = vunpack.c.l.b16 %v1539
    %v3073 = vunpack.c.h.b16 %v1539
    %v3074 = vunpack.c.l.b16 %v1540
    %v3075 = vunpack.c.h.b16 %v1540
    %v3076 = vunpack.c.l.b16 %v1541
    %v3077 = vunpack.c.h.b16 %v1541
    %v3078 = vunpack.c.l.b16 %v1542
    %v3079 = vunpack.c.h.b16 %v1542
    %v3080 = vunpack.c.l.b16 %v1543
    %v3081 = vunpack.c.h.b16 %v1543
    %v3082 = vunpack.c.l.b16 %v1544
    %v3083 = vunpack.c.h.b16 %v1544
    %v3084 = vunpack.c.l.b16 %v1545
    %v3085 = vunpack.c.h.b16 %v1545
    %v3086 = vunpack.c.l.b16 %v1546
    %v3087 = vunpack.c.h.b16 %v1546
    %v3088 = vunpack.c.l.b16 %v1547
    %v3089 = vunpack.c.h.b16 %v1547
    %v3090 = vunpack.c.l.b16 %v1548
    %v3091 = vunpack.c.h.b16 %v1548
    %v3092 = vunpack.c.l.b16 %v1549
    %v3093 = vunpack.c.h.b16 %v1549
    %v3094 = vunpack.c.l.b16 %v1550
    %v3095 = vunpack.c.h.b16 %v1550
    %v3096 = vunpack.c.l.b16 %v1551
    %v3097 = vunpack.c.h.b16 %v1551
    %v3098 = vunpack.c.l.b16 %v1552
    %v3099 = vunpack.c.h.b16 %v1552
    %v3100 = vunpack.c.l.b16 %v1553
    %v3101 = vunpack.c.h.b16 %v1553
    %v3102 = vunpack.c.l.b16 %v1554
    %v3103 = vunpack.c.h.b16 %v1554
    %v3104 = vunpack.c.l.b16 %v1555
    %v3105 = vunpack.c.h.b16 %v1555
    %v3106 = vunpack.c.l.b16 %v1556
    %v3107 = vunpack.c.h.b16 %v1556
    %v3108 = vunpack.c.l.b16 %v1557
    %v3109 = vunpack.c.h.b16 %v1557
    %v3110 = vunpack.c.l.b16 %v1558
    %v3111 = vunpack.c.h.b16 %v1558
    %v3112 = vunpack.c.l.b16 %v1559
    %v3113 = vunpack.c.h.b16 %v1559
    %v3114 = vunpack.c.l.b16 %v1560
    %v3115 = vunpack.c.h.b16 %v1560
    %v3116 = vunpack.c.l.b16 %v1561
    %v3117 = vunpack.c.h.b16 %v1561
    %v3118 = vunpack.c.l.b16 %v1562
    %v3119 = vunpack.c.h.b16 %v1562
    %v3120 = vunpack.c.l.b16 %v1563
    %v3121 = vunpack.c.h.b16 %v1563
    %v3122 = vunpack.c.l.b16 %v1564
    %v3123 = vunpack.c.h.b16 %v1564
    %v3124 = vunpack.c.l.b16 %v1565
    %v3125 = vunpack.c.h.b16 %v1565
    %v3126 = vunpack.c.l.b16 %v1566
    %v3127 = vunpack.c.h.b16 %v1566
    %v3128 = vunpack.c.l.b16 %v1567
    %v3129 = vunpack.c.h.b16 %v1567
    %v3130 = vunpack.c.l.b16 %v1568
    %v3131 = vunpack.c.h.b16 %v1568
    %v3132 = vunpack.c.l.b16 %v1569
    %v3133 = vunpack.c.h.b16 %v1569
    %v3134 = vunpack.c.l.b16 %v1570
    %v3135 = vunpack.c.h.b16 %v1570
    %v3136 = vunpack.c.l.b16 %v1571
    %v3137 = vunpack.c.h.b16 %v1571
    %v3138 = vunpack.c.l.b16 %v1572
    %v3139 = vunpack.c.h.b16 %v1572
    %v3140 = vunpack.c.l.b16 %v1573
    %v3141 = vunpack.c.h.b16 %v1573
    %v3142 = vunpack.c.l.b16 %v1574
    %v3143 = vunpack.c.h.b16 %v1574
    %v3144 = vunpack.c.l.b16 %v1575
    %v3145 = vunpack.c.h.b16 %v1575
    %v3146 = vunpack.c.l.b16 %v1576
    %v3147 = vunpack.c.h.b16 %v1576
    %v3148 = vunpack.c.l.b16 %v1577
    %v3149 = vunpack.c.h.b16 %v1577
    %v3150 = vunpack.c.l.b16 %v1578
    %v3151 = vunpack.c.h.b16 %v1578
    %v3152 = vunpack.c.l.b16 %v1579
    %v3153 = vunpack.c.h.b16 %v1579
    %v3154 = vunpack.c.l.b16 %v1580
    %v3155 = vunpack.c.h.b16 %v1580
    %v3156 = vunpack.c.l.b16 %v1581
    %v3157 = vunpack.c.h.b16 %v1581
    %v3158 = vunpack.c.l.b16 %v1582
    %v3159 = vunpack.c.h.b16 %v1582
    %v3160 = vunpack.c.l.b16 %v1583
    %v3161 = vunpack.c.h.b16 %v1583
    %v3162 = vpack.c.b16 %v2146, %v2138
    %v3163 = vpack.c.b16 %v2147, %v2139
    %v3164 = vpack.c.b16 %v2148, %v2140
    %v3165 = vpack.c.b16 %v2149, %v2141
    %v3166 = vpack.c.b16 %v2150, %v2142
    %v3167 = vpack.c.b16 %v2151, %v2143
    %v3168 = vpack.c.b16 %v2152, %v2144
    %v3169 = vpack.c.b16 %v2153, %v2145
    %v3170 = vpack.c.b16 %v2162, %v2154
    %v3171 = vpack.c.b16 %v2163, %v2155
    %v3172 = vpack.c.b16 %v2164, %v2156
    %v3173 = vpack.c.b16 %v2165, %v2157
    %v3174 = vpack.c.b16 %v2166, %v2158
    %v3175 = vpack.c.b16 %v2167, %v2159
    %v3176 = vpack.c.b16 %v2168, %v2160
    %v3177 = vpack.c.b16 %v2169, %v2161
    %v3178 = vpack.c.b16 %v2178, %v2170
    %v3179 = vpack.c.b16 %v2179, %v2171
    %v3180 = vpack.c.b16 %v2180, %v2172
    %v3181 = vpack.c.b16 %v2181, %v2173
    %v3182 = vpack.c.b16 %v2182, %v2174
    %v3183 = vpack.c.b16 %v2183, %v2175
    %v3184 = vpack.c.b16 %v2184, %v2176
    %v3185 = vpack.c.b16 %v2185, %v2177
    %v3186 = vpack.c.b16 %v2194, %v2186
    %v3187 = vpack.c.b16 %v2195, %v2187
    %v3188 = vpack.c.b16 %v2196, %v2188
    %v3189 = vpack.c.b16 %v2197, %v2189
    %v3190 = vpack.c.b16 %v2198, %v2190
    %v3191 = vpack.c.b16 %v2199, %v2191
    %v3192 = vpack.c.b16 %v2200, %v2192
    %v3193 = vpack.c.b16 %v2201, %v2193
    %v3194 = vpack.c.b16 %v2210, %v2202
    %v3195 = vpack.c.b16 %v2211, %v2203
    %v3196 = vpack.c.b16 %v2212, %v2204
    %v3197 = vpack.c.b16 %v2213, %v2205
    %v3198 = vpack.c.b16 %v2214, %v2206
    %v3199 = vpack.c.b16 %v2215, %v2207
    %v3200 = vpack.c.b16 %v2216, %v2208
    %v3201 = vpack.c.b16 %v2217, %v2209
    %v3202 = vpack.c.b16 %v2226, %v2218
    %v3203 = vpack.c.b16 %v2227, %v2219
    %v3204 = vpack.c.b16 %v2228, %v2220
    %v3205 = vpack.c.b16 %v2229, %v2221
    %v3206 = vpack.c.b16 %v2230, %v2222
    %v3207 = vpack.c.b16 %v2231, %v2223
    %v3208 = vpack.c.b16 %v2232, %v2224
    %v3209 = vpack.c.b16 %v2233, %v2225
    %v3210 = vpack.c.b16 %v2242, %v2234
    %v3211 = vpack.c.b16 %v2243, %v2235
    %v3212 = vpack.c.b16 %v2244, %v2236
    %v3213 = vpack.c.b16 %v2245, %v2237
    %v3214 = vpack.c.b16 %v2246, %v2238
    %v3215 = vpack.c.b16 %v2247, %v2239
    %v3216 = vpack.c.b16 %v2248, %v2240
    %v3217 = vpack.c.b16 %v2249, %v2241
    %v3218 = vpack.c.b16 %v2258, %v2250
    %v3219 = vpack.c.b16 %v2259, %v2251
    %v3220 = vpack.c.b16 %v2260, %v2252
    %v3221 = vpack.c.b16 %v2261, %v2253
    %v3222 = vpack.c.b16 %v2262, %v2254
    %v3223 = vpack.c.b16 %v2263, %v2255
    %v3224 = vpack.c.b16 %v2264, %v2256
    %v3225 = vpack.c.b16 %v2265, %v2257
    %v3226 = vpack.c.b16 %v2274, %v2266
    %v3227 = vpack.c.b16 %v2275, %v2267
    %v3228 = vpack.c.b16 %v2276, %v2268
    %v3229 = vpack.c.b16 %v2277, %v2269
    %v3230 = vpack.c.b16 %v2278, %v2270
    %v3231 = vpack.c.b16 %v2279, %v2271
    %v3232 = vpack.c.b16 %v2280, %v2272
    %v3233 = vpack.c.b16 %v2281, %v2273
    %v3234 = vpack.c.b16 %v2290, %v2282
    %v3235 = vpack.c.b16 %v2291, %v2283
    %v3236 = vpack.c.b16 %v2292, %v2284
    %v3237 = vpack.c.b16 %v2293, %v2285
    %v3238 = vpack.c.b16 %v2294, %v2286
    %v3239 = vpack.c.b16 %v2295, %v2287
    %v3240 = vpack.c.b16 %v2296, %v2288
    %v3241 = vpack.c.b16 %v2297, %v2289
    %v3242 = vpack.c.b16 %v2306, %v2298
    %v3243 = vpack.c.b16 %v2307, %v2299
    %v3244 = vpack.c.b16 %v2308, %v2300
    %v3245 = vpack.c.b16 %v2309, %v2301
    %v3246 = vpack.c.b16 %v2310, %v2302
    %v3247 = vpack.c.b16 %v2311, %v2303
    %v3248 = vpack.c.b16 %v2312, %v2304
    %v3249 = vpack.c.b16 %v2313, %v2305
    %v3250 = vpack.c.b16 %v2322, %v2314
    %v3251 = vpack.c.b16 %v2323, %v2315
    %v3252 = vpack.c.b16 %v2324, %v2316
    %v3253 = vpack.c.b16 %v2325, %v2317
    %v3254 = vpack.c.b16 %v2326, %v2318
    %v3255 = vpack.c.b16 %v2327, %v2319
    %v3256 = vpack.c.b16 %v2328, %v2320
    %v3257 = vpack.c.b16 %v2329, %v2321
    %v3258 = vpack.c.b16 %v2338, %v2330
    %v3259 = vpack.c.b16 %v2339, %v2331
    %v3260 = vpack.c.b16 %v2340, %v2332
    %v3261 = vpack.c.b16 %v2341, %v2333
    %v3262 = vpack.c.b16 %v2342, %v2334
    %v3263 = vpack.c.b16 %v2343, %v2335
    %v3264 = vpack.c.b16 %v2344, %v2336
    %v3265 = vpack.c.b16 %v2345, %v2337
    %v3266 = vpack.c.b16 %v2354, %v2346
    %v3267 = vpack.c.b16 %v2355, %v2347
    %v3268 = vpack.c.b16 %v2356, %v2348
    %v3269 = vpack.c.b16 %v2357, %v2349
    %v3270 = vpack.c.b16 %v2358, %v2350
    %v3271 = vpack.c.b16 %v2359, %v2351
    %v3272 = vpack.c.b16 %v2360, %v2352
    %v3273 = vpack.c.b16 %v2361, %v2353
    %v3274 = vpack.c.b16 %v2370, %v2362
    %v3275 = vpack.c.b16 %v2371, %v2363
    %v3276 = vpack.c.b16 %v2372, %v2364
    %v3277 = vpack.c.b16 %v2373, %v2365
    %v3278 = vpack.c.b16 %v2374, %v2366
    %v3279 = vpack.c.b16 %v2375, %v2367
    %v3280 = vpack.c.b16 %v2376, %v2368
    %v3281 = vpack.c.b16 %v2377, %v2369
    %v3282 = vpack.c.b16 %v2386, %v2378
    %v3283 = vpack.c.b16 %v2387, %v2379
    %v3284 = vpack.c.b16 %v2388, %v2380
    %v3285 = vpack.c.b16 %v2389, %v2381
    %v3286 = vpack.c.b16 %v2390, %v2382
    %v3287 = vpack.c.b16 %v2391, %v2383
    %v3288 = vpack.c.b16 %v2392, %v2384
    %v3289 = vpack.c.b16 %v2393, %v2385
    %v3290 = vpack.c.b16 %v2402, %v2394
    %v3291 = vpack.c.b16 %v2403, %v2395
    %v3292 = vpack.c.b16 %v2404, %v2396
    %v3293 = vpack.c.b16 %v2405, %v2397
    %v3294 = vpack.c.b16 %v2406, %v2398
    %v3295 = vpack.c.b16 %v2407, %v2399
    %v3296 = vpack.c.b16 %v2408, %v2400
    %v3297 = vpack.c.b16 %v2409, %v2401
    %v3298 = vpack.c.b16 %v2418, %v2410
    %v3299 = vpack.c.b16 %v2419, %v2411
    %v3300 = vpack.c.b16 %v2420, %v2412
    %v3301 = vpack.c.b16 %v2421, %v2413
    %v3302 = vpack.c.b16 %v2422, %v2414
    %v3303 = vpack.c.b16 %v2423, %v2415
    %v3304 = vpack.c.b16 %v2424, %v2416
    %v3305 = vpack.c.b16 %v2425, %v2417
    %v3306 = vpack.c.b16 %v2434, %v2426
    %v3307 = vpack.c.b16 %v2435, %v2427
    %v3308 = vpack.c.b16 %v2436, %v2428
    %v3309 = vpack.c.b16 %v2437, %v2429
    %v3310 = vpack.c.b16 %v2438, %v2430
    %v3311 = vpack.c.b16 %v2439, %v2431
    %v3312 = vpack.c.b16 %v2440, %v2432
    %v3313 = vpack.c.b16 %v2441, %v2433
    %v3314 = vpack.c.b16 %v2450, %v2442
    %v3315 = vpack.c.b16 %v2451, %v2443
    %v3316 = vpack.c.b16 %v2452, %v2444
    %v3317 = vpack.c.b16 %v2453, %v2445
    %v3318 = vpack.c.b16 %v2454, %v2446
    %v3319 = vpack.c.b16 %v2455, %v2447
    %v3320 = vpack.c.b16 %v2456, %v2448
    %v3321 = vpack.c.b16 %v2457, %v2449
    %v3322 = vpack.c.b16 %v2466, %v2458
    %v3323 = vpack.c.b16 %v2467, %v2459
    %v3324 = vpack.c.b16 %v2468, %v2460
    %v3325 = vpack.c.b16 %v2469, %v2461
    %v3326 = vpack.c.b16 %v2470, %v2462
    %v3327 = vpack.c.b16 %v2471, %v2463
    %v3328 = vpack.c.b16 %v2472, %v2464
    %v3329 = vpack.c.b16 %v2473, %v2465
    %v3330 = vpack.c.b16 %v2482, %v2474
    %v3331 = vpack.c.b16 %v2483, %v2475
    %v3332 = vpack.c.b16 %v2484, %v2476
    %v3333 = vpack.c.b16 %v2485, %v2477
    %v3334 = vpack.c.b16 %v2486, %v2478
    %v3335 = vpack.c.b16 %v2487, %v2479
    %v3336 = vpack.c.b16 %v2488, %v2480
    %v3337 = vpack.c.b16 %v2489, %v2481
    %v3338 = vpack.c.b16 %v2498, %v2490
    %v3339 = vpack.c.b16 %v2499, %v2491
    %v3340 = vpack.c.b16 %v2500, %v2492
    %v3341 = vpack.c.b16 %v2501, %v2493
    %v3342 = vpack.c.b16 %v2502, %v2494
    %v3343 = vpack.c.b16 %v2503, %v2495
    %v3344 = vpack.c.b16 %v2504, %v2496
    %v3345 = vpack.c.b16 %v2505, %v2497
    %v3346 = vpack.c.b16 %v2514, %v2506
    %v3347 = vpack.c.b16 %v2515, %v2507
    %v3348 = vpack.c.b16 %v2516, %v2508
    %v3349 = vpack.c.b16 %v2517, %v2509
    %v3350 = vpack.c.b16 %v2518, %v2510
    %v3351 = vpack.c.b16 %v2519, %v2511
    %v3352 = vpack.c.b16 %v2520, %v2512
    %v3353 = vpack.c.b16 %v2521, %v2513
    %v3354 = vpack.c.b16 %v2530, %v2522
    %v3355 = vpack.c.b16 %v2531, %v2523
    %v3356 = vpack.c.b16 %v2532, %v2524
    %v3357 = vpack.c.b16 %v2533, %v2525
    %v3358 = vpack.c.b16 %v2534, %v2526
    %v3359 = vpack.c.b16 %v2535, %v2527
    %v3360 = vpack.c.b16 %v2536, %v2528
    %v3361 = vpack.c.b16 %v2537, %v2529
    %v3362 = vpack.c.b16 %v2546, %v2538
    %v3363 = vpack.c.b16 %v2547, %v2539
    %v3364 = vpack.c.b16 %v2548, %v2540
    %v3365 = vpack.c.b16 %v2549, %v2541
    %v3366 = vpack.c.b16 %v2550, %v2542
    %v3367 = vpack.c.b16 %v2551, %v2543
    %v3368 = vpack.c.b16 %v2552, %v2544
    %v3369 = vpack.c.b16 %v2553, %v2545
    %v3370 = vpack.c.b16 %v2562, %v2554
    %v3371 = vpack.c.b16 %v2563, %v2555
    %v3372 = vpack.c.b16 %v2564, %v2556
    %v3373 = vpack.c.b16 %v2565, %v2557
    %v3374 = vpack.c.b16 %v2566, %v2558
    %v3375 = vpack.c.b16 %v2567, %v2559
    %v3376 = vpack.c.b16 %v2568, %v2560
    %v3377 = vpack.c.b16 %v2569, %v2561
    %v3378 = vpack.c.b16 %v2578, %v2570
    %v3379 = vpack.c.b16 %v2579, %v2571
    %v3380 = vpack.c.b16 %v2580, %v2572
    %v3381 = vpack.c.b16 %v2581, %v2573
    %v3382 = vpack.c.b16 %v2582, %v2574
    %v3383 = vpack.c.b16 %v2583, %v2575
    %v3384 = vpack.c.b16 %v2584, %v2576
    %v3385 = vpack.c.b16 %v2585, %v2577
    %v3386 = vpack.c.b16 %v2594, %v2586
    %v3387 = vpack.c.b16 %v2595, %v2587
    %v3388 = vpack.c.b16 %v2596, %v2588
    %v3389 = vpack.c.b16 %v2597, %v2589
    %v3390 = vpack.c.b16 %v2598, %v2590
    %v3391 = vpack.c.b16 %v2599, %v2591
    %v3392 = vpack.c.b16 %v2600, %v2592
    %v3393 = vpack.c.b16 %v2601, %v2593
    %v3394 = vpack.c.b16 %v2610, %v2602
    %v3395 = vpack.c.b16 %v2611, %v2603
    %v3396 = vpack.c.b16 %v2612, %v2604
    %v3397 = vpack.c.b16 %v2613, %v2605
    %v3398 = vpack.c.b16 %v2614, %v2606
    %v3399 = vpack.c.b16 %v2615, %v2607
    %v3400 = vpack.c.b16 %v2616, %v2608
    %v3401 = vpack.c.b16 %v2617, %v2609
    %v3402 = vpack.c.b16 %v2626, %v2618
    %v3403 = vpack.c.b16 %v2627, %v2619
    %v3404 = vpack.c.b16 %v2628, %v2620
    %v3405 = vpack.c.b16 %v2629, %v2621
    %v3406 = vpack.c.b16 %v2630, %v2622
    %v3407 = vpack.c.b16 %v2631, %v2623
    %v3408 = vpack.c.b16 %v2632, %v2624
    %v3409 = vpack.c.b16 %v2633, %v2625
    %v3410 = vpack.c.b16 %v2642, %v2634
    %v3411 = vpack.c.b16 %v2643, %v2635
    %v3412 = vpack.c.b16 %v2644, %v2636
    %v3413 = vpack.c.b16 %v2645, %v2637
    %v3414 = vpack.c.b16 %v2646, %v2638
    %v3415 = vpack.c.b16 %v2647, %v2639
    %v3416 = vpack.c.b16 %v2648, %v2640
    %v3417 = vpack.c.b16 %v2649, %v2641
    %v3418 = vpack.c.b16 %v2658, %v2650
    %v3419 = vpack.c.b16 %v2659, %v2651
    %v3420 = vpack.c.b16 %v2660, %v2652
    %v3421 = vpack.c.b16 %v2661, %v2653
    %v3422 = vpack.c.b16 %v2662, %v2654
    %v3423 = vpack.c.b16 %v2663, %v2655
    %v3424 = vpack.c.b16 %v2664, %v2656
    %v3425 = vpack.c.b16 %v2665, %v2657
    %v3426 = vpack.c.b16 %v2674, %v2666
    %v3427 = vpack.c.b16 %v2675, %v2667
    %v3428 = vpack.c.b16 %v2676, %v2668
    %v3429 = vpack.c.b16 %v2677, %v2669
    %v3430 = vpack.c.b16 %v2678, %v2670
    %v3431 = vpack.c.b16 %v2679, %v2671
    %v3432 = vpack.c.b16 %v2680, %v2672
    %v3433 = vpack.c.b16 %v2681, %v2673
    %v3434 = vpack.c.b16 %v2690, %v2682
    %v3435 = vpack.c.b16 %v2691, %v2683
    %v3436 = vpack.c.b16 %v2692, %v2684
    %v3437 = vpack.c.b16 %v2693, %v2685
    %v3438 = vpack.c.b16 %v2694, %v2686
    %v3439 = vpack.c.b16 %v2695, %v2687
    %v3440 = vpack.c.b16 %v2696, %v2688
    %v3441 = vpack.c.b16 %v2697, %v2689
    %v3442 = vpack.c.b16 %v2706, %v2698
    %v3443 = vpack.c.b16 %v2707, %v2699
    %v3444 = vpack.c.b16 %v2708, %v2700
    %v3445 = vpack.c.b16 %v2709, %v2701
    %v3446 = vpack.c.b16 %v2710, %v2702
    %v3447 = vpack.c.b16 %v2711, %v2703
    %v3448 = vpack.c.b16 %v2712, %v2704
    %v3449 = vpack.c.b16 %v2713, %v2705
    %v3450 = vpack.c.b16 %v2722, %v2714
    %v3451 = vpack.c.b16 %v2723, %v2715
    %v3452 = vpack.c.b16 %v2724, %v2716
    %v3453 = vpack.c.b16 %v2725, %v2717
    %v3454 = vpack.c.b16 %v2726, %v2718
    %v3455 = vpack.c.b16 %v2727, %v2719
    %v3456 = vpack.c.b16 %v2728, %v2720
    %v3457 = vpack.c.b16 %v2729, %v2721
    %v3458 = vpack.c.b16 %v2738, %v2730
    %v3459 = vpack.c.b16 %v2739, %v2731
    %v3460 = vpack.c.b16 %v2740, %v2732
    %v3461 = vpack.c.b16 %v2741, %v2733
    %v3462 = vpack.c.b16 %v2742, %v2734
    %v3463 = vpack.c.b16 %v2743, %v2735
    %v3464 = vpack.c.b16 %v2744, %v2736
    %v3465 = vpack.c.b16 %v2745, %v2737
    %v3466 = vpack.c.b16 %v2754, %v2746
    %v3467 = vpack.c.b16 %v2755, %v2747
    %v3468 = vpack.c.b16 %v2756, %v2748
    %v3469 = vpack.c.b16 %v2757, %v2749
    %v3470 = vpack.c.b16 %v2758, %v2750
    %v3471 = vpack.c.b16 %v2759, %v2751
    %v3472 = vpack.c.b16 %v2760, %v2752
    %v3473 = vpack.c.b16 %v2761, %v2753
    %v3474 = vpack.c.b16 %v2770, %v2762
    %v3475 = vpack.c.b16 %v2771, %v2763
    %v3476 = vpack.c.b16 %v2772, %v2764
    %v3477 = vpack.c.b16 %v2773, %v2765
    %v3478 = vpack.c.b16 %v2774, %v2766
    %v3479 = vpack.c.b16 %v2775, %v2767
    %v3480 = vpack.c.b16 %v2776, %v2768
    %v3481 = vpack.c.b16 %v2777, %v2769
    %v3482 = vpack.c.b16 %v2786, %v2778
    %v3483 = vpack.c.b16 %v2787, %v2779
    %v3484 = vpack.c.b16 %v2788, %v2780
    %v3485 = vpack.c.b16 %v2789, %v2781
    %v3486 = vpack.c.b16 %v2790, %v2782
    %v3487 = vpack.c.b16 %v2791, %v2783
    %v3488 = vpack.c.b16 %v2792, %v2784
    %v3489 = vpack.c.b16 %v2793, %v2785
    %v3490 = vpack.c.b16 %v2802, %v2794
    %v3491 = vpack.c.b16 %v2803, %v2795
    %v3492 = vpack.c.b16 %v2804, %v2796
    %v3493 = vpack.c.b16 %v2805, %v2797
    %v3494 = vpack.c.b16 %v2806, %v2798
    %v3495 = vpack.c.b16 %v2807, %v2799
    %v3496 = vpack.c.b16 %v2808, %v2800
    %v3497 = vpack.c.b16 %v2809, %v2801
    %v3498 = vpack.c.b16 %v2818, %v2810
    %v3499 = vpack.c.b16 %v2819, %v2811
    %v3500 = vpack.c.b16 %v2820, %v2812
    %v3501 = vpack.c.b16 %v2821, %v2813
    %v3502 = vpack.c.b16 %v2822, %v2814
    %v3503 = vpack.c.b16 %v2823, %v2815
    %v3504 = vpack.c.b16 %v2824, %v2816
    %v3505 = vpack.c.b16 %v2825, %v2817
    %v3506 = vpack.c.b16 %v2834, %v2826
    %v3507 = vpack.c.b16 %v2835, %v2827
    %v3508 = vpack.c.b16 %v2836, %v2828
    %v3509 = vpack.c.b16 %v2837, %v2829
    %v3510 = vpack.c.b16 %v2838, %v2830
    %v3511 = vpack.c.b16 %v2839, %v2831
    %v3512 = vpack.c.b16 %v2840, %v2832
    %v3513 = vpack.c.b16 %v2841, %v2833
    %v3514 = vpack.c.b16 %v2850, %v2842
    %v3515 = vpack.c.b16 %v2851, %v2843
    %v3516 = vpack.c.b16 %v2852, %v2844
    %v3517 = vpack.c.b16 %v2853, %v2845
    %v3518 = vpack.c.b16 %v2854, %v2846
    %v3519 = vpack.c.b16 %v2855, %v2847
    %v3520 = vpack.c.b16 %v2856, %v2848
    %v3521 = vpack.c.b16 %v2857, %v2849
    %v3522 = vpack.c.b16 %v2866, %v2858
    %v3523 = vpack.c.b16 %v2867, %v2859
    %v3524 = vpack.c.b16 %v2868, %v2860
    %v3525 = vpack.c.b16 %v2869, %v2861
    %v3526 = vpack.c.b16 %v2870, %v2862
    %v3527 = vpack.c.b16 %v2871, %v2863
    %v3528 = vpack.c.b16 %v2872, %v2864
    %v3529 = vpack.c.b16 %v2873, %v2865
    %v3530 = vpack.c.b16 %v2882, %v2874
    %v3531 = vpack.c.b16 %v2883, %v2875
    %v3532 = vpack.c.b16 %v2884, %v2876
    %v3533 = vpack.c.b16 %v2885, %v2877
    %v3534 = vpack.c.b16 %v2886, %v2878
    %v3535 = vpack.c.b16 %v2887, %v2879
    %v3536 = vpack.c.b16 %v2888, %v2880
    %v3537 = vpack.c.b16 %v2889, %v2881
    %v3538 = vpack.c.b16 %v2898, %v2890
    %v3539 = vpack.c.b16 %v2899, %v2891
    %v3540 = vpack.c.b16 %v2900, %v2892
    %v3541 = vpack.c.b16 %v2901, %v2893
    %v3542 = vpack.c.b16 %v2902, %v2894
    %v3543 = vpack.c.b16 %v2903, %v2895
    %v3544 = vpack.c.b16 %v2904, %v2896
    %v3545 = vpack.c.b16 %v2905, %v2897
    %v3546 = vpack.c.b16 %v2914, %v2906
    %v3547 = vpack.c.b16 %v2915, %v2907
    %v3548 = vpack.c.b16 %v2916, %v2908
    %v3549 = vpack.c.b16 %v2917, %v2909
    %v3550 = vpack.c.b16 %v2918, %v2910
    %v3551 = vpack.c.b16 %v2919, %v2911
    %v3552 = vpack.c.b16 %v2920, %v2912
    %v3553 = vpack.c.b16 %v2921, %v2913
    %v3554 = vpack.c.b16 %v2930, %v2922
    %v3555 = vpack.c.b16 %v2931, %v2923
    %v3556 = vpack.c.b16 %v2932, %v2924
    %v3557 = vpack.c.b16 %v2933, %v2925
    %v3558 = vpack.c.b16 %v2934, %v2926
    %v3559 = vpack.c.b16 %v2935, %v2927
    %v3560 = vpack.c.b16 %v2936, %v2928
    %v3561 = vpack.c.b16 %v2937, %v2929
    %v3562 = vpack.c.b16 %v2946, %v2938
    %v3563 = vpack.c.b16 %v2947, %v2939
    %v3564 = vpack.c.b16 %v2948, %v2940
    %v3565 = vpack.c.b16 %v2949, %v2941
    %v3566 = vpack.c.b16 %v2950, %v2942
    %v3567 = vpack.c.b16 %v2951, %v2943
    %v3568 = vpack.c.b16 %v2952, %v2944
    %v3569 = vpack.c.b16 %v2953, %v2945
    %v3570 = vpack.c.b16 %v2962, %v2954
    %v3571 = vpack.c.b16 %v2963, %v2955
    %v3572 = vpack.c.b16 %v2964, %v2956
    %v3573 = vpack.c.b16 %v2965, %v2957
    %v3574 = vpack.c.b16 %v2966, %v2958
    %v3575 = vpack.c.b16 %v2967, %v2959
    %v3576 = vpack.c.b16 %v2968, %v2960
    %v3577 = vpack.c.b16 %v2969, %v2961
    %v3578 = vpack.c.b16 %v2978, %v2970
    %v3579 = vpack.c.b16 %v2979, %v2971
    %v3580 = vpack.c.b16 %v2980, %v2972
    %v3581 = vpack.c.b16 %v2981, %v2973
    %v3582 = vpack.c.b16 %v2982, %v2974
    %v3583 = vpack.c.b16 %v2983, %v2975
    %v3584 = vpack.c.b16 %v2984, %v2976
    %v3585 = vpack.c.b16 %v2985, %v2977
    %v3586 = vpack.c.b16 %v2994, %v2986
    %v3587 = vpack.c.b16 %v2995, %v2987
    %v3588 = vpack.c.b16 %v2996, %v2988
    %v3589 = vpack.c.b16 %v2997, %v2989
    %v3590 = vpack.c.b16 %v2998, %v2990
    %v3591 = vpack.c.b16 %v2999, %v2991
    %v3592 = vpack.c.b16 %v3000, %v2992
    %v3593 = vpack.c.b16 %v3001, %v2993
    %v3594 = vpack.c.b16 %v3010, %v3002
    %v3595 = vpack.c.b16 %v3011, %v3003
    %v3596 = vpack.c.b16 %v3012, %v3004
    %v3597 = vpack.c.b16 %v3013, %v3005
    %v3598 = vpack.c.b16 %v3014, %v3006
    %v3599 = vpack.c.b16 %v3015, %v3007
    %v3600 = vpack.c.b16 %v3016, %v3008
    %v3601 = vpack.c.b16 %v3017, %v3009
    %v3602 = vpack.c.b16 %v3026, %v3018
    %v3603 = vpack.c.b16 %v3027, %v3019
    %v3604 = vpack.c.b16 %v3028, %v3020
    %v3605 = vpack.c.b16 %v3029, %v3021
    %v3606 = vpack.c.b16 %v3030, %v3022
    %v3607 = vpack.c.b16 %v3031, %v3023
    %v3608 = vpack.c.b16 %v3032, %v3024
    %v3609 = vpack.c.b16 %v3033, %v3025
    %v3610 = vpack.c.b16 %v3042, %v3034
    %v3611 = vpack.c.b16 %v3043, %v3035
    %v3612 = vpack.c.b16 %v3044, %v3036
    %v3613 = vpack.c.b16 %v3045, %v3037
    %v3614 = vpack.c.b16 %v3046, %v3038
    %v3615 = vpack.c.b16 %v3047, %v3039
    %v3616 = vpack.c.b16 %v3048, %v3040
    %v3617 = vpack.c.b16 %v3049, %v3041
    %v3618 = vpack.c.b16 %v3058, %v3050
    %v3619 = vpack.c.b16 %v3059, %v3051
    %v3620 = vpack.c.b16 %v3060, %v3052
    %v3621 = vpack.c.b16 %v3061, %v3053
    %v3622 = vpack.c.b16 %v3062, %v3054
    %v3623 = vpack.c.b16 %v3063, %v3055
    %v3624 = vpack.c.b16 %v3064, %v3056
    %v3625 = vpack.c.b16 %v3065, %v3057
    %v3626 = vpack.c.b16 %v3074, %v3066
    %v3627 = vpack.c.b16 %v3075, %v3067
    %v3628 = vpack.c.b16 %v3076, %v3068
    %v3629 = vpack.c.b16 %v3077, %v3069
    %v3630 = vpack.c.b16 %v3078, %v3070
    %v3631 = vpack.c.b16 %v3079, %v3071
    %v3632 = vpack.c.b16 %v3080, %v3072
    %v3633 = vpack.c.b16 %v3081, %v3073
    %v3634 = vpack.c.b16 %v3090, %v3082
    %v3635 = vpack.c.b16 %v3091, %v3083
    %v3636 = vpack.c.b16 %v3092, %v3084
    %v3637 = vpack.c.b16 %v3093, %v3085
    %v3638 = vpack.c.b16 %v3094, %v3086
    %v3639 = vpack.c.b16 %v3095, %v3087
    %v3640 = vpack.c.b16 %v3096, %v3088
    %v3641 = vpack.c.b16 %v3097, %v3089
    %v3642 = vpack.c.b16 %v3106, %v3098
    %v3643 = vpack.c.b16 %v3107, %v3099
    %v3644 = vpack.c.b16 %v3108, %v3100
    %v3645 = vpack.c.b16 %v3109, %v3101
    %v3646 = vpack.c.b16 %v3110, %v3102
    %v3647 = vpack.c.b16 %v3111, %v3103
    %v3648 = vpack.c.b16 %v3112, %v3104
    %v3649 = vpack.c.b16 %v3113, %v3105
    %v3650 = vpack.c.b16 %v3122, %v3114
    %v3651 = vpack.c.b16 %v3123, %v3115
    %v3652 = vpack.c.b16 %v3124, %v3116
    %v3653 = vpack.c.b16 %v3125, %v3117
    %v3654 = vpack.c.b16 %v3126, %v3118
    %v3655 = vpack.c.b16 %v3127, %v3119
    %v3656 = vpack.c.b16 %v3128, %v3120
    %v3657 = vpack.c.b16 %v3129, %v3121
    %v3658 = vpack.c.b16 %v3138, %v3130
    %v3659 = vpack.c.b16 %v3139, %v3131
    %v3660 = vpack.c.b16 %v3140, %v3132
    %v3661 = vpack.c.b16 %v3141, %v3133
    %v3662 = vpack.c.b16 %v3142, %v3134
    %v3663 = vpack.c.b16 %v3143, %v3135
    %v3664 = vpack.c.b16 %v3144, %v3136
    %v3665 = vpack.c.b16 %v3145, %v3137
    %v3666 = vpack.c.b16 %v3154, %v3146
    %v3667 = vpack.c.b16 %v3155, %v3147
    %v3668 = vpack.c.b16 %v3156, %v3148
    %v3669 = vpack.c.b16 %v3157, %v3149
    %v3670 = vpack.c.b16 %v3158, %v3150
    %v3671 = vpack.c.b16 %v3159, %v3151
    %v3672 = vpack.c.b16 %v3160, %v3152
    %v3673 = vpack.c.b16 %v3161, %v3153
    %4186 = vmatprep.subr.bf16.mxu0 %v3163
    %4187 = vmatpush1.bf16.msra.mxu0 %v3162
    %4188 = vmatprep.subr.bf16.mxu0 %v3171
    %4189 = vmatpush1.bf16.msra.mxu0 %v3170
    %4190 = vmatprep.subr.bf16.mxu0 %v3179
    %4191 = vmatpush1.bf16.msra.mxu0 %v3178
    %4192 = vmatprep.subr.bf16.mxu0 %v3187
    %4193 = vmatpush1.bf16.msra.mxu0 %v3186
    %4194 = vmatprep.subr.bf16.mxu0 %v3195
    %4195 = vmatpush1.bf16.msra.mxu0 %v3194
    %4196 = vmatprep.subr.bf16.mxu0 %v3203
    %4197 = vmatpush1.bf16.msra.mxu0 %v3202
    %4198 = vmatprep.subr.bf16.mxu0 %v3211
    %4199 = vmatpush1.bf16.msra.mxu0 %v3210
    %4200 = vmatprep.subr.bf16.mxu0 %v3219
    %4201 = vmatpush1.bf16.msra.mxu0 %v3218
    %4202 = vmatprep.subr.bf16.mxu0 %v3227
    %4203 = vmatpush1.bf16.msra.mxu0 %v3226
    %4204 = vmatprep.subr.bf16.mxu0 %v3235
    %4205 = vmatpush1.bf16.msra.mxu0 %v3234
    %4206 = vmatprep.subr.bf16.mxu0 %v3243
    %4207 = vmatpush1.bf16.msra.mxu0 %v3242
    %4208 = vmatprep.subr.bf16.mxu0 %v3251
    %4209 = vmatpush1.bf16.msra.mxu0 %v3250
    %4210 = vmatprep.subr.bf16.mxu0 %v3259
    %4211 = vmatpush1.bf16.msra.mxu0 %v3258
    %4212 = vmatprep.subr.bf16.mxu0 %v3267
    %4213 = vmatpush1.bf16.msra.mxu0 %v3266
    %4214 = vmatprep.subr.bf16.mxu0 %v3275
    %4215 = vmatpush1.bf16.msra.mxu0 %v3274
    %4216 = vmatprep.subr.bf16.mxu0 %v3283
    %4217 = vmatpush1.bf16.msra.mxu0 %v3282
    %4218 = vmatprep.mubr.bf16.mxu0 %v1065
    %4219 = vmatmul.mubr.bf16.gmra.mrb[0].mxu0 %v1064
    %v4220 = vpop.f32.mrb[0].mxu0
    %v4221 = vadd.f32 %v1589, %v4220
    %v4222 = vpop.f32.mrb[0].mxu0
    %v4223 = vadd.f32 %v1593, %v4222
    %v4224 = vpop.f32.mrb[0].mxu0
    %v4225 = vpop.f32.mrb[0].mxu0
    %4226 = vdwg.mxu0
    %4227 = vmatprep.subr.bf16.mxu0 %v3291
    %4228 = vmatpush1.bf16.msra.mxu0 %v3290
    %4229 = vmatprep.subr.bf16.mxu0 %v3299
    %4230 = vmatpush1.bf16.msra.mxu0 %v3298
    %4231 = vmatprep.subr.bf16.mxu0 %v3307
    %4232 = vmatpush1.bf16.msra.mxu0 %v3306
    %4233 = vmatprep.subr.bf16.mxu0 %v3315
    %4234 = vmatpush1.bf16.msra.mxu0 %v3314
    %4235 = vmatprep.subr.bf16.mxu0 %v3323
    %4236 = vmatpush1.bf16.msra.mxu0 %v3322
    %4237 = vmatprep.subr.bf16.mxu0 %v3331
    %4238 = vmatpush1.bf16.msra.mxu0 %v3330
    %4239 = vmatprep.subr.bf16.mxu0 %v3339
    %4240 = vmatpush1.bf16.msra.mxu0 %v3338
    %4241 = vmatprep.subr.bf16.mxu0 %v3347
    %4242 = vmatpush1.bf16.msra.mxu0 %v3346
    %4243 = vmatprep.subr.bf16.mxu0 %v3355
    %4244 = vmatpush1.bf16.msra.mxu0 %v3354
    %4245 = vmatprep.subr.bf16.mxu0 %v3363
    %4246 = vmatpush1.bf16.msra.mxu0 %v3362
    %4247 = vmatprep.subr.bf16.mxu0 %v3371
    %4248 = vmatpush1.bf16.msra.mxu0 %v3370
    %4249 = vmatprep.subr.bf16.mxu0 %v3379
    %4250 = vmatpush1.bf16.msra.mxu0 %v3378
    %4251 = vmatprep.subr.bf16.mxu0 %v3387
    %4252 = vmatpush1.bf16.msra.mxu0 %v3386
    %4253 = vmatprep.subr.bf16.mxu0 %v3395
    %4254 = vmatpush1.bf16.msra.mxu0 %v3394
    %4255 = vmatprep.subr.bf16.mxu0 %v3403
    %4256 = vmatpush1.bf16.msra.mxu0 %v3402
    %4257 = vmatprep.subr.bf16.mxu0 %v3411
    %4258 = vmatpush1.bf16.msra.mxu0 %v3410
    %4259 = vmatprep.mubr.bf16.mxu0 %v1067
    %4260 = vmatmul.mubr.bf16.gmra.mrb[0].mxu0 %v1066
    %v4261 = vpop.f32.mrb[0].mxu0
    %v4262 = vadd.f32 %v4221, %v4261
    %v4263 = vpop.f32.mrb[0].mxu0
    %v4264 = vadd.f32 %v4223, %v4263
    %v4265 = vpop.f32.mrb[0].mxu0
    %v4266 = vpop.f32.mrb[0].mxu0
    %4267 = vdwg.mxu0
    %4268 = vmatprep.subr.bf16.mxu0 %v3419
    %4269 = vmatpush1.bf16.msra.mxu0 %v3418
    %4270 = vmatprep.subr.bf16.mxu0 %v3427
    %4271 = vmatpush1.bf16.msra.mxu0 %v3426
    %4272 = vmatprep.subr.bf16.mxu0 %v3435
    %4273 = vmatpush1.bf16.msra.mxu0 %v3434
    %4274 = vmatprep.subr.bf16.mxu0 %v3443
    %4275 = vmatpush1.bf16.msra.mxu0 %v3442
    %4276 = vmatprep.subr.bf16.mxu0 %v3451
    %4277 = vmatpush1.bf16.msra.mxu0 %v3450
    %4278 = vmatprep.subr.bf16.mxu0 %v3459
    %4279 = vmatpush1.bf16.msra.mxu0 %v3458
    %4280 = vmatprep.subr.bf16.mxu0 %v3467
    %4281 = vmatpush1.bf16.msra.mxu0 %v3466
    %4282 = vmatprep.subr.bf16.mxu0 %v3475
    %4283 = vmatpush1.bf16.msra.mxu0 %v3474
    %4284 = vmatprep.subr.bf16.mxu0 %v3483
    %4285 = vmatpush1.bf16.msra.mxu0 %v3482
    %4286 = vmatprep.subr.bf16.mxu0 %v3491
    %4287 = vmatpush1.bf16.msra.mxu0 %v3490
    %4288 = vmatprep.subr.bf16.mxu0 %v3499
    %4289 = vmatpush1.bf16.msra.mxu0 %v3498
    %4290 = vmatprep.subr.bf16.mxu0 %v3507
    %4291 = vmatpush1.bf16.msra.mxu0 %v3506
    %4292 = vmatprep.subr.bf16.mxu0 %v3515
    %4293 = vmatpush1.bf16.msra.mxu0 %v3514
    %4294 = vmatprep.subr.bf16.mxu0 %v3523
    %4295 = vmatpush1.bf16.msra.mxu0 %v3522
    %4296 = vmatprep.subr.bf16.mxu0 %v3531
    %4297 = vmatpush1.bf16.msra.mxu0 %v3530
    %4298 = vmatprep.subr.bf16.mxu0 %v3539
    %4299 = vmatpush1.bf16.msra.mxu0 %v3538
    %4300 = vmatprep.mubr.bf16.mxu0 %v1069
    %4301 = vmatmul.mubr.bf16.gmra.mrb[0].mxu0 %v1068
    %v4302 = vpop.f32.mrb[0].mxu0
    %v4303 = vadd.f32 %v4262, %v4302
    %v4304 = vpop.f32.mrb[0].mxu0
    %v4305 = vadd.f32 %v4264, %v4304
    %v4306 = vpop.f32.mrb[0].mxu0
    %v4307 = vpop.f32.mrb[0].mxu0
    %4308 = vdwg.mxu0
    %4309 = vmatprep.subr.bf16.mxu0 %v3547
    %4310 = vmatpush1.bf16.msra.mxu0 %v3546
    %4311 = vmatprep.subr.bf16.mxu0 %v3555
    %4312 = vmatpush1.bf16.msra.mxu0 %v3554
    %4313 = vmatprep.subr.bf16.mxu0 %v3563
    %4314 = vmatpush1.bf16.msra.mxu0 %v3562
    %4315 = vmatprep.subr.bf16.mxu0 %v3571
    %4316 = vmatpush1.bf16.msra.mxu0 %v3570
    %4317 = vmatprep.subr.bf16.mxu0 %v3579
    %4318 = vmatpush1.bf16.msra.mxu0 %v3578
    %4319 = vmatprep.subr.bf16.mxu0 %v3587
    %4320 = vmatpush1.bf16.msra.mxu0 %v3586
    %4321 = vmatprep.subr.bf16.mxu0 %v3595
    %4322 = vmatpush1.bf16.msra.mxu0 %v3594
    %4323 = vmatprep.subr.bf16.mxu0 %v3603
    %4324 = vmatpush1.bf16.msra.mxu0 %v3602
    %4325 = vmatprep.subr.bf16.mxu0 %v3611
    %4326 = vmatpush1.bf16.msra.mxu0 %v3610
    %4327 = vmatprep.subr.bf16.mxu0 %v3619
    %4328 = vmatpush1.bf16.msra.mxu0 %v3618
    %4329 = vmatprep.subr.bf16.mxu0 %v3627
    %4330 = vmatpush1.bf16.msra.mxu0 %v3626
    %4331 = vmatprep.subr.bf16.mxu0 %v3635
    %4332 = vmatpush1.bf16.msra.mxu0 %v3634
    %4333 = vmatprep.subr.bf16.mxu0 %v3643
    %4334 = vmatpush1.bf16.msra.mxu0 %v3642
    %4335 = vmatprep.subr.bf16.mxu0 %v3651
    %4336 = vmatpush1.bf16.msra.mxu0 %v3650
    %4337 = vmatprep.subr.bf16.mxu0 %v3659
    %4338 = vmatpush1.bf16.msra.mxu0 %v3658
    %4339 = vmatprep.subr.bf16.mxu0 %v3667
    %4340 = vmatpush1.bf16.msra.mxu0 %v3666
    %4341 = vmatprep.mubr.bf16.mxu0 %v1071
    %4342 = vmatmul.mubr.bf16.gmra.mrb[0].mxu0 %v1070
    %v4343 = vpop.f32.mrb[0].mxu0
    %v4344 = vadd.f32 %v4303, %v4343
    %v4345 = vpop.f32.mrb[0].mxu0
    %v4346 = vadd.f32 %v4305, %v4345
    %v4347 = vpop.f32.mrb[0].mxu0
    %v4348 = vpop.f32.mrb[0].mxu0
    %4349 = vdwg.mxu0
    %4350 = vmatprep.subr.bf16.mxu0 %v3165
    %4351 = vmatpush1.bf16.msra.mxu0 %v3164
    %4352 = vmatprep.subr.bf16.mxu0 %v3173
    %4353 = vmatpush1.bf16.msra.mxu0 %v3172
    %4354 = vmatprep.subr.bf16.mxu0 %v3181
    %4355 = vmatpush1.bf16.msra.mxu0 %v3180
    %4356 = vmatprep.subr.bf16.mxu0 %v3189
    %4357 = vmatpush1.bf16.msra.mxu0 %v3188
    %4358 = vmatprep.subr.bf16.mxu0 %v3197
    %4359 = vmatpush1.bf16.msra.mxu0 %v3196
    %4360 = vmatprep.subr.bf16.mxu0 %v3205
    %4361 = vmatpush1.bf16.msra.mxu0 %v3204
    %4362 = vmatprep.subr.bf16.mxu0 %v3213
    %4363 = vmatpush1.bf16.msra.mxu0 %v3212
    %4364 = vmatprep.subr.bf16.mxu0 %v3221
    %4365 = vmatpush1.bf16.msra.mxu0 %v3220
    %4366 = vmatprep.subr.bf16.mxu0 %v3229
    %4367 = vmatpush1.bf16.msra.mxu0 %v3228
    %4368 = vmatprep.subr.bf16.mxu0 %v3237
    %4369 = vmatpush1.bf16.msra.mxu0 %v3236
    %4370 = vmatprep.subr.bf16.mxu0 %v3245
    %4371 = vmatpush1.bf16.msra.mxu0 %v3244
    %4372 = vmatprep.subr.bf16.mxu0 %v3253
    %4373 = vmatpush1.bf16.msra.mxu0 %v3252
    %4374 = vmatprep.subr.bf16.mxu0 %v3261
    %4375 = vmatpush1.bf16.msra.mxu0 %v3260
    %4376 = vmatprep.subr.bf16.mxu0 %v3269
    %4377 = vmatpush1.bf16.msra.mxu0 %v3268
    %4378 = vmatprep.subr.bf16.mxu0 %v3277
    %4379 = vmatpush1.bf16.msra.mxu0 %v3276
    %4380 = vmatprep.subr.bf16.mxu0 %v3285
    %4381 = vmatpush1.bf16.msra.mxu0 %v3284
    %4382 = vmatprep.mubr.bf16.mxu0 %v1065
    %4383 = vmatmul.mubr.bf16.gmra.mrb[0].mxu0 %v1064
    %v4384 = vpop.f32.mrb[0].mxu0
    %v4385 = vadd.f32 %v1597, %v4384
    %v4386 = vpop.f32.mrb[0].mxu0
    %v4387 = vadd.f32 %v1601, %v4386
    %v4388 = vpop.f32.mrb[0].mxu0
    %v4389 = vpop.f32.mrb[0].mxu0
    %4390 = vdwg.mxu0
    %4391 = vmatprep.subr.bf16.mxu0 %v3293
    %4392 = vmatpush1.bf16.msra.mxu0 %v3292
    %4393 = vmatprep.subr.bf16.mxu0 %v3301
    %4394 = vmatpush1.bf16.msra.mxu0 %v3300
    %4395 = vmatprep.subr.bf16.mxu0 %v3309
    %4396 = vmatpush1.bf16.msra.mxu0 %v3308
    %4397 = vmatprep.subr.bf16.mxu0 %v3317
    %4398 = vmatpush1.bf16.msra.mxu0 %v3316
    %4399 = vmatprep.subr.bf16.mxu0 %v3325
    %4400 = vmatpush1.bf16.msra.mxu0 %v3324
    %4401 = vmatprep.subr.bf16.mxu0 %v3333
    %4402 = vmatpush1.bf16.msra.mxu0 %v3332
    %4403 = vmatprep.subr.bf16.mxu0 %v3341
    %4404 = vmatpush1.bf16.msra.mxu0 %v3340
    %4405 = vmatprep.subr.bf16.mxu0 %v3349
    %4406 = vmatpush1.bf16.msra.mxu0 %v3348
    %4407 = vmatprep.subr.bf16.mxu0 %v3357
    %4408 = vmatpush1.bf16.msra.mxu0 %v3356
    %4409 = vmatprep.subr.bf16.mxu0 %v3365
    %4410 = vmatpush1.bf16.msra.mxu0 %v3364
    %4411 = vmatprep.subr.bf16.mxu0 %v3373
    %4412 = vmatpush1.bf16.msra.mxu0 %v3372
    %4413 = vmatprep.subr.bf16.mxu0 %v3381
    %4414 = vmatpush1.bf16.msra.mxu0 %v3380
    %4415 = vmatprep.subr.bf16.mxu0 %v3389
    %4416 = vmatpush1.bf16.msra.mxu0 %v3388
    %4417 = vmatprep.subr.bf16.mxu0 %v3397
    %4418 = vmatpush1.bf16.msra.mxu0 %v3396
    %4419 = vmatprep.subr.bf16.mxu0 %v3405
    %4420 = vmatpush1.bf16.msra.mxu0 %v3404
    %4421 = vmatprep.subr.bf16.mxu0 %v3413
    %4422 = vmatpush1.bf16.msra.mxu0 %v3412
    %4423 = vmatprep.mubr.bf16.mxu0 %v1067
    %4424 = vmatmul.mubr.bf16.gmra.mrb[0].mxu0 %v1066
    %v4425 = vpop.f32.mrb[0].mxu0
    %v4426 = vadd.f32 %v4385, %v4425
    %v4427 = vpop.f32.mrb[0].mxu0
    %v4428 = vadd.f32 %v4387, %v4427
    %v4429 = vpop.f32.mrb[0].mxu0
    %v4430 = vpop.f32.mrb[0].mxu0
    %4431 = vdwg.mxu0
    %4432 = vmatprep.subr.bf16.mxu0 %v3421
    %4433 = vmatpush1.bf16.msra.mxu0 %v3420
    %4434 = vmatprep.subr.bf16.mxu0 %v3429
    %4435 = vmatpush1.bf16.msra.mxu0 %v3428
    %4436 = vmatprep.subr.bf16.mxu0 %v3437
    %4437 = vmatpush1.bf16.msra.mxu0 %v3436
    %4438 = vmatprep.subr.bf16.mxu0 %v3445
    %4439 = vmatpush1.bf16.msra.mxu0 %v3444
    %4440 = vmatprep.subr.bf16.mxu0 %v3453
    %4441 = vmatpush1.bf16.msra.mxu0 %v3452
    %4442 = vmatprep.subr.bf16.mxu0 %v3461
    %4443 = vmatpush1.bf16.msra.mxu0 %v3460
    %4444 = vmatprep.subr.bf16.mxu0 %v3469
    %4445 = vmatpush1.bf16.msra.mxu0 %v3468
    %4446 = vmatprep.subr.bf16.mxu0 %v3477
    %4447 = vmatpush1.bf16.msra.mxu0 %v3476
    %4448 = vmatprep.subr.bf16.mxu0 %v3485
    %4449 = vmatpush1.bf16.msra.mxu0 %v3484
    %4450 = vmatprep.subr.bf16.mxu0 %v3493
    %4451 = vmatpush1.bf16.msra.mxu0 %v3492
    %4452 = vmatprep.subr.bf16.mxu0 %v3501
    %4453 = vmatpush1.bf16.msra.mxu0 %v3500
    %4454 = vmatprep.subr.bf16.mxu0 %v3509
    %4455 = vmatpush1.bf16.msra.mxu0 %v3508
    %4456 = vmatprep.subr.bf16.mxu0 %v3517
    %4457 = vmatpush1.bf16.msra.mxu0 %v3516
    %4458 = vmatprep.subr.bf16.mxu0 %v3525
    %4459 = vmatpush1.bf16.msra.mxu0 %v3524
    %4460 = vmatprep.subr.bf16.mxu0 %v3533
    %4461 = vmatpush1.bf16.msra.mxu0 %v3532
    %4462 = vmatprep.subr.bf16.mxu0 %v3541
    %4463 = vmatpush1.bf16.msra.mxu0 %v3540
    %4464 = vmatprep.mubr.bf16.mxu0 %v1069
    %4465 = vmatmul.mubr.bf16.gmra.mrb[0].mxu0 %v1068
    %v4466 = vpop.f32.mrb[0].mxu0
    %v4467 = vadd.f32 %v4426, %v4466
    %v4468 = vpop.f32.mrb[0].mxu0
    %v4469 = vadd.f32 %v4428, %v4468
    %v4470 = vpop.f32.mrb[0].mxu0
    %v4471 = vpop.f32.mrb[0].mxu0
    %4472 = vdwg.mxu0
    %4473 = vmatprep.subr.bf16.mxu0 %v3549
    %4474 = vmatpush1.bf16.msra.mxu0 %v3548
    %4475 = vmatprep.subr.bf16.mxu0 %v3557
    %4476 = vmatpush1.bf16.msra.mxu0 %v3556
    %4477 = vmatprep.subr.bf16.mxu0 %v3565
    %4478 = vmatpush1.bf16.msra.mxu0 %v3564
    %4479 = vmatprep.subr.bf16.mxu0 %v3573
    %4480 = vmatpush1.bf16.msra.mxu0 %v3572
    %4481 = vmatprep.subr.bf16.mxu0 %v3581
    %4482 = vmatpush1.bf16.msra.mxu0 %v3580
    %4483 = vmatprep.subr.bf16.mxu0 %v3589
    %4484 = vmatpush1.bf16.msra.mxu0 %v3588
    %4485 = vmatprep.subr.bf16.mxu0 %v3597
    %4486 = vmatpush1.bf16.msra.mxu0 %v3596
    %4487 = vmatprep.subr.bf16.mxu0 %v3605
    %4488 = vmatpush1.bf16.msra.mxu0 %v3604
    %4489 = vmatprep.subr.bf16.mxu0 %v3613
    %4490 = vmatpush1.bf16.msra.mxu0 %v3612
    %4491 = vmatprep.subr.bf16.mxu0 %v3621
    %4492 = vmatpush1.bf16.msra.mxu0 %v3620
    %4493 = vmatprep.subr.bf16.mxu0 %v3629
    %4494 = vmatpush1.bf16.msra.mxu0 %v3628
    %4495 = vmatprep.subr.bf16.mxu0 %v3637
    %4496 = vmatpush1.bf16.msra.mxu0 %v3636
    %4497 = vmatprep.subr.bf16.mxu0 %v3645
    %4498 = vmatpush1.bf16.msra.mxu0 %v3644
    %4499 = vmatprep.subr.bf16.mxu0 %v3653
    %4500 = vmatpush1.bf16.msra.mxu0 %v3652
    %4501 = vmatprep.subr.bf16.mxu0 %v3661
    %4502 = vmatpush1.bf16.msra.mxu0 %v3660
    %4503 = vmatprep.subr.bf16.mxu0 %v3669
    %4504 = vmatpush1.bf16.msra.mxu0 %v3668
    %4505 = vmatprep.mubr.bf16.mxu0 %v1071
    %4506 = vmatmul.mubr.bf16.gmra.mrb[0].mxu0 %v1070
    %v4507 = vpop.f32.mrb[0].mxu0
    %v4508 = vadd.f32 %v4467, %v4507
    %v4509 = vpop.f32.mrb[0].mxu0
    %v4510 = vadd.f32 %v4469, %v4509
    %v4511 = vpop.f32.mrb[0].mxu0
    %v4512 = vpop.f32.mrb[0].mxu0
    %4513 = vdwg.mxu0
    %4514 = vmatprep.subr.bf16.mxu0 %v3167
    %4515 = vmatpush1.bf16.msra.mxu0 %v3166
    %4516 = vmatprep.subr.bf16.mxu0 %v3175
    %4517 = vmatpush1.bf16.msra.mxu0 %v3174
    %4518 = vmatprep.subr.bf16.mxu0 %v3183
    %4519 = vmatpush1.bf16.msra.mxu0 %v3182
    %4520 = vmatprep.subr.bf16.mxu0 %v3191
    %4521 = vmatpush1.bf16.msra.mxu0 %v3190
    %4522 = vmatprep.subr.bf16.mxu0 %v3199
    %4523 = vmatpush1.bf16.msra.mxu0 %v3198
    %4524 = vmatprep.subr.bf16.mxu0 %v3207
    %4525 = vmatpush1.bf16.msra.mxu0 %v3206
    %4526 = vmatprep.subr.bf16.mxu0 %v3215
    %4527 = vmatpush1.bf16.msra.mxu0 %v3214
    %4528 = vmatprep.subr.bf16.mxu0 %v3223
    %4529 = vmatpush1.bf16.msra.mxu0 %v3222
    %4530 = vmatprep.subr.bf16.mxu0 %v3231
    %4531 = vmatpush1.bf16.msra.mxu0 %v3230
    %4532 = vmatprep.subr.bf16.mxu0 %v3239
    %4533 = vmatpush1.bf16.msra.mxu0 %v3238
    %4534 = vmatprep.subr.bf16.mxu0 %v3247
    %4535 = vmatpush1.bf16.msra.mxu0 %v3246
    %4536 = vmatprep.subr.bf16.mxu0 %v3255
    %4537 = vmatpush1.bf16.msra.mxu0 %v3254
    %4538 = vmatprep.subr.bf16.mxu0 %v3263
    %4539 = vmatpush1.bf16.msra.mxu0 %v3262
    %4540 = vmatprep.subr.bf16.mxu0 %v3271
    %4541 = vmatpush1.bf16.msra.mxu0 %v3270
    %4542 = vmatprep.subr.bf16.mxu0 %v3279
    %4543 = vmatpush1.bf16.msra.mxu0 %v3278
    %4544 = vmatprep.subr.bf16.mxu0 %v3287
    %4545 = vmatpush1.bf16.msra.mxu0 %v3286
    %4546 = vmatprep.mubr.bf16.mxu0 %v1065
    %4547 = vmatmul.mubr.bf16.gmra.mrb[0].mxu0 %v1064
    %v4548 = vpop.f32.mrb[0].mxu0
    %v4549 = vadd.f32 %v1605, %v4548
    %v4550 = vpop.f32.mrb[0].mxu0
    %v4551 = vadd.f32 %v1609, %v4550
    %v4552 = vpop.f32.mrb[0].mxu0
    %v4553 = vpop.f32.mrb[0].mxu0
    %4554 = vdwg.mxu0
    %4555 = vmatprep.subr.bf16.mxu0 %v3295
    %4556 = vmatpush1.bf16.msra.mxu0 %v3294
    %4557 = vmatprep.subr.bf16.mxu0 %v3303
    %4558 = vmatpush1.bf16.msra.mxu0 %v3302
    %4559 = vmatprep.subr.bf16.mxu0 %v3311
    %4560 = vmatpush1.bf16.msra.mxu0 %v3310
    %4561 = vmatprep.subr.bf16.mxu0 %v3319
    %4562 = vmatpush1.bf16.msra.mxu0 %v3318
    %4563 = vmatprep.subr.bf16.mxu0 %v3327
    %4564 = vmatpush1.bf16.msra.mxu0 %v3326
    %4565 = vmatprep.subr.bf16.mxu0 %v3335
    %4566 = vmatpush1.bf16.msra.mxu0 %v3334
    %4567 = vmatprep.subr.bf16.mxu0 %v3343
    %4568 = vmatpush1.bf16.msra.mxu0 %v3342
    %4569 = vmatprep.subr.bf16.mxu0 %v3351
    %4570 = vmatpush1.bf16.msra.mxu0 %v3350
    %4571 = vmatprep.subr.bf16.mxu0 %v3359
    %4572 = vmatpush1.bf16.msra.mxu0 %v3358
    %4573 = vmatprep.subr.bf16.mxu0 %v3367
    %4574 = vmatpush1.bf16.msra.mxu0 %v3366
    %4575 = vmatprep.subr.bf16.mxu0 %v3375
    %4576 = vmatpush1.bf16.msra.mxu0 %v3374
    %4577 = vmatprep.subr.bf16.mxu0 %v3383
    %4578 = vmatpush1.bf16.msra.mxu0 %v3382
    %4579 = vmatprep.subr.bf16.mxu0 %v3391
    %4580 = vmatpush1.bf16.msra.mxu0 %v3390
    %4581 = vmatprep.subr.bf16.mxu0 %v3399
    %4582 = vmatpush1.bf16.msra.mxu0 %v3398
    %4583 = vmatprep.subr.bf16.mxu0 %v3407
    %4584 = vmatpush1.bf16.msra.mxu0 %v3406
    %4585 = vmatprep.subr.bf16.mxu0 %v3415
    %4586 = vmatpush1.bf16.msra.mxu0 %v3414
    %4587 = vmatprep.mubr.bf16.mxu0 %v1067
    %4588 = vmatmul.mubr.bf16.gmra.mrb[0].mxu0 %v1066
    %v4589 = vpop.f32.mrb[0].mxu0
    %v4590 = vadd.f32 %v4549, %v4589
    %v4591 = vpop.f32.mrb[0].mxu0
    %v4592 = vadd.f32 %v4551, %v4591
    %v4593 = vpop.f32.mrb[0].mxu0
    %v4594 = vpop.f32.mrb[0].mxu0
    %4595 = vdwg.mxu0
    %4596 = vmatprep.subr.bf16.mxu0 %v3423
    %4597 = vmatpush1.bf16.msra.mxu0 %v3422
    %4598 = vmatprep.subr.bf16.mxu0 %v3431
    %4599 = vmatpush1.bf16.msra.mxu0 %v3430
    %4600 = vmatprep.subr.bf16.mxu0 %v3439
    %4601 = vmatpush1.bf16.msra.mxu0 %v3438
    %4602 = vmatprep.subr.bf16.mxu0 %v3447
    %4603 = vmatpush1.bf16.msra.mxu0 %v3446
    %4604 = vmatprep.subr.bf16.mxu0 %v3455
    %4605 = vmatpush1.bf16.msra.mxu0 %v3454
    %4606 = vmatprep.subr.bf16.mxu0 %v3463
    %4607 = vmatpush1.bf16.msra.mxu0 %v3462
    %4608 = vmatprep.subr.bf16.mxu0 %v3471
    %4609 = vmatpush1.bf16.msra.mxu0 %v3470
    %4610 = vmatprep.subr.bf16.mxu0 %v3479
    %4611 = vmatpush1.bf16.msra.mxu0 %v3478
    %4612 = vmatprep.subr.bf16.mxu0 %v3487
    %4613 = vmatpush1.bf16.msra.mxu0 %v3486
    %4614 = vmatprep.subr.bf16.mxu0 %v3495
    %4615 = vmatpush1.bf16.msra.mxu0 %v3494
    %4616 = vmatprep.subr.bf16.mxu0 %v3503
    %4617 = vmatpush1.bf16.msra.mxu0 %v3502
    %4618 = vmatprep.subr.bf16.mxu0 %v3511
    %4619 = vmatpush1.bf16.msra.mxu0 %v3510
    %4620 = vmatprep.subr.bf16.mxu0 %v3519
    %4621 = vmatpush1.bf16.msra.mxu0 %v3518
    %4622 = vmatprep.subr.bf16.mxu0 %v3527
    %4623 = vmatpush1.bf16.msra.mxu0 %v3526
    %4624 = vmatprep.subr.bf16.mxu0 %v3535
    %4625 = vmatpush1.bf16.msra.mxu0 %v3534
    %4626 = vmatprep.subr.bf16.mxu0 %v3543
    %4627 = vmatpush1.bf16.msra.mxu0 %v3542
    %4628 = vmatprep.mubr.bf16.mxu0 %v1069
    %4629 = vmatmul.mubr.bf16.gmra.mrb[0].mxu0 %v1068
    %v4630 = vpop.f32.mrb[0].mxu0
    %v4631 = vadd.f32 %v4590, %v4630
    %v4632 = vpop.f32.mrb[0].mxu0
    %v4633 = vadd.f32 %v4592, %v4632
    %v4634 = vpop.f32.mrb[0].mxu0
    %v4635 = vpop.f32.mrb[0].mxu0
    %4636 = vdwg.mxu0
    %4637 = vmatprep.subr.bf16.mxu0 %v3551
    %4638 = vmatpush1.bf16.msra.mxu0 %v3550
    %4639 = vmatprep.subr.bf16.mxu0 %v3559
    %4640 = vmatpush1.bf16.msra.mxu0 %v3558
    %4641 = vmatprep.subr.bf16.mxu0 %v3567
    %4642 = vmatpush1.bf16.msra.mxu0 %v3566
    %4643 = vmatprep.subr.bf16.mxu0 %v3575
    %4644 = vmatpush1.bf16.msra.mxu0 %v3574
    %4645 = vmatprep.subr.bf16.mxu0 %v3583
    %4646 = vmatpush1.bf16.msra.mxu0 %v3582
    %4647 = vmatprep.subr.bf16.mxu0 %v3591
    %4648 = vmatpush1.bf16.msra.mxu0 %v3590
    %4649 = vmatprep.subr.bf16.mxu0 %v3599
    %4650 = vmatpush1.bf16.msra.mxu0 %v3598
    %4651 = vmatprep.subr.bf16.mxu0 %v3607
    %4652 = vmatpush1.bf16.msra.mxu0 %v3606
    %4653 = vmatprep.subr.bf16.mxu0 %v3615
    %4654 = vmatpush1.bf16.msra.mxu0 %v3614
    %4655 = vmatprep.subr.bf16.mxu0 %v3623
    %4656 = vmatpush1.bf16.msra.mxu0 %v3622
    %4657 = vmatprep.subr.bf16.mxu0 %v3631
    %4658 = vmatpush1.bf16.msra.mxu0 %v3630
    %4659 = vmatprep.subr.bf16.mxu0 %v3639
    %4660 = vmatpush1.bf16.msra.mxu0 %v3638
    %4661 = vmatprep.subr.bf16.mxu0 %v3647
    %4662 = vmatpush1.bf16.msra.mxu0 %v3646
    %4663 = vmatprep.subr.bf16.mxu0 %v3655
    %4664 = vmatpush1.bf16.msra.mxu0 %v3654
    %4665 = vmatprep.subr.bf16.mxu0 %v3663
    %4666 = vmatpush1.bf16.msra.mxu0 %v3662
    %4667 = vmatprep.subr.bf16.mxu0 %v3671
    %4668 = vmatpush1.bf16.msra.mxu0 %v3670
    %4669 = vmatprep.mubr.bf16.mxu0 %v1071
    %4670 = vmatmul.mubr.bf16.gmra.mrb[0].mxu0 %v1070
    %v4671 = vpop.f32.mrb[0].mxu0
    %v4672 = vadd.f32 %v4631, %v4671
    %v4673 = vpop.f32.mrb[0].mxu0
    %v4674 = vadd.f32 %v4633, %v4673
    %v4675 = vpop.f32.mrb[0].mxu0
    %v4676 = vpop.f32.mrb[0].mxu0
    %4677 = vdwg.mxu0
    %4678 = vmatprep.subr.bf16.mxu0 %v3169
    %4679 = vmatpush1.bf16.msra.mxu0 %v3168
    %4680 = vmatprep.subr.bf16.mxu0 %v3177
    %4681 = vmatpush1.bf16.msra.mxu0 %v3176
    %4682 = vmatprep.subr.bf16.mxu0 %v3185
    %4683 = vmatpush1.bf16.msra.mxu0 %v3184
    %4684 = vmatprep.subr.bf16.mxu0 %v3193
    %4685 = vmatpush1.bf16.msra.mxu0 %v3192
    %4686 = vmatprep.subr.bf16.mxu0 %v3201
    %4687 = vmatpush1.bf16.msra.mxu0 %v3200
    %4688 = vmatprep.subr.bf16.mxu0 %v3209
    %4689 = vmatpush1.bf16.msra.mxu0 %v3208
    %4690 = vmatprep.subr.bf16.mxu0 %v3217
    %4691 = vmatpush1.bf16.msra.mxu0 %v3216
    %4692 = vmatprep.subr.bf16.mxu0 %v3225
    %4693 = vmatpush1.bf16.msra.mxu0 %v3224
    %4694 = vmatprep.subr.bf16.mxu0 %v3233
    %4695 = vmatpush1.bf16.msra.mxu0 %v3232
    %4696 = vmatprep.subr.bf16.mxu0 %v3241
    %4697 = vmatpush1.bf16.msra.mxu0 %v3240
    %4698 = vmatprep.subr.bf16.mxu0 %v3249
    %4699 = vmatpush1.bf16.msra.mxu0 %v3248
    %4700 = vmatprep.subr.bf16.mxu0 %v3257
    %4701 = vmatpush1.bf16.msra.mxu0 %v3256
    %4702 = vmatprep.subr.bf16.mxu0 %v3265
    %4703 = vmatpush1.bf16.msra.mxu0 %v3264
    %4704 = vmatprep.subr.bf16.mxu0 %v3273
    %4705 = vmatpush1.bf16.msra.mxu0 %v3272
    %4706 = vmatprep.subr.bf16.mxu0 %v3281
    %4707 = vmatpush1.bf16.msra.mxu0 %v3280
    %4708 = vmatprep.subr.bf16.mxu0 %v3289
    %4709 = vmatpush1.bf16.msra.mxu0 %v3288
    %4710 = vmatprep.mubr.bf16.mxu0 %v1065
    %4711 = vmatmul.mubr.bf16.gmra.mrb[0].mxu0 %v1064
    %v4712 = vpop.f32.mrb[0].mxu0
    %v4713 = vadd.f32 %v1613, %v4712
    %v4714 = vpop.f32.mrb[0].mxu0
    %v4715 = vadd.f32 %v1617, %v4714
    %v4716 = vpop.f32.mrb[0].mxu0
    %v4717 = vpop.f32.mrb[0].mxu0
    %4718 = vdwg.mxu0
    %4719 = vmatprep.subr.bf16.mxu0 %v3297
    %4720 = vmatpush1.bf16.msra.mxu0 %v3296
    %4721 = vmatprep.subr.bf16.mxu0 %v3305
    %4722 = vmatpush1.bf16.msra.mxu0 %v3304
    %4723 = vmatprep.subr.bf16.mxu0 %v3313
    %4724 = vmatpush1.bf16.msra.mxu0 %v3312
    %4725 = vmatprep.subr.bf16.mxu0 %v3321
    %4726 = vmatpush1.bf16.msra.mxu0 %v3320
    %4727 = vmatprep.subr.bf16.mxu0 %v3329
    %4728 = vmatpush1.bf16.msra.mxu0 %v3328
    %4729 = vmatprep.subr.bf16.mxu0 %v3337
    %4730 = vmatpush1.bf16.msra.mxu0 %v3336
    %4731 = vmatprep.subr.bf16.mxu0 %v3345
    %4732 = vmatpush1.bf16.msra.mxu0 %v3344
    %4733 = vmatprep.subr.bf16.mxu0 %v3353
    %4734 = vmatpush1.bf16.msra.mxu0 %v3352
    %4735 = vmatprep.subr.bf16.mxu0 %v3361
    %4736 = vmatpush1.bf16.msra.mxu0 %v3360
    %4737 = vmatprep.subr.bf16.mxu0 %v3369
    %4738 = vmatpush1.bf16.msra.mxu0 %v3368
    %4739 = vmatprep.subr.bf16.mxu0 %v3377
    %4740 = vmatpush1.bf16.msra.mxu0 %v3376
    %4741 = vmatprep.subr.bf16.mxu0 %v3385
    %4742 = vmatpush1.bf16.msra.mxu0 %v3384
    %4743 = vmatprep.subr.bf16.mxu0 %v3393
    %4744 = vmatpush1.bf16.msra.mxu0 %v3392
    %4745 = vmatprep.subr.bf16.mxu0 %v3401
    %4746 = vmatpush1.bf16.msra.mxu0 %v3400
    %4747 = vmatprep.subr.bf16.mxu0 %v3409
    %4748 = vmatpush1.bf16.msra.mxu0 %v3408
    %4749 = vmatprep.subr.bf16.mxu0 %v3417
    %4750 = vmatpush1.bf16.msra.mxu0 %v3416
    %4751 = vmatprep.mubr.bf16.mxu0 %v1067
    %4752 = vmatmul.mubr.bf16.gmra.mrb[0].mxu0 %v1066
    %v4753 = vpop.f32.mrb[0].mxu0
    %v4754 = vadd.f32 %v4713, %v4753
    %v4755 = vpop.f32.mrb[0].mxu0
    %v4756 = vadd.f32 %v4715, %v4755
    %v4757 = vpop.f32.mrb[0].mxu0
    %v4758 = vpop.f32.mrb[0].mxu0
    %4759 = vdwg.mxu0
    %4760 = vmatprep.subr.bf16.mxu0 %v3425
    %4761 = vmatpush1.bf16.msra.mxu0 %v3424
    %4762 = vmatprep.subr.bf16.mxu0 %v3433
    %4763 = vmatpush1.bf16.msra.mxu0 %v3432
    %4764 = vmatprep.subr.bf16.mxu0 %v3441
    %4765 = vmatpush1.bf16.msra.mxu0 %v3440
    %4766 = vmatprep.subr.bf16.mxu0 %v3449
    %4767 = vmatpush1.bf16.msra.mxu0 %v3448
    %4768 = vmatprep.subr.bf16.mxu0 %v3457
    %4769 = vmatpush1.bf16.msra.mxu0 %v3456
    %4770 = vmatprep.subr.bf16.mxu0 %v3465
    %4771 = vmatpush1.bf16.msra.mxu0 %v3464
    %4772 = vmatprep.subr.bf16.mxu0 %v3473
    %4773 = vmatpush1.bf16.msra.mxu0 %v3472
    %4774 = vmatprep.subr.bf16.mxu0 %v3481
    %4775 = vmatpush1.bf16.msra.mxu0 %v3480
    %4776 = vmatprep.subr.bf16.mxu0 %v3489
    %4777 = vmatpush1.bf16.msra.mxu0 %v3488
    %4778 = vmatprep.subr.bf16.mxu0 %v3497
    %4779 = vmatpush1.bf16.msra.mxu0 %v3496
    %4780 = vmatprep.subr.bf16.mxu0 %v3505
    %4781 = vmatpush1.bf16.msra.mxu0 %v3504
    %4782 = vmatprep.subr.bf16.mxu0 %v3513
    %4783 = vmatpush1.bf16.msra.mxu0 %v3512
    %4784 = vmatprep.subr.bf16.mxu0 %v3521
    %4785 = vmatpush1.bf16.msra.mxu0 %v3520
    %4786 = vmatprep.subr.bf16.mxu0 %v3529
    %4787 = vmatpush1.bf16.msra.mxu0 %v3528
    %4788 = vmatprep.subr.bf16.mxu0 %v3537
    %4789 = vmatpush1.bf16.msra.mxu0 %v3536
    %4790 = vmatprep.subr.bf16.mxu0 %v3545
    %4791 = vmatpush1.bf16.msra.mxu0 %v3544
    %4792 = vmatprep.mubr.bf16.mxu0 %v1069
    %4793 = vmatmul.mubr.bf16.gmra.mrb[0].mxu0 %v1068
    %v4794 = vpop.f32.mrb[0].mxu0
    %v4795 = vadd.f32 %v4754, %v4794
    %v4796 = vpop.f32.mrb[0].mxu0
    %v4797 = vadd.f32 %v4756, %v4796
    %v4798 = vpop.f32.mrb[0].mxu0
    %v4799 = vpop.f32.mrb[0].mxu0
    %4800 = vdwg.mxu0
    %4801 = vmatprep.subr.bf16.mxu0 %v3553
    %4802 = vmatpush1.bf16.msra.mxu0 %v3552
    %4803 = vmatprep.subr.bf16.mxu0 %v3561
    %4804 = vmatpush1.bf16.msra.mxu0 %v3560
    %4805 = vmatprep.subr.bf16.mxu0 %v3569
    %4806 = vmatpush1.bf16.msra.mxu0 %v3568
    %4807 = vmatprep.subr.bf16.mxu0 %v3577
    %4808 = vmatpush1.bf16.msra.mxu0 %v3576
    %4809 = vmatprep.subr.bf16.mxu0 %v3585
    %4810 = vmatpush1.bf16.msra.mxu0 %v3584
    %4811 = vmatprep.subr.bf16.mxu0 %v3593
    %4812 = vmatpush1.bf16.msra.mxu0 %v3592
    %4813 = vmatprep.subr.bf16.mxu0 %v3601
    %4814 = vmatpush1.bf16.msra.mxu0 %v3600
    %4815 = vmatprep.subr.bf16.mxu0 %v3609
    %4816 = vmatpush1.bf16.msra.mxu0 %v3608
    %4817 = vmatprep.subr.bf16.mxu0 %v3617
    %4818 = vmatpush1.bf16.msra.mxu0 %v3616
    %4819 = vmatprep.subr.bf16.mxu0 %v3625
    %4820 = vmatpush1.bf16.msra.mxu0 %v3624
    %4821 = vmatprep.subr.bf16.mxu0 %v3633
    %4822 = vmatpush1.bf16.msra.mxu0 %v3632
    %4823 = vmatprep.subr.bf16.mxu0 %v3641
    %4824 = vmatpush1.bf16.msra.mxu0 %v3640
    %4825 = vmatprep.subr.bf16.mxu0 %v3649
    %4826 = vmatpush1.bf16.msra.mxu0 %v3648
    %4827 = vmatprep.subr.bf16.mxu0 %v3657
    %4828 = vmatpush1.bf16.msra.mxu0 %v3656
    %4829 = vmatprep.subr.bf16.mxu0 %v3665
    %4830 = vmatpush1.bf16.msra.mxu0 %v3664
    %4831 = vmatprep.subr.bf16.mxu0 %v3673
    %4832 = vmatpush1.bf16.msra.mxu0 %v3672
    %4833 = vmatprep.mubr.bf16.mxu0 %v1071
    %4834 = vmatmul.mubr.bf16.gmra.mrb[0].mxu0 %v1070
    %v4835 = vpop.f32.mrb[0].mxu0
    %v4836 = vadd.f32 %v4795, %v4835
    %v4837 = vpop.f32.mrb[0].mxu0
    %v4838 = vadd.f32 %v4797, %v4837
    %v4839 = vpop.f32.mrb[0].mxu0
    %v4840 = vpop.f32.mrb[0].mxu0
    %4841 = vdwg.mxu0
    %v4842 = vmax.f32 %v4344, 0.0
    %v4843 = vmax.f32 %v4346, 0.0
    %v4844 = vmax.f32 %v4508, 0.0
    %v4845 = vmax.f32 %v4510, 0.0
    %v4846 = vmax.f32 %v4672, 0.0
    %v4847 = vmax.f32 %v4674, 0.0
    %v4848 = vmax.f32 %v4836, 0.0
    %v4849 = vmax.f32 %v4838, 0.0
    %v4850 = vpack.c.bf16 %v4842, %v4842
    %v4851 = vpack.c.bf16 %v4843, %v4843
    %v4852 = vpack.c.bf16 %v4844, %v4844
    %v4853 = vpack.c.bf16 %v4845, %v4845
    %v4854 = vpack.c.bf16 %v4846, %v4846
    %v4855 = vpack.c.bf16 %v4847, %v4847
    %v4856 = vpack.c.bf16 %v4848, %v4848
    %v4857 = vpack.c.bf16 %v4849, %v4849
    %v4858 = vld [vmem:[#allocation10] sm:$0xff]
    %v4859 = vld [vmem:[#allocation10 + $0x8] sm:$0xff]
    %v4860 = vld [vmem:[#allocation10 + $0x10] sm:$0xff]
    %v4861 = vld [vmem:[#allocation10 + $0x18] sm:$0xff]
    %v4862 = vld [vmem:[#allocation10 + $0x20] sm:$0xff]
    %v4863 = vld [vmem:[#allocation10 + $0x28] sm:$0xff]
    %v4864 = vld [vmem:[#allocation10 + $0x30] sm:$0xff]
    %v4865 = vld [vmem:[#allocation10 + $0x38] sm:$0xff]
    %v4866 = vld [vmem:[#allocation10 + $0x40] sm:$0xff]
    %v4867 = vld [vmem:[#allocation10 + $0x48] sm:$0xff]
    %v4868 = vld [vmem:[#allocation10 + $0x50] sm:$0xff]
    %v4869 = vld [vmem:[#allocation10 + $0x58] sm:$0xff]
    %v4870 = vld [vmem:[#allocation10 + $0x60] sm:$0xff]
    %v4871 = vld [vmem:[#allocation10 + $0x68] sm:$0xff]
    %v4872 = vld [vmem:[#allocation10 + $0x70] sm:$0xff]
    %v4873 = vld [vmem:[#allocation10 + $0x78] sm:$0xff]
    %v4874 = vld [vmem:[#allocation10 + $0x80] sm:$0xff]
    %v4875 = vld [vmem:[#allocation10 + $0x88] sm:$0xff]
    %v4876 = vld [vmem:[#allocation10 + $0x90] sm:$0xff]
    %v4877 = vld [vmem:[#allocation10 + $0x98] sm:$0xff]
    %v4878 = vld [vmem:[#allocation10 + $0xa0] sm:$0xff]
    %v4879 = vld [vmem:[#allocation10 + $0xa8] sm:$0xff]
    %v4880 = vld [vmem:[#allocation10 + $0xb0] sm:$0xff]
    %v4881 = vld [vmem:[#allocation10 + $0xb8] sm:$0xff]
    %v4882 = vld [vmem:[#allocation10 + $0xc0] sm:$0xff]
    %v4883 = vld [vmem:[#allocation10 + $0xc8] sm:$0xff]
    %v4884 = vld [vmem:[#allocation10 + $0xd0] sm:$0xff]
    %v4885 = vld [vmem:[#allocation10 + $0xd8] sm:$0xff]
    %v4886 = vld [vmem:[#allocation10 + $0xe0] sm:$0xff]
    %v4887 = vld [vmem:[#allocation10 + $0xe8] sm:$0xff]
    %v4888 = vld [vmem:[#allocation10 + $0xf0] sm:$0xff]
    %v4889 = vld [vmem:[#allocation10 + $0xf8] sm:$0xff]
    %v4890 = vld [vmem:[#allocation10 + $0x100] sm:$0xff]
    %v4891 = vld [vmem:[#allocation10 + $0x108] sm:$0xff]
    %v4892 = vld [vmem:[#allocation10 + $0x110] sm:$0xff]
    %v4893 = vld [vmem:[#allocation10 + $0x118] sm:$0xff]
    %v4894 = vld [vmem:[#allocation10 + $0x120] sm:$0xff]
    %v4895 = vld [vmem:[#allocation10 + $0x128] sm:$0xff]
    %v4896 = vld [vmem:[#allocation10 + $0x130] sm:$0xff]
    %v4897 = vld [vmem:[#allocation10 + $0x138] sm:$0xff]
    %v4898 = vld [vmem:[#allocation10 + $0x140] sm:$0xff]
    %v4899 = vld [vmem:[#allocation10 + $0x148] sm:$0xff]
    %v4900 = vld [vmem:[#allocation10 + $0x150] sm:$0xff]
    %v4901 = vld [vmem:[#allocation10 + $0x158] sm:$0xff]
    %v4902 = vld [vmem:[#allocation10 + $0x160] sm:$0xff]
    %v4903 = vld [vmem:[#allocation10 + $0x168] sm:$0xff]
    %v4904 = vld [vmem:[#allocation10 + $0x170] sm:$0xff]
    %v4905 = vld [vmem:[#allocation10 + $0x178] sm:$0xff]
    %v4906 = vld [vmem:[#allocation10 + $0x180] sm:$0xff]
    %v4907 = vld [vmem:[#allocation10 + $0x188] sm:$0xff]
    %v4908 = vld [vmem:[#allocation10 + $0x190] sm:$0xff]
    %v4909 = vld [vmem:[#allocation10 + $0x198] sm:$0xff]
    %v4910 = vld [vmem:[#allocation10 + $0x1a0] sm:$0xff]
    %v4911 = vld [vmem:[#allocation10 + $0x1a8] sm:$0xff]
    %v4912 = vld [vmem:[#allocation10 + $0x1b0] sm:$0xff]
    %v4913 = vld [vmem:[#allocation10 + $0x1b8] sm:$0xff]
    %v4914 = vld [vmem:[#allocation10 + $0x1c0] sm:$0xff]
    %v4915 = vld [vmem:[#allocation10 + $0x1c8] sm:$0xff]
    %v4916 = vld [vmem:[#allocation10 + $0x1d0] sm:$0xff]
    %v4917 = vld [vmem:[#allocation10 + $0x1d8] sm:$0xff]
    %v4918 = vld [vmem:[#allocation10 + $0x1e0] sm:$0xff]
    %v4919 = vld [vmem:[#allocation10 + $0x1e8] sm:$0xff]
    %v4920 = vld [vmem:[#allocation10 + $0x1f0] sm:$0xff]
    %v4921 = vld [vmem:[#allocation10 + $0x1f8] sm:$0xff]
    %v4922 = vld [vmem:[#allocation10 + $0x200] sm:$0xff]
    %v4923 = vld [vmem:[#allocation10 + $0x208] sm:$0xff]
    %v4924 = vld [vmem:[#allocation10 + $0x210] sm:$0xff]
    %v4925 = vld [vmem:[#allocation10 + $0x218] sm:$0xff]
    %v4926 = vld [vmem:[#allocation10 + $0x220] sm:$0xff]
    %v4927 = vld [vmem:[#allocation10 + $0x228] sm:$0xff]
    %v4928 = vld [vmem:[#allocation10 + $0x230] sm:$0xff]
    %v4929 = vld [vmem:[#allocation10 + $0x238] sm:$0xff]
    %v4930 = vld [vmem:[#allocation10 + $0x240] sm:$0xff]
    %v4931 = vld [vmem:[#allocation10 + $0x248] sm:$0xff]
    %v4932 = vld [vmem:[#allocation10 + $0x250] sm:$0xff]
    %v4933 = vld [vmem:[#allocation10 + $0x258] sm:$0xff]
    %v4934 = vld [vmem:[#allocation10 + $0x260] sm:$0xff]
    %v4935 = vld [vmem:[#allocation10 + $0x268] sm:$0xff]
    %v4936 = vld [vmem:[#allocation10 + $0x270] sm:$0xff]
    %v4937 = vld [vmem:[#allocation10 + $0x278] sm:$0xff]
    %v4938 = vld [vmem:[#allocation10 + $0x280] sm:$0xff]
    %v4939 = vld [vmem:[#allocation10 + $0x288] sm:$0xff]
    %v4940 = vld [vmem:[#allocation10 + $0x290] sm:$0xff]
    %v4941 = vld [vmem:[#allocation10 + $0x298] sm:$0xff]
    %v4942 = vld [vmem:[#allocation10 + $0x2a0] sm:$0xff]
    %v4943 = vld [vmem:[#allocation10 + $0x2a8] sm:$0xff]
    %v4944 = vld [vmem:[#allocation10 + $0x2b0] sm:$0xff]
    %v4945 = vld [vmem:[#allocation10 + $0x2b8] sm:$0xff]
    %v4946 = vld [vmem:[#allocation10 + $0x2c0] sm:$0xff]
    %v4947 = vld [vmem:[#allocation10 + $0x2c8] sm:$0xff]
    %v4948 = vld [vmem:[#allocation10 + $0x2d0] sm:$0xff]
    %v4949 = vld [vmem:[#allocation10 + $0x2d8] sm:$0xff]
    %v4950 = vld [vmem:[#allocation10 + $0x2e0] sm:$0xff]
    %v4951 = vld [vmem:[#allocation10 + $0x2e8] sm:$0xff]
    %v4952 = vld [vmem:[#allocation10 + $0x2f0] sm:$0xff]
    %v4953 = vld [vmem:[#allocation10 + $0x2f8] sm:$0xff]
    %v4954 = vld [vmem:[#allocation10 + $0x300] sm:$0xff]
    %v4955 = vld [vmem:[#allocation10 + $0x308] sm:$0xff]
    %v4956 = vld [vmem:[#allocation10 + $0x310] sm:$0xff]
    %v4957 = vld [vmem:[#allocation10 + $0x318] sm:$0xff]
    %v4958 = vld [vmem:[#allocation10 + $0x320] sm:$0xff]
    %v4959 = vld [vmem:[#allocation10 + $0x328] sm:$0xff]
    %v4960 = vld [vmem:[#allocation10 + $0x330] sm:$0xff]
    %v4961 = vld [vmem:[#allocation10 + $0x338] sm:$0xff]
    %v4962 = vld [vmem:[#allocation10 + $0x340] sm:$0xff]
    %v4963 = vld [vmem:[#allocation10 + $0x348] sm:$0xff]
    %v4964 = vld [vmem:[#allocation10 + $0x350] sm:$0xff]
    %v4965 = vld [vmem:[#allocation10 + $0x358] sm:$0xff]
    %v4966 = vld [vmem:[#allocation10 + $0x360] sm:$0xff]
    %v4967 = vld [vmem:[#allocation10 + $0x368] sm:$0xff]
    %v4968 = vld [vmem:[#allocation10 + $0x370] sm:$0xff]
    %v4969 = vld [vmem:[#allocation10 + $0x378] sm:$0xff]
    %v4970 = vld [vmem:[#allocation10 + $0x380] sm:$0xff]
    %v4971 = vld [vmem:[#allocation10 + $0x388] sm:$0xff]
    %v4972 = vld [vmem:[#allocation10 + $0x390] sm:$0xff]
    %v4973 = vld [vmem:[#allocation10 + $0x398] sm:$0xff]
    %v4974 = vld [vmem:[#allocation10 + $0x3a0] sm:$0xff]
    %v4975 = vld [vmem:[#allocation10 + $0x3a8] sm:$0xff]
    %v4976 = vld [vmem:[#allocation10 + $0x3b0] sm:$0xff]
    %v4977 = vld [vmem:[#allocation10 + $0x3b8] sm:$0xff]
    %v4978 = vld [vmem:[#allocation10 + $0x3c0] sm:$0xff]
    %v4979 = vld [vmem:[#allocation10 + $0x3c8] sm:$0xff]
    %v4980 = vld [vmem:[#allocation10 + $0x3d0] sm:$0xff]
    %v4981 = vld [vmem:[#allocation10 + $0x3d8] sm:$0xff]
    %v4982 = vld [vmem:[#allocation10 + $0x3e0] sm:$0xff]
    %v4983 = vld [vmem:[#allocation10 + $0x3e8] sm:$0xff]
    %v4984 = vld [vmem:[#allocation10 + $0x3f0] sm:$0xff]
    %v4985 = vld [vmem:[#allocation10 + $0x3f8] sm:$0xff]
    %v4986 = vld [vmem:[#allocation12] sm:$0x3]
    %v4988 = vlaneseq
    %v4989 = vshrl.u32 %v4988, 7
    %v4990 = vsub.s32 0, %v4989
    %v4991 = vrot.slane %v4986, %v4990
    %v4992 = vlaneseq
    %v4993 = vshrl.u32 %v4992, 7
    %v4994 = vsub.s32 1, %v4993
    %v4995 = vrot.slane %v4986, %v4994
    %v5126 = vunpack.c.l.b16 %v4858
    %v5127 = vunpack.c.h.b16 %v4858
    %v5128 = vunpack.c.l.b16 %v4859
    %v5129 = vunpack.c.h.b16 %v4859
    %v5130 = vunpack.c.l.b16 %v4860
    %v5131 = vunpack.c.h.b16 %v4860
    %v5132 = vunpack.c.l.b16 %v4861
    %v5133 = vunpack.c.h.b16 %v4861
    %v5134 = vunpack.c.l.b16 %v4862
    %v5135 = vunpack.c.h.b16 %v4862
    %v5136 = vunpack.c.l.b16 %v4863
    %v5137 = vunpack.c.h.b16 %v4863
    %v5138 = vunpack.c.l.b16 %v4864
    %v5139 = vunpack.c.h.b16 %v4864
    %v5140 = vunpack.c.l.b16 %v4865
    %v5141 = vunpack.c.h.b16 %v4865
    %v5142 = vunpack.c.l.b16 %v4866
    %v5143 = vunpack.c.h.b16 %v4866
    %v5144 = vunpack.c.l.b16 %v4867
    %v5145 = vunpack.c.h.b16 %v4867
    %v5146 = vunpack.c.l.b16 %v4868
    %v5147 = vunpack.c.h.b16 %v4868
    %v5148 = vunpack.c.l.b16 %v4869
    %v5149 = vunpack.c.h.b16 %v4869
    %v5150 = vunpack.c.l.b16 %v4870
    %v5151 = vunpack.c.h.b16 %v4870
    %v5152 = vunpack.c.l.b16 %v4871
    %v5153 = vunpack.c.h.b16 %v4871
    %v5154 = vunpack.c.l.b16 %v4872
    %v5155 = vunpack.c.h.b16 %v4872
    %v5156 = vunpack.c.l.b16 %v4873
    %v5157 = vunpack.c.h.b16 %v4873
    %v5158 = vunpack.c.l.b16 %v4874
    %v5159 = vunpack.c.h.b16 %v4874
    %v5160 = vunpack.c.l.b16 %v4875
    %v5161 = vunpack.c.h.b16 %v4875
    %v5162 = vunpack.c.l.b16 %v4876
    %v5163 = vunpack.c.h.b16 %v4876
    %v5164 = vunpack.c.l.b16 %v4877
    %v5165 = vunpack.c.h.b16 %v4877
    %v5166 = vunpack.c.l.b16 %v4878
    %v5167 = vunpack.c.h.b16 %v4878
    %v5168 = vunpack.c.l.b16 %v4879
    %v5169 = vunpack.c.h.b16 %v4879
    %v5170 = vunpack.c.l.b16 %v4880
    %v5171 = vunpack.c.h.b16 %v4880
    %v5172 = vunpack.c.l.b16 %v4881
    %v5173 = vunpack.c.h.b16 %v4881
    %v5174 = vunpack.c.l.b16 %v4882
    %v5175 = vunpack.c.h.b16 %v4882
    %v5176 = vunpack.c.l.b16 %v4883
    %v5177 = vunpack.c.h.b16 %v4883
    %v5178 = vunpack.c.l.b16 %v4884
    %v5179 = vunpack.c.h.b16 %v4884
    %v5180 = vunpack.c.l.b16 %v4885
    %v5181 = vunpack.c.h.b16 %v4885
    %v5182 = vunpack.c.l.b16 %v4886
    %v5183 = vunpack.c.h.b16 %v4886
    %v5184 = vunpack.c.l.b16 %v4887
    %v5185 = vunpack.c.h.b16 %v4887
    %v5186 = vunpack.c.l.b16 %v4888
    %v5187 = vunpack.c.h.b16 %v4888
    %v5188 = vunpack.c.l.b16 %v4889
    %v5189 = vunpack.c.h.b16 %v4889
    %v5190 = vunpack.c.l.b16 %v4890
    %v5191 = vunpack.c.h.b16 %v4890
    %v5192 = vunpack.c.l.b16 %v4891
    %v5193 = vunpack.c.h.b16 %v4891
    %v5194 = vunpack.c.l.b16 %v4892
    %v5195 = vunpack.c.h.b16 %v4892
    %v5196 = vunpack.c.l.b16 %v4893
    %v5197 = vunpack.c.h.b16 %v4893
    %v5198 = vunpack.c.l.b16 %v4894
    %v5199 = vunpack.c.h.b16 %v4894
    %v5200 = vunpack.c.l.b16 %v4895
    %v5201 = vunpack.c.h.b16 %v4895
    %v5202 = vunpack.c.l.b16 %v4896
    %v5203 = vunpack.c.h.b16 %v4896
    %v5204 = vunpack.c.l.b16 %v4897
    %v5205 = vunpack.c.h.b16 %v4897
    %v5206 = vunpack.c.l.b16 %v4898
    %v5207 = vunpack.c.h.b16 %v4898
    %v5208 = vunpack.c.l.b16 %v4899
    %v5209 = vunpack.c.h.b16 %v4899
    %v5210 = vunpack.c.l.b16 %v4900
    %v5211 = vunpack.c.h.b16 %v4900
    %v5212 = vunpack.c.l.b16 %v4901
    %v5213 = vunpack.c.h.b16 %v4901
    %v5214 = vunpack.c.l.b16 %v4902
    %v5215 = vunpack.c.h.b16 %v4902
    %v5216 = vunpack.c.l.b16 %v4903
    %v5217 = vunpack.c.h.b16 %v4903
    %v5218 = vunpack.c.l.b16 %v4904
    %v5219 = vunpack.c.h.b16 %v4904
    %v5220 = vunpack.c.l.b16 %v4905
    %v5221 = vunpack.c.h.b16 %v4905
    %v5222 = vunpack.c.l.b16 %v4906
    %v5223 = vunpack.c.h.b16 %v4906
    %v5224 = vunpack.c.l.b16 %v4907
    %v5225 = vunpack.c.h.b16 %v4907
    %v5226 = vunpack.c.l.b16 %v4908
    %v5227 = vunpack.c.h.b16 %v4908
    %v5228 = vunpack.c.l.b16 %v4909
    %v5229 = vunpack.c.h.b16 %v4909
    %v5230 = vunpack.c.l.b16 %v4910
    %v5231 = vunpack.c.h.b16 %v4910
    %v5232 = vunpack.c.l.b16 %v4911
    %v5233 = vunpack.c.h.b16 %v4911
    %v5234 = vunpack.c.l.b16 %v4912
    %v5235 = vunpack.c.h.b16 %v4912
    %v5236 = vunpack.c.l.b16 %v4913
    %v5237 = vunpack.c.h.b16 %v4913
    %v5238 = vunpack.c.l.b16 %v4914
    %v5239 = vunpack.c.h.b16 %v4914
    %v5240 = vunpack.c.l.b16 %v4915
    %v5241 = vunpack.c.h.b16 %v4915
    %v5242 = vunpack.c.l.b16 %v4916
    %v5243 = vunpack.c.h.b16 %v4916
    %v5244 = vunpack.c.l.b16 %v4917
    %v5245 = vunpack.c.h.b16 %v4917
    %v5246 = vunpack.c.l.b16 %v4918
    %v5247 = vunpack.c.h.b16 %v4918
    %v5248 = vunpack.c.l.b16 %v4919
    %v5249 = vunpack.c.h.b16 %v4919
    %v5250 = vunpack.c.l.b16 %v4920
    %v5251 = vunpack.c.h.b16 %v4920
    %v5252 = vunpack.c.l.b16 %v4921
    %v5253 = vunpack.c.h.b16 %v4921
    %v5254 = vunpack.c.l.b16 %v4922
    %v5255 = vunpack.c.h.b16 %v4922
    %v5256 = vunpack.c.l.b16 %v4923
    %v5257 = vunpack.c.h.b16 %v4923
    %v5258 = vunpack.c.l.b16 %v4924
    %v5259 = vunpack.c.h.b16 %v4924
    %v5260 = vunpack.c.l.b16 %v4925
    %v5261 = vunpack.c.h.b16 %v4925
    %v5262 = vunpack.c.l.b16 %v4926
    %v5263 = vunpack.c.h.b16 %v4926
    %v5264 = vunpack.c.l.b16 %v4927
    %v5265 = vunpack.c.h.b16 %v4927
    %v5266 = vunpack.c.l.b16 %v4928
    %v5267 = vunpack.c.h.b16 %v4928
    %v5268 = vunpack.c.l.b16 %v4929
    %v5269 = vunpack.c.h.b16 %v4929
    %v5270 = vunpack.c.l.b16 %v4930
    %v5271 = vunpack.c.h.b16 %v4930
    %v5272 = vunpack.c.l.b16 %v4931
    %v5273 = vunpack.c.h.b16 %v4931
    %v5274 = vunpack.c.l.b16 %v4932
    %v5275 = vunpack.c.h.b16 %v4932
    %v5276 = vunpack.c.l.b16 %v4933
    %v5277 = vunpack.c.h.b16 %v4933
    %v5278 = vunpack.c.l.b16 %v4934
    %v5279 = vunpack.c.h.b16 %v4934
    %v5280 = vunpack.c.l.b16 %v4935
    %v5281 = vunpack.c.h.b16 %v4935
    %v5282 = vunpack.c.l.b16 %v4936
    %v5283 = vunpack.c.h.b16 %v4936
    %v5284 = vunpack.c.l.b16 %v4937
    %v5285 = vunpack.c.h.b16 %v4937
    %v5286 = vunpack.c.l.b16 %v4938
    %v5287 = vunpack.c.h.b16 %v4938
    %v5288 = vunpack.c.l.b16 %v4939
    %v5289 = vunpack.c.h.b16 %v4939
    %v5290 = vunpack.c.l.b16 %v4940
    %v5291 = vunpack.c.h.b16 %v4940
    %v5292 = vunpack.c.l.b16 %v4941
    %v5293 = vunpack.c.h.b16 %v4941
    %v5294 = vunpack.c.l.b16 %v4942
    %v5295 = vunpack.c.h.b16 %v4942
    %v5296 = vunpack.c.l.b16 %v4943
    %v5297 = vunpack.c.h.b16 %v4943
    %v5298 = vunpack.c.l.b16 %v4944
    %v5299 = vunpack.c.h.b16 %v4944
    %v5300 = vunpack.c.l.b16 %v4945
    %v5301 = vunpack.c.h.b16 %v4945
    %v5302 = vunpack.c.l.b16 %v4946
    %v5303 = vunpack.c.h.b16 %v4946
    %v5304 = vunpack.c.l.b16 %v4947
    %v5305 = vunpack.c.h.b16 %v4947
    %v5306 = vunpack.c.l.b16 %v4948
    %v5307 = vunpack.c.h.b16 %v4948
    %v5308 = vunpack.c.l.b16 %v4949
    %v5309 = vunpack.c.h.b16 %v4949
    %v5310 = vunpack.c.l.b16 %v4950
    %v5311 = vunpack.c.h.b16 %v4950
    %v5312 = vunpack.c.l.b16 %v4951
    %v5313 = vunpack.c.h.b16 %v4951
    %v5314 = vunpack.c.l.b16 %v4952
    %v5315 = vunpack.c.h.b16 %v4952
    %v5316 = vunpack.c.l.b16 %v4953
    %v5317 = vunpack.c.h.b16 %v4953
    %v5318 = vunpack.c.l.b16 %v4954
    %v5319 = vunpack.c.h.b16 %v4954
    %v5320 = vunpack.c.l.b16 %v4955
    %v5321 = vunpack.c.h.b16 %v4955
    %v5322 = vunpack.c.l.b16 %v4956
    %v5323 = vunpack.c.h.b16 %v4956
    %v5324 = vunpack.c.l.b16 %v4957
    %v5325 = vunpack.c.h.b16 %v4957
    %v5326 = vunpack.c.l.b16 %v4958
    %v5327 = vunpack.c.h.b16 %v4958
    %v5328 = vunpack.c.l.b16 %v4959
    %v5329 = vunpack.c.h.b16 %v4959
    %v5330 = vunpack.c.l.b16 %v4960
    %v5331 = vunpack.c.h.b16 %v4960
    %v5332 = vunpack.c.l.b16 %v4961
    %v5333 = vunpack.c.h.b16 %v4961
    %v5334 = vunpack.c.l.b16 %v4962
    %v5335 = vunpack.c.h.b16 %v4962
    %v5336 = vunpack.c.l.b16 %v4963
    %v5337 = vunpack.c.h.b16 %v4963
    %v5338 = vunpack.c.l.b16 %v4964
    %v5339 = vunpack.c.h.b16 %v4964
    %v5340 = vunpack.c.l.b16 %v4965
    %v5341 = vunpack.c.h.b16 %v4965
    %v5342 = vunpack.c.l.b16 %v4966
    %v5343 = vunpack.c.h.b16 %v4966
    %v5344 = vunpack.c.l.b16 %v4967
    %v5345 = vunpack.c.h.b16 %v4967
    %v5346 = vunpack.c.l.b16 %v4968
    %v5347 = vunpack.c.h.b16 %v4968
    %v5348 = vunpack.c.l.b16 %v4969
    %v5349 = vunpack.c.h.b16 %v4969
    %v5350 = vunpack.c.l.b16 %v4970
    %v5351 = vunpack.c.h.b16 %v4970
    %v5352 = vunpack.c.l.b16 %v4971
    %v5353 = vunpack.c.h.b16 %v4971
    %v5354 = vunpack.c.l.b16 %v4972
    %v5355 = vunpack.c.h.b16 %v4972
    %v5356 = vunpack.c.l.b16 %v4973
    %v5357 = vunpack.c.h.b16 %v4973
    %v5358 = vunpack.c.l.b16 %v4974
    %v5359 = vunpack.c.h.b16 %v4974
    %v5360 = vunpack.c.l.b16 %v4975
    %v5361 = vunpack.c.h.b16 %v4975
    %v5362 = vunpack.c.l.b16 %v4976
    %v5363 = vunpack.c.h.b16 %v4976
    %v5364 = vunpack.c.l.b16 %v4977
    %v5365 = vunpack.c.h.b16 %v4977
    %v5366 = vunpack.c.l.b16 %v4978
    %v5367 = vunpack.c.h.b16 %v4978
    %v5368 = vunpack.c.l.b16 %v4979
    %v5369 = vunpack.c.h.b16 %v4979
    %v5370 = vunpack.c.l.b16 %v4980
    %v5371 = vunpack.c.h.b16 %v4980
    %v5372 = vunpack.c.l.b16 %v4981
    %v5373 = vunpack.c.h.b16 %v4981
    %v5374 = vunpack.c.l.b16 %v4982
    %v5375 = vunpack.c.h.b16 %v4982
    %v5376 = vunpack.c.l.b16 %v4983
    %v5377 = vunpack.c.h.b16 %v4983
    %v5378 = vunpack.c.l.b16 %v4984
    %v5379 = vunpack.c.h.b16 %v4984
    %v5380 = vunpack.c.l.b16 %v4985
    %v5381 = vunpack.c.h.b16 %v4985
    %v5382 = vpack.c.b16 %v5128, %v5126
    %v5383 = vpack.c.b16 %v5129, %v5127
    %v5384 = vpack.c.b16 %v5132, %v5130
    %v5385 = vpack.c.b16 %v5133, %v5131
    %v5386 = vpack.c.b16 %v5136, %v5134
    %v5387 = vpack.c.b16 %v5137, %v5135
    %v5388 = vpack.c.b16 %v5140, %v5138
    %v5389 = vpack.c.b16 %v5141, %v5139
    %v5390 = vpack.c.b16 %v5144, %v5142
    %v5391 = vpack.c.b16 %v5145, %v5143
    %v5392 = vpack.c.b16 %v5148, %v5146
    %v5393 = vpack.c.b16 %v5149, %v5147
    %v5394 = vpack.c.b16 %v5152, %v5150
    %v5395 = vpack.c.b16 %v5153, %v5151
    %v5396 = vpack.c.b16 %v5156, %v5154
    %v5397 = vpack.c.b16 %v5157, %v5155
    %v5398 = vpack.c.b16 %v5160, %v5158
    %v5399 = vpack.c.b16 %v5161, %v5159
    %v5400 = vpack.c.b16 %v5164, %v5162
    %v5401 = vpack.c.b16 %v5165, %v5163
    %v5402 = vpack.c.b16 %v5168, %v5166
    %v5403 = vpack.c.b16 %v5169, %v5167
    %v5404 = vpack.c.b16 %v5172, %v5170
    %v5405 = vpack.c.b16 %v5173, %v5171
    %v5406 = vpack.c.b16 %v5176, %v5174
    %v5407 = vpack.c.b16 %v5177, %v5175
    %v5408 = vpack.c.b16 %v5180, %v5178
    %v5409 = vpack.c.b16 %v5181, %v5179
    %v5410 = vpack.c.b16 %v5184, %v5182
    %v5411 = vpack.c.b16 %v5185, %v5183
    %v5412 = vpack.c.b16 %v5188, %v5186
    %v5413 = vpack.c.b16 %v5189, %v5187
    %v5414 = vpack.c.b16 %v5192, %v5190
    %v5415 = vpack.c.b16 %v5193, %v5191
    %v5416 = vpack.c.b16 %v5196, %v5194
    %v5417 = vpack.c.b16 %v5197, %v5195
    %v5418 = vpack.c.b16 %v5200, %v5198
    %v5419 = vpack.c.b16 %v5201, %v5199
    %v5420 = vpack.c.b16 %v5204, %v5202
    %v5421 = vpack.c.b16 %v5205, %v5203
    %v5422 = vpack.c.b16 %v5208, %v5206
    %v5423 = vpack.c.b16 %v5209, %v5207
    %v5424 = vpack.c.b16 %v5212, %v5210
    %v5425 = vpack.c.b16 %v5213, %v5211
    %v5426 = vpack.c.b16 %v5216, %v5214
    %v5427 = vpack.c.b16 %v5217, %v5215
    %v5428 = vpack.c.b16 %v5220, %v5218
    %v5429 = vpack.c.b16 %v5221, %v5219
    %v5430 = vpack.c.b16 %v5224, %v5222
    %v5431 = vpack.c.b16 %v5225, %v5223
    %v5432 = vpack.c.b16 %v5228, %v5226
    %v5433 = vpack.c.b16 %v5229, %v5227
    %v5434 = vpack.c.b16 %v5232, %v5230
    %v5435 = vpack.c.b16 %v5233, %v5231
    %v5436 = vpack.c.b16 %v5236, %v5234
    %v5437 = vpack.c.b16 %v5237, %v5235
    %v5438 = vpack.c.b16 %v5240, %v5238
    %v5439 = vpack.c.b16 %v5241, %v5239
    %v5440 = vpack.c.b16 %v5244, %v5242
    %v5441 = vpack.c.b16 %v5245, %v5243
    %v5442 = vpack.c.b16 %v5248, %v5246
    %v5443 = vpack.c.b16 %v5249, %v5247
    %v5444 = vpack.c.b16 %v5252, %v5250
    %v5445 = vpack.c.b16 %v5253, %v5251
    %v5446 = vpack.c.b16 %v5256, %v5254
    %v5447 = vpack.c.b16 %v5257, %v5255
    %v5448 = vpack.c.b16 %v5260, %v5258
    %v5449 = vpack.c.b16 %v5261, %v5259
    %v5450 = vpack.c.b16 %v5264, %v5262
    %v5451 = vpack.c.b16 %v5265, %v5263
    %v5452 = vpack.c.b16 %v5268, %v5266
    %v5453 = vpack.c.b16 %v5269, %v5267
    %v5454 = vpack.c.b16 %v5272, %v5270
    %v5455 = vpack.c.b16 %v5273, %v5271
    %v5456 = vpack.c.b16 %v5276, %v5274
    %v5457 = vpack.c.b16 %v5277, %v5275
    %v5458 = vpack.c.b16 %v5280, %v5278
    %v5459 = vpack.c.b16 %v5281, %v5279
    %v5460 = vpack.c.b16 %v5284, %v5282
    %v5461 = vpack.c.b16 %v5285, %v5283
    %v5462 = vpack.c.b16 %v5288, %v5286
    %v5463 = vpack.c.b16 %v5289, %v5287
    %v5464 = vpack.c.b16 %v5292, %v5290
    %v5465 = vpack.c.b16 %v5293, %v5291
    %v5466 = vpack.c.b16 %v5296, %v5294
    %v5467 = vpack.c.b16 %v5297, %v5295
    %v5468 = vpack.c.b16 %v5300, %v5298
    %v5469 = vpack.c.b16 %v5301, %v5299
    %v5470 = vpack.c.b16 %v5304, %v5302
    %v5471 = vpack.c.b16 %v5305, %v5303
    %v5472 = vpack.c.b16 %v5308, %v5306
    %v5473 = vpack.c.b16 %v5309, %v5307
    %v5474 = vpack.c.b16 %v5312, %v5310
    %v5475 = vpack.c.b16 %v5313, %v5311
    %v5476 = vpack.c.b16 %v5316, %v5314
    %v5477 = vpack.c.b16 %v5317, %v5315
    %v5478 = vpack.c.b16 %v5320, %v5318
    %v5479 = vpack.c.b16 %v5321, %v5319
    %v5480 = vpack.c.b16 %v5324, %v5322
    %v5481 = vpack.c.b16 %v5325, %v5323
    %v5482 = vpack.c.b16 %v5328, %v5326
    %v5483 = vpack.c.b16 %v5329, %v5327
    %v5484 = vpack.c.b16 %v5332, %v5330
    %v5485 = vpack.c.b16 %v5333, %v5331
    %v5486 = vpack.c.b16 %v5336, %v5334
    %v5487 = vpack.c.b16 %v5337, %v5335
    %v5488 = vpack.c.b16 %v5340, %v5338
    %v5489 = vpack.c.b16 %v5341, %v5339
    %v5490 = vpack.c.b16 %v5344, %v5342
    %v5491 = vpack.c.b16 %v5345, %v5343
    %v5492 = vpack.c.b16 %v5348, %v5346
    %v5493 = vpack.c.b16 %v5349, %v5347
    %v5494 = vpack.c.b16 %v5352, %v5350
    %v5495 = vpack.c.b16 %v5353, %v5351
    %v5496 = vpack.c.b16 %v5356, %v5354
    %v5497 = vpack.c.b16 %v5357, %v5355
    %v5498 = vpack.c.b16 %v5360, %v5358
    %v5499 = vpack.c.b16 %v5361, %v5359
    %v5500 = vpack.c.b16 %v5364, %v5362
    %v5501 = vpack.c.b16 %v5365, %v5363
    %v5502 = vpack.c.b16 %v5368, %v5366
    %v5503 = vpack.c.b16 %v5369, %v5367
    %v5504 = vpack.c.b16 %v5372, %v5370
    %v5505 = vpack.c.b16 %v5373, %v5371
    %v5506 = vpack.c.b16 %v5376, %v5374
    %v5507 = vpack.c.b16 %v5377, %v5375
    %v5508 = vpack.c.b16 %v5380, %v5378
    %v5509 = vpack.c.b16 %v5381, %v5379
    %5638 = vmatprep.subr.bf16.mxu0 %v5383
    %5639 = vmatpush1.bf16.msra.mxu0 %v5382
    %5640 = vmatprep.subr.bf16.mxu0 %v5385
    %5641 = vmatpush1.bf16.msra.mxu0 %v5384
    %5642 = vmatprep.subr.bf16.mxu0 %v5387
    %5643 = vmatpush1.bf16.msra.mxu0 %v5386
    %5644 = vmatprep.subr.bf16.mxu0 %v5389
    %5645 = vmatpush1.bf16.msra.mxu0 %v5388
    %5646 = vmatprep.subr.bf16.mxu0 %v5391
    %5647 = vmatpush1.bf16.msra.mxu0 %v5390
    %5648 = vmatprep.subr.bf16.mxu0 %v5393
    %5649 = vmatpush1.bf16.msra.mxu0 %v5392
    %5650 = vmatprep.subr.bf16.mxu0 %v5395
    %5651 = vmatpush1.bf16.msra.mxu0 %v5394
    %5652 = vmatprep.subr.bf16.mxu0 %v5397
    %5653 = vmatpush1.bf16.msra.mxu0 %v5396
    %5654 = vmatprep.subr.bf16.mxu0 %v5399
    %5655 = vmatpush1.bf16.msra.mxu0 %v5398
    %5656 = vmatprep.subr.bf16.mxu0 %v5401
    %5657 = vmatpush1.bf16.msra.mxu0 %v5400
    %5658 = vmatprep.subr.bf16.mxu0 %v5403
    %5659 = vmatpush1.bf16.msra.mxu0 %v5402
    %5660 = vmatprep.subr.bf16.mxu0 %v5405
    %5661 = vmatpush1.bf16.msra.mxu0 %v5404
    %5662 = vmatprep.subr.bf16.mxu0 %v5407
    %5663 = vmatpush1.bf16.msra.mxu0 %v5406
    %5664 = vmatprep.subr.bf16.mxu0 %v5409
    %5665 = vmatpush1.bf16.msra.mxu0 %v5408
    %5666 = vmatprep.subr.bf16.mxu0 %v5411
    %5667 = vmatpush1.bf16.msra.mxu0 %v5410
    %5668 = vmatprep.subr.bf16.mxu0 %v5413
    %5669 = vmatpush1.bf16.msra.mxu0 %v5412
    %5670 = vmatprep.mubr.bf16.mxu0 %v4851
    %5671 = vmatmul.mubr.bf16.gmra.mrb[0].mxu0 %v4850
    %v5672 = vpop.f32.mrb[0].mxu0
    %v5673 = vadd.f32 %v4991, %v5672
    %v5674 = vpop.f32.mrb[0].mxu0
    %v5675 = vadd.f32 %v4995, %v5674
    %v5676 = vpop.f32.mrb[0].mxu0
    %v5677 = vpop.f32.mrb[0].mxu0
    %5678 = vdwg.mxu0
    %5679 = vmatprep.subr.bf16.mxu0 %v5415
    %5680 = vmatpush1.bf16.msra.mxu0 %v5414
    %5681 = vmatprep.subr.bf16.mxu0 %v5417
    %5682 = vmatpush1.bf16.msra.mxu0 %v5416
    %5683 = vmatprep.subr.bf16.mxu0 %v5419
    %5684 = vmatpush1.bf16.msra.mxu0 %v5418
    %5685 = vmatprep.subr.bf16.mxu0 %v5421
    %5686 = vmatpush1.bf16.msra.mxu0 %v5420
    %5687 = vmatprep.subr.bf16.mxu0 %v5423
    %5688 = vmatpush1.bf16.msra.mxu0 %v5422
    %5689 = vmatprep.subr.bf16.mxu0 %v5425
    %5690 = vmatpush1.bf16.msra.mxu0 %v5424
    %5691 = vmatprep.subr.bf16.mxu0 %v5427
    %5692 = vmatpush1.bf16.msra.mxu0 %v5426
    %5693 = vmatprep.subr.bf16.mxu0 %v5429
    %5694 = vmatpush1.bf16.msra.mxu0 %v5428
    %5695 = vmatprep.subr.bf16.mxu0 %v5431
    %5696 = vmatpush1.bf16.msra.mxu0 %v5430
    %5697 = vmatprep.subr.bf16.mxu0 %v5433
    %5698 = vmatpush1.bf16.msra.mxu0 %v5432
    %5699 = vmatprep.subr.bf16.mxu0 %v5435
    %5700 = vmatpush1.bf16.msra.mxu0 %v5434
    %5701 = vmatprep.subr.bf16.mxu0 %v5437
    %5702 = vmatpush1.bf16.msra.mxu0 %v5436
    %5703 = vmatprep.subr.bf16.mxu0 %v5439
    %5704 = vmatpush1.bf16.msra.mxu0 %v5438
    %5705 = vmatprep.subr.bf16.mxu0 %v5441
    %5706 = vmatpush1.bf16.msra.mxu0 %v5440
    %5707 = vmatprep.subr.bf16.mxu0 %v5443
    %5708 = vmatpush1.bf16.msra.mxu0 %v5442
    %5709 = vmatprep.subr.bf16.mxu0 %v5445
    %5710 = vmatpush1.bf16.msra.mxu0 %v5444
    %5711 = vmatprep.mubr.bf16.mxu0 %v4853
    %5712 = vmatmul.mubr.bf16.gmra.mrb[0].mxu0 %v4852
    %v5713 = vpop.f32.mrb[0].mxu0
    %v5714 = vadd.f32 %v5673, %v5713
    %v5715 = vpop.f32.mrb[0].mxu0
    %v5716 = vadd.f32 %v5675, %v5715
    %v5717 = vpop.f32.mrb[0].mxu0
    %v5718 = vpop.f32.mrb[0].mxu0
    %5719 = vdwg.mxu0
    %5720 = vmatprep.subr.bf16.mxu0 %v5447
    %5721 = vmatpush1.bf16.msra.mxu0 %v5446
    %5722 = vmatprep.subr.bf16.mxu0 %v5449
    %5723 = vmatpush1.bf16.msra.mxu0 %v5448
    %5724 = vmatprep.subr.bf16.mxu0 %v5451
    %5725 = vmatpush1.bf16.msra.mxu0 %v5450
    %5726 = vmatprep.subr.bf16.mxu0 %v5453
    %5727 = vmatpush1.bf16.msra.mxu0 %v5452
    %5728 = vmatprep.subr.bf16.mxu0 %v5455
    %5729 = vmatpush1.bf16.msra.mxu0 %v5454
    %5730 = vmatprep.subr.bf16.mxu0 %v5457
    %5731 = vmatpush1.bf16.msra.mxu0 %v5456
    %5732 = vmatprep.subr.bf16.mxu0 %v5459
    %5733 = vmatpush1.bf16.msra.mxu0 %v5458
    %5734 = vmatprep.subr.bf16.mxu0 %v5461
    %5735 = vmatpush1.bf16.msra.mxu0 %v5460
    %5736 = vmatprep.subr.bf16.mxu0 %v5463
    %5737 = vmatpush1.bf16.msra.mxu0 %v5462
    %5738 = vmatprep.subr.bf16.mxu0 %v5465
    %5739 = vmatpush1.bf16.msra.mxu0 %v5464
    %5740 = vmatprep.subr.bf16.mxu0 %v5467
    %5741 = vmatpush1.bf16.msra.mxu0 %v5466
    %5742 = vmatprep.subr.bf16.mxu0 %v5469
    %5743 = vmatpush1.bf16.msra.mxu0 %v5468
    %5744 = vmatprep.subr.bf16.mxu0 %v5471
    %5745 = vmatpush1.bf16.msra.mxu0 %v5470
    %5746 = vmatprep.subr.bf16.mxu0 %v5473
    %5747 = vmatpush1.bf16.msra.mxu0 %v5472
    %5748 = vmatprep.subr.bf16.mxu0 %v5475
    %5749 = vmatpush1.bf16.msra.mxu0 %v5474
    %5750 = vmatprep.subr.bf16.mxu0 %v5477
    %5751 = vmatpush1.bf16.msra.mxu0 %v5476
    %5752 = vmatprep.mubr.bf16.mxu0 %v4855
    %5753 = vmatmul.mubr.bf16.gmra.mrb[0].mxu0 %v4854
    %v5754 = vpop.f32.mrb[0].mxu0
    %v5755 = vadd.f32 %v5714, %v5754
    %v5756 = vpop.f32.mrb[0].mxu0
    %v5757 = vadd.f32 %v5716, %v5756
    %v5758 = vpop.f32.mrb[0].mxu0
    %v5759 = vpop.f32.mrb[0].mxu0
    %5760 = vdwg.mxu0
    %5761 = vmatprep.subr.bf16.mxu0 %v5479
    %5762 = vmatpush1.bf16.msra.mxu0 %v5478
    %5763 = vmatprep.subr.bf16.mxu0 %v5481
    %5764 = vmatpush1.bf16.msra.mxu0 %v5480
    %5765 = vmatprep.subr.bf16.mxu0 %v5483
    %5766 = vmatpush1.bf16.msra.mxu0 %v5482
    %5767 = vmatprep.subr.bf16.mxu0 %v5485
    %5768 = vmatpush1.bf16.msra.mxu0 %v5484
    %5769 = vmatprep.subr.bf16.mxu0 %v5487
    %5770 = vmatpush1.bf16.msra.mxu0 %v5486
    %5771 = vmatprep.subr.bf16.mxu0 %v5489
    %5772 = vmatpush1.bf16.msra.mxu0 %v5488
    %5773 = vmatprep.subr.bf16.mxu0 %v5491
    %5774 = vmatpush1.bf16.msra.mxu0 %v5490
    %5775 = vmatprep.subr.bf16.mxu0 %v5493
    %5776 = vmatpush1.bf16.msra.mxu0 %v5492
    %5777 = vmatprep.subr.bf16.mxu0 %v5495
    %5778 = vmatpush1.bf16.msra.mxu0 %v5494
    %5779 = vmatprep.subr.bf16.mxu0 %v5497
    %5780 = vmatpush1.bf16.msra.mxu0 %v5496
    %5781 = vmatprep.subr.bf16.mxu0 %v5499
    %5782 = vmatpush1.bf16.msra.mxu0 %v5498
    %5783 = vmatprep.subr.bf16.mxu0 %v5501
    %5784 = vmatpush1.bf16.msra.mxu0 %v5500
    %5785 = vmatprep.subr.bf16.mxu0 %v5503
    %5786 = vmatpush1.bf16.msra.mxu0 %v5502
    %5787 = vmatprep.subr.bf16.mxu0 %v5505
    %5788 = vmatpush1.bf16.msra.mxu0 %v5504
    %5789 = vmatprep.subr.bf16.mxu0 %v5507
    %5790 = vmatpush1.bf16.msra.mxu0 %v5506
    %5791 = vmatprep.subr.bf16.mxu0 %v5509
    %5792 = vmatpush1.bf16.msra.mxu0 %v5508
    %5793 = vmatprep.mubr.bf16.mxu0 %v4857
    %5794 = vmatmul.mubr.bf16.gmra.mrb[0].mxu0 %v4856
    %v5795 = vpop.f32.mrb[0].mxu0
    %v5796 = vadd.f32 %v5755, %v5795
    %v5797 = vpop.f32.mrb[0].mxu0
    %v5798 = vadd.f32 %v5757, %v5797
    %v5799 = vpop.f32.mrb[0].mxu0
    %v5800 = vpop.f32.mrb[0].mxu0
    %5801 = vdwg.mxu0
    %v5802 = vmax.f32 %v5796, 0.0
    %v5803 = vmax.f32 %v5798, 0.0
    %v5804 = vpack.c.bf16 %v5802, %v5802
    %v5805 = vpack.c.bf16 %v5803, %v5803
    %v5806 = vld [vmem:[%s7] sm:$0xf]
    %v5807 = vld [vmem:[%s7 + $0x4] sm:$0xf]
    %v5808 = vld [vmem:[%s7 + $0x8] sm:$0xf]
    %v5809 = vld [vmem:[%s7 + $0xc] sm:$0xf]
    %v5810 = vld [vmem:[%s7 + $0x10] sm:$0xf]
    %v5811 = vld [vmem:[%s7 + $0x14] sm:$0xf]
    %v5812 = vld [vmem:[%s7 + $0x18] sm:$0xf]
    %v5813 = vld [vmem:[%s7 + $0x1c] sm:$0xf]
    %v5814 = vld [vmem:[%s7 + $0x20] sm:$0xf]
    %v5815 = vld [vmem:[%s7 + $0x24] sm:$0xf]
    %v5816 = vld [vmem:[%s7 + $0x28] sm:$0xf]
    %v5817 = vld [vmem:[%s7 + $0x2c] sm:$0xf]
    %v5818 = vld [vmem:[%s7 + $0x30] sm:$0xf]
    %v5819 = vld [vmem:[%s7 + $0x34] sm:$0xf]
    %v5820 = vld [vmem:[%s7 + $0x38] sm:$0xf]
    %v5821 = vld [vmem:[%s7 + $0x3c] sm:$0xf]
    %v5822 = vld [vmem:[%s7 + $0x40] sm:$0xf]
    %v5823 = vld [vmem:[%s7 + $0x44] sm:$0xf]
    %v5824 = vld [vmem:[%s7 + $0x48] sm:$0xf]
    %v5825 = vld [vmem:[%s7 + $0x4c] sm:$0xf]
    %v5826 = vld [vmem:[%s7 + $0x50] sm:$0xf]
    %v5827 = vld [vmem:[%s7 + $0x54] sm:$0xf]
    %v5828 = vld [vmem:[%s7 + $0x58] sm:$0xf]
    %v5829 = vld [vmem:[%s7 + $0x5c] sm:$0xf]
    %v5830 = vld [vmem:[%s7 + $0x60] sm:$0xf]
    %v5831 = vld [vmem:[%s7 + $0x64] sm:$0xf]
    %v5832 = vld [vmem:[%s7 + $0x68] sm:$0xf]
    %v5833 = vld [vmem:[%s7 + $0x6c] sm:$0xf]
    %v5834 = vld [vmem:[%s7 + $0x70] sm:$0xf]
    %v5835 = vld [vmem:[%s7 + $0x74] sm:$0xf]
    %v5836 = vld [vmem:[%s7 + $0x78] sm:$0xf]
    %v5837 = vld [vmem:[%s7 + $0x7c] sm:$0xf]
    %v5838 = vld [vmem:[#allocation13] sm:$0x1]
    %v5840 = vlaneseq
    %v5841 = vshrl.u32 %v5840, 7
    %v5842 = vsub.s32 0, %v5841
    %v5843 = vrot.slane %v5838, %v5842
    %v5877 = vunpack.c.l.b16 %v5806
    %v5878 = vunpack.c.l.b16 %v5807
    %v5879 = vunpack.c.l.b16 %v5808
    %v5880 = vunpack.c.l.b16 %v5809
    %v5881 = vunpack.c.l.b16 %v5810
    %v5882 = vunpack.c.l.b16 %v5811
    %v5883 = vunpack.c.l.b16 %v5812
    %v5884 = vunpack.c.l.b16 %v5813
    %v5885 = vunpack.c.l.b16 %v5814
    %v5886 = vunpack.c.l.b16 %v5815
    %v5887 = vunpack.c.l.b16 %v5816
    %v5888 = vunpack.c.l.b16 %v5817
    %v5889 = vunpack.c.l.b16 %v5818
    %v5890 = vunpack.c.l.b16 %v5819
    %v5891 = vunpack.c.l.b16 %v5820
    %v5892 = vunpack.c.l.b16 %v5821
    %v5893 = vunpack.c.l.b16 %v5822
    %v5894 = vunpack.c.l.b16 %v5823
    %v5895 = vunpack.c.l.b16 %v5824
    %v5896 = vunpack.c.l.b16 %v5825
    %v5897 = vunpack.c.l.b16 %v5826
    %v5898 = vunpack.c.l.b16 %v5827
    %v5899 = vunpack.c.l.b16 %v5828
    %v5900 = vunpack.c.l.b16 %v5829
    %v5901 = vunpack.c.l.b16 %v5830
    %v5902 = vunpack.c.l.b16 %v5831
    %v5903 = vunpack.c.l.b16 %v5832
    %v5904 = vunpack.c.l.b16 %v5833
    %v5905 = vunpack.c.l.b16 %v5834
    %v5906 = vunpack.c.l.b16 %v5835
    %v5907 = vunpack.c.l.b16 %v5836
    %v5908 = vunpack.c.l.b16 %v5837
    %v5909 = vpack.c.b16 %v5878, %v5877
    %v5910 = vpack.c.b16 %v5880, %v5879
    %v5911 = vpack.c.b16 %v5882, %v5881
    %v5912 = vpack.c.b16 %v5884, %v5883
    %v5913 = vpack.c.b16 %v5886, %v5885
    %v5914 = vpack.c.b16 %v5888, %v5887
    %v5915 = vpack.c.b16 %v5890, %v5889
    %v5916 = vpack.c.b16 %v5892, %v5891
    %v5917 = vpack.c.b16 %v5894, %v5893
    %v5918 = vpack.c.b16 %v5896, %v5895
    %v5919 = vpack.c.b16 %v5898, %v5897
    %v5920 = vpack.c.b16 %v5900, %v5899
    %v5921 = vpack.c.b16 %v5902, %v5901
    %v5922 = vpack.c.b16 %v5904, %v5903
    %v5923 = vpack.c.b16 %v5906, %v5905
    %v5924 = vpack.c.b16 %v5908, %v5907
    %5941 = vmatprep.subr.bf16.mxu0 0
    %5942 = vmatpush1.bf16.msra.mxu0 %v5909
    %5943 = vmatprep.subr.bf16.mxu0 0
    %5944 = vmatpush1.bf16.msra.mxu0 %v5910
    %5945 = vmatprep.subr.bf16.mxu0 0
    %5946 = vmatpush1.bf16.msra.mxu0 %v5911
    %5947 = vmatprep.subr.bf16.mxu0 0
    %5948 = vmatpush1.bf16.msra.mxu0 %v5912
    %5949 = vmatprep.subr.bf16.mxu0 0
    %5950 = vmatpush1.bf16.msra.mxu0 %v5913
    %5951 = vmatprep.subr.bf16.mxu0 0
    %5952 = vmatpush1.bf16.msra.mxu0 %v5914
    %5953 = vmatprep.subr.bf16.mxu0 0
    %5954 = vmatpush1.bf16.msra.mxu0 %v5915
    %5955 = vmatprep.subr.bf16.mxu0 0
    %5956 = vmatpush1.bf16.msra.mxu0 %v5916
    %5957 = vmatprep.subr.bf16.mxu0 0
    %5958 = vmatpush1.bf16.msra.mxu0 %v5917
    %5959 = vmatprep.subr.bf16.mxu0 0
    %5960 = vmatpush1.bf16.msra.mxu0 %v5918
    %5961 = vmatprep.subr.bf16.mxu0 0
    %5962 = vmatpush1.bf16.msra.mxu0 %v5919
    %5963 = vmatprep.subr.bf16.mxu0 0
    %5964 = vmatpush1.bf16.msra.mxu0 %v5920
    %5965 = vmatprep.subr.bf16.mxu0 0
    %5966 = vmatpush1.bf16.msra.mxu0 %v5921
    %5967 = vmatprep.subr.bf16.mxu0 0
    %5968 = vmatpush1.bf16.msra.mxu0 %v5922
    %5969 = vmatprep.subr.bf16.mxu0 0
    %5970 = vmatpush1.bf16.msra.mxu0 %v5923
    %5971 = vmatprep.subr.bf16.mxu0 0
    %5972 = vmatpush1.bf16.msra.mxu0 %v5924
    %5973 = vmatprep.mubr.bf16.mxu0 %v5805
    %5974 = vmatmul.mubr.bf16.gmra.mrb[0].mxu0 %v5804
    %v5975 = vpop.f32.mrb[0].mxu0
    %v5976 = vadd.f32 %v5843, %v5975
    %v5977 = vpop.f32.mrb[0].mxu0
    %v5978 = vpop.f32.mrb[0].mxu0
    %v5979 = vpop.f32.mrb[0].mxu0
    %5980 = vdwg.mxu0
    %v5981 = vmax.f32 %v5976, 0.0
    %v5982 = vpack.c.bf16 %v5981, %v5981
    %v5983 = vld [vmem:[%s9] sm:$0xf]
    %v5984 = vld [vmem:[%s9 + $0x4] sm:$0xf]
    %v5985 = vld [vmem:[%s9 + $0x8] sm:$0xf]
    %v5986 = vld [vmem:[%s9 + $0xc] sm:$0xf]
    %v5987 = vld [vmem:[%s9 + $0x10] sm:$0xf]
    %v5988 = vld [vmem:[%s9 + $0x14] sm:$0xf]
    %v5989 = vld [vmem:[%s9 + $0x18] sm:$0xf]
    %v5990 = vld [vmem:[%s9 + $0x1c] sm:$0xf]
    %v5991 = vld [vmem:[#allocation15] sm:$0x1]
    %v5993 = vlaneseq
    %v5994 = vshrl.u32 %v5993, 7
    %v5995 = vsub.s32 0, %v5994
    %v5996 = vrot.slane %v5991, %v5995
    %v6006 = vunpack.c.l.b16 %v5983
    %v6007 = vunpack.c.l.b16 %v5984
    %v6008 = vunpack.c.l.b16 %v5985
    %v6009 = vunpack.c.l.b16 %v5986
    %v6010 = vunpack.c.l.b16 %v5987
    %v6011 = vunpack.c.l.b16 %v5988
    %v6012 = vunpack.c.l.b16 %v5989
    %v6013 = vunpack.c.l.b16 %v5990
    %v6014 = vpack.c.b16 %v6007, %v6006
    %v6015 = vpack.c.b16 %v6009, %v6008
    %v6016 = vpack.c.b16 %v6011, %v6010
    %v6017 = vpack.c.b16 %v6013, %v6012
    %vm6022 = vcmask 523264
    %v6024 = vsel %vm6022, %v5982, 0
    %6026 = vmatprep.subr.bf16.mxu0 0
    %6027 = vmatpush1.bf16.msra.mxu0 %v6014
    %6028 = vmatprep.subr.bf16.mxu0 0
    %6029 = vmatpush1.bf16.msra.mxu0 %v6015
    %6030 = vmatprep.subr.bf16.mxu0 0
    %6031 = vmatpush1.bf16.msra.mxu0 %v6016
    %6032 = vmatprep.subr.bf16.mxu0 0
    %6033 = vmatpush1.bf16.msra.mxu0 %v6017
    %6034 = vmatprep.subr.bf16.mxu0 0
    %6035 = vmatpush1.bf16.msra.mxu0 0
    %6036 = vmatprep.subr.bf16.mxu0 0
    %6037 = vmatpush1.bf16.msra.mxu0 0
    %6038 = vmatprep.subr.bf16.mxu0 0
    %6039 = vmatpush1.bf16.msra.mxu0 0
    %6040 = vmatprep.subr.bf16.mxu0 0
    %6041 = vmatpush1.bf16.msra.mxu0 0
    %6042 = vmatprep.subr.bf16.mxu0 0
    %6043 = vmatpush1.bf16.msra.mxu0 0
    %6044 = vmatprep.subr.bf16.mxu0 0
    %6045 = vmatpush1.bf16.msra.mxu0 0
    %6046 = vmatprep.subr.bf16.mxu0 0
    %6047 = vmatpush1.bf16.msra.mxu0 0
    %6048 = vmatprep.subr.bf16.mxu0 0
    %6049 = vmatpush1.bf16.msra.mxu0 0
    %6050 = vmatprep.subr.bf16.mxu0 0
    %6051 = vmatpush1.bf16.msra.mxu0 0
    %6052 = vmatprep.subr.bf16.mxu0 0
    %6053 = vmatpush1.bf16.msra.mxu0 0
    %6054 = vmatprep.subr.bf16.mxu0 0
    %6055 = vmatpush1.bf16.msra.mxu0 0
    %6056 = vmatprep.subr.bf16.mxu0 0
    %6057 = vmatpush1.bf16.msra.mxu0 0
    %6058 = vmatprep.mubr.bf16.mxu0 0
    %6059 = vmatmul.mubr.bf16.gmra.mrb[0].mxu0 %v6024
    %v6060 = vpop.f32.mrb[0].mxu0
    %v6061 = vadd.f32 %v5996, %v6060
    %v6062 = vpop.f32.mrb[0].mxu0
    %v6063 = vpop.f32.mrb[0].mxu0
    %v6064 = vpop.f32.mrb[0].mxu0
    %6065 = vdwg.mxu0
    %v6066 = vmax.f32 %v6061, 0.0
    %v6067 = vpack.c.bf16 %v6066, %v6066
    %v6068 = vld [vmem:[%s11] sm:$0xf]
    %v6069 = vld [vmem:[%s11 + $0x4] sm:$0xf]
    %v6070 = vld [vmem:[#allocation16] sm:$0x1]
    %v6072 = vlaneseq
    %v6073 = vshrl.u32 %v6072, 7
    %v6074 = vsub.s32 0, %v6073
    %v6075 = vrot.slane %v6070, %v6074
    %v6079 = vunpack.c.l.b16 %v6068
    %v6080 = vunpack.c.l.b16 %v6069
    %v6081 = vpack.c.b16 %v6080, %v6079
    %vm6083 = vcmask 130048
    %v6085 = vsel %vm6083, %v6067, 0
    %6087 = vmatprep.subr.bf16.mxu0 0
    %6088 = vmatpush1.bf16.msra.mxu0 %v6081
    %6089 = vmatprep.subr.bf16.mxu0 0
    %6090 = vmatpush1.bf16.msra.mxu0 0
    %6091 = vmatprep.subr.bf16.mxu0 0
    %6092 = vmatpush1.bf16.msra.mxu0 0
    %6093 = vmatprep.subr.bf16.mxu0 0
    %6094 = vmatpush1.bf16.msra.mxu0 0
    %6095 = vmatprep.subr.bf16.mxu0 0
    %6096 = vmatpush1.bf16.msra.mxu0 0
    %6097 = vmatprep.subr.bf16.mxu0 0
    %6098 = vmatpush1.bf16.msra.mxu0 0
    %6099 = vmatprep.subr.bf16.mxu0 0
    %6100 = vmatpush1.bf16.msra.mxu0 0
    %6101 = vmatprep.subr.bf16.mxu0 0
    %6102 = vmatpush1.bf16.msra.mxu0 0
    %6103 = vmatprep.subr.bf16.mxu0 0
    %6104 = vmatpush1.bf16.msra.mxu0 0
    %6105 = vmatprep.subr.bf16.mxu0 0
    %6106 = vmatpush1.bf16.msra.mxu0 0
    %6107 = vmatprep.subr.bf16.mxu0 0
    %6108 = vmatpush1.bf16.msra.mxu0 0
    %6109 = vmatprep.subr.bf16.mxu0 0
    %6110 = vmatpush1.bf16.msra.mxu0 0
    %6111 = vmatprep.subr.bf16.mxu0 0
    %6112 = vmatpush1.bf16.msra.mxu0 0
    %6113 = vmatprep.subr.bf16.mxu0 0
    %6114 = vmatpush1.bf16.msra.mxu0 0
    %6115 = vmatprep.subr.bf16.mxu0 0
    %6116 = vmatpush1.bf16.msra.mxu0 0
    %6117 = vmatprep.subr.bf16.mxu0 0
    %6118 = vmatpush1.bf16.msra.mxu0 0
    %6119 = vmatprep.mubr.bf16.mxu0 0
    %6120 = vmatmul.mubr.bf16.gmra.mrb[0].mxu0 %v6085
    %v6121 = vpop.f32.mrb[0].mxu0
    %v6122 = vadd.f32 %v6075, %v6121
    %v6123 = vpop.f32.mrb[0].mxu0
    %v6124 = vpop.f32.mrb[0].mxu0
    %v6125 = vpop.f32.mrb[0].mxu0
    %6126 = vdwg.mxu0
    %vm6127 = vcmask 15360
    %6128 = vst.msk [vmem:[%s13] sm:$0xff] %vm6127, %v6122
    // Predicated region
    $region94: #{tpu_custom_call.1} parent=1 // pred_check
      _
    $region95: #{tpu_custom_call.1} parent=1 // pred_check_branch
      %6130 = sbr.rel (0) target = $region97
    $region96: #{tpu_custom_call.1} parent=1 // pred_region
      _
    $region97: #{tpu_custom_call.1} parent=1 // pred_fallthru
      _
    // Predicated region
    $region98: #{tpu_custom_call.1} parent=1 // pred_check
      _
    $region99: #{tpu_custom_call.1} parent=1 // pred_check_branch
      %6132 = sbr.rel (0) target = $region101
    $region100: #{tpu_custom_call.1} parent=1 // pred_region
      _
    $region101: #{tpu_custom_call.1} parent=1 // pred_fallthru
      _
    %6133 = vsyncpa [#allocation3], 1
    %6134 = vsyncpa [#allocation5], 1
    %6135 = vsyncpa [#allocation8], 1
    %6136 = vsyncpa [#allocation11], 1
    %6137 = vsyncpa [#allocation14], 1
    %6138 = vsyncpa [#allocation17], 1

</llo_original>
